<compile_context>
chip_gen: v5e
topology: v5e:2x2
jax: 0.10.0
libtpu: 0.0.40
codegen_flags: <defaults>
</compile_context>

<pallas_src>
import numpy as np
import jax
import jax.numpy as jnp
from jax.experimental import pallas as pl
from jax.experimental.pallas import tpu as pltpu

CP = 128          # padded channel width (lane dimension)
SUB = 16          # node-count padding (bf16 sublane pack)
N_CH = [1, 8, 16, 16, 16, 32, 32, 32]   # ncars: conv1..conv7 (cin, cout) chain


def _round_up(n, m):
    return ((n + m - 1) // m) * m


# --------------------------- Pallas fused stage ------------------------------

def _make_fused_kernel(num_layers, K, n_pad, n_real, sc_save_at, sc_add_at,
                       with_tmd):
    """Fused [SplineConv(mean aggr, no root/bias) + ELU + BatchNorm] x num_layers,
    with optional residual snapshot/add and TMD Laplacian update."""
    inv_n = np.float32(1.0 / n_real)

    def kernel(*refs):
        if with_tmd:
            (x_ref, a_ref, w_ref, g_ref, b_ref, invd_ref, mask_ref, tmd_ref,
             o_ref, xw_ref) = refs
        else:
            (x_ref, a_ref, w_ref, g_ref, b_ref, invd_ref, mask_ref,
             o_ref, xw_ref) = refs
            tmd_ref = None

        a_bf = a_ref[...]          # [NP, K*NP] bf16 flattened per-kernel adjacency
        inv_deg = invd_ref[...]    # [NP, 1]  f32 reciprocal in-degree
        mask = mask_ref[...]       # [NP, 1]  f32 (1 real node, 0 row padding)

        h = x_ref[...]             # [NP, CP] f32, resident across all layers
        h_sc = h
        for l in range(num_layers):
            if l == sc_save_at:
                h_sc = h
            h_bf = h.astype(jnp.bfloat16)
            # Stage x @ W_k for every kernel index into one VMEM slab, then one
            # wide bf16 MXU matmul against the flattened adjacency.
            for k in range(K):
                xw = jnp.dot(h_bf, w_ref[l * K + k],
                             preferred_element_type=jnp.float32)
                xw_ref[pl.ds(k * n_pad, n_pad), :] = xw.astype(jnp.bfloat16)
            acc = jnp.dot(a_bf, xw_ref[...], preferred_element_type=jnp.float32)
            hm = acc * inv_deg                                    # mean aggregation
            he = jnp.where(hm > 0, hm,
                           jnp.exp(jnp.minimum(hm, 0.0)) - 1.0)   # ELU (alpha=1)
            # BatchNorm with per-call (training) statistics, f32 epilogue,
            # padded rows excluded via mask.
            mu = jnp.sum(he * mask, axis=0, keepdims=True) * inv_n
            dm = (he - mu) * mask
            var = jnp.sum(dm * dm, axis=0, keepdims=True) * inv_n
            hn = (he - mu) * jax.lax.rsqrt(var + 1e-5)
            h = (hn * g_ref[l] + b_ref[l]) * mask
            if l == sc_add_at:
                h = h + h_sc                                      # residual add
            if with_tmd and l == num_layers - 1:
                # x <- (I + dt * kron(L, I_{N/4})) @ x  (== original reshape form)
                h = jnp.dot(tmd_ref[...], h, preferred_element_type=jnp.float32)
        o_ref[...] = h

    return kernel


def fused_spline_stage(h_p, a_flat, w_stack, gamma, beta, inv_deg, mask,
                       n_real, sc_save_at, sc_add_at, tmd=None):
    """h_p [NP,CP] f32, a_flat [NP,K*NP] bf16, w_stack [L,K,CP,CP] bf16,
    gamma/beta [L,1,CP] f32, inv_deg/mask [NP,1] f32, tmd [NP,NP] f32 or None."""
    n_pad = h_p.shape[0]
    num_layers, K = w_stack.shape[0], w_stack.shape[1]
    w_flat = w_stack.reshape(num_layers * K, CP, CP)

    inputs = [h_p, a_flat, w_flat, gamma, beta, inv_deg, mask]
    if tmd is not None:
        inputs.append(tmd)

    def full_spec(arr):
        nd = arr.ndim
        return pl.BlockSpec(arr.shape, lambda i, _n=nd: (0,) * _n)

    kernel = _make_fused_kernel(num_layers, K, n_pad, n_real,
                                sc_save_at, sc_add_at, tmd is not None)
    return pl.pallas_call(
        kernel,
        out_shape=jax.ShapeDtypeStruct((n_pad, CP), jnp.float32),
        grid_spec=pltpu.PrefetchScalarGridSpec(
            num_scalar_prefetch=0,
            grid=(1,),
            in_specs=[full_spec(a) for a in inputs],
            out_specs=pl.BlockSpec((n_pad, CP), lambda i: (0, 0)),
            scratch_shapes=[pltpu.VMEM((K * n_pad, CP), jnp.bfloat16)],
        ),
        compiler_params=pltpu.CompilerParams(dimension_semantics=("arbitrary",)),
    )(*inputs)


# --------------------------- device-side graph glue ---------------------------

def cartesian(pos, edge_index):
    """torch_geometric.transforms.Cartesian(norm=True, cat=False)."""
    cart = pos[edge_index[0]] - pos[edge_index[1]]
    max_val = jnp.maximum(jnp.max(jnp.abs(cart)), 1e-9)
    return cart / (2.0 * max_val) + 0.5


def spline_dense_adj_flat(edge_index, edge_attr, n_pad, kernel_size=2):
    """Degree-1 open B-spline basis scattered to a flattened dense adjacency
    A_flat[NP, K*NP] (bf16) plus reciprocal in-degree [NP, 1] (f32)."""
    src, dst = edge_index[0], edge_index[1]
    u = jnp.clip(edge_attr, 0.0, 1.0 - 1e-6).astype(jnp.float32)
    E, dim = u.shape
    v = u * (kernel_size - 1)
    lo = jnp.floor(v).astype(jnp.int32)
    frac = v - lo
    K = kernel_size ** dim
    A = jnp.zeros((K, n_pad, n_pad), jnp.float32)
    for bits in range(2 ** dim):
        w = jnp.ones((E,), jnp.float32)
        idx = jnp.zeros((E,), jnp.int32)
        for d in range(dim):
            b = (bits >> d) & 1
            w = w * (frac[:, d] if b else (1.0 - frac[:, d]))
            idx = idx + (lo[:, d] + b) * (kernel_size ** d)
        A = A.at[idx, dst, src].add(w)
    deg = jnp.zeros((n_pad,), jnp.float32).at[dst].add(1.0)
    inv_deg = (1.0 / jnp.maximum(deg, 1.0)).reshape(n_pad, 1)
    a_flat = jnp.transpose(A, (1, 0, 2)).reshape(n_pad, K * n_pad)
    return a_flat.astype(jnp.bfloat16), inv_deg


def tmd_map(x, adj, key):
    """Deterministic re-implementation of GraphRes.TMD_map (4x4 Laplacian L)."""
    # TODO(synk): original uses torch RNG, in-place Tensor.apply_ and a shape-
    # inconsistent transpose/broadcast propagation; replaced with jax.random and
    # an A @ x propagation step of the same spirit.
    N = x.shape[0]
    bs = 4
    iterations = 4
    rx = x[:, :1]
    keys = jax.random.split(key, 3 * iterations)
    Ks = []
    for i in range(iterations):
        rx = rx + adj @ rx
        mean = jnp.mean(rx)
        var = jnp.mean((rx - mean) ** 2)
        nrx = (rx - mean) / jnp.sqrt(var + 1e-12)
        rff_w = jax.random.normal(keys[3 * i], (N // bs, 1))
        rff_b = jax.random.normal(keys[3 * i + 1], (bs, 1)) * (2.0 * np.pi)
        qt = jnp.cos(nrx.reshape(bs, N // bs) @ rff_w + rff_b)
        t = jax.random.uniform(keys[3 * i + 2], (bs, 1), minval=-1.0, maxval=1.0)
        sgn = jnp.where(qt + t < 0, 0.0, 1.0)            # {-1,1} -> {0,1}
        Keps = (jnp.abs(sgn[:, None, 0] - sgn[None, :, 0]) > 0).astype(jnp.float32)
        Ks.append(Keps)                                   # cdist(., p=0)
    K = sum(Ks) / iterations
    eps = 0.25
    q = jnp.maximum(K.sum(axis=1), 1e-6)
    D_eps = jnp.diag(eps / q)
    K_tilde = K @ D_eps
    D_tilde = jnp.diag(jnp.maximum(K_tilde.sum(axis=1), 1e-6))
    L = (1.0 / eps) * jnp.linalg.inv(D_tilde) @ K_tilde - jnp.eye(bs)
    return L


# --------------------------- host-side (numpy) pooling structure -------------

def _cartesian_np(pos, edge_index):
    cart = pos[edge_index[0]] - pos[edge_index[1]]
    m = max(float(np.max(np.abs(cart))), 1e-9)
    return (cart / (2.0 * m) + 0.5).astype(np.float32)


def host_pool5_structure(pos_np, batch_np, ei_np, voxel_size, grid_wh):
    """MaxPooling(pooling_size, transform=Cartesian): voxel clusters, coarse pos,
    coarse batch, coarse edges and coarse edge_attr — all on host, once."""
    nvx = int(np.ceil(grid_wh[0] / voxel_size[0]))
    nvy = int(np.ceil(grid_wh[1] / voxel_size[1]))
    vx = np.clip(np.floor(pos_np[:, 0] / voxel_size[0]).astype(np.int64), 0, nvx - 1)
    vy = np.clip(np.floor(pos_np[:, 1] / voxel_size[1]).astype(np.int64), 0, nvy - 1)
    raw = batch_np.astype(np.int64) * (nvx * nvy) + vy * nvx + vx
    uniq, inv = np.unique(raw, return_inverse=True)
    C = int(uniq.shape[0])
    counts = np.bincount(inv, minlength=C).astype(np.float64)
    new_pos = np.zeros((C, pos_np.shape[1]), np.float64)
    np.add.at(new_pos, inv, pos_np.astype(np.float64))
    new_pos = (new_pos / counts[:, None]).astype(np.float32)
    new_batch = np.zeros((C,), np.int64)
    new_batch[inv] = batch_np.astype(np.int64)
    src_c, dst_c = inv[ei_np[0]], inv[ei_np[1]]
    keep = src_c != dst_c
    if not np.any(keep):
        # TODO(synk): pyg keeps an edgeless coarse graph; dense kernel needs >=1 edge.
        pairs = np.array([[0], [min(1, C - 1)]], np.int64)
    else:
        pairs = np.unique(np.stack([src_c[keep], dst_c[keep]]), axis=1)
    ea2 = _cartesian_np(new_pos, pairs)
    return inv.astype(np.int32), C, new_pos, new_batch, pairs.astype(np.int32), ea2


def host_pool7_segments(pos2_np, batch2_np, voxel_size, grid_wh, size):
    """MaxPoolingX(input_shape[:2] // 4, size=16) segment ids."""
    nvx = int(np.ceil(grid_wh[0] / voxel_size[0]))
    nvy = int(np.ceil(grid_wh[1] / voxel_size[1]))
    vx = np.clip(np.floor(pos2_np[:, 0] / voxel_size[0]).astype(np.int64), 0, nvx - 1)
    vy = np.clip(np.floor(pos2_np[:, 1] / voxel_size[1]).astype(np.int64), 0, nvy - 1)
    cl = np.clip(vy * nvx + vx, 0, size - 1)
    return (batch2_np.astype(np.int64) * size + cl).astype(np.int32)


# --------------------------- parameters & forward ----------------------------

def init_params(key, dim=3, kernel_size=2, num_outputs=2):
    K = kernel_size ** dim
    keys = jax.random.split(key, 9)

    def stack(layer_ids, ks):
        L = len(layer_ids)
        w = jnp.zeros((L, K, CP, CP), jnp.float32)
        g = jnp.zeros((L, 1, CP), jnp.float32)
        b = jnp.zeros((L, 1, CP), jnp.float32)
        for j, i in enumerate(layer_ids):
            cin, cout = N_CH[i], N_CH[i + 1]
            wi = jax.random.normal(ks[j], (K, cin, cout), jnp.float32)
            wi = wi / np.sqrt(cin * K)
            w = w.at[j, :, :cin, :cout].set(wi)
            g = g.at[j, 0, :cout].set(1.0)
        return w.astype(jnp.bfloat16), g, b       # bf16 MXU weight storage

    w1, g1, b1 = stack([0, 1, 2, 3, 4], keys[0:5])
    w2, g2, b2 = stack([5, 6], keys[5:7])
    fc_in = 32 * 16
    return {
        "w1": w1, "gamma1": g1, "beta1": b1,
        "w2": w2, "gamma2": g2, "beta2": b2,
        "fc_w": jax.random.normal(keys[7], (fc_in, num_outputs), jnp.float32)
                / np.sqrt(fc_in),
        "dt_0": jnp.asarray(0.1, jnp.float32),
    }


def graph_res_forward(params, x, pos, batch, edge_index, edge_attr,
                      input_shape=(64, 48, 3), num_graphs=2, num_outputs=2):
    kernel_size = 2
    N = int(x.shape[0])

    # ---- host-side structure, computed once, BEFORE any device work ----------
    pos_np = np.asarray(pos)
    batch_np = np.asarray(batch)
    ei_np = np.asarray(edge_index)
    tmd_check = (N % 4 == 0) and (int(ei_np.max()) + 1 == N)
    clus5, C2, pos2_np, batch2_np, ei2_np, ea2_np = host_pool5_structure(
        pos_np, batch_np, ei_np, voxel_size=(16.0, 12.0),
        grid_wh=(input_shape[0], input_shape[1]))
    seg7_np = host_pool7_segments(
        pos2_np, batch2_np,
        voxel_size=(input_shape[0] / 4.0, input_shape[1] / 4.0),
        grid_wh=(input_shape[0], input_shape[1]), size=16)

    NP1 = _round_up(N, SUB)
    NP2 = _round_up(C2, SUB)

    @jax.jit
    def _device_forward(params, x, edge_index, edge_attr):
        # stage-1 graph operators
        a1, invdeg1 = spline_dense_adj_flat(edge_index, edge_attr, NP1, kernel_size)
        mask1 = jnp.zeros((NP1, 1), jnp.float32).at[:N].set(1.0)
        if tmd_check:
            adj = jnp.zeros((N, N), jnp.float32).at[edge_index[0],
                                                    edge_index[1]].set(1.0)
            L4 = tmd_map(x, adj, jax.random.PRNGKey(42))
            tmd1 = jnp.eye(NP1, dtype=jnp.float32).at[:N, :N].add(
                params["dt_0"] * jnp.kron(L4, jnp.eye(N // 4, dtype=jnp.float32)))
        else:
            tmd1 = jnp.eye(NP1, dtype=jnp.float32)

        h0 = jnp.zeros((NP1, CP), jnp.float32).at[:N, :x.shape[1]].set(x)

        # conv1..conv5 + residual(conv3/4) + TMD update: ONE fused Pallas call
        h1 = fused_spline_stage(h0, a1, params["w1"], params["gamma1"],
                                params["beta1"], invdeg1, mask1, n_real=N,
                                sc_save_at=2, sc_add_at=3, tmd=tmd1)

        # pool5: voxel-grid max pooling (cluster ids precomputed on host)
        h2 = jax.ops.segment_max(h1[:N, :32], jnp.asarray(clus5, jnp.int32),
                                 num_segments=C2)

        # stage-2 graph operators (coarse graph)
        ei2 = jnp.asarray(ei2_np, jnp.int32)
        ea2 = jnp.asarray(ea2_np, jnp.float32)
        a2, invdeg2 = spline_dense_adj_flat(ei2, ea2, NP2, kernel_size)
        mask2 = jnp.zeros((NP2, 1), jnp.float32).at[:C2].set(1.0)
        h2p = jnp.zeros((NP2, CP), jnp.float32).at[:C2, :32].set(h2)

        # conv6..conv7 + residual around both: ONE fused Pallas call
        h3 = fused_spline_stage(h2p, a2, params["w2"], params["gamma2"],
                                params["beta2"], invdeg2, mask2, n_real=C2,
                                sc_save_at=0, sc_add_at=1, tmd=None)

        # pool7 (fixed 16 clusters per graph) + fc (tiny matmul, left to XLA)
        x16 = jax.ops.segment_max(h3[:C2, :32], jnp.asarray(seg7_np, jnp.int32),
                                  num_segments=num_graphs * 16)
        x16 = jnp.where(jnp.isfinite(x16), x16, 0.0)      # empty clusters -> 0
        xf = x16.reshape(num_graphs, 32 * 16)
        return jnp.dot(xf, params["fc_w"])                # Linear(bias=False)

    return _device_forward(params, x, edge_index, edge_attr)


# ------------------------------- main ----------------------------------------

if __name__ == "__main__":
    key = jax.random.PRNGKey(0)
    k1, k2, k3, kp = jax.random.split(key, 4)

    num_graphs = 2
    nodes_per_graph = 32
    N = num_graphs * nodes_per_graph
    W_img, H_img, dim = 64, 48, 3
    num_outputs = 2

    # node features (polarity-like, 1 channel), positions (x, y, t)
    x = jnp.where(jax.random.uniform(k1, (N, 1)) > 0.5, 1.0, -1.0).astype(jnp.float32)
    pos_xy = jax.random.uniform(k2, (N, 2)) * jnp.array([W_img, H_img], jnp.float32)
    pos_t = jax.random.uniform(k3, (N, 1)) * 100.0
    pos = jnp.concatenate([pos_xy, pos_t], axis=1)
    batch = jnp.repeat(jnp.arange(num_graphs, dtype=jnp.int32), nodes_per_graph)

    # random intra-graph directed edges (deterministic); guarantee node N-1 appears
    rng = np.random.default_rng(0)
    E_per = 128
    srcs, dsts = [], []
    for g in range(num_graphs):
        lo = g * nodes_per_graph
        s = rng.integers(0, nodes_per_graph, E_per) + lo
        d = rng.integers(0, nodes_per_graph, E_per) + lo
        d = np.where(s == d, lo + (d - lo + 1) % nodes_per_graph, d)
        srcs.append(s)
        dsts.append(d)
    srcs.append(np.array([N - 2]))
    dsts.append(np.array([N - 1]))
    edge_index = jnp.asarray(
        np.stack([np.concatenate(srcs), np.concatenate(dsts)]), jnp.int32)
    edge_attr = cartesian(pos, edge_index)   # normalized pseudo-coords in [0,1]^3

    params = init_params(kp, dim=dim, kernel_size=2, num_outputs=num_outputs)
    out = graph_res_forward(params, x, pos, batch, edge_index, edge_attr,
                            input_shape=(W_img, H_img, dim),
                            num_graphs=num_graphs, num_outputs=num_outputs)
    out = jax.block_until_ready(out)
    assert out.shape == (num_graphs, num_outputs)
    assert bool(jnp.all(jnp.isfinite(out)))
    print("KERNEL_OK")
</pallas_src>

<mosaic_0001>
module attributes {stable_mosaic.version = 11 : i64} {
  func.func @kernel(%arg0: i32, %arg1: memref<64x128xf32, #tpu.memory_space<vmem>>, %arg2: memref<64x512xbf16, #tpu.memory_space<vmem>>, %arg3: memref<40x128x128xbf16, #tpu.memory_space<vmem>>, %arg4: memref<5x1x128xf32, #tpu.memory_space<vmem>>, %arg5: memref<5x1x128xf32, #tpu.memory_space<vmem>>, %arg6: memref<64x1xf32, #tpu.memory_space<vmem>>, %arg7: memref<64x1xf32, #tpu.memory_space<vmem>>, %arg8: memref<64x64xf32, #tpu.memory_space<vmem>>, %arg9: memref<64x128xf32, #tpu.memory_space<vmem>>, %arg10: memref<512x128xbf16, #tpu.memory_space<vmem>>) attributes {dimension_semantics = [#tpu.dimension_semantics<arbitrary>], iteration_bounds = array<i64: 1>, scalar_prefetch = 0 : i64, scratch_operands = 1 : i64, tpu.core_type = #tpu.core_type<tc>, window_params = [{pipeline_mode = #tpu.pipeline_mode<synchronous>, transform_indices = @transform_0, window_bounds = array<i64: 64, 128>}, {pipeline_mode = #tpu.pipeline_mode<synchronous>, transform_indices = @transform_1, window_bounds = array<i64: 64, 512>}, {pipeline_mode = #tpu.pipeline_mode<synchronous>, transform_indices = @transform_2, window_bounds = array<i64: 40, 128, 128>}, {pipeline_mode = #tpu.pipeline_mode<synchronous>, transform_indices = @transform_3, window_bounds = array<i64: 5, 1, 128>}, {pipeline_mode = #tpu.pipeline_mode<synchronous>, transform_indices = @transform_4, window_bounds = array<i64: 5, 1, 128>}, {pipeline_mode = #tpu.pipeline_mode<synchronous>, transform_indices = @transform_5, window_bounds = array<i64: 64, 1>}, {pipeline_mode = #tpu.pipeline_mode<synchronous>, transform_indices = @transform_6, window_bounds = array<i64: 64, 1>}, {pipeline_mode = #tpu.pipeline_mode<synchronous>, transform_indices = @transform_7, window_bounds = array<i64: 64, 64>}, {pipeline_mode = #tpu.pipeline_mode<synchronous>, transform_indices = @transform_8, window_bounds = array<i64: 64, 128>}]} {
    %c0 = arith.constant 0 : index
    %c0_0 = arith.constant 0 : index
    %0 = vector.load %arg2[%c0, %c0_0] : memref<64x512xbf16, #tpu.memory_space<vmem>>, vector<64x512xbf16>
    %c0_1 = arith.constant 0 : index
    %c0_2 = arith.constant 0 : index
    %1 = vector.load %arg6[%c0_1, %c0_2] : memref<64x1xf32, #tpu.memory_space<vmem>>, vector<64x1xf32>
    %c0_3 = arith.constant 0 : index
    %c0_4 = arith.constant 0 : index
    %2 = vector.load %arg7[%c0_3, %c0_4] : memref<64x1xf32, #tpu.memory_space<vmem>>, vector<64x1xf32>
    %c0_5 = arith.constant 0 : index
    %c0_6 = arith.constant 0 : index
    %3 = vector.load %arg1[%c0_5, %c0_6] : memref<64x128xf32, #tpu.memory_space<vmem>>, vector<64x128xf32>
    %4 = arith.truncf %3 : vector<64x128xf32> to vector<64x128xbf16>
    %c0_7 = arith.constant 0 : index
    %c0_8 = arith.constant 0 : index
    %c0_9 = arith.constant 0 : index
    %5 = vector.load %arg3[%c0_7, %c0_8, %c0_9] : memref<40x128x128xbf16, #tpu.memory_space<vmem>>, vector<1x128x128xbf16>
    %6 = vector.shape_cast %5 : vector<1x128x128xbf16> to vector<128x128xbf16>
    %cst = arith.constant dense<0.000000e+00> : vector<64x128xf32>
    %7 = tpu.matmul %4, %6, %cst {dimension_numbers = #tpu.dot_dimension_numbers<[1], [0], [0], [1], [0, 0, 1, 1], [], []>} : vector<64x128xbf16>, vector<128x128xbf16>, vector<64x128xf32> -> vector<64x128xf32>
    %8 = arith.truncf %7 : vector<64x128xf32> to vector<64x128xbf16>
    %c0_10 = arith.constant 0 : index
    %c0_11 = arith.constant 0 : index
    %9 = vector.load %arg10[%c0_10, %c0_11] : memref<512x128xbf16, #tpu.memory_space<vmem>>, vector<64x128xbf16>
    tpu.vector_store %arg10[%c0_10, %c0_11], %8 {strides = array<i32>} : memref<512x128xbf16, #tpu.memory_space<vmem>>, vector<64x128xbf16>,
    %c1 = arith.constant 1 : index
    %c0_12 = arith.constant 0 : index
    %c0_13 = arith.constant 0 : index
    %10 = vector.load %arg3[%c1, %c0_12, %c0_13] : memref<40x128x128xbf16, #tpu.memory_space<vmem>>, vector<1x128x128xbf16>
    %11 = vector.shape_cast %10 : vector<1x128x128xbf16> to vector<128x128xbf16>
    %cst_14 = arith.constant dense<0.000000e+00> : vector<64x128xf32>
    %12 = tpu.matmul %4, %11, %cst_14 {dimension_numbers = #tpu.dot_dimension_numbers<[1], [0], [0], [1], [0, 0, 1, 1], [], []>} : vector<64x128xbf16>, vector<128x128xbf16>, vector<64x128xf32> -> vector<64x128xf32>
    %13 = arith.truncf %12 : vector<64x128xf32> to vector<64x128xbf16>
    %c64 = arith.constant 64 : index
    %c0_15 = arith.constant 0 : index
    %14 = vector.load %arg10[%c64, %c0_15] : memref<512x128xbf16, #tpu.memory_space<vmem>>, vector<64x128xbf16>
    tpu.vector_store %arg10[%c64, %c0_15], %13 {strides = array<i32>} : memref<512x128xbf16, #tpu.memory_space<vmem>>, vector<64x128xbf16>,
    %c2 = arith.constant 2 : index
    %c0_16 = arith.constant 0 : index
    %c0_17 = arith.constant 0 : index
    %15 = vector.load %arg3[%c2, %c0_16, %c0_17] : memref<40x128x128xbf16, #tpu.memory_space<vmem>>, vector<1x128x128xbf16>
    %16 = vector.shape_cast %15 : vector<1x128x128xbf16> to vector<128x128xbf16>
    %cst_18 = arith.constant dense<0.000000e+00> : vector<64x128xf32>
    %17 = tpu.matmul %4, %16, %cst_18 {dimension_numbers = #tpu.dot_dimension_numbers<[1], [0], [0], [1], [0, 0, 1, 1], [], []>} : vector<64x128xbf16>, vector<128x128xbf16>, vector<64x128xf32> -> vector<64x128xf32>
    %18 = arith.truncf %17 : vector<64x128xf32> to vector<64x128xbf16>
    %c128 = arith.constant 128 : index
    %c0_19 = arith.constant 0 : index
    %19 = vector.load %arg10[%c128, %c0_19] : memref<512x128xbf16, #tpu.memory_space<vmem>>, vector<64x128xbf16>
    tpu.vector_store %arg10[%c128, %c0_19], %18 {strides = array<i32>} : memref<512x128xbf16, #tpu.memory_space<vmem>>, vector<64x128xbf16>,
    %c3 = arith.constant 3 : index
    %c0_20 = arith.constant 0 : index
    %c0_21 = arith.constant 0 : index
    %20 = vector.load %arg3[%c3, %c0_20, %c0_21] : memref<40x128x128xbf16, #tpu.memory_space<vmem>>, vector<1x128x128xbf16>
    %21 = vector.shape_cast %20 : vector<1x128x128xbf16> to vector<128x128xbf16>
    %cst_22 = arith.constant dense<0.000000e+00> : vector<64x128xf32>
    %22 = tpu.matmul %4, %21, %cst_22 {dimension_numbers = #tpu.dot_dimension_numbers<[1], [0], [0], [1], [0, 0, 1, 1], [], []>} : vector<64x128xbf16>, vector<128x128xbf16>, vector<64x128xf32> -> vector<64x128xf32>
    %23 = arith.truncf %22 : vector<64x128xf32> to vector<64x128xbf16>
    %c192 = arith.constant 192 : index
    %c0_23 = arith.constant 0 : index
    %24 = vector.load %arg10[%c192, %c0_23] : memref<512x128xbf16, #tpu.memory_space<vmem>>, vector<64x128xbf16>
    tpu.vector_store %arg10[%c192, %c0_23], %23 {strides = array<i32>} : memref<512x128xbf16, #tpu.memory_space<vmem>>, vector<64x128xbf16>,
    %c4 = arith.constant 4 : index
    %c0_24 = arith.constant 0 : index
    %c0_25 = arith.constant 0 : index
    %25 = vector.load %arg3[%c4, %c0_24, %c0_25] : memref<40x128x128xbf16, #tpu.memory_space<vmem>>, vector<1x128x128xbf16>
    %26 = vector.shape_cast %25 : vector<1x128x128xbf16> to vector<128x128xbf16>
    %cst_26 = arith.constant dense<0.000000e+00> : vector<64x128xf32>
    %27 = tpu.matmul %4, %26, %cst_26 {dimension_numbers = #tpu.dot_dimension_numbers<[1], [0], [0], [1], [0, 0, 1, 1], [], []>} : vector<64x128xbf16>, vector<128x128xbf16>, vector<64x128xf32> -> vector<64x128xf32>
    %28 = arith.truncf %27 : vector<64x128xf32> to vector<64x128xbf16>
    %c256 = arith.constant 256 : index
    %c0_27 = arith.constant 0 : index
    %29 = vector.load %arg10[%c256, %c0_27] : memref<512x128xbf16, #tpu.memory_space<vmem>>, vector<64x128xbf16>
    tpu.vector_store %arg10[%c256, %c0_27], %28 {strides = array<i32>} : memref<512x128xbf16, #tpu.memory_space<vmem>>, vector<64x128xbf16>,
    %c5 = arith.constant 5 : index
    %c0_28 = arith.constant 0 : index
    %c0_29 = arith.constant 0 : index
    %30 = vector.load %arg3[%c5, %c0_28, %c0_29] : memref<40x128x128xbf16, #tpu.memory_space<vmem>>, vector<1x128x128xbf16>
    %31 = vector.shape_cast %30 : vector<1x128x128xbf16> to vector<128x128xbf16>
    %cst_30 = arith.constant dense<0.000000e+00> : vector<64x128xf32>
    %32 = tpu.matmul %4, %31, %cst_30 {dimension_numbers = #tpu.dot_dimension_numbers<[1], [0], [0], [1], [0, 0, 1, 1], [], []>} : vector<64x128xbf16>, vector<128x128xbf16>, vector<64x128xf32> -> vector<64x128xf32>
    %33 = arith.truncf %32 : vector<64x128xf32> to vector<64x128xbf16>
    %c320 = arith.constant 320 : index
    %c0_31 = arith.constant 0 : index
    %34 = vector.load %arg10[%c320, %c0_31] : memref<512x128xbf16, #tpu.memory_space<vmem>>, vector<64x128xbf16>
    tpu.vector_store %arg10[%c320, %c0_31], %33 {strides = array<i32>} : memref<512x128xbf16, #tpu.memory_space<vmem>>, vector<64x128xbf16>,
    %c6 = arith.constant 6 : index
    %c0_32 = arith.constant 0 : index
    %c0_33 = arith.constant 0 : index
    %35 = vector.load %arg3[%c6, %c0_32, %c0_33] : memref<40x128x128xbf16, #tpu.memory_space<vmem>>, vector<1x128x128xbf16>
    %36 = vector.shape_cast %35 : vector<1x128x128xbf16> to vector<128x128xbf16>
    %cst_34 = arith.constant dense<0.000000e+00> : vector<64x128xf32>
    %37 = tpu.matmul %4, %36, %cst_34 {dimension_numbers = #tpu.dot_dimension_numbers<[1], [0], [0], [1], [0, 0, 1, 1], [], []>} : vector<64x128xbf16>, vector<128x128xbf16>, vector<64x128xf32> -> vector<64x128xf32>
    %38 = arith.truncf %37 : vector<64x128xf32> to vector<64x128xbf16>
    %c384 = arith.constant 384 : index
    %c0_35 = arith.constant 0 : index
    %39 = vector.load %arg10[%c384, %c0_35] : memref<512x128xbf16, #tpu.memory_space<vmem>>, vector<64x128xbf16>
    tpu.vector_store %arg10[%c384, %c0_35], %38 {strides = array<i32>} : memref<512x128xbf16, #tpu.memory_space<vmem>>, vector<64x128xbf16>,
    %c7 = arith.constant 7 : index
    %c0_36 = arith.constant 0 : index
    %c0_37 = arith.constant 0 : index
    %40 = vector.load %arg3[%c7, %c0_36, %c0_37] : memref<40x128x128xbf16, #tpu.memory_space<vmem>>, vector<1x128x128xbf16>
    %41 = vector.shape_cast %40 : vector<1x128x128xbf16> to vector<128x128xbf16>
    %cst_38 = arith.constant dense<0.000000e+00> : vector<64x128xf32>
    %42 = tpu.matmul %4, %41, %cst_38 {dimension_numbers = #tpu.dot_dimension_numbers<[1], [0], [0], [1], [0, 0, 1, 1], [], []>} : vector<64x128xbf16>, vector<128x128xbf16>, vector<64x128xf32> -> vector<64x128xf32>
    %43 = arith.truncf %42 : vector<64x128xf32> to vector<64x128xbf16>
    %c448 = arith.constant 448 : index
    %c0_39 = arith.constant 0 : index
    %44 = vector.load %arg10[%c448, %c0_39] : memref<512x128xbf16, #tpu.memory_space<vmem>>, vector<64x128xbf16>
    tpu.vector_store %arg10[%c448, %c0_39], %43 {strides = array<i32>} : memref<512x128xbf16, #tpu.memory_space<vmem>>, vector<64x128xbf16>,
    %c0_40 = arith.constant 0 : index
    %c0_41 = arith.constant 0 : index
    %45 = vector.load %arg10[%c0_40, %c0_41] : memref<512x128xbf16, #tpu.memory_space<vmem>>, vector<512x128xbf16>
    %cst_42 = arith.constant dense<0.000000e+00> : vector<64x128xf32>
    %46 = tpu.matmul %0, %45, %cst_42 {dimension_numbers = #tpu.dot_dimension_numbers<[1], [0], [0], [1], [0, 0, 1, 1], [], []>} : vector<64x512xbf16>, vector<512x128xbf16>, vector<64x128xf32> -> vector<64x128xf32>
    %47 = vector.broadcast %1 : vector<64x1xf32> to vector<64x128xf32>
    %48 = arith.mulf %46, %47 : vector<64x128xf32>
    %cst_43 = arith.constant 0.000000e+00 : f32
    %49 = vector.broadcast %cst_43 : f32 to vector<64x128xf32>
    %50 = arith.cmpf ogt, %48, %49 : vector<64x128xf32>
    %cst_44 = arith.constant 0.000000e+00 : f32
    %51 = vector.broadcast %cst_44 : f32 to vector<64x128xf32>
    %52 = arith.minimumf %48, %51 : vector<64x128xf32>
    %53 = math.exp %52 : vector<64x128xf32>
    %cst_45 = arith.constant 1.000000e+00 : f32
    %54 = vector.broadcast %cst_45 : f32 to vector<64x128xf32>
    %55 = arith.subf %53, %54 : vector<64x128xf32>
    %56 = arith.select %50, %48, %55 : vector<64x128xi1>, vector<64x128xf32>
    %57 = vector.broadcast %2 : vector<64x1xf32> to vector<64x128xf32>
    %58 = arith.mulf %56, %57 : vector<64x128xf32>
    %cst_46 = arith.constant dense<0.000000e+00> : vector<128xf32>
    %59 = vector.multi_reduction <add>, %58, %cst_46 [0] : vector<64x128xf32> to vector<128xf32>
    %60 = vector.shape_cast %59 : vector<128xf32> to vector<1x128xf32>
    %cst_47 = arith.constant 1.562500e-02 : f32
    %61 = vector.broadcast %cst_47 : f32 to vector<1x128xf32>
    %62 = arith.mulf %60, %61 : vector<1x128xf32>
    %63 = vector.broadcast %62 : vector<1x128xf32> to vector<64x128xf32>
    %64 = arith.subf %56, %63 : vector<64x128xf32>
    %65 = vector.broadcast %2 : vector<64x1xf32> to vector<64x128xf32>
    %66 = arith.mulf %64, %65 : vector<64x128xf32>
    %67 = arith.mulf %66, %66 : vector<64x128xf32>
    %cst_48 = arith.constant dense<0.000000e+00> : vector<128xf32>
    %68 = vector.multi_reduction <add>, %67, %cst_48 [0] : vector<64x128xf32> to vector<128xf32>
    %69 = vector.shape_cast %68 : vector<128xf32> to vector<1x128xf32>
    %cst_49 = arith.constant 1.562500e-02 : f32
    %70 = vector.broadcast %cst_49 : f32 to vector<1x128xf32>
    %71 = arith.mulf %69, %70 : vector<1x128xf32>
    %72 = vector.broadcast %62 : vector<1x128xf32> to vector<64x128xf32>
    %73 = arith.subf %56, %72 : vector<64x128xf32>
    %cst_50 = arith.constant 9.99999974E-6 : f32
    %74 = vector.broadcast %cst_50 : f32 to vector<1x128xf32>
    %75 = arith.addf %71, %74 : vector<1x128xf32>
    %76 = math.rsqrt %75 : vector<1x128xf32>
    %77 = vector.broadcast %76 : vector<1x128xf32> to vector<64x128xf32>
    %78 = arith.mulf %73, %77 : vector<64x128xf32>
    %c0_51 = arith.constant 0 : index
    %c0_52 = arith.constant 0 : index
    %c0_53 = arith.constant 0 : index
    %79 = vector.load %arg4[%c0_51, %c0_52, %c0_53] : memref<5x1x128xf32, #tpu.memory_space<vmem>>, vector<1x1x128xf32>
    %80 = vector.shape_cast %79 : vector<1x1x128xf32> to vector<1x128xf32>
    %81 = vector.broadcast %80 : vector<1x128xf32> to vector<64x128xf32>
    %82 = arith.mulf %78, %81 : vector<64x128xf32>
    %c0_54 = arith.constant 0 : index
    %c0_55 = arith.constant 0 : index
    %c0_56 = arith.constant 0 : index
    %83 = vector.load %arg5[%c0_54, %c0_55, %c0_56] : memref<5x1x128xf32, #tpu.memory_space<vmem>>, vector<1x1x128xf32>
    %84 = vector.shape_cast %83 : vector<1x1x128xf32> to vector<1x128xf32>
    %85 = vector.broadcast %84 : vector<1x128xf32> to vector<64x128xf32>
    %86 = arith.addf %82, %85 : vector<64x128xf32>
    %87 = vector.broadcast %2 : vector<64x1xf32> to vector<64x128xf32>
    %88 = arith.mulf %86, %87 : vector<64x128xf32>
    %89 = arith.truncf %88 : vector<64x128xf32> to vector<64x128xbf16>
    %c8 = arith.constant 8 : index
    %c0_57 = arith.constant 0 : index
    %c0_58 = arith.constant 0 : index
    %90 = vector.load %arg3[%c8, %c0_57, %c0_58] : memref<40x128x128xbf16, #tpu.memory_space<vmem>>, vector<1x128x128xbf16>
    %91 = vector.shape_cast %90 : vector<1x128x128xbf16> to vector<128x128xbf16>
    %cst_59 = arith.constant dense<0.000000e+00> : vector<64x128xf32>
    %92 = tpu.matmul %89, %91, %cst_59 {dimension_numbers = #tpu.dot_dimension_numbers<[1], [0], [0], [1], [0, 0, 1, 1], [], []>} : vector<64x128xbf16>, vector<128x128xbf16>, vector<64x128xf32> -> vector<64x128xf32>
    %93 = arith.truncf %92 : vector<64x128xf32> to vector<64x128xbf16>
    %c0_60 = arith.constant 0 : index
    %c0_61 = arith.constant 0 : index
    %94 = vector.load %arg10[%c0_60, %c0_61] : memref<512x128xbf16, #tpu.memory_space<vmem>>, vector<64x128xbf16>
    tpu.vector_store %arg10[%c0_60, %c0_61], %93 {strides = array<i32>} : memref<512x128xbf16, #tpu.memory_space<vmem>>, vector<64x128xbf16>,
    %c9 = arith.constant 9 : index
    %c0_62 = arith.constant 0 : index
    %c0_63 = arith.constant 0 : index
    %95 = vector.load %arg3[%c9, %c0_62, %c0_63] : memref<40x128x128xbf16, #tpu.memory_space<vmem>>, vector<1x128x128xbf16>
    %96 = vector.shape_cast %95 : vector<1x128x128xbf16> to vector<128x128xbf16>
    %cst_64 = arith.constant dense<0.000000e+00> : vector<64x128xf32>
    %97 = tpu.matmul %89, %96, %cst_64 {dimension_numbers = #tpu.dot_dimension_numbers<[1], [0], [0], [1], [0, 0, 1, 1], [], []>} : vector<64x128xbf16>, vector<128x128xbf16>, vector<64x128xf32> -> vector<64x128xf32>
    %98 = arith.truncf %97 : vector<64x128xf32> to vector<64x128xbf16>
    %c64_65 = arith.constant 64 : index
    %c0_66 = arith.constant 0 : index
    %99 = vector.load %arg10[%c64_65, %c0_66] : memref<512x128xbf16, #tpu.memory_space<vmem>>, vector<64x128xbf16>
    tpu.vector_store %arg10[%c64_65, %c0_66], %98 {strides = array<i32>} : memref<512x128xbf16, #tpu.memory_space<vmem>>, vector<64x128xbf16>,
    %c10 = arith.constant 10 : index
    %c0_67 = arith.constant 0 : index
    %c0_68 = arith.constant 0 : index
    %100 = vector.load %arg3[%c10, %c0_67, %c0_68] : memref<40x128x128xbf16, #tpu.memory_space<vmem>>, vector<1x128x128xbf16>
    %101 = vector.shape_cast %100 : vector<1x128x128xbf16> to vector<128x128xbf16>
    %cst_69 = arith.constant dense<0.000000e+00> : vector<64x128xf32>
    %102 = tpu.matmul %89, %101, %cst_69 {dimension_numbers = #tpu.dot_dimension_numbers<[1], [0], [0], [1], [0, 0, 1, 1], [], []>} : vector<64x128xbf16>, vector<128x128xbf16>, vector<64x128xf32> -> vector<64x128xf32>
    %103 = arith.truncf %102 : vector<64x128xf32> to vector<64x128xbf16>
    %c128_70 = arith.constant 128 : index
    %c0_71 = arith.constant 0 : index
    %104 = vector.load %arg10[%c128_70, %c0_71] : memref<512x128xbf16, #tpu.memory_space<vmem>>, vector<64x128xbf16>
    tpu.vector_store %arg10[%c128_70, %c0_71], %103 {strides = array<i32>} : memref<512x128xbf16, #tpu.memory_space<vmem>>, vector<64x128xbf16>,
    %c11 = arith.constant 11 : index
    %c0_72 = arith.constant 0 : index
    %c0_73 = arith.constant 0 : index
    %105 = vector.load %arg3[%c11, %c0_72, %c0_73] : memref<40x128x128xbf16, #tpu.memory_space<vmem>>, vector<1x128x128xbf16>
    %106 = vector.shape_cast %105 : vector<1x128x128xbf16> to vector<128x128xbf16>
    %cst_74 = arith.constant dense<0.000000e+00> : vector<64x128xf32>
    %107 = tpu.matmul %89, %106, %cst_74 {dimension_numbers = #tpu.dot_dimension_numbers<[1], [0], [0], [1], [0, 0, 1, 1], [], []>} : vector<64x128xbf16>, vector<128x128xbf16>, vector<64x128xf32> -> vector<64x128xf32>
    %108 = arith.truncf %107 : vector<64x128xf32> to vector<64x128xbf16>
    %c192_75 = arith.constant 192 : index
    %c0_76 = arith.constant 0 : index
    %109 = vector.load %arg10[%c192_75, %c0_76] : memref<512x128xbf16, #tpu.memory_space<vmem>>, vector<64x128xbf16>
    tpu.vector_store %arg10[%c192_75, %c0_76], %108 {strides = array<i32>} : memref<512x128xbf16, #tpu.memory_space<vmem>>, vector<64x128xbf16>,
    %c12 = arith.constant 12 : index
    %c0_77 = arith.constant 0 : index
    %c0_78 = arith.constant 0 : index
    %110 = vector.load %arg3[%c12, %c0_77, %c0_78] : memref<40x128x128xbf16, #tpu.memory_space<vmem>>, vector<1x128x128xbf16>
    %111 = vector.shape_cast %110 : vector<1x128x128xbf16> to vector<128x128xbf16>
    %cst_79 = arith.constant dense<0.000000e+00> : vector<64x128xf32>
    %112 = tpu.matmul %89, %111, %cst_79 {dimension_numbers = #tpu.dot_dimension_numbers<[1], [0], [0], [1], [0, 0, 1, 1], [], []>} : vector<64x128xbf16>, vector<128x128xbf16>, vector<64x128xf32> -> vector<64x128xf32>
    %113 = arith.truncf %112 : vector<64x128xf32> to vector<64x128xbf16>
    %c256_80 = arith.constant 256 : index
    %c0_81 = arith.constant 0 : index
    %114 = vector.load %arg10[%c256_80, %c0_81] : memref<512x128xbf16, #tpu.memory_space<vmem>>, vector<64x128xbf16>
    tpu.vector_store %arg10[%c256_80, %c0_81], %113 {strides = array<i32>} : memref<512x128xbf16, #tpu.memory_space<vmem>>, vector<64x128xbf16>,
    %c13 = arith.constant 13 : index
    %c0_82 = arith.constant 0 : index
    %c0_83 = arith.constant 0 : index
    %115 = vector.load %arg3[%c13, %c0_82, %c0_83] : memref<40x128x128xbf16, #tpu.memory_space<vmem>>, vector<1x128x128xbf16>
    %116 = vector.shape_cast %115 : vector<1x128x128xbf16> to vector<128x128xbf16>
    %cst_84 = arith.constant dense<0.000000e+00> : vector<64x128xf32>
    %117 = tpu.matmul %89, %116, %cst_84 {dimension_numbers = #tpu.dot_dimension_numbers<[1], [0], [0], [1], [0, 0, 1, 1], [], []>} : vector<64x128xbf16>, vector<128x128xbf16>, vector<64x128xf32> -> vector<64x128xf32>
    %118 = arith.truncf %117 : vector<64x128xf32> to vector<64x128xbf16>
    %c320_85 = arith.constant 320 : index
    %c0_86 = arith.constant 0 : index
    %119 = vector.load %arg10[%c320_85, %c0_86] : memref<512x128xbf16, #tpu.memory_space<vmem>>, vector<64x128xbf16>
    tpu.vector_store %arg10[%c320_85, %c0_86], %118 {strides = array<i32>} : memref<512x128xbf16, #tpu.memory_space<vmem>>, vector<64x128xbf16>,
    %c14 = arith.constant 14 : index
    %c0_87 = arith.constant 0 : index
    %c0_88 = arith.constant 0 : index
    %120 = vector.load %arg3[%c14, %c0_87, %c0_88] : memref<40x128x128xbf16, #tpu.memory_space<vmem>>, vector<1x128x128xbf16>
    %121 = vector.shape_cast %120 : vector<1x128x128xbf16> to vector<128x128xbf16>
    %cst_89 = arith.constant dense<0.000000e+00> : vector<64x128xf32>
    %122 = tpu.matmul %89, %121, %cst_89 {dimension_numbers = #tpu.dot_dimension_numbers<[1], [0], [0], [1], [0, 0, 1, 1], [], []>} : vector<64x128xbf16>, vector<128x128xbf16>, vector<64x128xf32> -> vector<64x128xf32>
    %123 = arith.truncf %122 : vector<64x128xf32> to vector<64x128xbf16>
    %c384_90 = arith.constant 384 : index
    %c0_91 = arith.constant 0 : index
    %124 = vector.load %arg10[%c384_90, %c0_91] : memref<512x128xbf16, #tpu.memory_space<vmem>>, vector<64x128xbf16>
    tpu.vector_store %arg10[%c384_90, %c0_91], %123 {strides = array<i32>} : memref<512x128xbf16, #tpu.memory_space<vmem>>, vector<64x128xbf16>,
    %c15 = arith.constant 15 : index
    %c0_92 = arith.constant 0 : index
    %c0_93 = arith.constant 0 : index
    %125 = vector.load %arg3[%c15, %c0_92, %c0_93] : memref<40x128x128xbf16, #tpu.memory_space<vmem>>, vector<1x128x128xbf16>
    %126 = vector.shape_cast %125 : vector<1x128x128xbf16> to vector<128x128xbf16>
    %cst_94 = arith.constant dense<0.000000e+00> : vector<64x128xf32>
    %127 = tpu.matmul %89, %126, %cst_94 {dimension_numbers = #tpu.dot_dimension_numbers<[1], [0], [0], [1], [0, 0, 1, 1], [], []>} : vector<64x128xbf16>, vector<128x128xbf16>, vector<64x128xf32> -> vector<64x128xf32>
    %128 = arith.truncf %127 : vector<64x128xf32> to vector<64x128xbf16>
    %c448_95 = arith.constant 448 : index
    %c0_96 = arith.constant 0 : index
    %129 = vector.load %arg10[%c448_95, %c0_96] : memref<512x128xbf16, #tpu.memory_space<vmem>>, vector<64x128xbf16>
    tpu.vector_store %arg10[%c448_95, %c0_96], %128 {strides = array<i32>} : memref<512x128xbf16, #tpu.memory_space<vmem>>, vector<64x128xbf16>,
    %c0_97 = arith.constant 0 : index
    %c0_98 = arith.constant 0 : index
    %130 = vector.load %arg10[%c0_97, %c0_98] : memref<512x128xbf16, #tpu.memory_space<vmem>>, vector<512x128xbf16>
    %cst_99 = arith.constant dense<0.000000e+00> : vector<64x128xf32>
    %131 = tpu.matmul %0, %130, %cst_99 {dimension_numbers = #tpu.dot_dimension_numbers<[1], [0], [0], [1], [0, 0, 1, 1], [], []>} : vector<64x512xbf16>, vector<512x128xbf16>, vector<64x128xf32> -> vector<64x128xf32>
    %132 = vector.broadcast %1 : vector<64x1xf32> to vector<64x128xf32>
    %133 = arith.mulf %131, %132 : vector<64x128xf32>
    %cst_100 = arith.constant 0.000000e+00 : f32
    %134 = vector.broadcast %cst_100 : f32 to vector<64x128xf32>
    %135 = arith.cmpf ogt, %133, %134 : vector<64x128xf32>
    %cst_101 = arith.constant 0.000000e+00 : f32
    %136 = vector.broadcast %cst_101 : f32 to vector<64x128xf32>
    %137 = arith.minimumf %133, %136 : vector<64x128xf32>
    %138 = math.exp %137 : vector<64x128xf32>
    %cst_102 = arith.constant 1.000000e+00 : f32
    %139 = vector.broadcast %cst_102 : f32 to vector<64x128xf32>
    %140 = arith.subf %138, %139 : vector<64x128xf32>
    %141 = arith.select %135, %133, %140 : vector<64x128xi1>, vector<64x128xf32>
    %142 = vector.broadcast %2 : vector<64x1xf32> to vector<64x128xf32>
    %143 = arith.mulf %141, %142 : vector<64x128xf32>
    %cst_103 = arith.constant dense<0.000000e+00> : vector<128xf32>
    %144 = vector.multi_reduction <add>, %143, %cst_103 [0] : vector<64x128xf32> to vector<128xf32>
    %145 = vector.shape_cast %144 : vector<128xf32> to vector<1x128xf32>
    %cst_104 = arith.constant 1.562500e-02 : f32
    %146 = vector.broadcast %cst_104 : f32 to vector<1x128xf32>
    %147 = arith.mulf %145, %146 : vector<1x128xf32>
    %148 = vector.broadcast %147 : vector<1x128xf32> to vector<64x128xf32>
    %149 = arith.subf %141, %148 : vector<64x128xf32>
    %150 = vector.broadcast %2 : vector<64x1xf32> to vector<64x128xf32>
    %151 = arith.mulf %149, %150 : vector<64x128xf32>
    %152 = arith.mulf %151, %151 : vector<64x128xf32>
    %cst_105 = arith.constant dense<0.000000e+00> : vector<128xf32>
    %153 = vector.multi_reduction <add>, %152, %cst_105 [0] : vector<64x128xf32> to vector<128xf32>
    %154 = vector.shape_cast %153 : vector<128xf32> to vector<1x128xf32>
    %cst_106 = arith.constant 1.562500e-02 : f32
    %155 = vector.broadcast %cst_106 : f32 to vector<1x128xf32>
    %156 = arith.mulf %154, %155 : vector<1x128xf32>
    %157 = vector.broadcast %147 : vector<1x128xf32> to vector<64x128xf32>
    %158 = arith.subf %141, %157 : vector<64x128xf32>
    %cst_107 = arith.constant 9.99999974E-6 : f32
    %159 = vector.broadcast %cst_107 : f32 to vector<1x128xf32>
    %160 = arith.addf %156, %159 : vector<1x128xf32>
    %161 = math.rsqrt %160 : vector<1x128xf32>
    %162 = vector.broadcast %161 : vector<1x128xf32> to vector<64x128xf32>
    %163 = arith.mulf %158, %162 : vector<64x128xf32>
    %c1_108 = arith.constant 1 : index
    %c0_109 = arith.constant 0 : index
    %c0_110 = arith.constant 0 : index
    %164 = vector.load %arg4[%c1_108, %c0_109, %c0_110] : memref<5x1x128xf32, #tpu.memory_space<vmem>>, vector<1x1x128xf32>
    %165 = vector.shape_cast %164 : vector<1x1x128xf32> to vector<1x128xf32>
    %166 = vector.broadcast %165 : vector<1x128xf32> to vector<64x128xf32>
    %167 = arith.mulf %163, %166 : vector<64x128xf32>
    %c1_111 = arith.constant 1 : index
    %c0_112 = arith.constant 0 : index
    %c0_113 = arith.constant 0 : index
    %168 = vector.load %arg5[%c1_111, %c0_112, %c0_113] : memref<5x1x128xf32, #tpu.memory_space<vmem>>, vector<1x1x128xf32>
    %169 = vector.shape_cast %168 : vector<1x1x128xf32> to vector<1x128xf32>
    %170 = vector.broadcast %169 : vector<1x128xf32> to vector<64x128xf32>
    %171 = arith.addf %167, %170 : vector<64x128xf32>
    %172 = vector.broadcast %2 : vector<64x1xf32> to vector<64x128xf32>
    %173 = arith.mulf %171, %172 : vector<64x128xf32>
    %174 = arith.truncf %173 : vector<64x128xf32> to vector<64x128xbf16>
    %c16 = arith.constant 16 : index
    %c0_114 = arith.constant 0 : index
    %c0_115 = arith.constant 0 : index
    %175 = vector.load %arg3[%c16, %c0_114, %c0_115] : memref<40x128x128xbf16, #tpu.memory_space<vmem>>, vector<1x128x128xbf16>
    %176 = vector.shape_cast %175 : vector<1x128x128xbf16> to vector<128x128xbf16>
    %cst_116 = arith.constant dense<0.000000e+00> : vector<64x128xf32>
    %177 = tpu.matmul %174, %176, %cst_116 {dimension_numbers = #tpu.dot_dimension_numbers<[1], [0], [0], [1], [0, 0, 1, 1], [], []>} : vector<64x128xbf16>, vector<128x128xbf16>, vector<64x128xf32> -> vector<64x128xf32>
    %178 = arith.truncf %177 : vector<64x128xf32> to vector<64x128xbf16>
    %c0_117 = arith.constant 0 : index
    %c0_118 = arith.constant 0 : index
    %179 = vector.load %arg10[%c0_117, %c0_118] : memref<512x128xbf16, #tpu.memory_space<vmem>>, vector<64x128xbf16>
    tpu.vector_store %arg10[%c0_117, %c0_118], %178 {strides = array<i32>} : memref<512x128xbf16, #tpu.memory_space<vmem>>, vector<64x128xbf16>,
    %c17 = arith.constant 17 : index
    %c0_119 = arith.constant 0 : index
    %c0_120 = arith.constant 0 : index
    %180 = vector.load %arg3[%c17, %c0_119, %c0_120] : memref<40x128x128xbf16, #tpu.memory_space<vmem>>, vector<1x128x128xbf16>
    %181 = vector.shape_cast %180 : vector<1x128x128xbf16> to vector<128x128xbf16>
    %cst_121 = arith.constant dense<0.000000e+00> : vector<64x128xf32>
    %182 = tpu.matmul %174, %181, %cst_121 {dimension_numbers = #tpu.dot_dimension_numbers<[1], [0], [0], [1], [0, 0, 1, 1], [], []>} : vector<64x128xbf16>, vector<128x128xbf16>, vector<64x128xf32> -> vector<64x128xf32>
    %183 = arith.truncf %182 : vector<64x128xf32> to vector<64x128xbf16>
    %c64_122 = arith.constant 64 : index
    %c0_123 = arith.constant 0 : index
    %184 = vector.load %arg10[%c64_122, %c0_123] : memref<512x128xbf16, #tpu.memory_space<vmem>>, vector<64x128xbf16>
    tpu.vector_store %arg10[%c64_122, %c0_123], %183 {strides = array<i32>} : memref<512x128xbf16, #tpu.memory_space<vmem>>, vector<64x128xbf16>,
    %c18 = arith.constant 18 : index
    %c0_124 = arith.constant 0 : index
    %c0_125 = arith.constant 0 : index
    %185 = vector.load %arg3[%c18, %c0_124, %c0_125] : memref<40x128x128xbf16, #tpu.memory_space<vmem>>, vector<1x128x128xbf16>
    %186 = vector.shape_cast %185 : vector<1x128x128xbf16> to vector<128x128xbf16>
    %cst_126 = arith.constant dense<0.000000e+00> : vector<64x128xf32>
    %187 = tpu.matmul %174, %186, %cst_126 {dimension_numbers = #tpu.dot_dimension_numbers<[1], [0], [0], [1], [0, 0, 1, 1], [], []>} : vector<64x128xbf16>, vector<128x128xbf16>, vector<64x128xf32> -> vector<64x128xf32>
    %188 = arith.truncf %187 : vector<64x128xf32> to vector<64x128xbf16>
    %c128_127 = arith.constant 128 : index
    %c0_128 = arith.constant 0 : index
    %189 = vector.load %arg10[%c128_127, %c0_128] : memref<512x128xbf16, #tpu.memory_space<vmem>>, vector<64x128xbf16>
    tpu.vector_store %arg10[%c128_127, %c0_128], %188 {strides = array<i32>} : memref<512x128xbf16, #tpu.memory_space<vmem>>, vector<64x128xbf16>,
    %c19 = arith.constant 19 : index
    %c0_129 = arith.constant 0 : index
    %c0_130 = arith.constant 0 : index
    %190 = vector.load %arg3[%c19, %c0_129, %c0_130] : memref<40x128x128xbf16, #tpu.memory_space<vmem>>, vector<1x128x128xbf16>
    %191 = vector.shape_cast %190 : vector<1x128x128xbf16> to vector<128x128xbf16>
    %cst_131 = arith.constant dense<0.000000e+00> : vector<64x128xf32>
    %192 = tpu.matmul %174, %191, %cst_131 {dimension_numbers = #tpu.dot_dimension_numbers<[1], [0], [0], [1], [0, 0, 1, 1], [], []>} : vector<64x128xbf16>, vector<128x128xbf16>, vector<64x128xf32> -> vector<64x128xf32>
    %193 = arith.truncf %192 : vector<64x128xf32> to vector<64x128xbf16>
    %c192_132 = arith.constant 192 : index
    %c0_133 = arith.constant 0 : index
    %194 = vector.load %arg10[%c192_132, %c0_133] : memref<512x128xbf16, #tpu.memory_space<vmem>>, vector<64x128xbf16>
    tpu.vector_store %arg10[%c192_132, %c0_133], %193 {strides = array<i32>} : memref<512x128xbf16, #tpu.memory_space<vmem>>, vector<64x128xbf16>,
    %c20 = arith.constant 20 : index
    %c0_134 = arith.constant 0 : index
    %c0_135 = arith.constant 0 : index
    %195 = vector.load %arg3[%c20, %c0_134, %c0_135] : memref<40x128x128xbf16, #tpu.memory_space<vmem>>, vector<1x128x128xbf16>
    %196 = vector.shape_cast %195 : vector<1x128x128xbf16> to vector<128x128xbf16>
    %cst_136 = arith.constant dense<0.000000e+00> : vector<64x128xf32>
    %197 = tpu.matmul %174, %196, %cst_136 {dimension_numbers = #tpu.dot_dimension_numbers<[1], [0], [0], [1], [0, 0, 1, 1], [], []>} : vector<64x128xbf16>, vector<128x128xbf16>, vector<64x128xf32> -> vector<64x128xf32>
    %198 = arith.truncf %197 : vector<64x128xf32> to vector<64x128xbf16>
    %c256_137 = arith.constant 256 : index
    %c0_138 = arith.constant 0 : index
    %199 = vector.load %arg10[%c256_137, %c0_138] : memref<512x128xbf16, #tpu.memory_space<vmem>>, vector<64x128xbf16>
    tpu.vector_store %arg10[%c256_137, %c0_138], %198 {strides = array<i32>} : memref<512x128xbf16, #tpu.memory_space<vmem>>, vector<64x128xbf16>,
    %c21 = arith.constant 21 : index
    %c0_139 = arith.constant 0 : index
    %c0_140 = arith.constant 0 : index
    %200 = vector.load %arg3[%c21, %c0_139, %c0_140] : memref<40x128x128xbf16, #tpu.memory_space<vmem>>, vector<1x128x128xbf16>
    %201 = vector.shape_cast %200 : vector<1x128x128xbf16> to vector<128x128xbf16>
    %cst_141 = arith.constant dense<0.000000e+00> : vector<64x128xf32>
    %202 = tpu.matmul %174, %201, %cst_141 {dimension_numbers = #tpu.dot_dimension_numbers<[1], [0], [0], [1], [0, 0, 1, 1], [], []>} : vector<64x128xbf16>, vector<128x128xbf16>, vector<64x128xf32> -> vector<64x128xf32>
    %203 = arith.truncf %202 : vector<64x128xf32> to vector<64x128xbf16>
    %c320_142 = arith.constant 320 : index
    %c0_143 = arith.constant 0 : index
    %204 = vector.load %arg10[%c320_142, %c0_143] : memref<512x128xbf16, #tpu.memory_space<vmem>>, vector<64x128xbf16>
    tpu.vector_store %arg10[%c320_142, %c0_143], %203 {strides = array<i32>} : memref<512x128xbf16, #tpu.memory_space<vmem>>, vector<64x128xbf16>,
    %c22 = arith.constant 22 : index
    %c0_144 = arith.constant 0 : index
    %c0_145 = arith.constant 0 : index
    %205 = vector.load %arg3[%c22, %c0_144, %c0_145] : memref<40x128x128xbf16, #tpu.memory_space<vmem>>, vector<1x128x128xbf16>
    %206 = vector.shape_cast %205 : vector<1x128x128xbf16> to vector<128x128xbf16>
    %cst_146 = arith.constant dense<0.000000e+00> : vector<64x128xf32>
    %207 = tpu.matmul %174, %206, %cst_146 {dimension_numbers = #tpu.dot_dimension_numbers<[1], [0], [0], [1], [0, 0, 1, 1], [], []>} : vector<64x128xbf16>, vector<128x128xbf16>, vector<64x128xf32> -> vector<64x128xf32>
    %208 = arith.truncf %207 : vector<64x128xf32> to vector<64x128xbf16>
    %c384_147 = arith.constant 384 : index
    %c0_148 = arith.constant 0 : index
    %209 = vector.load %arg10[%c384_147, %c0_148] : memref<512x128xbf16, #tpu.memory_space<vmem>>, vector<64x128xbf16>
    tpu.vector_store %arg10[%c384_147, %c0_148], %208 {strides = array<i32>} : memref<512x128xbf16, #tpu.memory_space<vmem>>, vector<64x128xbf16>,
    %c23 = arith.constant 23 : index
    %c0_149 = arith.constant 0 : index
    %c0_150 = arith.constant 0 : index
    %210 = vector.load %arg3[%c23, %c0_149, %c0_150] : memref<40x128x128xbf16, #tpu.memory_space<vmem>>, vector<1x128x128xbf16>
    %211 = vector.shape_cast %210 : vector<1x128x128xbf16> to vector<128x128xbf16>
    %cst_151 = arith.constant dense<0.000000e+00> : vector<64x128xf32>
    %212 = tpu.matmul %174, %211, %cst_151 {dimension_numbers = #tpu.dot_dimension_numbers<[1], [0], [0], [1], [0, 0, 1, 1], [], []>} : vector<64x128xbf16>, vector<128x128xbf16>, vector<64x128xf32> -> vector<64x128xf32>
    %213 = arith.truncf %212 : vector<64x128xf32> to vector<64x128xbf16>
    %c448_152 = arith.constant 448 : index
    %c0_153 = arith.constant 0 : index
    %214 = vector.load %arg10[%c448_152, %c0_153] : memref<512x128xbf16, #tpu.memory_space<vmem>>, vector<64x128xbf16>
    tpu.vector_store %arg10[%c448_152, %c0_153], %213 {strides = array<i32>} : memref<512x128xbf16, #tpu.memory_space<vmem>>, vector<64x128xbf16>,
    %c0_154 = arith.constant 0 : index
    %c0_155 = arith.constant 0 : index
    %215 = vector.load %arg10[%c0_154, %c0_155] : memref<512x128xbf16, #tpu.memory_space<vmem>>, vector<512x128xbf16>
    %cst_156 = arith.constant dense<0.000000e+00> : vector<64x128xf32>
    %216 = tpu.matmul %0, %215, %cst_156 {dimension_numbers = #tpu.dot_dimension_numbers<[1], [0], [0], [1], [0, 0, 1, 1], [], []>} : vector<64x512xbf16>, vector<512x128xbf16>, vector<64x128xf32> -> vector<64x128xf32>
    %217 = vector.broadcast %1 : vector<64x1xf32> to vector<64x128xf32>
    %218 = arith.mulf %216, %217 : vector<64x128xf32>
    %cst_157 = arith.constant 0.000000e+00 : f32
    %219 = vector.broadcast %cst_157 : f32 to vector<64x128xf32>
    %220 = arith.cmpf ogt, %218, %219 : vector<64x128xf32>
    %cst_158 = arith.constant 0.000000e+00 : f32
    %221 = vector.broadcast %cst_158 : f32 to vector<64x128xf32>
    %222 = arith.minimumf %218, %221 : vector<64x128xf32>
    %223 = math.exp %222 : vector<64x128xf32>
    %cst_159 = arith.constant 1.000000e+00 : f32
    %224 = vector.broadcast %cst_159 : f32 to vector<64x128xf32>
    %225 = arith.subf %223, %224 : vector<64x128xf32>
    %226 = arith.select %220, %218, %225 : vector<64x128xi1>, vector<64x128xf32>
    %227 = vector.broadcast %2 : vector<64x1xf32> to vector<64x128xf32>
    %228 = arith.mulf %226, %227 : vector<64x128xf32>
    %cst_160 = arith.constant dense<0.000000e+00> : vector<128xf32>
    %229 = vector.multi_reduction <add>, %228, %cst_160 [0] : vector<64x128xf32> to vector<128xf32>
    %230 = vector.shape_cast %229 : vector<128xf32> to vector<1x128xf32>
    %cst_161 = arith.constant 1.562500e-02 : f32
    %231 = vector.broadcast %cst_161 : f32 to vector<1x128xf32>
    %232 = arith.mulf %230, %231 : vector<1x128xf32>
    %233 = vector.broadcast %232 : vector<1x128xf32> to vector<64x128xf32>
    %234 = arith.subf %226, %233 : vector<64x128xf32>
    %235 = vector.broadcast %2 : vector<64x1xf32> to vector<64x128xf32>
    %236 = arith.mulf %234, %235 : vector<64x128xf32>
    %237 = arith.mulf %236, %236 : vector<64x128xf32>
    %cst_162 = arith.constant dense<0.000000e+00> : vector<128xf32>
    %238 = vector.multi_reduction <add>, %237, %cst_162 [0] : vector<64x128xf32> to vector<128xf32>
    %239 = vector.shape_cast %238 : vector<128xf32> to vector<1x128xf32>
    %cst_163 = arith.constant 1.562500e-02 : f32
    %240 = vector.broadcast %cst_163 : f32 to vector<1x128xf32>
    %241 = arith.mulf %239, %240 : vector<1x128xf32>
    %242 = vector.broadcast %232 : vector<1x128xf32> to vector<64x128xf32>
    %243 = arith.subf %226, %242 : vector<64x128xf32>
    %cst_164 = arith.constant 9.99999974E-6 : f32
    %244 = vector.broadcast %cst_164 : f32 to vector<1x128xf32>
    %245 = arith.addf %241, %244 : vector<1x128xf32>
    %246 = math.rsqrt %245 : vector<1x128xf32>
    %247 = vector.broadcast %246 : vector<1x128xf32> to vector<64x128xf32>
    %248 = arith.mulf %243, %247 : vector<64x128xf32>
    %c2_165 = arith.constant 2 : index
    %c0_166 = arith.constant 0 : index
    %c0_167 = arith.constant 0 : index
    %249 = vector.load %arg4[%c2_165, %c0_166, %c0_167] : memref<5x1x128xf32, #tpu.memory_space<vmem>>, vector<1x1x128xf32>
    %250 = vector.shape_cast %249 : vector<1x1x128xf32> to vector<1x128xf32>
    %251 = vector.broadcast %250 : vector<1x128xf32> to vector<64x128xf32>
    %252 = arith.mulf %248, %251 : vector<64x128xf32>
    %c2_168 = arith.constant 2 : index
    %c0_169 = arith.constant 0 : index
    %c0_170 = arith.constant 0 : index
    %253 = vector.load %arg5[%c2_168, %c0_169, %c0_170] : memref<5x1x128xf32, #tpu.memory_space<vmem>>, vector<1x1x128xf32>
    %254 = vector.shape_cast %253 : vector<1x1x128xf32> to vector<1x128xf32>
    %255 = vector.broadcast %254 : vector<1x128xf32> to vector<64x128xf32>
    %256 = arith.addf %252, %255 : vector<64x128xf32>
    %257 = vector.broadcast %2 : vector<64x1xf32> to vector<64x128xf32>
    %258 = arith.mulf %256, %257 : vector<64x128xf32>
    %259 = arith.truncf %258 : vector<64x128xf32> to vector<64x128xbf16>
    %c24 = arith.constant 24 : index
    %c0_171 = arith.constant 0 : index
    %c0_172 = arith.constant 0 : index
    %260 = vector.load %arg3[%c24, %c0_171, %c0_172] : memref<40x128x128xbf16, #tpu.memory_space<vmem>>, vector<1x128x128xbf16>
    %261 = vector.shape_cast %260 : vector<1x128x128xbf16> to vector<128x128xbf16>
    %cst_173 = arith.constant dense<0.000000e+00> : vector<64x128xf32>
    %262 = tpu.matmul %259, %261, %cst_173 {dimension_numbers = #tpu.dot_dimension_numbers<[1], [0], [0], [1], [0, 0, 1, 1], [], []>} : vector<64x128xbf16>, vector<128x128xbf16>, vector<64x128xf32> -> vector<64x128xf32>
    %263 = arith.truncf %262 : vector<64x128xf32> to vector<64x128xbf16>
    %c0_174 = arith.constant 0 : index
    %c0_175 = arith.constant 0 : index
    %264 = vector.load %arg10[%c0_174, %c0_175] : memref<512x128xbf16, #tpu.memory_space<vmem>>, vector<64x128xbf16>
    tpu.vector_store %arg10[%c0_174, %c0_175], %263 {strides = array<i32>} : memref<512x128xbf16, #tpu.memory_space<vmem>>, vector<64x128xbf16>,
    %c25 = arith.constant 25 : index
    %c0_176 = arith.constant 0 : index
    %c0_177 = arith.constant 0 : index
    %265 = vector.load %arg3[%c25, %c0_176, %c0_177] : memref<40x128x128xbf16, #tpu.memory_space<vmem>>, vector<1x128x128xbf16>
    %266 = vector.shape_cast %265 : vector<1x128x128xbf16> to vector<128x128xbf16>
    %cst_178 = arith.constant dense<0.000000e+00> : vector<64x128xf32>
    %267 = tpu.matmul %259, %266, %cst_178 {dimension_numbers = #tpu.dot_dimension_numbers<[1], [0], [0], [1], [0, 0, 1, 1], [], []>} : vector<64x128xbf16>, vector<128x128xbf16>, vector<64x128xf32> -> vector<64x128xf32>
    %268 = arith.truncf %267 : vector<64x128xf32> to vector<64x128xbf16>
    %c64_179 = arith.constant 64 : index
    %c0_180 = arith.constant 0 : index
    %269 = vector.load %arg10[%c64_179, %c0_180] : memref<512x128xbf16, #tpu.memory_space<vmem>>, vector<64x128xbf16>
    tpu.vector_store %arg10[%c64_179, %c0_180], %268 {strides = array<i32>} : memref<512x128xbf16, #tpu.memory_space<vmem>>, vector<64x128xbf16>,
    %c26 = arith.constant 26 : index
    %c0_181 = arith.constant 0 : index
    %c0_182 = arith.constant 0 : index
    %270 = vector.load %arg3[%c26, %c0_181, %c0_182] : memref<40x128x128xbf16, #tpu.memory_space<vmem>>, vector<1x128x128xbf16>
    %271 = vector.shape_cast %270 : vector<1x128x128xbf16> to vector<128x128xbf16>
    %cst_183 = arith.constant dense<0.000000e+00> : vector<64x128xf32>
    %272 = tpu.matmul %259, %271, %cst_183 {dimension_numbers = #tpu.dot_dimension_numbers<[1], [0], [0], [1], [0, 0, 1, 1], [], []>} : vector<64x128xbf16>, vector<128x128xbf16>, vector<64x128xf32> -> vector<64x128xf32>
    %273 = arith.truncf %272 : vector<64x128xf32> to vector<64x128xbf16>
    %c128_184 = arith.constant 128 : index
    %c0_185 = arith.constant 0 : index
    %274 = vector.load %arg10[%c128_184, %c0_185] : memref<512x128xbf16, #tpu.memory_space<vmem>>, vector<64x128xbf16>
    tpu.vector_store %arg10[%c128_184, %c0_185], %273 {strides = array<i32>} : memref<512x128xbf16, #tpu.memory_space<vmem>>, vector<64x128xbf16>,
    %c27 = arith.constant 27 : index
    %c0_186 = arith.constant 0 : index
    %c0_187 = arith.constant 0 : index
    %275 = vector.load %arg3[%c27, %c0_186, %c0_187] : memref<40x128x128xbf16, #tpu.memory_space<vmem>>, vector<1x128x128xbf16>
    %276 = vector.shape_cast %275 : vector<1x128x128xbf16> to vector<128x128xbf16>
    %cst_188 = arith.constant dense<0.000000e+00> : vector<64x128xf32>
    %277 = tpu.matmul %259, %276, %cst_188 {dimension_numbers = #tpu.dot_dimension_numbers<[1], [0], [0], [1], [0, 0, 1, 1], [], []>} : vector<64x128xbf16>, vector<128x128xbf16>, vector<64x128xf32> -> vector<64x128xf32>
    %278 = arith.truncf %277 : vector<64x128xf32> to vector<64x128xbf16>
    %c192_189 = arith.constant 192 : index
    %c0_190 = arith.constant 0 : index
    %279 = vector.load %arg10[%c192_189, %c0_190] : memref<512x128xbf16, #tpu.memory_space<vmem>>, vector<64x128xbf16>
    tpu.vector_store %arg10[%c192_189, %c0_190], %278 {strides = array<i32>} : memref<512x128xbf16, #tpu.memory_space<vmem>>, vector<64x128xbf16>,
    %c28 = arith.constant 28 : index
    %c0_191 = arith.constant 0 : index
    %c0_192 = arith.constant 0 : index
    %280 = vector.load %arg3[%c28, %c0_191, %c0_192] : memref<40x128x128xbf16, #tpu.memory_space<vmem>>, vector<1x128x128xbf16>
    %281 = vector.shape_cast %280 : vector<1x128x128xbf16> to vector<128x128xbf16>
    %cst_193 = arith.constant dense<0.000000e+00> : vector<64x128xf32>
    %282 = tpu.matmul %259, %281, %cst_193 {dimension_numbers = #tpu.dot_dimension_numbers<[1], [0], [0], [1], [0, 0, 1, 1], [], []>} : vector<64x128xbf16>, vector<128x128xbf16>, vector<64x128xf32> -> vector<64x128xf32>
    %283 = arith.truncf %282 : vector<64x128xf32> to vector<64x128xbf16>
    %c256_194 = arith.constant 256 : index
    %c0_195 = arith.constant 0 : index
    %284 = vector.load %arg10[%c256_194, %c0_195] : memref<512x128xbf16, #tpu.memory_space<vmem>>, vector<64x128xbf16>
    tpu.vector_store %arg10[%c256_194, %c0_195], %283 {strides = array<i32>} : memref<512x128xbf16, #tpu.memory_space<vmem>>, vector<64x128xbf16>,
    %c29 = arith.constant 29 : index
    %c0_196 = arith.constant 0 : index
    %c0_197 = arith.constant 0 : index
    %285 = vector.load %arg3[%c29, %c0_196, %c0_197] : memref<40x128x128xbf16, #tpu.memory_space<vmem>>, vector<1x128x128xbf16>
    %286 = vector.shape_cast %285 : vector<1x128x128xbf16> to vector<128x128xbf16>
    %cst_198 = arith.constant dense<0.000000e+00> : vector<64x128xf32>
    %287 = tpu.matmul %259, %286, %cst_198 {dimension_numbers = #tpu.dot_dimension_numbers<[1], [0], [0], [1], [0, 0, 1, 1], [], []>} : vector<64x128xbf16>, vector<128x128xbf16>, vector<64x128xf32> -> vector<64x128xf32>
    %288 = arith.truncf %287 : vector<64x128xf32> to vector<64x128xbf16>
    %c320_199 = arith.constant 320 : index
    %c0_200 = arith.constant 0 : index
    %289 = vector.load %arg10[%c320_199, %c0_200] : memref<512x128xbf16, #tpu.memory_space<vmem>>, vector<64x128xbf16>
    tpu.vector_store %arg10[%c320_199, %c0_200], %288 {strides = array<i32>} : memref<512x128xbf16, #tpu.memory_space<vmem>>, vector<64x128xbf16>,
    %c30 = arith.constant 30 : index
    %c0_201 = arith.constant 0 : index
    %c0_202 = arith.constant 0 : index
    %290 = vector.load %arg3[%c30, %c0_201, %c0_202] : memref<40x128x128xbf16, #tpu.memory_space<vmem>>, vector<1x128x128xbf16>
    %291 = vector.shape_cast %290 : vector<1x128x128xbf16> to vector<128x128xbf16>
    %cst_203 = arith.constant dense<0.000000e+00> : vector<64x128xf32>
    %292 = tpu.matmul %259, %291, %cst_203 {dimension_numbers = #tpu.dot_dimension_numbers<[1], [0], [0], [1], [0, 0, 1, 1], [], []>} : vector<64x128xbf16>, vector<128x128xbf16>, vector<64x128xf32> -> vector<64x128xf32>
    %293 = arith.truncf %292 : vector<64x128xf32> to vector<64x128xbf16>
    %c384_204 = arith.constant 384 : index
    %c0_205 = arith.constant 0 : index
    %294 = vector.load %arg10[%c384_204, %c0_205] : memref<512x128xbf16, #tpu.memory_space<vmem>>, vector<64x128xbf16>
    tpu.vector_store %arg10[%c384_204, %c0_205], %293 {strides = array<i32>} : memref<512x128xbf16, #tpu.memory_space<vmem>>, vector<64x128xbf16>,
    %c31 = arith.constant 31 : index
    %c0_206 = arith.constant 0 : index
    %c0_207 = arith.constant 0 : index
    %295 = vector.load %arg3[%c31, %c0_206, %c0_207] : memref<40x128x128xbf16, #tpu.memory_space<vmem>>, vector<1x128x128xbf16>
    %296 = vector.shape_cast %295 : vector<1x128x128xbf16> to vector<128x128xbf16>
    %cst_208 = arith.constant dense<0.000000e+00> : vector<64x128xf32>
    %297 = tpu.matmul %259, %296, %cst_208 {dimension_numbers = #tpu.dot_dimension_numbers<[1], [0], [0], [1], [0, 0, 1, 1], [], []>} : vector<64x128xbf16>, vector<128x128xbf16>, vector<64x128xf32> -> vector<64x128xf32>
    %298 = arith.truncf %297 : vector<64x128xf32> to vector<64x128xbf16>
    %c448_209 = arith.constant 448 : index
    %c0_210 = arith.constant 0 : index
    %299 = vector.load %arg10[%c448_209, %c0_210] : memref<512x128xbf16, #tpu.memory_space<vmem>>, vector<64x128xbf16>
    tpu.vector_store %arg10[%c448_209, %c0_210], %298 {strides = array<i32>} : memref<512x128xbf16, #tpu.memory_space<vmem>>, vector<64x128xbf16>,
    %c0_211 = arith.constant 0 : index
    %c0_212 = arith.constant 0 : index
    %300 = vector.load %arg10[%c0_211, %c0_212] : memref<512x128xbf16, #tpu.memory_space<vmem>>, vector<512x128xbf16>
    %cst_213 = arith.constant dense<0.000000e+00> : vector<64x128xf32>
    %301 = tpu.matmul %0, %300, %cst_213 {dimension_numbers = #tpu.dot_dimension_numbers<[1], [0], [0], [1], [0, 0, 1, 1], [], []>} : vector<64x512xbf16>, vector<512x128xbf16>, vector<64x128xf32> -> vector<64x128xf32>
    %302 = vector.broadcast %1 : vector<64x1xf32> to vector<64x128xf32>
    %303 = arith.mulf %301, %302 : vector<64x128xf32>
    %cst_214 = arith.constant 0.000000e+00 : f32
    %304 = vector.broadcast %cst_214 : f32 to vector<64x128xf32>
    %305 = arith.cmpf ogt, %303, %304 : vector<64x128xf32>
    %cst_215 = arith.constant 0.000000e+00 : f32
    %306 = vector.broadcast %cst_215 : f32 to vector<64x128xf32>
    %307 = arith.minimumf %303, %306 : vector<64x128xf32>
    %308 = math.exp %307 : vector<64x128xf32>
    %cst_216 = arith.constant 1.000000e+00 : f32
    %309 = vector.broadcast %cst_216 : f32 to vector<64x128xf32>
    %310 = arith.subf %308, %309 : vector<64x128xf32>
    %311 = arith.select %305, %303, %310 : vector<64x128xi1>, vector<64x128xf32>
    %312 = vector.broadcast %2 : vector<64x1xf32> to vector<64x128xf32>
    %313 = arith.mulf %311, %312 : vector<64x128xf32>
    %cst_217 = arith.constant dense<0.000000e+00> : vector<128xf32>
    %314 = vector.multi_reduction <add>, %313, %cst_217 [0] : vector<64x128xf32> to vector<128xf32>
    %315 = vector.shape_cast %314 : vector<128xf32> to vector<1x128xf32>
    %cst_218 = arith.constant 1.562500e-02 : f32
    %316 = vector.broadcast %cst_218 : f32 to vector<1x128xf32>
    %317 = arith.mulf %315, %316 : vector<1x128xf32>
    %318 = vector.broadcast %317 : vector<1x128xf32> to vector<64x128xf32>
    %319 = arith.subf %311, %318 : vector<64x128xf32>
    %320 = vector.broadcast %2 : vector<64x1xf32> to vector<64x128xf32>
    %321 = arith.mulf %319, %320 : vector<64x128xf32>
    %322 = arith.mulf %321, %321 : vector<64x128xf32>
    %cst_219 = arith.constant dense<0.000000e+00> : vector<128xf32>
    %323 = vector.multi_reduction <add>, %322, %cst_219 [0] : vector<64x128xf32> to vector<128xf32>
    %324 = vector.shape_cast %323 : vector<128xf32> to vector<1x128xf32>
    %cst_220 = arith.constant 1.562500e-02 : f32
    %325 = vector.broadcast %cst_220 : f32 to vector<1x128xf32>
    %326 = arith.mulf %324, %325 : vector<1x128xf32>
    %327 = vector.broadcast %317 : vector<1x128xf32> to vector<64x128xf32>
    %328 = arith.subf %311, %327 : vector<64x128xf32>
    %cst_221 = arith.constant 9.99999974E-6 : f32
    %329 = vector.broadcast %cst_221 : f32 to vector<1x128xf32>
    %330 = arith.addf %326, %329 : vector<1x128xf32>
    %331 = math.rsqrt %330 : vector<1x128xf32>
    %332 = vector.broadcast %331 : vector<1x128xf32> to vector<64x128xf32>
    %333 = arith.mulf %328, %332 : vector<64x128xf32>
    %c3_222 = arith.constant 3 : index
    %c0_223 = arith.constant 0 : index
    %c0_224 = arith.constant 0 : index
    %334 = vector.load %arg4[%c3_222, %c0_223, %c0_224] : memref<5x1x128xf32, #tpu.memory_space<vmem>>, vector<1x1x128xf32>
    %335 = vector.shape_cast %334 : vector<1x1x128xf32> to vector<1x128xf32>
    %336 = vector.broadcast %335 : vector<1x128xf32> to vector<64x128xf32>
    %337 = arith.mulf %333, %336 : vector<64x128xf32>
    %c3_225 = arith.constant 3 : index
    %c0_226 = arith.constant 0 : index
    %c0_227 = arith.constant 0 : index
    %338 = vector.load %arg5[%c3_225, %c0_226, %c0_227] : memref<5x1x128xf32, #tpu.memory_space<vmem>>, vector<1x1x128xf32>
    %339 = vector.shape_cast %338 : vector<1x1x128xf32> to vector<1x128xf32>
    %340 = vector.broadcast %339 : vector<1x128xf32> to vector<64x128xf32>
    %341 = arith.addf %337, %340 : vector<64x128xf32>
    %342 = vector.broadcast %2 : vector<64x1xf32> to vector<64x128xf32>
    %343 = arith.mulf %341, %342 : vector<64x128xf32>
    %344 = arith.addf %343, %173 : vector<64x128xf32>
    %345 = arith.truncf %344 : vector<64x128xf32> to vector<64x128xbf16>
    %c32 = arith.constant 32 : index
    %c0_228 = arith.constant 0 : index
    %c0_229 = arith.constant 0 : index
    %346 = vector.load %arg3[%c32, %c0_228, %c0_229] : memref<40x128x128xbf16, #tpu.memory_space<vmem>>, vector<1x128x128xbf16>
    %347 = vector.shape_cast %346 : vector<1x128x128xbf16> to vector<128x128xbf16>
    %cst_230 = arith.constant dense<0.000000e+00> : vector<64x128xf32>
    %348 = tpu.matmul %345, %347, %cst_230 {dimension_numbers = #tpu.dot_dimension_numbers<[1], [0], [0], [1], [0, 0, 1, 1], [], []>} : vector<64x128xbf16>, vector<128x128xbf16>, vector<64x128xf32> -> vector<64x128xf32>
    %349 = arith.truncf %348 : vector<64x128xf32> to vector<64x128xbf16>
    %c0_231 = arith.constant 0 : index
    %c0_232 = arith.constant 0 : index
    %350 = vector.load %arg10[%c0_231, %c0_232] : memref<512x128xbf16, #tpu.memory_space<vmem>>, vector<64x128xbf16>
    tpu.vector_store %arg10[%c0_231, %c0_232], %349 {strides = array<i32>} : memref<512x128xbf16, #tpu.memory_space<vmem>>, vector<64x128xbf16>,
    %c33 = arith.constant 33 : index
    %c0_233 = arith.constant 0 : index
    %c0_234 = arith.constant 0 : index
    %351 = vector.load %arg3[%c33, %c0_233, %c0_234] : memref<40x128x128xbf16, #tpu.memory_space<vmem>>, vector<1x128x128xbf16>
    %352 = vector.shape_cast %351 : vector<1x128x128xbf16> to vector<128x128xbf16>
    %cst_235 = arith.constant dense<0.000000e+00> : vector<64x128xf32>
    %353 = tpu.matmul %345, %352, %cst_235 {dimension_numbers = #tpu.dot_dimension_numbers<[1], [0], [0], [1], [0, 0, 1, 1], [], []>} : vector<64x128xbf16>, vector<128x128xbf16>, vector<64x128xf32> -> vector<64x128xf32>
    %354 = arith.truncf %353 : vector<64x128xf32> to vector<64x128xbf16>
    %c64_236 = arith.constant 64 : index
    %c0_237 = arith.constant 0 : index
    %355 = vector.load %arg10[%c64_236, %c0_237] : memref<512x128xbf16, #tpu.memory_space<vmem>>, vector<64x128xbf16>
    tpu.vector_store %arg10[%c64_236, %c0_237], %354 {strides = array<i32>} : memref<512x128xbf16, #tpu.memory_space<vmem>>, vector<64x128xbf16>,
    %c34 = arith.constant 34 : index
    %c0_238 = arith.constant 0 : index
    %c0_239 = arith.constant 0 : index
    %356 = vector.load %arg3[%c34, %c0_238, %c0_239] : memref<40x128x128xbf16, #tpu.memory_space<vmem>>, vector<1x128x128xbf16>
    %357 = vector.shape_cast %356 : vector<1x128x128xbf16> to vector<128x128xbf16>
    %cst_240 = arith.constant dense<0.000000e+00> : vector<64x128xf32>
    %358 = tpu.matmul %345, %357, %cst_240 {dimension_numbers = #tpu.dot_dimension_numbers<[1], [0], [0], [1], [0, 0, 1, 1], [], []>} : vector<64x128xbf16>, vector<128x128xbf16>, vector<64x128xf32> -> vector<64x128xf32>
    %359 = arith.truncf %358 : vector<64x128xf32> to vector<64x128xbf16>
    %c128_241 = arith.constant 128 : index
    %c0_242 = arith.constant 0 : index
    %360 = vector.load %arg10[%c128_241, %c0_242] : memref<512x128xbf16, #tpu.memory_space<vmem>>, vector<64x128xbf16>
    tpu.vector_store %arg10[%c128_241, %c0_242], %359 {strides = array<i32>} : memref<512x128xbf16, #tpu.memory_space<vmem>>, vector<64x128xbf16>,
    %c35 = arith.constant 35 : index
    %c0_243 = arith.constant 0 : index
    %c0_244 = arith.constant 0 : index
    %361 = vector.load %arg3[%c35, %c0_243, %c0_244] : memref<40x128x128xbf16, #tpu.memory_space<vmem>>, vector<1x128x128xbf16>
    %362 = vector.shape_cast %361 : vector<1x128x128xbf16> to vector<128x128xbf16>
    %cst_245 = arith.constant dense<0.000000e+00> : vector<64x128xf32>
    %363 = tpu.matmul %345, %362, %cst_245 {dimension_numbers = #tpu.dot_dimension_numbers<[1], [0], [0], [1], [0, 0, 1, 1], [], []>} : vector<64x128xbf16>, vector<128x128xbf16>, vector<64x128xf32> -> vector<64x128xf32>
    %364 = arith.truncf %363 : vector<64x128xf32> to vector<64x128xbf16>
    %c192_246 = arith.constant 192 : index
    %c0_247 = arith.constant 0 : index
    %365 = vector.load %arg10[%c192_246, %c0_247] : memref<512x128xbf16, #tpu.memory_space<vmem>>, vector<64x128xbf16>
    tpu.vector_store %arg10[%c192_246, %c0_247], %364 {strides = array<i32>} : memref<512x128xbf16, #tpu.memory_space<vmem>>, vector<64x128xbf16>,
    %c36 = arith.constant 36 : index
    %c0_248 = arith.constant 0 : index
    %c0_249 = arith.constant 0 : index
    %366 = vector.load %arg3[%c36, %c0_248, %c0_249] : memref<40x128x128xbf16, #tpu.memory_space<vmem>>, vector<1x128x128xbf16>
    %367 = vector.shape_cast %366 : vector<1x128x128xbf16> to vector<128x128xbf16>
    %cst_250 = arith.constant dense<0.000000e+00> : vector<64x128xf32>
    %368 = tpu.matmul %345, %367, %cst_250 {dimension_numbers = #tpu.dot_dimension_numbers<[1], [0], [0], [1], [0, 0, 1, 1], [], []>} : vector<64x128xbf16>, vector<128x128xbf16>, vector<64x128xf32> -> vector<64x128xf32>
    %369 = arith.truncf %368 : vector<64x128xf32> to vector<64x128xbf16>
    %c256_251 = arith.constant 256 : index
    %c0_252 = arith.constant 0 : index
    %370 = vector.load %arg10[%c256_251, %c0_252] : memref<512x128xbf16, #tpu.memory_space<vmem>>, vector<64x128xbf16>
    tpu.vector_store %arg10[%c256_251, %c0_252], %369 {strides = array<i32>} : memref<512x128xbf16, #tpu.memory_space<vmem>>, vector<64x128xbf16>,
    %c37 = arith.constant 37 : index
    %c0_253 = arith.constant 0 : index
    %c0_254 = arith.constant 0 : index
    %371 = vector.load %arg3[%c37, %c0_253, %c0_254] : memref<40x128x128xbf16, #tpu.memory_space<vmem>>, vector<1x128x128xbf16>
    %372 = vector.shape_cast %371 : vector<1x128x128xbf16> to vector<128x128xbf16>
    %cst_255 = arith.constant dense<0.000000e+00> : vector<64x128xf32>
    %373 = tpu.matmul %345, %372, %cst_255 {dimension_numbers = #tpu.dot_dimension_numbers<[1], [0], [0], [1], [0, 0, 1, 1], [], []>} : vector<64x128xbf16>, vector<128x128xbf16>, vector<64x128xf32> -> vector<64x128xf32>
    %374 = arith.truncf %373 : vector<64x128xf32> to vector<64x128xbf16>
    %c320_256 = arith.constant 320 : index
    %c0_257 = arith.constant 0 : index
    %375 = vector.load %arg10[%c320_256, %c0_257] : memref<512x128xbf16, #tpu.memory_space<vmem>>, vector<64x128xbf16>
    tpu.vector_store %arg10[%c320_256, %c0_257], %374 {strides = array<i32>} : memref<512x128xbf16, #tpu.memory_space<vmem>>, vector<64x128xbf16>,
    %c38 = arith.constant 38 : index
    %c0_258 = arith.constant 0 : index
    %c0_259 = arith.constant 0 : index
    %376 = vector.load %arg3[%c38, %c0_258, %c0_259] : memref<40x128x128xbf16, #tpu.memory_space<vmem>>, vector<1x128x128xbf16>
    %377 = vector.shape_cast %376 : vector<1x128x128xbf16> to vector<128x128xbf16>
    %cst_260 = arith.constant dense<0.000000e+00> : vector<64x128xf32>
    %378 = tpu.matmul %345, %377, %cst_260 {dimension_numbers = #tpu.dot_dimension_numbers<[1], [0], [0], [1], [0, 0, 1, 1], [], []>} : vector<64x128xbf16>, vector<128x128xbf16>, vector<64x128xf32> -> vector<64x128xf32>
    %379 = arith.truncf %378 : vector<64x128xf32> to vector<64x128xbf16>
    %c384_261 = arith.constant 384 : index
    %c0_262 = arith.constant 0 : index
    %380 = vector.load %arg10[%c384_261, %c0_262] : memref<512x128xbf16, #tpu.memory_space<vmem>>, vector<64x128xbf16>
    tpu.vector_store %arg10[%c384_261, %c0_262], %379 {strides = array<i32>} : memref<512x128xbf16, #tpu.memory_space<vmem>>, vector<64x128xbf16>,
    %c39 = arith.constant 39 : index
    %c0_263 = arith.constant 0 : index
    %c0_264 = arith.constant 0 : index
    %381 = vector.load %arg3[%c39, %c0_263, %c0_264] : memref<40x128x128xbf16, #tpu.memory_space<vmem>>, vector<1x128x128xbf16>
    %382 = vector.shape_cast %381 : vector<1x128x128xbf16> to vector<128x128xbf16>
    %cst_265 = arith.constant dense<0.000000e+00> : vector<64x128xf32>
    %383 = tpu.matmul %345, %382, %cst_265 {dimension_numbers = #tpu.dot_dimension_numbers<[1], [0], [0], [1], [0, 0, 1, 1], [], []>} : vector<64x128xbf16>, vector<128x128xbf16>, vector<64x128xf32> -> vector<64x128xf32>
    %384 = arith.truncf %383 : vector<64x128xf32> to vector<64x128xbf16>
    %c448_266 = arith.constant 448 : index
    %c0_267 = arith.constant 0 : index
    %385 = vector.load %arg10[%c448_266, %c0_267] : memref<512x128xbf16, #tpu.memory_space<vmem>>, vector<64x128xbf16>
    tpu.vector_store %arg10[%c448_266, %c0_267], %384 {strides = array<i32>} : memref<512x128xbf16, #tpu.memory_space<vmem>>, vector<64x128xbf16>,
    %c0_268 = arith.constant 0 : index
    %c0_269 = arith.constant 0 : index
    %386 = vector.load %arg10[%c0_268, %c0_269] : memref<512x128xbf16, #tpu.memory_space<vmem>>, vector<512x128xbf16>
    %cst_270 = arith.constant dense<0.000000e+00> : vector<64x128xf32>
    %387 = tpu.matmul %0, %386, %cst_270 {dimension_numbers = #tpu.dot_dimension_numbers<[1], [0], [0], [1], [0, 0, 1, 1], [], []>} : vector<64x512xbf16>, vector<512x128xbf16>, vector<64x128xf32> -> vector<64x128xf32>
    %388 = vector.broadcast %1 : vector<64x1xf32> to vector<64x128xf32>
    %389 = arith.mulf %387, %388 : vector<64x128xf32>
    %cst_271 = arith.constant 0.000000e+00 : f32
    %390 = vector.broadcast %cst_271 : f32 to vector<64x128xf32>
    %391 = arith.cmpf ogt, %389, %390 : vector<64x128xf32>
    %cst_272 = arith.constant 0.000000e+00 : f32
    %392 = vector.broadcast %cst_272 : f32 to vector<64x128xf32>
    %393 = arith.minimumf %389, %392 : vector<64x128xf32>
    %394 = math.exp %393 : vector<64x128xf32>
    %cst_273 = arith.constant 1.000000e+00 : f32
    %395 = vector.broadcast %cst_273 : f32 to vector<64x128xf32>
    %396 = arith.subf %394, %395 : vector<64x128xf32>
    %397 = arith.select %391, %389, %396 : vector<64x128xi1>, vector<64x128xf32>
    %398 = vector.broadcast %2 : vector<64x1xf32> to vector<64x128xf32>
    %399 = arith.mulf %397, %398 : vector<64x128xf32>
    %cst_274 = arith.constant dense<0.000000e+00> : vector<128xf32>
    %400 = vector.multi_reduction <add>, %399, %cst_274 [0] : vector<64x128xf32> to vector<128xf32>
    %401 = vector.shape_cast %400 : vector<128xf32> to vector<1x128xf32>
    %cst_275 = arith.constant 1.562500e-02 : f32
    %402 = vector.broadcast %cst_275 : f32 to vector<1x128xf32>
    %403 = arith.mulf %401, %402 : vector<1x128xf32>
    %404 = vector.broadcast %403 : vector<1x128xf32> to vector<64x128xf32>
    %405 = arith.subf %397, %404 : vector<64x128xf32>
    %406 = vector.broadcast %2 : vector<64x1xf32> to vector<64x128xf32>
    %407 = arith.mulf %405, %406 : vector<64x128xf32>
    %408 = arith.mulf %407, %407 : vector<64x128xf32>
    %cst_276 = arith.constant dense<0.000000e+00> : vector<128xf32>
    %409 = vector.multi_reduction <add>, %408, %cst_276 [0] : vector<64x128xf32> to vector<128xf32>
    %410 = vector.shape_cast %409 : vector<128xf32> to vector<1x128xf32>
    %cst_277 = arith.constant 1.562500e-02 : f32
    %411 = vector.broadcast %cst_277 : f32 to vector<1x128xf32>
    %412 = arith.mulf %410, %411 : vector<1x128xf32>
    %413 = vector.broadcast %403 : vector<1x128xf32> to vector<64x128xf32>
    %414 = arith.subf %397, %413 : vector<64x128xf32>
    %cst_278 = arith.constant 9.99999974E-6 : f32
    %415 = vector.broadcast %cst_278 : f32 to vector<1x128xf32>
    %416 = arith.addf %412, %415 : vector<1x128xf32>
    %417 = math.rsqrt %416 : vector<1x128xf32>
    %418 = vector.broadcast %417 : vector<1x128xf32> to vector<64x128xf32>
    %419 = arith.mulf %414, %418 : vector<64x128xf32>
    %c4_279 = arith.constant 4 : index
    %c0_280 = arith.constant 0 : index
    %c0_281 = arith.constant 0 : index
    %420 = vector.load %arg4[%c4_279, %c0_280, %c0_281] : memref<5x1x128xf32, #tpu.memory_space<vmem>>, vector<1x1x128xf32>
    %421 = vector.shape_cast %420 : vector<1x1x128xf32> to vector<1x128xf32>
    %422 = vector.broadcast %421 : vector<1x128xf32> to vector<64x128xf32>
    %423 = arith.mulf %419, %422 : vector<64x128xf32>
    %c4_282 = arith.constant 4 : index
    %c0_283 = arith.constant 0 : index
    %c0_284 = arith.constant 0 : index
    %424 = vector.load %arg5[%c4_282, %c0_283, %c0_284] : memref<5x1x128xf32, #tpu.memory_space<vmem>>, vector<1x1x128xf32>
    %425 = vector.shape_cast %424 : vector<1x1x128xf32> to vector<1x128xf32>
    %426 = vector.broadcast %425 : vector<1x128xf32> to vector<64x128xf32>
    %427 = arith.addf %423, %426 : vector<64x128xf32>
    %428 = vector.broadcast %2 : vector<64x1xf32> to vector<64x128xf32>
    %429 = arith.mulf %427, %428 : vector<64x128xf32>
    %c0_285 = arith.constant 0 : index
    %c0_286 = arith.constant 0 : index
    %430 = vector.load %arg8[%c0_285, %c0_286] : memref<64x64xf32, #tpu.memory_space<vmem>>, vector<64x64xf32>
    %cst_287 = arith.constant dense<0.000000e+00> : vector<64x128xf32>
    %431 = tpu.matmul %430, %429, %cst_287 {dimension_numbers = #tpu.dot_dimension_numbers<[1], [0], [0], [1], [0, 0, 1, 1], [], []>} : vector<64x64xf32>, vector<64x128xf32>, vector<64x128xf32> -> vector<64x128xf32>
    %c0_288 = arith.constant 0 : index
    %c0_289 = arith.constant 0 : index
    %432 = vector.load %arg9[%c0_288, %c0_289] : memref<64x128xf32, #tpu.memory_space<vmem>>, vector<64x128xf32>
    tpu.vector_store %arg9[%c0_288, %c0_289], %431 {strides = array<i32>} : memref<64x128xf32, #tpu.memory_space<vmem>>, vector<64x128xf32>,
    return
  }
  func.func @transform_0(%arg0: i32) -> (i32, i32) {
    %c0_i32 = arith.constant 0 : i32
    %c0_i32_0 = arith.constant 0 : i32
    %c0_i32_1 = arith.constant 0 : i32
    return %c0_i32, %c0_i32_0 : i32, i32
  }
  func.func @transform_1(%arg0: i32) -> (i32, i32) {
    %c0_i32 = arith.constant 0 : i32
    %c0_i32_0 = arith.constant 0 : i32
    %c0_i32_1 = arith.constant 0 : i32
    return %c0_i32, %c0_i32_0 : i32, i32
  }
  func.func @transform_2(%arg0: i32) -> (i32, i32, i32) {
    %c0_i32 = arith.constant 0 : i32
    %c0_i32_0 = arith.constant 0 : i32
    %c0_i32_1 = arith.constant 0 : i32
    %c0_i32_2 = arith.constant 0 : i32
    return %c0_i32, %c0_i32_0, %c0_i32_1 : i32, i32, i32
  }
  func.func @transform_3(%arg0: i32) -> (i32, i32, i32) {
    %c0_i32 = arith.constant 0 : i32
    %c0_i32_0 = arith.constant 0 : i32
    %c0_i32_1 = arith.constant 0 : i32
    %c0_i32_2 = arith.constant 0 : i32
    return %c0_i32, %c0_i32_0, %c0_i32_1 : i32, i32, i32
  }
  func.func @transform_4(%arg0: i32) -> (i32, i32, i32) {
    %c0_i32 = arith.constant 0 : i32
    %c0_i32_0 = arith.constant 0 : i32
    %c0_i32_1 = arith.constant 0 : i32
    %c0_i32_2 = arith.constant 0 : i32
    return %c0_i32, %c0_i32_0, %c0_i32_1 : i32, i32, i32
  }
  func.func @transform_5(%arg0: i32) -> (i32, i32) {
    %c0_i32 = arith.constant 0 : i32
    %c0_i32_0 = arith.constant 0 : i32
    %c0_i32_1 = arith.constant 0 : i32
    return %c0_i32, %c0_i32_0 : i32, i32
  }
  func.func @transform_6(%arg0: i32) -> (i32, i32) {
    %c0_i32 = arith.constant 0 : i32
    %c0_i32_0 = arith.constant 0 : i32
    %c0_i32_1 = arith.constant 0 : i32
    return %c0_i32, %c0_i32_0 : i32, i32
  }
  func.func @transform_7(%arg0: i32) -> (i32, i32) {
    %c0_i32 = arith.constant 0 : i32
    %c0_i32_0 = arith.constant 0 : i32
    %c0_i32_1 = arith.constant 0 : i32
    return %c0_i32, %c0_i32_0 : i32, i32
  }
  func.func @transform_8(%arg0: i32) -> (i32, i32) {
    %c0_i32 = arith.constant 0 : i32
    %c0_i32_0 = arith.constant 0 : i32
    %c0_i32_1 = arith.constant 0 : i32
    return %c0_i32, %c0_i32_0 : i32, i32
  }
}

module attributes {stable_mosaic.version = 11 : i64} {
  func.func @kernel(%arg0: i32, %arg1: memref<32x128xf32, #tpu.memory_space<vmem>>, %arg2: memref<32x256xbf16, #tpu.memory_space<vmem>>, %arg3: memref<16x128x128xbf16, #tpu.memory_space<vmem>>, %arg4: memref<2x1x128xf32, #tpu.memory_space<vmem>>, %arg5: memref<2x1x128xf32, #tpu.memory_space<vmem>>, %arg6: memref<32x1xf32, #tpu.memory_space<vmem>>, %arg7: memref<32x1xf32, #tpu.memory_space<vmem>>, %arg8: memref<32x128xf32, #tpu.memory_space<vmem>>, %arg9: memref<256x128xbf16, #tpu.memory_space<vmem>>) attributes {dimension_semantics = [#tpu.dimension_semantics<arbitrary>], iteration_bounds = array<i64: 1>, scalar_prefetch = 0 : i64, scratch_operands = 1 : i64, tpu.core_type = #tpu.core_type<tc>, window_params = [{pipeline_mode = #tpu.pipeline_mode<synchronous>, transform_indices = @transform_0, window_bounds = array<i64: 32, 128>}, {pipeline_mode = #tpu.pipeline_mode<synchronous>, transform_indices = @transform_1, window_bounds = array<i64: 32, 256>}, {pipeline_mode = #tpu.pipeline_mode<synchronous>, transform_indices = @transform_2, window_bounds = array<i64: 16, 128, 128>}, {pipeline_mode = #tpu.pipeline_mode<synchronous>, transform_indices = @transform_3, window_bounds = array<i64: 2, 1, 128>}, {pipeline_mode = #tpu.pipeline_mode<synchronous>, transform_indices = @transform_4, window_bounds = array<i64: 2, 1, 128>}, {pipeline_mode = #tpu.pipeline_mode<synchronous>, transform_indices = @transform_5, window_bounds = array<i64: 32, 1>}, {pipeline_mode = #tpu.pipeline_mode<synchronous>, transform_indices = @transform_6, window_bounds = array<i64: 32, 1>}, {pipeline_mode = #tpu.pipeline_mode<synchronous>, transform_indices = @transform_7, window_bounds = array<i64: 32, 128>}]} {
    %c0 = arith.constant 0 : index
    %c0_0 = arith.constant 0 : index
    %0 = vector.load %arg2[%c0, %c0_0] : memref<32x256xbf16, #tpu.memory_space<vmem>>, vector<32x256xbf16>
    %c0_1 = arith.constant 0 : index
    %c0_2 = arith.constant 0 : index
    %1 = vector.load %arg6[%c0_1, %c0_2] : memref<32x1xf32, #tpu.memory_space<vmem>>, vector<32x1xf32>
    %c0_3 = arith.constant 0 : index
    %c0_4 = arith.constant 0 : index
    %2 = vector.load %arg7[%c0_3, %c0_4] : memref<32x1xf32, #tpu.memory_space<vmem>>, vector<32x1xf32>
    %c0_5 = arith.constant 0 : index
    %c0_6 = arith.constant 0 : index
    %3 = vector.load %arg1[%c0_5, %c0_6] : memref<32x128xf32, #tpu.memory_space<vmem>>, vector<32x128xf32>
    %4 = arith.truncf %3 : vector<32x128xf32> to vector<32x128xbf16>
    %c0_7 = arith.constant 0 : index
    %c0_8 = arith.constant 0 : index
    %c0_9 = arith.constant 0 : index
    %5 = vector.load %arg3[%c0_7, %c0_8, %c0_9] : memref<16x128x128xbf16, #tpu.memory_space<vmem>>, vector<1x128x128xbf16>
    %6 = vector.shape_cast %5 : vector<1x128x128xbf16> to vector<128x128xbf16>
    %cst = arith.constant dense<0.000000e+00> : vector<32x128xf32>
    %7 = tpu.matmul %4, %6, %cst {dimension_numbers = #tpu.dot_dimension_numbers<[1], [0], [0], [1], [0, 0, 1, 1], [], []>} : vector<32x128xbf16>, vector<128x128xbf16>, vector<32x128xf32> -> vector<32x128xf32>
    %8 = arith.truncf %7 : vector<32x128xf32> to vector<32x128xbf16>
    %c0_10 = arith.constant 0 : index
    %c0_11 = arith.constant 0 : index
    %9 = vector.load %arg9[%c0_10, %c0_11] : memref<256x128xbf16, #tpu.memory_space<vmem>>, vector<32x128xbf16>
    tpu.vector_store %arg9[%c0_10, %c0_11], %8 {strides = array<i32>} : memref<256x128xbf16, #tpu.memory_space<vmem>>, vector<32x128xbf16>,
    %c1 = arith.constant 1 : index
    %c0_12 = arith.constant 0 : index
    %c0_13 = arith.constant 0 : index
    %10 = vector.load %arg3[%c1, %c0_12, %c0_13] : memref<16x128x128xbf16, #tpu.memory_space<vmem>>, vector<1x128x128xbf16>
    %11 = vector.shape_cast %10 : vector<1x128x128xbf16> to vector<128x128xbf16>
    %cst_14 = arith.constant dense<0.000000e+00> : vector<32x128xf32>
    %12 = tpu.matmul %4, %11, %cst_14 {dimension_numbers = #tpu.dot_dimension_numbers<[1], [0], [0], [1], [0, 0, 1, 1], [], []>} : vector<32x128xbf16>, vector<128x128xbf16>, vector<32x128xf32> -> vector<32x128xf32>
    %13 = arith.truncf %12 : vector<32x128xf32> to vector<32x128xbf16>
    %c32 = arith.constant 32 : index
    %c0_15 = arith.constant 0 : index
    %14 = vector.load %arg9[%c32, %c0_15] : memref<256x128xbf16, #tpu.memory_space<vmem>>, vector<32x128xbf16>
    tpu.vector_store %arg9[%c32, %c0_15], %13 {strides = array<i32>} : memref<256x128xbf16, #tpu.memory_space<vmem>>, vector<32x128xbf16>,
    %c2 = arith.constant 2 : index
    %c0_16 = arith.constant 0 : index
    %c0_17 = arith.constant 0 : index
    %15 = vector.load %arg3[%c2, %c0_16, %c0_17] : memref<16x128x128xbf16, #tpu.memory_space<vmem>>, vector<1x128x128xbf16>
    %16 = vector.shape_cast %15 : vector<1x128x128xbf16> to vector<128x128xbf16>
    %cst_18 = arith.constant dense<0.000000e+00> : vector<32x128xf32>
    %17 = tpu.matmul %4, %16, %cst_18 {dimension_numbers = #tpu.dot_dimension_numbers<[1], [0], [0], [1], [0, 0, 1, 1], [], []>} : vector<32x128xbf16>, vector<128x128xbf16>, vector<32x128xf32> -> vector<32x128xf32>
    %18 = arith.truncf %17 : vector<32x128xf32> to vector<32x128xbf16>
    %c64 = arith.constant 64 : index
    %c0_19 = arith.constant 0 : index
    %19 = vector.load %arg9[%c64, %c0_19] : memref<256x128xbf16, #tpu.memory_space<vmem>>, vector<32x128xbf16>
    tpu.vector_store %arg9[%c64, %c0_19], %18 {strides = array<i32>} : memref<256x128xbf16, #tpu.memory_space<vmem>>, vector<32x128xbf16>,
    %c3 = arith.constant 3 : index
    %c0_20 = arith.constant 0 : index
    %c0_21 = arith.constant 0 : index
    %20 = vector.load %arg3[%c3, %c0_20, %c0_21] : memref<16x128x128xbf16, #tpu.memory_space<vmem>>, vector<1x128x128xbf16>
    %21 = vector.shape_cast %20 : vector<1x128x128xbf16> to vector<128x128xbf16>
    %cst_22 = arith.constant dense<0.000000e+00> : vector<32x128xf32>
    %22 = tpu.matmul %4, %21, %cst_22 {dimension_numbers = #tpu.dot_dimension_numbers<[1], [0], [0], [1], [0, 0, 1, 1], [], []>} : vector<32x128xbf16>, vector<128x128xbf16>, vector<32x128xf32> -> vector<32x128xf32>
    %23 = arith.truncf %22 : vector<32x128xf32> to vector<32x128xbf16>
    %c96 = arith.constant 96 : index
    %c0_23 = arith.constant 0 : index
    %24 = vector.load %arg9[%c96, %c0_23] : memref<256x128xbf16, #tpu.memory_space<vmem>>, vector<32x128xbf16>
    tpu.vector_store %arg9[%c96, %c0_23], %23 {strides = array<i32>} : memref<256x128xbf16, #tpu.memory_space<vmem>>, vector<32x128xbf16>,
    %c4 = arith.constant 4 : index
    %c0_24 = arith.constant 0 : index
    %c0_25 = arith.constant 0 : index
    %25 = vector.load %arg3[%c4, %c0_24, %c0_25] : memref<16x128x128xbf16, #tpu.memory_space<vmem>>, vector<1x128x128xbf16>
    %26 = vector.shape_cast %25 : vector<1x128x128xbf16> to vector<128x128xbf16>
    %cst_26 = arith.constant dense<0.000000e+00> : vector<32x128xf32>
    %27 = tpu.matmul %4, %26, %cst_26 {dimension_numbers = #tpu.dot_dimension_numbers<[1], [0], [0], [1], [0, 0, 1, 1], [], []>} : vector<32x128xbf16>, vector<128x128xbf16>, vector<32x128xf32> -> vector<32x128xf32>
    %28 = arith.truncf %27 : vector<32x128xf32> to vector<32x128xbf16>
    %c128 = arith.constant 128 : index
    %c0_27 = arith.constant 0 : index
    %29 = vector.load %arg9[%c128, %c0_27] : memref<256x128xbf16, #tpu.memory_space<vmem>>, vector<32x128xbf16>
    tpu.vector_store %arg9[%c128, %c0_27], %28 {strides = array<i32>} : memref<256x128xbf16, #tpu.memory_space<vmem>>, vector<32x128xbf16>,
    %c5 = arith.constant 5 : index
    %c0_28 = arith.constant 0 : index
    %c0_29 = arith.constant 0 : index
    %30 = vector.load %arg3[%c5, %c0_28, %c0_29] : memref<16x128x128xbf16, #tpu.memory_space<vmem>>, vector<1x128x128xbf16>
    %31 = vector.shape_cast %30 : vector<1x128x128xbf16> to vector<128x128xbf16>
    %cst_30 = arith.constant dense<0.000000e+00> : vector<32x128xf32>
    %32 = tpu.matmul %4, %31, %cst_30 {dimension_numbers = #tpu.dot_dimension_numbers<[1], [0], [0], [1], [0, 0, 1, 1], [], []>} : vector<32x128xbf16>, vector<128x128xbf16>, vector<32x128xf32> -> vector<32x128xf32>
    %33 = arith.truncf %32 : vector<32x128xf32> to vector<32x128xbf16>
    %c160 = arith.constant 160 : index
    %c0_31 = arith.constant 0 : index
    %34 = vector.load %arg9[%c160, %c0_31] : memref<256x128xbf16, #tpu.memory_space<vmem>>, vector<32x128xbf16>
    tpu.vector_store %arg9[%c160, %c0_31], %33 {strides = array<i32>} : memref<256x128xbf16, #tpu.memory_space<vmem>>, vector<32x128xbf16>,
    %c6 = arith.constant 6 : index
    %c0_32 = arith.constant 0 : index
    %c0_33 = arith.constant 0 : index
    %35 = vector.load %arg3[%c6, %c0_32, %c0_33] : memref<16x128x128xbf16, #tpu.memory_space<vmem>>, vector<1x128x128xbf16>
    %36 = vector.shape_cast %35 : vector<1x128x128xbf16> to vector<128x128xbf16>
    %cst_34 = arith.constant dense<0.000000e+00> : vector<32x128xf32>
    %37 = tpu.matmul %4, %36, %cst_34 {dimension_numbers = #tpu.dot_dimension_numbers<[1], [0], [0], [1], [0, 0, 1, 1], [], []>} : vector<32x128xbf16>, vector<128x128xbf16>, vector<32x128xf32> -> vector<32x128xf32>
    %38 = arith.truncf %37 : vector<32x128xf32> to vector<32x128xbf16>
    %c192 = arith.constant 192 : index
    %c0_35 = arith.constant 0 : index
    %39 = vector.load %arg9[%c192, %c0_35] : memref<256x128xbf16, #tpu.memory_space<vmem>>, vector<32x128xbf16>
    tpu.vector_store %arg9[%c192, %c0_35], %38 {strides = array<i32>} : memref<256x128xbf16, #tpu.memory_space<vmem>>, vector<32x128xbf16>,
    %c7 = arith.constant 7 : index
    %c0_36 = arith.constant 0 : index
    %c0_37 = arith.constant 0 : index
    %40 = vector.load %arg3[%c7, %c0_36, %c0_37] : memref<16x128x128xbf16, #tpu.memory_space<vmem>>, vector<1x128x128xbf16>
    %41 = vector.shape_cast %40 : vector<1x128x128xbf16> to vector<128x128xbf16>
    %cst_38 = arith.constant dense<0.000000e+00> : vector<32x128xf32>
    %42 = tpu.matmul %4, %41, %cst_38 {dimension_numbers = #tpu.dot_dimension_numbers<[1], [0], [0], [1], [0, 0, 1, 1], [], []>} : vector<32x128xbf16>, vector<128x128xbf16>, vector<32x128xf32> -> vector<32x128xf32>
    %43 = arith.truncf %42 : vector<32x128xf32> to vector<32x128xbf16>
    %c224 = arith.constant 224 : index
    %c0_39 = arith.constant 0 : index
    %44 = vector.load %arg9[%c224, %c0_39] : memref<256x128xbf16, #tpu.memory_space<vmem>>, vector<32x128xbf16>
    tpu.vector_store %arg9[%c224, %c0_39], %43 {strides = array<i32>} : memref<256x128xbf16, #tpu.memory_space<vmem>>, vector<32x128xbf16>,
    %c0_40 = arith.constant 0 : index
    %c0_41 = arith.constant 0 : index
    %45 = vector.load %arg9[%c0_40, %c0_41] : memref<256x128xbf16, #tpu.memory_space<vmem>>, vector<256x128xbf16>
    %cst_42 = arith.constant dense<0.000000e+00> : vector<32x128xf32>
    %46 = tpu.matmul %0, %45, %cst_42 {dimension_numbers = #tpu.dot_dimension_numbers<[1], [0], [0], [1], [0, 0, 1, 1], [], []>} : vector<32x256xbf16>, vector<256x128xbf16>, vector<32x128xf32> -> vector<32x128xf32>
    %47 = vector.broadcast %1 : vector<32x1xf32> to vector<32x128xf32>
    %48 = arith.mulf %46, %47 : vector<32x128xf32>
    %cst_43 = arith.constant 0.000000e+00 : f32
    %49 = vector.broadcast %cst_43 : f32 to vector<32x128xf32>
    %50 = arith.cmpf ogt, %48, %49 : vector<32x128xf32>
    %cst_44 = arith.constant 0.000000e+00 : f32
    %51 = vector.broadcast %cst_44 : f32 to vector<32x128xf32>
    %52 = arith.minimumf %48, %51 : vector<32x128xf32>
    %53 = math.exp %52 : vector<32x128xf32>
    %cst_45 = arith.constant 1.000000e+00 : f32
    %54 = vector.broadcast %cst_45 : f32 to vector<32x128xf32>
    %55 = arith.subf %53, %54 : vector<32x128xf32>
    %56 = arith.select %50, %48, %55 : vector<32x128xi1>, vector<32x128xf32>
    %57 = vector.broadcast %2 : vector<32x1xf32> to vector<32x128xf32>
    %58 = arith.mulf %56, %57 : vector<32x128xf32>
    %cst_46 = arith.constant dense<0.000000e+00> : vector<128xf32>
    %59 = vector.multi_reduction <add>, %58, %cst_46 [0] : vector<32x128xf32> to vector<128xf32>
    %60 = vector.shape_cast %59 : vector<128xf32> to vector<1x128xf32>
    %cst_47 = arith.constant 0.0370370373 : f32
    %61 = vector.broadcast %cst_47 : f32 to vector<1x128xf32>
    %62 = arith.mulf %60, %61 : vector<1x128xf32>
    %63 = vector.broadcast %62 : vector<1x128xf32> to vector<32x128xf32>
    %64 = arith.subf %56, %63 : vector<32x128xf32>
    %65 = vector.broadcast %2 : vector<32x1xf32> to vector<32x128xf32>
    %66 = arith.mulf %64, %65 : vector<32x128xf32>
    %67 = arith.mulf %66, %66 : vector<32x128xf32>
    %cst_48 = arith.constant dense<0.000000e+00> : vector<128xf32>
    %68 = vector.multi_reduction <add>, %67, %cst_48 [0] : vector<32x128xf32> to vector<128xf32>
    %69 = vector.shape_cast %68 : vector<128xf32> to vector<1x128xf32>
    %cst_49 = arith.constant 0.0370370373 : f32
    %70 = vector.broadcast %cst_49 : f32 to vector<1x128xf32>
    %71 = arith.mulf %69, %70 : vector<1x128xf32>
    %72 = vector.broadcast %62 : vector<1x128xf32> to vector<32x128xf32>
    %73 = arith.subf %56, %72 : vector<32x128xf32>
    %cst_50 = arith.constant 9.99999974E-6 : f32
    %74 = vector.broadcast %cst_50 : f32 to vector<1x128xf32>
    %75 = arith.addf %71, %74 : vector<1x128xf32>
    %76 = math.rsqrt %75 : vector<1x128xf32>
    %77 = vector.broadcast %76 : vector<1x128xf32> to vector<32x128xf32>
    %78 = arith.mulf %73, %77 : vector<32x128xf32>
    %c0_51 = arith.constant 0 : index
    %c0_52 = arith.constant 0 : index
    %c0_53 = arith.constant 0 : index
    %79 = vector.load %arg4[%c0_51, %c0_52, %c0_53] : memref<2x1x128xf32, #tpu.memory_space<vmem>>, vector<1x1x128xf32>
    %80 = vector.shape_cast %79 : vector<1x1x128xf32> to vector<1x128xf32>
    %81 = vector.broadcast %80 : vector<1x128xf32> to vector<32x128xf32>
    %82 = arith.mulf %78, %81 : vector<32x128xf32>
    %c0_54 = arith.constant 0 : index
    %c0_55 = arith.constant 0 : index
    %c0_56 = arith.constant 0 : index
    %83 = vector.load %arg5[%c0_54, %c0_55, %c0_56] : memref<2x1x128xf32, #tpu.memory_space<vmem>>, vector<1x1x128xf32>
    %84 = vector.shape_cast %83 : vector<1x1x128xf32> to vector<1x128xf32>
    %85 = vector.broadcast %84 : vector<1x128xf32> to vector<32x128xf32>
    %86 = arith.addf %82, %85 : vector<32x128xf32>
    %87 = vector.broadcast %2 : vector<32x1xf32> to vector<32x128xf32>
    %88 = arith.mulf %86, %87 : vector<32x128xf32>
    %89 = arith.truncf %88 : vector<32x128xf32> to vector<32x128xbf16>
    %c8 = arith.constant 8 : index
    %c0_57 = arith.constant 0 : index
    %c0_58 = arith.constant 0 : index
    %90 = vector.load %arg3[%c8, %c0_57, %c0_58] : memref<16x128x128xbf16, #tpu.memory_space<vmem>>, vector<1x128x128xbf16>
    %91 = vector.shape_cast %90 : vector<1x128x128xbf16> to vector<128x128xbf16>
    %cst_59 = arith.constant dense<0.000000e+00> : vector<32x128xf32>
    %92 = tpu.matmul %89, %91, %cst_59 {dimension_numbers = #tpu.dot_dimension_numbers<[1], [0], [0], [1], [0, 0, 1, 1], [], []>} : vector<32x128xbf16>, vector<128x128xbf16>, vector<32x128xf32> -> vector<32x128xf32>
    %93 = arith.truncf %92 : vector<32x128xf32> to vector<32x128xbf16>
    %c0_60 = arith.constant 0 : index
    %c0_61 = arith.constant 0 : index
    %94 = vector.load %arg9[%c0_60, %c0_61] : memref<256x128xbf16, #tpu.memory_space<vmem>>, vector<32x128xbf16>
    tpu.vector_store %arg9[%c0_60, %c0_61], %93 {strides = array<i32>} : memref<256x128xbf16, #tpu.memory_space<vmem>>, vector<32x128xbf16>,
    %c9 = arith.constant 9 : index
    %c0_62 = arith.constant 0 : index
    %c0_63 = arith.constant 0 : index
    %95 = vector.load %arg3[%c9, %c0_62, %c0_63] : memref<16x128x128xbf16, #tpu.memory_space<vmem>>, vector<1x128x128xbf16>
    %96 = vector.shape_cast %95 : vector<1x128x128xbf16> to vector<128x128xbf16>
    %cst_64 = arith.constant dense<0.000000e+00> : vector<32x128xf32>
    %97 = tpu.matmul %89, %96, %cst_64 {dimension_numbers = #tpu.dot_dimension_numbers<[1], [0], [0], [1], [0, 0, 1, 1], [], []>} : vector<32x128xbf16>, vector<128x128xbf16>, vector<32x128xf32> -> vector<32x128xf32>
    %98 = arith.truncf %97 : vector<32x128xf32> to vector<32x128xbf16>
    %c32_65 = arith.constant 32 : index
    %c0_66 = arith.constant 0 : index
    %99 = vector.load %arg9[%c32_65, %c0_66] : memref<256x128xbf16, #tpu.memory_space<vmem>>, vector<32x128xbf16>
    tpu.vector_store %arg9[%c32_65, %c0_66], %98 {strides = array<i32>} : memref<256x128xbf16, #tpu.memory_space<vmem>>, vector<32x128xbf16>,
    %c10 = arith.constant 10 : index
    %c0_67 = arith.constant 0 : index
    %c0_68 = arith.constant 0 : index
    %100 = vector.load %arg3[%c10, %c0_67, %c0_68] : memref<16x128x128xbf16, #tpu.memory_space<vmem>>, vector<1x128x128xbf16>
    %101 = vector.shape_cast %100 : vector<1x128x128xbf16> to vector<128x128xbf16>
    %cst_69 = arith.constant dense<0.000000e+00> : vector<32x128xf32>
    %102 = tpu.matmul %89, %101, %cst_69 {dimension_numbers = #tpu.dot_dimension_numbers<[1], [0], [0], [1], [0, 0, 1, 1], [], []>} : vector<32x128xbf16>, vector<128x128xbf16>, vector<32x128xf32> -> vector<32x128xf32>
    %103 = arith.truncf %102 : vector<32x128xf32> to vector<32x128xbf16>
    %c64_70 = arith.constant 64 : index
    %c0_71 = arith.constant 0 : index
    %104 = vector.load %arg9[%c64_70, %c0_71] : memref<256x128xbf16, #tpu.memory_space<vmem>>, vector<32x128xbf16>
    tpu.vector_store %arg9[%c64_70, %c0_71], %103 {strides = array<i32>} : memref<256x128xbf16, #tpu.memory_space<vmem>>, vector<32x128xbf16>,
    %c11 = arith.constant 11 : index
    %c0_72 = arith.constant 0 : index
    %c0_73 = arith.constant 0 : index
    %105 = vector.load %arg3[%c11, %c0_72, %c0_73] : memref<16x128x128xbf16, #tpu.memory_space<vmem>>, vector<1x128x128xbf16>
    %106 = vector.shape_cast %105 : vector<1x128x128xbf16> to vector<128x128xbf16>
    %cst_74 = arith.constant dense<0.000000e+00> : vector<32x128xf32>
    %107 = tpu.matmul %89, %106, %cst_74 {dimension_numbers = #tpu.dot_dimension_numbers<[1], [0], [0], [1], [0, 0, 1, 1], [], []>} : vector<32x128xbf16>, vector<128x128xbf16>, vector<32x128xf32> -> vector<32x128xf32>
    %108 = arith.truncf %107 : vector<32x128xf32> to vector<32x128xbf16>
    %c96_75 = arith.constant 96 : index
    %c0_76 = arith.constant 0 : index
    %109 = vector.load %arg9[%c96_75, %c0_76] : memref<256x128xbf16, #tpu.memory_space<vmem>>, vector<32x128xbf16>
    tpu.vector_store %arg9[%c96_75, %c0_76], %108 {strides = array<i32>} : memref<256x128xbf16, #tpu.memory_space<vmem>>, vector<32x128xbf16>,
    %c12 = arith.constant 12 : index
    %c0_77 = arith.constant 0 : index
    %c0_78 = arith.constant 0 : index
    %110 = vector.load %arg3[%c12, %c0_77, %c0_78] : memref<16x128x128xbf16, #tpu.memory_space<vmem>>, vector<1x128x128xbf16>
    %111 = vector.shape_cast %110 : vector<1x128x128xbf16> to vector<128x128xbf16>
    %cst_79 = arith.constant dense<0.000000e+00> : vector<32x128xf32>
    %112 = tpu.matmul %89, %111, %cst_79 {dimension_numbers = #tpu.dot_dimension_numbers<[1], [0], [0], [1], [0, 0, 1, 1], [], []>} : vector<32x128xbf16>, vector<128x128xbf16>, vector<32x128xf32> -> vector<32x128xf32>
    %113 = arith.truncf %112 : vector<32x128xf32> to vector<32x128xbf16>
    %c128_80 = arith.constant 128 : index
    %c0_81 = arith.constant 0 : index
    %114 = vector.load %arg9[%c128_80, %c0_81] : memref<256x128xbf16, #tpu.memory_space<vmem>>, vector<32x128xbf16>
    tpu.vector_store %arg9[%c128_80, %c0_81], %113 {strides = array<i32>} : memref<256x128xbf16, #tpu.memory_space<vmem>>, vector<32x128xbf16>,
    %c13 = arith.constant 13 : index
    %c0_82 = arith.constant 0 : index
    %c0_83 = arith.constant 0 : index
    %115 = vector.load %arg3[%c13, %c0_82, %c0_83] : memref<16x128x128xbf16, #tpu.memory_space<vmem>>, vector<1x128x128xbf16>
    %116 = vector.shape_cast %115 : vector<1x128x128xbf16> to vector<128x128xbf16>
    %cst_84 = arith.constant dense<0.000000e+00> : vector<32x128xf32>
    %117 = tpu.matmul %89, %116, %cst_84 {dimension_numbers = #tpu.dot_dimension_numbers<[1], [0], [0], [1], [0, 0, 1, 1], [], []>} : vector<32x128xbf16>, vector<128x128xbf16>, vector<32x128xf32> -> vector<32x128xf32>
    %118 = arith.truncf %117 : vector<32x128xf32> to vector<32x128xbf16>
    %c160_85 = arith.constant 160 : index
    %c0_86 = arith.constant 0 : index
    %119 = vector.load %arg9[%c160_85, %c0_86] : memref<256x128xbf16, #tpu.memory_space<vmem>>, vector<32x128xbf16>
    tpu.vector_store %arg9[%c160_85, %c0_86], %118 {strides = array<i32>} : memref<256x128xbf16, #tpu.memory_space<vmem>>, vector<32x128xbf16>,
    %c14 = arith.constant 14 : index
    %c0_87 = arith.constant 0 : index
    %c0_88 = arith.constant 0 : index
    %120 = vector.load %arg3[%c14, %c0_87, %c0_88] : memref<16x128x128xbf16, #tpu.memory_space<vmem>>, vector<1x128x128xbf16>
    %121 = vector.shape_cast %120 : vector<1x128x128xbf16> to vector<128x128xbf16>
    %cst_89 = arith.constant dense<0.000000e+00> : vector<32x128xf32>
    %122 = tpu.matmul %89, %121, %cst_89 {dimension_numbers = #tpu.dot_dimension_numbers<[1], [0], [0], [1], [0, 0, 1, 1], [], []>} : vector<32x128xbf16>, vector<128x128xbf16>, vector<32x128xf32> -> vector<32x128xf32>
    %123 = arith.truncf %122 : vector<32x128xf32> to vector<32x128xbf16>
    %c192_90 = arith.constant 192 : index
    %c0_91 = arith.constant 0 : index
    %124 = vector.load %arg9[%c192_90, %c0_91] : memref<256x128xbf16, #tpu.memory_space<vmem>>, vector<32x128xbf16>
    tpu.vector_store %arg9[%c192_90, %c0_91], %123 {strides = array<i32>} : memref<256x128xbf16, #tpu.memory_space<vmem>>, vector<32x128xbf16>,
    %c15 = arith.constant 15 : index
    %c0_92 = arith.constant 0 : index
    %c0_93 = arith.constant 0 : index
    %125 = vector.load %arg3[%c15, %c0_92, %c0_93] : memref<16x128x128xbf16, #tpu.memory_space<vmem>>, vector<1x128x128xbf16>
    %126 = vector.shape_cast %125 : vector<1x128x128xbf16> to vector<128x128xbf16>
    %cst_94 = arith.constant dense<0.000000e+00> : vector<32x128xf32>
    %127 = tpu.matmul %89, %126, %cst_94 {dimension_numbers = #tpu.dot_dimension_numbers<[1], [0], [0], [1], [0, 0, 1, 1], [], []>} : vector<32x128xbf16>, vector<128x128xbf16>, vector<32x128xf32> -> vector<32x128xf32>
    %128 = arith.truncf %127 : vector<32x128xf32> to vector<32x128xbf16>
    %c224_95 = arith.constant 224 : index
    %c0_96 = arith.constant 0 : index
    %129 = vector.load %arg9[%c224_95, %c0_96] : memref<256x128xbf16, #tpu.memory_space<vmem>>, vector<32x128xbf16>
    tpu.vector_store %arg9[%c224_95, %c0_96], %128 {strides = array<i32>} : memref<256x128xbf16, #tpu.memory_space<vmem>>, vector<32x128xbf16>,
    %c0_97 = arith.constant 0 : index
    %c0_98 = arith.constant 0 : index
    %130 = vector.load %arg9[%c0_97, %c0_98] : memref<256x128xbf16, #tpu.memory_space<vmem>>, vector<256x128xbf16>
    %cst_99 = arith.constant dense<0.000000e+00> : vector<32x128xf32>
    %131 = tpu.matmul %0, %130, %cst_99 {dimension_numbers = #tpu.dot_dimension_numbers<[1], [0], [0], [1], [0, 0, 1, 1], [], []>} : vector<32x256xbf16>, vector<256x128xbf16>, vector<32x128xf32> -> vector<32x128xf32>
    %132 = vector.broadcast %1 : vector<32x1xf32> to vector<32x128xf32>
    %133 = arith.mulf %131, %132 : vector<32x128xf32>
    %cst_100 = arith.constant 0.000000e+00 : f32
    %134 = vector.broadcast %cst_100 : f32 to vector<32x128xf32>
    %135 = arith.cmpf ogt, %133, %134 : vector<32x128xf32>
    %cst_101 = arith.constant 0.000000e+00 : f32
    %136 = vector.broadcast %cst_101 : f32 to vector<32x128xf32>
    %137 = arith.minimumf %133, %136 : vector<32x128xf32>
    %138 = math.exp %137 : vector<32x128xf32>
    %cst_102 = arith.constant 1.000000e+00 : f32
    %139 = vector.broadcast %cst_102 : f32 to vector<32x128xf32>
    %140 = arith.subf %138, %139 : vector<32x128xf32>
    %141 = arith.select %135, %133, %140 : vector<32x128xi1>, vector<32x128xf32>
    %142 = vector.broadcast %2 : vector<32x1xf32> to vector<32x128xf32>
    %143 = arith.mulf %141, %142 : vector<32x128xf32>
    %cst_103 = arith.constant dense<0.000000e+00> : vector<128xf32>
    %144 = vector.multi_reduction <add>, %143, %cst_103 [0] : vector<32x128xf32> to vector<128xf32>
    %145 = vector.shape_cast %144 : vector<128xf32> to vector<1x128xf32>
    %cst_104 = arith.constant 0.0370370373 : f32
    %146 = vector.broadcast %cst_104 : f32 to vector<1x128xf32>
    %147 = arith.mulf %145, %146 : vector<1x128xf32>
    %148 = vector.broadcast %147 : vector<1x128xf32> to vector<32x128xf32>
    %149 = arith.subf %141, %148 : vector<32x128xf32>
    %150 = vector.broadcast %2 : vector<32x1xf32> to vector<32x128xf32>
    %151 = arith.mulf %149, %150 : vector<32x128xf32>
    %152 = arith.mulf %151, %151 : vector<32x128xf32>
    %cst_105 = arith.constant dense<0.000000e+00> : vector<128xf32>
    %153 = vector.multi_reduction <add>, %152, %cst_105 [0] : vector<32x128xf32> to vector<128xf32>
    %154 = vector.shape_cast %153 : vector<128xf32> to vector<1x128xf32>
    %cst_106 = arith.constant 0.0370370373 : f32
    %155 = vector.broadcast %cst_106 : f32 to vector<1x128xf32>
    %156 = arith.mulf %154, %155 : vector<1x128xf32>
    %157 = vector.broadcast %147 : vector<1x128xf32> to vector<32x128xf32>
    %158 = arith.subf %141, %157 : vector<32x128xf32>
    %cst_107 = arith.constant 9.99999974E-6 : f32
    %159 = vector.broadcast %cst_107 : f32 to vector<1x128xf32>
    %160 = arith.addf %156, %159 : vector<1x128xf32>
    %161 = math.rsqrt %160 : vector<1x128xf32>
    %162 = vector.broadcast %161 : vector<1x128xf32> to vector<32x128xf32>
    %163 = arith.mulf %158, %162 : vector<32x128xf32>
    %c1_108 = arith.constant 1 : index
    %c0_109 = arith.constant 0 : index
    %c0_110 = arith.constant 0 : index
    %164 = vector.load %arg4[%c1_108, %c0_109, %c0_110] : memref<2x1x128xf32, #tpu.memory_space<vmem>>, vector<1x1x128xf32>
    %165 = vector.shape_cast %164 : vector<1x1x128xf32> to vector<1x128xf32>
    %166 = vector.broadcast %165 : vector<1x128xf32> to vector<32x128xf32>
    %167 = arith.mulf %163, %166 : vector<32x128xf32>
    %c1_111 = arith.constant 1 : index
    %c0_112 = arith.constant 0 : index
    %c0_113 = arith.constant 0 : index
    %168 = vector.load %arg5[%c1_111, %c0_112, %c0_113] : memref<2x1x128xf32, #tpu.memory_space<vmem>>, vector<1x1x128xf32>
    %169 = vector.shape_cast %168 : vector<1x1x128xf32> to vector<1x128xf32>
    %170 = vector.broadcast %169 : vector<1x128xf32> to vector<32x128xf32>
    %171 = arith.addf %167, %170 : vector<32x128xf32>
    %172 = vector.broadcast %2 : vector<32x1xf32> to vector<32x128xf32>
    %173 = arith.mulf %171, %172 : vector<32x128xf32>
    %174 = arith.addf %173, %3 : vector<32x128xf32>
    %c0_114 = arith.constant 0 : index
    %c0_115 = arith.constant 0 : index
    %175 = vector.load %arg8[%c0_114, %c0_115] : memref<32x128xf32, #tpu.memory_space<vmem>>, vector<32x128xf32>
    tpu.vector_store %arg8[%c0_114, %c0_115], %174 {strides = array<i32>} : memref<32x128xf32, #tpu.memory_space<vmem>>, vector<32x128xf32>,
    return
  }
  func.func @transform_0(%arg0: i32) -> (i32, i32) {
    %c0_i32 = arith.constant 0 : i32
    %c0_i32_0 = arith.constant 0 : i32
    %c0_i32_1 = arith.constant 0 : i32
    return %c0_i32, %c0_i32_0 : i32, i32
  }
  func.func @transform_1(%arg0: i32) -> (i32, i32) {
    %c0_i32 = arith.constant 0 : i32
    %c0_i32_0 = arith.constant 0 : i32
    %c0_i32_1 = arith.constant 0 : i32
    return %c0_i32, %c0_i32_0 : i32, i32
  }
  func.func @transform_2(%arg0: i32) -> (i32, i32, i32) {
    %c0_i32 = arith.constant 0 : i32
    %c0_i32_0 = arith.constant 0 : i32
    %c0_i32_1 = arith.constant 0 : i32
    %c0_i32_2 = arith.constant 0 : i32
    return %c0_i32, %c0_i32_0, %c0_i32_1 : i32, i32, i32
  }
  func.func @transform_3(%arg0: i32) -> (i32, i32, i32) {
    %c0_i32 = arith.constant 0 : i32
    %c0_i32_0 = arith.constant 0 : i32
    %c0_i32_1 = arith.constant 0 : i32
    %c0_i32_2 = arith.constant 0 : i32
    return %c0_i32, %c0_i32_0, %c0_i32_1 : i32, i32, i32
  }
  func.func @transform_4(%arg0: i32) -> (i32, i32, i32) {
    %c0_i32 = arith.constant 0 : i32
    %c0_i32_0 = arith.constant 0 : i32
    %c0_i32_1 = arith.constant 0 : i32
    %c0_i32_2 = arith.constant 0 : i32
    return %c0_i32, %c0_i32_0, %c0_i32_1 : i32, i32, i32
  }
  func.func @transform_5(%arg0: i32) -> (i32, i32) {
    %c0_i32 = arith.constant 0 : i32
    %c0_i32_0 = arith.constant 0 : i32
    %c0_i32_1 = arith.constant 0 : i32
    return %c0_i32, %c0_i32_0 : i32, i32
  }
  func.func @transform_6(%arg0: i32) -> (i32, i32) {
    %c0_i32 = arith.constant 0 : i32
    %c0_i32_0 = arith.constant 0 : i32
    %c0_i32_1 = arith.constant 0 : i32
    return %c0_i32, %c0_i32_0 : i32, i32
  }
  func.func @transform_7(%arg0: i32) -> (i32, i32) {
    %c0_i32 = arith.constant 0 : i32
    %c0_i32_0 = arith.constant 0 : i32
    %c0_i32_1 = arith.constant 0 : i32
    return %c0_i32, %c0_i32_0 : i32, i32
  }
}

</mosaic_0001>

<llo_original>
// kernel: custom-call.11
$region0: #{custom-call.11}
  %s0 = inlined_call_operand.vmem [shape: f32[4,4], index: 0, kind: input, shape index: {}]
  %s1 = inlined_call_operand.vmem [shape: f32[4,4], index: 1, kind: output, shape index: {0}]
  %s2 = inlined_call_operand.hbm [shape: s32[4], index: 2, kind: output, shape index: {1}]
  %s3 = inlined_call_operand.vmem [shape: s32[4], index: 3, kind: output, shape index: {2}]
  %4 = xla_tuple %s1, %s2, %s3
  $region1: #{custom-call.11} parent=0
    #allocation0 [shape = 'u8[4096]{0}', space=vmem, size = 0x1000, scoped, tag = 'operand span for operand 0']
    #allocation1 [shape = 'u8[2048]{0}', space=vmem, size = 0x800, scoped, tag = 'packed  for operand 0']
    #allocation2 [shape = 'u8[4096]{0}', space=vmem, size = 0x1000, scoped, tag = 'operand span for operand 1']
    #allocation3 [shape = 'u8[2048]{0}', space=vmem, size = 0x800, scoped, tag = 'packed  for operand 1']
    #allocation4 [shape = 'u8[4096]{0}', space=vmem, size = 0x1000, scoped, tag = 'operand span for operand 2']
    #allocation5 [shape = 'u8[512]{0}', space=vmem, size = 0x400, scoped, tag = 'packed  for operand 2']
    #allocation6 [shape = 's32[1]{0}', space=sflag, size = 0x4, scoped, tag = 'scoped memory for custom-call.11']
    #allocation7 [shape = 'u8[4096]{0}', space=vmem, size = 0x1000, scoped, tag = 'operand span for operand 3']
    #allocation8 [shape = 'u8[512]{0}', space=vmem, size = 0x400, scoped, tag = 'packed  for operand 3']
    #allocation9 [shape = 's32[4,128]{1,0}', space=vmem, size = 0x1000, scoped, tag = 'scratch for permutations']
    %5 = vsyncpa [#allocation6], 0
    // Predicated region
    $region2: #{custom-call.11} parent=1 // pred_check
      _
    $region3: #{custom-call.11} parent=1 // pred_check_branch
      %7 = sbr.rel (0) target = $region5
    $region4: #{custom-call.11} parent=1 // pred_region
      %p9 = scmp.gt.s32.totalorder 0, 0
      // Predicated region
      $region6: #{custom-call.11} parent=4 // pred_check
        %p10 = pneg %p9
      $region7: #{custom-call.11} parent=4 // pred_check_branch
        %12 = sbr.rel (%p10) target = $region9
      $region8: #{custom-call.11} parent=4 // pred_region
        %s13 = ssub.s32 0, 1
        %s14 = smul.u32 %s13, 8
        %s15 = scalar_lea.vmem %s0, %s14
        %v16 = vld [vmem:[%s0] sm:$0xff]
        // While loop
        $region10: #{custom-call.11} parent=8 // loop_pre_header
          _
        $region11: #{custom-call.11} parent=8 // loop_header
          %s17 = sphi %s0, %s39
          %s18 = sphi [#allocation1], %s40
          %v19 = vphi %v16, %v41
          %s20 = ssub.s32 %s15, 64
          %p21 = scmp.gt.s32.totalorder %s17, %s20
        $region12: #{custom-call.11} parent=8 // loop_header_branch
          %23 = sbr.rel (%p21) target = $region16
        $region13: #{custom-call.11} parent=8 // loop_body
          %24 = vst [vmem:[%s18] sm:$0xff] %v19
          %v25 = vld [vmem:[%s17 + $0x8] sm:$0xff]
          %26 = vst [vmem:[%s18 + $0x8] sm:$0xff] %v25
          %v27 = vld [vmem:[%s17 + $0x10] sm:$0xff]
          %28 = vst [vmem:[%s18 + $0x10] sm:$0xff] %v27
          %v29 = vld [vmem:[%s17 + $0x18] sm:$0xff]
          %30 = vst [vmem:[%s18 + $0x18] sm:$0xff] %v29
          %v31 = vld [vmem:[%s17 + $0x20] sm:$0xff]
          %32 = vst [vmem:[%s18 + $0x20] sm:$0xff] %v31
          %v33 = vld [vmem:[%s17 + $0x28] sm:$0xff]
          %34 = vst [vmem:[%s18 + $0x28] sm:$0xff] %v33
          %v35 = vld [vmem:[%s17 + $0x30] sm:$0xff]
          %36 = vst [vmem:[%s18 + $0x30] sm:$0xff] %v35
          %v37 = vld [vmem:[%s17 + $0x38] sm:$0xff]
          %38 = vst [vmem:[%s18 + $0x38] sm:$0xff] %v37
        $region14: #{custom-call.11} parent=8 // loop_footer
          %s39 = scalar_lea.vmem %s17, 64
          %s40 = scalar_lea.vmem %s18, 64
          %v41 = vld [vmem:[%s17 + $0x40] sm:$0xff]
        $region15: #{custom-call.11} parent=8 // loop_footer_branch
          %42 = sbr.rel target = $region11
        $region16: #{custom-call.11} parent=8 // loop_exit
          _
        // While loop
        $region17: #{custom-call.11} parent=8 // loop_pre_header
          _
        $region18: #{custom-call.11} parent=8 // loop_header
          %s43 = sphi %s17, %s51
          %s44 = sphi %s18, %s52
          %v45 = vphi %v19, %v45
          %p46 = scmp.gt.s32.totalorder %s43, %s15
        $region19: #{custom-call.11} parent=8 // loop_header_branch
          %48 = sbr.rel (%p46) target = $region23
        $region20: #{custom-call.11} parent=8 // loop_body
          %v49 = vld [vmem:[%s43] sm:$0xff]
          %50 = vst [vmem:[%s44] sm:$0xff] %v49
        $region21: #{custom-call.11} parent=8 // loop_footer
          %s51 = scalar_lea.vmem %s43, 8
          %s52 = scalar_lea.vmem %s44, 8
        $region22: #{custom-call.11} parent=8 // loop_footer_branch
          %53 = sbr.rel target = $region18
        $region23: #{custom-call.11} parent=8 // loop_exit
          _
      $region9: #{custom-call.11} parent=4 // pred_fallthru
        _
      %s55 = ssub.s32 16, 1
      %s56 = smul.u32 0, 8
      %s57 = scalar_lea.vmem [#allocation1], %s56
      %s58 = smul.u32 0, 8
      %s59 = scalar_lea.vmem %s0, %s58
      %v60 = vld [vmem:[%s59] sm:%s55]
      %61 = vst [vmem:[%s57] sm:%s55] %v60
    $region5: #{custom-call.11} parent=1 // pred_fallthru
      _
    %s63 = ssub.s32 16, 1
    %v64 = vld [vmem:[#allocation1] sm:%s63]
    %65 = vst [vmem:[#allocation0] sm:%s63] %v64
    %v66 = vld [vmem:[#allocation0] sm:$0xff]
    %67 = vst [vmem:[#allocation2] sm:$0xff] %v66
    %68 = vst [vmem:[#allocation4] sm:$0x1] 0
    %v69 = vlaneseq
    %v70 = vshrl.u32 %v69, 7
    %v71 = vmov %v70
    %73 = vst [vmem:[#allocation9] sm:$0xff] %v71
    loop: start=0, step=1, limit=4
    $region25: #{custom-call.11} parent=1 // loop_pre_header
      _
    $region26: #{custom-call.11} parent=1 // loop_header
      %s75 = sphi 0, %s79
      %p76 = scmp.ge.s32.totalorder %s75, 4
    $region27: #{custom-call.11} parent=1 // loop_header_branch
      %78 = sbr.rel (%p76) target = $region31
    $region28: #{custom-call.11} parent=1 // loop_body
      %v80 = vstv %s75
      %v81 = vlaneseq
      %v82 = vshrl.u32 %v81, 7
      %v83 = vmov %v82
      %v84 = vld [vmem:[#allocation2] sm:$0xff]
      %v85 = vand.u32 2147483647, %v84
      %v87 = vstv %s75
      %vm88 = vcmp.ge.s32.totalorder %v83, %v87
      %vm89 = vcmp.lt.s32.totalorder %v83, 4
      %vm90 = vmand %vm88, %vm89
      %vm91 = vcmp.lt.f32.partialorder -inf, %v85
      %vm92 = vmand %vm90, %vm91
      %v93 = vsel %vm92, %v83, %v80
      %v94 = vsel %vm92, %v85, -inf
      %v95 = vrot.slane %v94, 1
      %v96 = vrot.slane %v93, 1
      %vm97 = vcmp.ge.f32.partialorder %v95, %v94
      %v98 = vsel %vm97, %v95, %v94
      %v99 = vsel %vm97, %v96, %v93
      %v100 = vrot.slane %v95, 1
      %v101 = vrot.slane %v96, 1
      %vm102 = vcmp.ge.f32.partialorder %v100, %v98
      %v103 = vsel %vm102, %v100, %v98
      %v104 = vsel %vm102, %v101, %v99
      %v105 = vrot.slane %v100, 1
      %v106 = vrot.slane %v101, 1
      %vm107 = vcmp.ge.f32.partialorder %v105, %v103
      %v108 = vsel %vm107, %v105, %v103
      %v109 = vsel %vm107, %v106, %v104
      %v110 = vrot.slane %v105, 1
      %v111 = vrot.slane %v106, 1
      %vm112 = vcmp.ge.f32.partialorder %v110, %v108
      %v113 = vsel %vm112, %v110, %v108
      %v114 = vsel %vm112, %v111, %v109
      %v115 = vrot.slane %v110, 1
      %v116 = vrot.slane %v111, 1
      %vm117 = vcmp.ge.f32.partialorder %v115, %v113
      %v118 = vsel %vm117, %v115, %v113
      %v119 = vsel %vm117, %v116, %v114
      %v120 = vrot.slane %v115, 1
      %v121 = vrot.slane %v116, 1
      %vm122 = vcmp.ge.f32.partialorder %v120, %v118
      %v123 = vsel %vm122, %v120, %v118
      %v124 = vsel %vm122, %v121, %v119
      %v125 = vrot.slane %v120, 1
      %v126 = vrot.slane %v121, 1
      %vm127 = vcmp.ge.f32.partialorder %v125, %v123
      %v128 = vsel %vm127, %v125, %v123
      %v129 = vsel %vm127, %v126, %v124
      %s130 = ssub.s32 128, %s75
      %131 = vrot.lane.b32.xlu0 %v129, %s130
      %v132 = vpop.permute.xlu0 %131
      %s133 = vtos %v132
      %v134 = vstv %s75
      %v135 = vlaneseq
      %v136 = vand.u32 %v135, 127
      %vm137 = vcmp.eq.s32.totalorder %v136, %v134
      %v138 = vstv %s133
      %v139 = vld [vmem:[#allocation4] ss:$0 sm:$0xff]
      %v140 = vsel %vm137, %v138, %v139
      %141 = vst [vmem:[#allocation4] sm:$0x1] %v140
      %s142 = scalar_lea.vmem [#allocation2], %s75
      %s143 = scalar_lea.vmem [#allocation2], %s133
      %v144 = vld [vmem:[%s142] ss:$0 sm:$0xff]
      %v145 = vld [vmem:[%s143] ss:$0 sm:$0xff]
      %146 = vst [vmem:[%s143] sm:$0x1] %v144
      %147 = vst [vmem:[%s142] sm:$0x1] %v145
      %s148 = scalar_lea.vmem [#allocation9], %s75
      %s149 = scalar_lea.vmem [#allocation9], %s133
      %v150 = vld [vmem:[%s148] ss:$0 sm:$0xff]
      %v151 = vld [vmem:[%s149] ss:$0 sm:$0xff]
      %152 = vst [vmem:[%s149] sm:$0x1] %v150
      %153 = vst [vmem:[%s148] sm:$0x1] %v151
      %vm154 = vcmp.ne.f32.partialorder %v145, 0.0
      %vm155 = vmand %vm137, %vm154
      %v156 = vsel %vm155, %v145, 1.0
      %v157 = vlaneseq
      %v158 = vand.u32 %v157, 127
      %v159 = vstv %s75
      %vm160 = vcmp.gt.s32.totalorder %v158, %v159
      %v161 = vsel %vm160, %v145, 0.0
      %v162 = vlaneseq
      %v163 = vshrl.u32 %v162, 7
      %v164 = vmov %v163
      %v165 = vld [vmem:[#allocation2] sm:$0xff]
      %v167 = vstv %s75
      %vm168 = vcmp.gt.s32.totalorder %v164, %v167
      %v169 = vsel %vm168, %v156, 1.0
      %v170 = vrcp.pop %v169
      %v171 = vmul.f32 %v169, %v170
      %v172 = vsub.f32 1.0, %v171
      %v173 = vmul.f32 %v170, %v172
      %v174 = vadd.f32 %v170, %v173
      %vm175 = vweird.f32 %v169
      %vm176 = vweird.f32 %v170
      %vm177 = vmor %vm175, %vm176
      %v178 = vsel %vm177, %v170, %v174
      %v179 = vand.u32 2147483647, %v169
      %vm180 = vcmp.eq.f32.partialorder %v179, 8.507059e+37
      %v181 = vand.u32 %v169, 2147483648
      %v182 = vor.u32 1.1754944e-38, %v181
      %v183 = vsel %vm180, %v182, %v178
      %v184 = vmul.f32 %v165, %v183
      %vm185 = vmand %vm168, %vm137
      %v186 = vsel %vm185, %v184, 0.0
      %187 = vadd.xlane.f32.xlu0 %v186
      %v188 = vpop.xlane.xlu0 %187
      %v189 = vmul.f32 %v188, %v161
      %v190 = vsub.f32 %v184, %v189
      %191 = vst [vmem:[#allocation2] sm:$0xff] %v190
    $region29: #{custom-call.11} parent=1 // loop_footer
      %s79 = sadd.s32 1, %s75
    $region30: #{custom-call.11} parent=1 // loop_footer_branch
      %74 = sbr.rel target = $region26
    $region31: #{custom-call.11} parent=1 // loop_exit
      _
    %v192 = vld [vmem:[#allocation9] sm:$0xff]
    %s193 = scalar_lea.vmem [#allocation9], 8
    %s194 = scalar_lea.vmem [#allocation9], 16
    %s195 = scalar_lea.vmem [#allocation9], 24
    %s196 = scalar_lea.vmem [#allocation9], 32
    %s197 = scalar_lea.vmem [#allocation9], 40
    %s198 = scalar_lea.vmem [#allocation9], 48
    %s199 = scalar_lea.vmem [#allocation9], 56
    %s200 = scalar_lea.vmem [#allocation9], 64
    %s201 = scalar_lea.vmem [#allocation9], 72
    %s202 = scalar_lea.vmem [#allocation9], 80
    %s203 = scalar_lea.vmem [#allocation9], 88
    %s204 = scalar_lea.vmem [#allocation9], 96
    %s205 = scalar_lea.vmem [#allocation9], 104
    %s206 = scalar_lea.vmem [#allocation9], 112
    %s207 = scalar_lea.vmem [#allocation9], 120
    %208 = vxpose.xlu0.b32.start [1/16] %v192, 128
    %209 = vxpose.xlu0.b32.cont [2/16] 0, 128
    %210 = vxpose.xlu0.b32.cont [3/16] 0, 128
    %211 = vxpose.xlu0.b32.cont [4/16] 0, 128
    %212 = vxpose.xlu0.b32.cont [5/16] 0, 128
    %213 = vxpose.xlu0.b32.cont [6/16] 0, 128
    %214 = vxpose.xlu0.b32.cont [7/16] 0, 128
    %215 = vxpose.xlu0.b32.cont [8/16] 0, 128
    %216 = vxpose.xlu0.b32.cont [9/16] 0, 128
    %217 = vxpose.xlu0.b32.cont [10/16] 0, 128
    %218 = vxpose.xlu0.b32.cont [11/16] 0, 128
    %219 = vxpose.xlu0.b32.cont [12/16] 0, 128
    %220 = vxpose.xlu0.b32.cont [13/16] 0, 128
    %221 = vxpose.xlu0.b32.cont [14/16] 0, 128
    %222 = vxpose.xlu0.b32.cont [15/16] 0, 128
    %223 = vxpose.xlu0.b32.end [16/16] 0, 128
    %v224 = vpop.trf.xlu0
    %v225 = vpop.trf.xlu0
    %v226 = vpop.trf.xlu0
    %v227 = vpop.trf.xlu0
    %v228 = vpop.trf.xlu0
    %v229 = vpop.trf.xlu0
    %v230 = vpop.trf.xlu0
    %v231 = vpop.trf.xlu0
    %v232 = vpop.trf.xlu0
    %v233 = vpop.trf.xlu0
    %v234 = vpop.trf.xlu0
    %v235 = vpop.trf.xlu0
    %v236 = vpop.trf.xlu0
    %v237 = vpop.trf.xlu0
    %v238 = vpop.trf.xlu0
    %v239 = vpop.trf.xlu0
    %240 = vst [vmem:[#allocation7] sm:$0x1] %v224
    %s242 = ssub.s32 16, 1
    %v243 = vld [vmem:[#allocation2] sm:%s242]
    %s245 = ssub.s32 16, 1
    %246 = vst [vmem:[#allocation3] sm:%s245] %v243
    %s248 = ssub.s32 2, 1
    %v249 = vld [vmem:[#allocation4] sm:%s248]
    %s251 = ssub.s32 2, 1
    %252 = vst [vmem:[#allocation5] sm:%s251] %v249
    %s254 = ssub.s32 2, 1
    %v255 = vld [vmem:[#allocation7] sm:%s254]
    %s257 = ssub.s32 2, 1
    %258 = vst [vmem:[#allocation8] sm:%s257] %v255
    // Predicated region
    $region32: #{custom-call.11} parent=1 // pred_check
      _
    $region33: #{custom-call.11} parent=1 // pred_check_branch
      %260 = sbr.rel (0) target = $region35
    $region34: #{custom-call.11} parent=1 // pred_region
      %p262 = scmp.gt.s32.totalorder 0, 0
      // Predicated region
      $region36: #{custom-call.11} parent=34 // pred_check
        %p263 = pneg %p262
      $region37: #{custom-call.11} parent=34 // pred_check_branch
        %265 = sbr.rel (%p263) target = $region39
      $region38: #{custom-call.11} parent=34 // pred_region
        %s266 = ssub.s32 0, 1
        %s267 = smul.u32 %s266, 8
        %s268 = scalar_lea.vmem [#allocation3], %s267
        %v269 = vld [vmem:[#allocation3] sm:$0xff]
        // While loop
        $region40: #{custom-call.11} parent=38 // loop_pre_header
          _
        $region41: #{custom-call.11} parent=38 // loop_header
          %s270 = sphi [#allocation3], %s292
          %s271 = sphi %s1, %s293
          %v272 = vphi %v269, %v294
          %s273 = ssub.s32 %s268, 64
          %p274 = scmp.gt.s32.totalorder %s270, %s273
        $region42: #{custom-call.11} parent=38 // loop_header_branch
          %276 = sbr.rel (%p274) target = $region46
        $region43: #{custom-call.11} parent=38 // loop_body
          %277 = vst [vmem:[%s271] sm:$0xff] %v272
          %v278 = vld [vmem:[%s270 + $0x8] sm:$0xff]
          %279 = vst [vmem:[%s271 + $0x8] sm:$0xff] %v278
          %v280 = vld [vmem:[%s270 + $0x10] sm:$0xff]
          %281 = vst [vmem:[%s271 + $0x10] sm:$0xff] %v280
          %v282 = vld [vmem:[%s270 + $0x18] sm:$0xff]
          %283 = vst [vmem:[%s271 + $0x18] sm:$0xff] %v282
          %v284 = vld [vmem:[%s270 + $0x20] sm:$0xff]
          %285 = vst [vmem:[%s271 + $0x20] sm:$0xff] %v284
          %v286 = vld [vmem:[%s270 + $0x28] sm:$0xff]
          %287 = vst [vmem:[%s271 + $0x28] sm:$0xff] %v286
          %v288 = vld [vmem:[%s270 + $0x30] sm:$0xff]
          %289 = vst [vmem:[%s271 + $0x30] sm:$0xff] %v288
          %v290 = vld [vmem:[%s270 + $0x38] sm:$0xff]
          %291 = vst [vmem:[%s271 + $0x38] sm:$0xff] %v290
        $region44: #{custom-call.11} parent=38 // loop_footer
          %s292 = scalar_lea.vmem %s270, 64
          %s293 = scalar_lea.vmem %s271, 64
          %v294 = vld [vmem:[%s270 + $0x40] sm:$0xff]
        $region45: #{custom-call.11} parent=38 // loop_footer_branch
          %295 = sbr.rel target = $region41
        $region46: #{custom-call.11} parent=38 // loop_exit
          _
        // While loop
        $region47: #{custom-call.11} parent=38 // loop_pre_header
          _
        $region48: #{custom-call.11} parent=38 // loop_header
          %s296 = sphi %s270, %s304
          %s297 = sphi %s271, %s305
          %v298 = vphi %v272, %v298
          %p299 = scmp.gt.s32.totalorder %s296, %s268
        $region49: #{custom-call.11} parent=38 // loop_header_branch
          %301 = sbr.rel (%p299) target = $region53
        $region50: #{custom-call.11} parent=38 // loop_body
          %v302 = vld [vmem:[%s296] sm:$0xff]
          %303 = vst [vmem:[%s297] sm:$0xff] %v302
        $region51: #{custom-call.11} parent=38 // loop_footer
          %s304 = scalar_lea.vmem %s296, 8
          %s305 = scalar_lea.vmem %s297, 8
        $region52: #{custom-call.11} parent=38 // loop_footer_branch
          %306 = sbr.rel target = $region48
        $region53: #{custom-call.11} parent=38 // loop_exit
          _
      $region39: #{custom-call.11} parent=34 // pred_fallthru
        _
      %s308 = ssub.s32 16, 1
      %s309 = smul.u32 0, 8
      %s310 = scalar_lea.vmem %s1, %s309
      %s311 = smul.u32 0, 8
      %s312 = scalar_lea.vmem [#allocation3], %s311
      %v313 = vld [vmem:[%s312] sm:%s308]
      %314 = vst [vmem:[%s310] sm:%s308] %v313
    $region35: #{custom-call.11} parent=1 // pred_fallthru
      _
    // Predicated region
    $region54: #{custom-call.11} parent=1 // pred_check
      _
    $region55: #{custom-call.11} parent=1 // pred_check_branch
      %316 = sbr.rel (0) target = $region57
    $region56: #{custom-call.11} parent=1 // pred_region
      %318 = vsyncadd [#allocation6], 0
      %s320 = sshll.u32 [#allocation5], 4
      %s321 = int_to_ptr.vmem [resolvable:$true] %s320
      %s322 = sshll.u32 %s2, 4
      %s323 = int_to_ptr.hbm [resolvable:$true] %s322
      %325 = dma.vmem_to_hbm [thread:$0]  %s321, 16, %s323, [#allocation6]
    $region57: #{custom-call.11} parent=1 // pred_fallthru
      _
    // Predicated region
    $region58: #{custom-call.11} parent=1 // pred_check
      _
    $region59: #{custom-call.11} parent=1 // pred_check_branch
      %327 = sbr.rel (0) target = $region61
    $region60: #{custom-call.11} parent=1 // pred_region
      // Predicated region
      $region62: #{custom-call.11} parent=60 // pred_check
        _
      $region63: #{custom-call.11} parent=60 // pred_check_branch
        %329 = sbr.rel (0) target = $region65
      $region64: #{custom-call.11} parent=60 // pred_region
        %p331 = scmp.gt.s32.totalorder 0, 0
        // Predicated region
        $region66: #{custom-call.11} parent=64 // pred_check
          %p332 = pneg %p331
        $region67: #{custom-call.11} parent=64 // pred_check_branch
          %334 = sbr.rel (%p332) target = $region69
        $region68: #{custom-call.11} parent=64 // pred_region
          %s335 = ssub.s32 0, 1
          %s336 = smul.u32 %s335, 8
          %s337 = scalar_lea.vmem [#allocation8], %s336
          %v338 = vld [vmem:[#allocation8] sm:$0xff]
          // While loop
          $region70: #{custom-call.11} parent=68 // loop_pre_header
            _
          $region71: #{custom-call.11} parent=68 // loop_header
            %s339 = sphi [#allocation8], %s361
            %s340 = sphi %s3, %s362
            %v341 = vphi %v338, %v363
            %s342 = ssub.s32 %s337, 64
            %p343 = scmp.gt.s32.totalorder %s339, %s342
          $region72: #{custom-call.11} parent=68 // loop_header_branch
            %345 = sbr.rel (%p343) target = $region76
          $region73: #{custom-call.11} parent=68 // loop_body
            %346 = vst [vmem:[%s340] sm:$0xff] %v341
            %v347 = vld [vmem:[%s339 + $0x8] sm:$0xff]
            %348 = vst [vmem:[%s340 + $0x8] sm:$0xff] %v347
            %v349 = vld [vmem:[%s339 + $0x10] sm:$0xff]
            %350 = vst [vmem:[%s340 + $0x10] sm:$0xff] %v349
            %v351 = vld [vmem:[%s339 + $0x18] sm:$0xff]
            %352 = vst [vmem:[%s340 + $0x18] sm:$0xff] %v351
            %v353 = vld [vmem:[%s339 + $0x20] sm:$0xff]
            %354 = vst [vmem:[%s340 + $0x20] sm:$0xff] %v353
            %v355 = vld [vmem:[%s339 + $0x28] sm:$0xff]
            %356 = vst [vmem:[%s340 + $0x28] sm:$0xff] %v355
            %v357 = vld [vmem:[%s339 + $0x30] sm:$0xff]
            %358 = vst [vmem:[%s340 + $0x30] sm:$0xff] %v357
            %v359 = vld [vmem:[%s339 + $0x38] sm:$0xff]
            %360 = vst [vmem:[%s340 + $0x38] sm:$0xff] %v359
          $region74: #{custom-call.11} parent=68 // loop_footer
            %s361 = scalar_lea.vmem %s339, 64
            %s362 = scalar_lea.vmem %s340, 64
            %v363 = vld [vmem:[%s339 + $0x40] sm:$0xff]
          $region75: #{custom-call.11} parent=68 // loop_footer_branch
            %364 = sbr.rel target = $region71
          $region76: #{custom-call.11} parent=68 // loop_exit
            _
          // While loop
          $region77: #{custom-call.11} parent=68 // loop_pre_header
            _
          $region78: #{custom-call.11} parent=68 // loop_header
            %s365 = sphi %s339, %s373
            %s366 = sphi %s340, %s374
            %v367 = vphi %v341, %v367
            %p368 = scmp.gt.s32.totalorder %s365, %s337
          $region79: #{custom-call.11} parent=68 // loop_header_branch
            %370 = sbr.rel (%p368) target = $region83
          $region80: #{custom-call.11} parent=68 // loop_body
            %v371 = vld [vmem:[%s365] sm:$0xff]
            %372 = vst [vmem:[%s366] sm:$0xff] %v371
          $region81: #{custom-call.11} parent=68 // loop_footer
            %s373 = scalar_lea.vmem %s365, 8
            %s374 = scalar_lea.vmem %s366, 8
          $region82: #{custom-call.11} parent=68 // loop_footer_branch
            %375 = sbr.rel target = $region78
          $region83: #{custom-call.11} parent=68 // loop_exit
            _
        $region69: #{custom-call.11} parent=64 // pred_fallthru
          _
        %s377 = ssub.s32 2, 1
        %s378 = smul.u32 0, 8
        %s379 = scalar_lea.vmem %s3, %s378
        %s380 = smul.u32 0, 8
        %s381 = scalar_lea.vmem [#allocation8], %s380
        %v382 = vld [vmem:[%s381] sm:%s377]
        %383 = vst [vmem:[%s379] sm:%s377] %v382
      $region65: #{custom-call.11} parent=60 // pred_fallthru
        _
    $region61: #{custom-call.11} parent=1 // pred_fallthru
      _
    // Predicated region
    $region84: #{custom-call.11} parent=1 // pred_check
      _
    $region85: #{custom-call.11} parent=1 // pred_check_branch
      %385 = sbr.rel (0) target = $region87
    $region86: #{custom-call.11} parent=1 // pred_region
      %387 = dma.done [#allocation6], 16
    $region87: #{custom-call.11} parent=1 // pred_fallthru
      _
    // Predicated region
    $region88: #{custom-call.11} parent=1 // pred_check
      _
    $region89: #{custom-call.11} parent=1 // pred_check_branch
      %389 = sbr.rel (0) target = $region91
    $region90: #{custom-call.11} parent=1 // pred_region
      _
    $region91: #{custom-call.11} parent=1 // pred_fallthru
      _
    %390 = vsyncpa [#allocation6], 1

// kernel: custom-call.13
$region0: #{custom-call.13}
  %s0 = inlined_call_operand.vmem [shape: f32[1,4,4], index: 0, kind: input, shape index: {}]
  %s1 = inlined_call_operand.vmem [shape: f32[1,4,4], index: 1, kind: output, shape index: {}]
  $region1: #{custom-call.13} parent=0
    #allocation0 [shape = 'u8[4096]{0}', space=vmem, size = 0x1000, scoped, tag = 'operand span for operand 0']
    #allocation1 [shape = 'u8[2048]{0}', space=vmem, size = 0x800, scoped, tag = 'packed  for operand 0']
    #allocation2 [shape = 'u8[4096]{0}', space=vmem, size = 0x1000, scoped, tag = 'operand span for operand 1']
    #allocation3 [shape = 'u8[2048]{0}', space=vmem, size = 0x800, scoped, tag = 'packed  for operand 1']
    #allocation4 [shape = 'f32[4,4]{1,0}', space=vmem, size = 0x1000, scoped, tag = 'rescaled input a']
    // Predicated region
    $region2: #{custom-call.13} parent=1 // pred_check
      _
    $region3: #{custom-call.13} parent=1 // pred_check_branch
      %3 = sbr.rel (0) target = $region5
    $region4: #{custom-call.13} parent=1 // pred_region
      // Predicated region
      $region6: #{custom-call.13} parent=4 // pred_check
        _
      $region7: #{custom-call.13} parent=4 // pred_check_branch
        %5 = sbr.rel target = $region9
      $region8: #{custom-call.13} parent=4 // pred_region
        // Predicated region
        $region21: #{custom-call.13} parent=8 // pred_check
          _
        $region22: #{custom-call.13} parent=8 // pred_check_branch
          %21 = sbr.rel (0) target = $region24
        $region23: #{custom-call.13} parent=8 // pred_region
          %s23 = ssub.s32 16, 1
          loop: start=0, step=1, limit=1
          $region25: #{custom-call.13} parent=23 // loop_pre_header
            _
          $region26: #{custom-call.13} parent=23 // loop_header
            %s25 = sphi 0, %s29
            %p26 = scmp.ge.s32.totalorder %s25, 1
            %s30 = sphi %s0, %s0
            %s31 = sphi [#allocation1], [#allocation1]
          $region27: #{custom-call.13} parent=23 // loop_header_branch
            %28 = sbr.rel (%p26) target = $region31
          $region28: #{custom-call.13} parent=23 // loop_body
            %v32 = vld [vmem:[%s30] sm:%s23]
            %33 = vst [vmem:[%s31] sm:%s23] %v32
          $region29: #{custom-call.13} parent=23 // loop_footer
            %s29 = sadd.s32 1, %s25
          $region30: #{custom-call.13} parent=23 // loop_footer_branch
            %24 = sbr.rel target = $region26
          $region31: #{custom-call.13} parent=23 // loop_exit
            _
        $region24: #{custom-call.13} parent=8 // pred_fallthru
          _
      $region9: #{custom-call.13} parent=4 // pred_fallthru
        _
      // Predicated region
      $region10: #{custom-call.13} parent=4 // pred_check
        _
      $region11: #{custom-call.13} parent=4 // pred_check_branch
        %7 = sbr.rel (0) target = $region13
      $region12: #{custom-call.13} parent=4 // pred_region
        %s9 = ssub.s32 16, 1
        loop: start=0, step=1, limit=1
        $region14: #{custom-call.13} parent=12 // loop_pre_header
          _
        $region15: #{custom-call.13} parent=12 // loop_header
          %s11 = sphi 0, %s15
          %p12 = scmp.ge.s32.totalorder %s11, 1
          %s16 = sphi %s0, %s0
          %s17 = sphi [#allocation1], [#allocation1]
        $region16: #{custom-call.13} parent=12 // loop_header_branch
          %14 = sbr.rel (%p12) target = $region20
        $region17: #{custom-call.13} parent=12 // loop_body
          %v18 = vld [vmem:[%s16] sm:%s9]
          %19 = vst [vmem:[%s17] sm:%s9] %v18
        $region18: #{custom-call.13} parent=12 // loop_footer
          %s15 = sadd.s32 1, %s11
        $region19: #{custom-call.13} parent=12 // loop_footer_branch
          %10 = sbr.rel target = $region15
        $region20: #{custom-call.13} parent=12 // loop_exit
          _
      $region13: #{custom-call.13} parent=4 // pred_fallthru
        _
    $region5: #{custom-call.13} parent=1 // pred_fallthru
      _
    %34 = vnop
    %s36 = ssub.s32 16, 1
    %v37 = vld [vmem:[#allocation1] sm:%s36]
    %38 = vst [vmem:[#allocation0] sm:%s36] %v37
    %v39 = vlaneseq
    %v40 = vand.u32 %v39, 127
    %vm41 = vcmp.lt.s32.totalorder %v40, 4
    %v42 = vlaneseq
    %v43 = vshrl.u32 %v42, 7
    %vm45 = vcmp.eq.s32.totalorder %v43, %v40
    %v46 = vld [vmem:[#allocation0] sm:$0xff]
    %v47 = vsel %vm45, %v46, 0.0
    %48 = vadd.xlane.f32.xlu0 %v47
    %v49 = vpop.xlane.xlu0 %48
    %vm50 = vcmp.ge.s32.totalorder %v43, %v40
    %vm51 = vmand %vm50, %vm41
    %v52 = vsel %vm51, %v46, 0.0
    %v53 = vrcp.pop %v49
    %v54 = vmul.f32 %v49, %v53
    %v55 = vsub.f32 1.0, %v54
    %v56 = vmul.f32 %v53, %v55
    %v57 = vadd.f32 %v53, %v56
    %vm58 = vweird.f32 %v49
    %vm59 = vweird.f32 %v53
    %vm60 = vmor %vm58, %vm59
    %v61 = vsel %vm60, %v53, %v57
    %v62 = vand.u32 2147483647, %v49
    %vm63 = vcmp.eq.f32.partialorder %v62, 8.507059e+37
    %v64 = vand.u32 %v49, 2147483648
    %v65 = vor.u32 1.1754944e-38, %v64
    %v66 = vsel %vm63, %v65, %v61
    %v67 = vmul.f32 %v52, %v66
    %68 = vst [vmem:[#allocation4] sm:$0xff] %v67
    %v69 = vlaneseq
    %v70 = vand.u32 %v69, 127
    %v71 = vlaneseq
    %v72 = vshrl.u32 %v71, 7
    %vm74 = vcmp.eq.s32.totalorder %v70, %v72
    %v75 = vlaneseq
    %v76 = vand.u32 %v75, 127
    %vm77 = vcmp.eq.s32.totalorder %v76, 0
    %v78 = vsel %vm77, 1.0, -1.0
    %v79 = vsel %vm74, %v78, 0.0
    %s80 = scalar_lea.vmem [#allocation4], 1
    %v81 = vld [vmem:[%s80] ss:$0 sm:$0xff]
    %v82 = vxor.u32 %v81, 2147483648
    %v83 = vlaneseq
    %v84 = vand.u32 %v83, 127
    %vm85 = vcmp.eq.s32.totalorder %v84, 1
    %v86 = vmul.f32 %v82, %v79
    %87 = vadd.xlane.f32.xlu0 %v86
    %v88 = vpop.xlane.xlu0 %87
    %v89 = vsel %vm85, %v88, %v79
    %s90 = scalar_lea.vmem [#allocation4], 2
    %v91 = vld [vmem:[%s90] ss:$0 sm:$0xff]
    %v92 = vxor.u32 %v91, 2147483648
    %v93 = vlaneseq
    %v94 = vand.u32 %v93, 127
    %vm95 = vcmp.eq.s32.totalorder %v94, 2
    %v96 = vmul.f32 %v92, %v89
    %97 = vadd.xlane.f32.xlu0 %v96
    %v98 = vpop.xlane.xlu0 %97
    %v99 = vsel %vm95, %v98, %v89
    %s100 = scalar_lea.vmem [#allocation4], 3
    %v101 = vld [vmem:[%s100] ss:$0 sm:$0xff]
    %v102 = vxor.u32 %v101, 2147483648
    %v103 = vlaneseq
    %v104 = vand.u32 %v103, 127
    %vm105 = vcmp.eq.s32.totalorder %v104, 3
    %v106 = vmul.f32 %v102, %v99
    %107 = vadd.xlane.f32.xlu0 %v106
    %v108 = vpop.xlane.xlu0 %107
    %v109 = vsel %vm105, %v108, %v99
    %v110 = vrcp.pop %v49
    %v111 = vmul.f32 %v49, %v110
    %v112 = vsub.f32 1.0, %v111
    %v113 = vmul.f32 %v110, %v112
    %v114 = vadd.f32 %v110, %v113
    %vm115 = vweird.f32 %v49
    %vm116 = vweird.f32 %v110
    %vm117 = vmor %vm115, %vm116
    %v118 = vsel %vm117, %v110, %v114
    %v119 = vand.u32 2147483647, %v49
    %vm120 = vcmp.eq.f32.partialorder %v119, 8.507059e+37
    %v121 = vand.u32 %v49, 2147483648
    %v122 = vor.u32 1.1754944e-38, %v121
    %v123 = vsel %vm120, %v122, %v118
    %v124 = vmul.f32 %v109, %v123
    %vm125 = vweird.f32 %v49
    %v126 = vsel %vm125, %v109, %v124
    %127 = vst [vmem:[#allocation2] sm:$0xff] %v126
    %s129 = ssub.s32 16, 1
    %v130 = vld [vmem:[#allocation2] sm:%s129]
    %s132 = ssub.s32 16, 1
    %133 = vst [vmem:[#allocation3] sm:%s132] %v130
    // Predicated region
    $region32: #{custom-call.13} parent=1 // pred_check
      _
    $region33: #{custom-call.13} parent=1 // pred_check_branch
      %135 = sbr.rel (0) target = $region35
    $region34: #{custom-call.13} parent=1 // pred_region
      // Predicated region
      $region36: #{custom-call.13} parent=34 // pred_check
        _
      $region37: #{custom-call.13} parent=34 // pred_check_branch
        %137 = sbr.rel target = $region39
      $region38: #{custom-call.13} parent=34 // pred_region
        // Predicated region
        $region51: #{custom-call.13} parent=38 // pred_check
          _
        $region52: #{custom-call.13} parent=38 // pred_check_branch
          %153 = sbr.rel (0) target = $region54
        $region53: #{custom-call.13} parent=38 // pred_region
          %s155 = ssub.s32 16, 1
          loop: start=0, step=1, limit=1
          $region55: #{custom-call.13} parent=53 // loop_pre_header
            _
          $region56: #{custom-call.13} parent=53 // loop_header
            %s157 = sphi 0, %s161
            %p158 = scmp.ge.s32.totalorder %s157, 1
            %s162 = sphi [#allocation3], [#allocation3]
            %s163 = sphi %s1, %s1
          $region57: #{custom-call.13} parent=53 // loop_header_branch
            %160 = sbr.rel (%p158) target = $region61
          $region58: #{custom-call.13} parent=53 // loop_body
            %v164 = vld [vmem:[%s162] sm:%s155]
            %165 = vst [vmem:[%s163] sm:%s155] %v164
          $region59: #{custom-call.13} parent=53 // loop_footer
            %s161 = sadd.s32 1, %s157
          $region60: #{custom-call.13} parent=53 // loop_footer_branch
            %156 = sbr.rel target = $region56
          $region61: #{custom-call.13} parent=53 // loop_exit
            _
        $region54: #{custom-call.13} parent=38 // pred_fallthru
          _
      $region39: #{custom-call.13} parent=34 // pred_fallthru
        _
      // Predicated region
      $region40: #{custom-call.13} parent=34 // pred_check
        _
      $region41: #{custom-call.13} parent=34 // pred_check_branch
        %139 = sbr.rel (0) target = $region43
      $region42: #{custom-call.13} parent=34 // pred_region
        %s141 = ssub.s32 16, 1
        loop: start=0, step=1, limit=1
        $region44: #{custom-call.13} parent=42 // loop_pre_header
          _
        $region45: #{custom-call.13} parent=42 // loop_header
          %s143 = sphi 0, %s147
          %p144 = scmp.ge.s32.totalorder %s143, 1
          %s148 = sphi [#allocation3], [#allocation3]
          %s149 = sphi %s1, %s1
        $region46: #{custom-call.13} parent=42 // loop_header_branch
          %146 = sbr.rel (%p144) target = $region50
        $region47: #{custom-call.13} parent=42 // loop_body
          %v150 = vld [vmem:[%s148] sm:%s141]
          %151 = vst [vmem:[%s149] sm:%s141] %v150
        $region48: #{custom-call.13} parent=42 // loop_footer
          %s147 = sadd.s32 1, %s143
        $region49: #{custom-call.13} parent=42 // loop_footer_branch
          %142 = sbr.rel target = $region45
        $region50: #{custom-call.13} parent=42 // loop_exit
          _
      $region43: #{custom-call.13} parent=34 // pred_fallthru
        _
    $region35: #{custom-call.13} parent=1 // pred_fallthru
      _
    %166 = vnop

// kernel: custom-call.12
$region0: #{custom-call.12}
  %s0 = inlined_call_operand.vmem [shape: f32[1,4,4], index: 0, kind: input, shape index: {}]
  %s1 = inlined_call_operand.vmem [shape: f32[1,4,4], index: 1, kind: output, shape index: {}]
  $region1: #{custom-call.12} parent=0
    #allocation0 [shape = 'u8[4096]{0}', space=vmem, size = 0x1000, scoped, tag = 'operand span for operand 0']
    #allocation1 [shape = 'u8[2048]{0}', space=vmem, size = 0x800, scoped, tag = 'packed  for operand 0']
    #allocation2 [shape = 'u8[4096]{0}', space=vmem, size = 0x1000, scoped, tag = 'operand span for operand 1']
    #allocation3 [shape = 'u8[2048]{0}', space=vmem, size = 0x800, scoped, tag = 'packed  for operand 1']
    #allocation4 [shape = 'f32[4,4]{1,0}', space=vmem, size = 0x1000, scoped, tag = 'rescaled input a']
    // Predicated region
    $region2: #{custom-call.12} parent=1 // pred_check
      _
    $region3: #{custom-call.12} parent=1 // pred_check_branch
      %3 = sbr.rel (0) target = $region5
    $region4: #{custom-call.12} parent=1 // pred_region
      // Predicated region
      $region6: #{custom-call.12} parent=4 // pred_check
        _
      $region7: #{custom-call.12} parent=4 // pred_check_branch
        %5 = sbr.rel target = $region9
      $region8: #{custom-call.12} parent=4 // pred_region
        // Predicated region
        $region21: #{custom-call.12} parent=8 // pred_check
          _
        $region22: #{custom-call.12} parent=8 // pred_check_branch
          %21 = sbr.rel (0) target = $region24
        $region23: #{custom-call.12} parent=8 // pred_region
          %s23 = ssub.s32 16, 1
          loop: start=0, step=1, limit=1
          $region25: #{custom-call.12} parent=23 // loop_pre_header
            _
          $region26: #{custom-call.12} parent=23 // loop_header
            %s25 = sphi 0, %s29
            %p26 = scmp.ge.s32.totalorder %s25, 1
            %s30 = sphi %s0, %s0
            %s31 = sphi [#allocation1], [#allocation1]
          $region27: #{custom-call.12} parent=23 // loop_header_branch
            %28 = sbr.rel (%p26) target = $region31
          $region28: #{custom-call.12} parent=23 // loop_body
            %v32 = vld [vmem:[%s30] sm:%s23]
            %33 = vst [vmem:[%s31] sm:%s23] %v32
          $region29: #{custom-call.12} parent=23 // loop_footer
            %s29 = sadd.s32 1, %s25
          $region30: #{custom-call.12} parent=23 // loop_footer_branch
            %24 = sbr.rel target = $region26
          $region31: #{custom-call.12} parent=23 // loop_exit
            _
        $region24: #{custom-call.12} parent=8 // pred_fallthru
          _
      $region9: #{custom-call.12} parent=4 // pred_fallthru
        _
      // Predicated region
      $region10: #{custom-call.12} parent=4 // pred_check
        _
      $region11: #{custom-call.12} parent=4 // pred_check_branch
        %7 = sbr.rel (0) target = $region13
      $region12: #{custom-call.12} parent=4 // pred_region
        %s9 = ssub.s32 16, 1
        loop: start=0, step=1, limit=1
        $region14: #{custom-call.12} parent=12 // loop_pre_header
          _
        $region15: #{custom-call.12} parent=12 // loop_header
          %s11 = sphi 0, %s15
          %p12 = scmp.ge.s32.totalorder %s11, 1
          %s16 = sphi %s0, %s0
          %s17 = sphi [#allocation1], [#allocation1]
        $region16: #{custom-call.12} parent=12 // loop_header_branch
          %14 = sbr.rel (%p12) target = $region20
        $region17: #{custom-call.12} parent=12 // loop_body
          %v18 = vld [vmem:[%s16] sm:%s9]
          %19 = vst [vmem:[%s17] sm:%s9] %v18
        $region18: #{custom-call.12} parent=12 // loop_footer
          %s15 = sadd.s32 1, %s11
        $region19: #{custom-call.12} parent=12 // loop_footer_branch
          %10 = sbr.rel target = $region15
        $region20: #{custom-call.12} parent=12 // loop_exit
          _
      $region13: #{custom-call.12} parent=4 // pred_fallthru
        _
    $region5: #{custom-call.12} parent=1 // pred_fallthru
      _
    %34 = vnop
    %s36 = ssub.s32 16, 1
    %v37 = vld [vmem:[#allocation1] sm:%s36]
    %38 = vst [vmem:[#allocation0] sm:%s36] %v37
    %v39 = vlaneseq
    %v40 = vand.u32 %v39, 127
    %vm41 = vcmp.lt.s32.totalorder %v40, 4
    %v42 = vlaneseq
    %v43 = vshrl.u32 %v42, 7
    %vm45 = vcmp.eq.s32.totalorder %v43, %v40
    %v46 = vld [vmem:[#allocation0] sm:$0xff]
    %v47 = vsel %vm45, %v46, 0.0
    %48 = vadd.xlane.f32.xlu0 %v47
    %v49 = vpop.xlane.xlu0 %48
    %vm50 = vcmp.le.s32.totalorder %v43, %v40
    %vm51 = vmand %vm50, %vm41
    %v52 = vsel %vm51, %v46, 0.0
    %v53 = vrcp.pop %v49
    %v54 = vmul.f32 %v49, %v53
    %v55 = vsub.f32 1.0, %v54
    %v56 = vmul.f32 %v53, %v55
    %v57 = vadd.f32 %v53, %v56
    %vm58 = vweird.f32 %v49
    %vm59 = vweird.f32 %v53
    %vm60 = vmor %vm58, %vm59
    %v61 = vsel %vm60, %v53, %v57
    %v62 = vand.u32 2147483647, %v49
    %vm63 = vcmp.eq.f32.partialorder %v62, 8.507059e+37
    %v64 = vand.u32 %v49, 2147483648
    %v65 = vor.u32 1.1754944e-38, %v64
    %v66 = vsel %vm63, %v65, %v61
    %v67 = vmul.f32 %v52, %v66
    %68 = vst [vmem:[#allocation4] sm:$0xff] %v67
    %v69 = vlaneseq
    %v70 = vand.u32 %v69, 127
    %v71 = vlaneseq
    %v72 = vshrl.u32 %v71, 7
    %vm74 = vcmp.eq.s32.totalorder %v70, %v72
    %v75 = vlaneseq
    %v76 = vand.u32 %v75, 127
    %vm77 = vcmp.eq.s32.totalorder %v76, 3
    %v78 = vsel %vm77, 1.0, -1.0
    %v79 = vsel %vm74, %v78, 0.0
    %s80 = scalar_lea.vmem [#allocation4], 2
    %v81 = vld [vmem:[%s80] ss:$0 sm:$0xff]
    %v82 = vxor.u32 %v81, 2147483648
    %v83 = vlaneseq
    %v84 = vand.u32 %v83, 127
    %vm85 = vcmp.eq.s32.totalorder %v84, 2
    %v86 = vmul.f32 %v82, %v79
    %87 = vadd.xlane.f32.xlu0 %v86
    %v88 = vpop.xlane.xlu0 %87
    %v89 = vsel %vm85, %v88, %v79
    %s90 = scalar_lea.vmem [#allocation4], 1
    %v91 = vld [vmem:[%s90] ss:$0 sm:$0xff]
    %v92 = vxor.u32 %v91, 2147483648
    %v93 = vlaneseq
    %v94 = vand.u32 %v93, 127
    %vm95 = vcmp.eq.s32.totalorder %v94, 1
    %v96 = vmul.f32 %v92, %v89
    %97 = vadd.xlane.f32.xlu0 %v96
    %v98 = vpop.xlane.xlu0 %97
    %v99 = vsel %vm95, %v98, %v89
    %v100 = vld [vmem:[#allocation4] ss:$0 sm:$0xff]
    %v101 = vxor.u32 %v100, 2147483648
    %v102 = vlaneseq
    %v103 = vand.u32 %v102, 127
    %vm104 = vcmp.eq.s32.totalorder %v103, 0
    %v105 = vmul.f32 %v101, %v99
    %106 = vadd.xlane.f32.xlu0 %v105
    %v107 = vpop.xlane.xlu0 %106
    %v108 = vsel %vm104, %v107, %v99
    %v109 = vrcp.pop %v49
    %v110 = vmul.f32 %v49, %v109
    %v111 = vsub.f32 1.0, %v110
    %v112 = vmul.f32 %v109, %v111
    %v113 = vadd.f32 %v109, %v112
    %vm114 = vweird.f32 %v49
    %vm115 = vweird.f32 %v109
    %vm116 = vmor %vm114, %vm115
    %v117 = vsel %vm116, %v109, %v113
    %v118 = vand.u32 2147483647, %v49
    %vm119 = vcmp.eq.f32.partialorder %v118, 8.507059e+37
    %v120 = vand.u32 %v49, 2147483648
    %v121 = vor.u32 1.1754944e-38, %v120
    %v122 = vsel %vm119, %v121, %v117
    %v123 = vmul.f32 %v108, %v122
    %vm124 = vweird.f32 %v49
    %v125 = vsel %vm124, %v108, %v123
    %126 = vst [vmem:[#allocation2] sm:$0xff] %v125
    %s128 = ssub.s32 16, 1
    %v129 = vld [vmem:[#allocation2] sm:%s128]
    %s131 = ssub.s32 16, 1
    %132 = vst [vmem:[#allocation3] sm:%s131] %v129
    // Predicated region
    $region32: #{custom-call.12} parent=1 // pred_check
      _
    $region33: #{custom-call.12} parent=1 // pred_check_branch
      %134 = sbr.rel (0) target = $region35
    $region34: #{custom-call.12} parent=1 // pred_region
      // Predicated region
      $region36: #{custom-call.12} parent=34 // pred_check
        _
      $region37: #{custom-call.12} parent=34 // pred_check_branch
        %136 = sbr.rel target = $region39
      $region38: #{custom-call.12} parent=34 // pred_region
        // Predicated region
        $region51: #{custom-call.12} parent=38 // pred_check
          _
        $region52: #{custom-call.12} parent=38 // pred_check_branch
          %152 = sbr.rel (0) target = $region54
        $region53: #{custom-call.12} parent=38 // pred_region
          %s154 = ssub.s32 16, 1
          loop: start=0, step=1, limit=1
          $region55: #{custom-call.12} parent=53 // loop_pre_header
            _
          $region56: #{custom-call.12} parent=53 // loop_header
            %s156 = sphi 0, %s160
            %p157 = scmp.ge.s32.totalorder %s156, 1
            %s161 = sphi [#allocation3], [#allocation3]
            %s162 = sphi %s1, %s1
          $region57: #{custom-call.12} parent=53 // loop_header_branch
            %159 = sbr.rel (%p157) target = $region61
          $region58: #{custom-call.12} parent=53 // loop_body
            %v163 = vld [vmem:[%s161] sm:%s154]
            %164 = vst [vmem:[%s162] sm:%s154] %v163
          $region59: #{custom-call.12} parent=53 // loop_footer
            %s160 = sadd.s32 1, %s156
          $region60: #{custom-call.12} parent=53 // loop_footer_branch
            %155 = sbr.rel target = $region56
          $region61: #{custom-call.12} parent=53 // loop_exit
            _
        $region54: #{custom-call.12} parent=38 // pred_fallthru
          _
      $region39: #{custom-call.12} parent=34 // pred_fallthru
        _
      // Predicated region
      $region40: #{custom-call.12} parent=34 // pred_check
        _
      $region41: #{custom-call.12} parent=34 // pred_check_branch
        %138 = sbr.rel (0) target = $region43
      $region42: #{custom-call.12} parent=34 // pred_region
        %s140 = ssub.s32 16, 1
        loop: start=0, step=1, limit=1
        $region44: #{custom-call.12} parent=42 // loop_pre_header
          _
        $region45: #{custom-call.12} parent=42 // loop_header
          %s142 = sphi 0, %s146
          %p143 = scmp.ge.s32.totalorder %s142, 1
          %s147 = sphi [#allocation3], [#allocation3]
          %s148 = sphi %s1, %s1
        $region46: #{custom-call.12} parent=42 // loop_header_branch
          %145 = sbr.rel (%p143) target = $region50
        $region47: #{custom-call.12} parent=42 // loop_body
          %v149 = vld [vmem:[%s147] sm:%s140]
          %150 = vst [vmem:[%s148] sm:%s140] %v149
        $region48: #{custom-call.12} parent=42 // loop_footer
          %s146 = sadd.s32 1, %s142
        $region49: #{custom-call.12} parent=42 // loop_footer_branch
          %141 = sbr.rel target = $region45
        $region50: #{custom-call.12} parent=42 // loop_exit
          _
      $region43: #{custom-call.12} parent=34 // pred_fallthru
        _
    $region35: #{custom-call.12} parent=1 // pred_fallthru
      _
    %165 = vnop

// kernel: _device_forward.3
$region0: #{_device_forward.3}
  #allocation0 [shape = 'u32[]', space=smem, size = 0x4, offset = 0x4, fixed_abs, tag = 'smem constant byte address 0x4 - core index']
  #allocation1 [shape = 'u32[72,128]{1,0:T(1,128)}', space=vmem, size = 0x9000, scoped, tag = 'internal scratch']
  #allocation2 [shape = 'bf16[256,128]{1,0:T(8,128)(2,1)}', space=vmem, size = 0x10000, scoped, tag = 'scratch operand']
  %s0 = inlined_call_operand.vmem [shape: f32[32,128], index: 0, kind: input, shape index: {}]
  %s1 = inlined_call_operand.vmem [shape: bf16[32,256], index: 1, kind: input, shape index: {}]
  %s2 = inlined_call_operand.vmem [shape: bf16[16,128,128], index: 2, kind: input, shape index: {}]
  %s3 = inlined_call_operand.vmem [shape: f32[2,1,128], index: 3, kind: input, shape index: {}]
  %s4 = inlined_call_operand.vmem [shape: f32[2,1,128], index: 4, kind: input, shape index: {}]
  %s5 = inlined_call_operand.vmem [shape: f32[32,1], index: 5, kind: input, shape index: {}]
  %s6 = inlined_call_operand.vmem [shape: f32[32,1], index: 6, kind: input, shape index: {}]
  %s7 = inlined_call_operand.vmem [shape: f32[32,128], index: 7, kind: output, shape index: {}]
  %s8 = sld [smem:[#allocation0]]
  $region38: #{_device_forward.3} parent=0
    _
  %s10 = ssub.s32 1, %s8
  %s11 = scalar_select 0, %s10, %s8
  // Predicated region
  $region2: #{_device_forward.3} parent=0 // pred_check
    _
  $region3: #{_device_forward.3} parent=0 // pred_check_branch
    %13 = sbr.rel (0) target = $region5
  $region4: #{_device_forward.3} parent=0 // pred_region
    _
  $region5: #{_device_forward.3} parent=0 // pred_fallthru
    _
  // Predicated region
  $region6: #{_device_forward.3} parent=0 // pred_check
    _
  $region7: #{_device_forward.3} parent=0 // pred_check_branch
    %15 = sbr.rel (0) target = $region9
  $region8: #{_device_forward.3} parent=0 // pred_region
    _
  $region9: #{_device_forward.3} parent=0 // pred_fallthru
    _
  // Predicated region
  $region10: #{_device_forward.3} parent=0 // pred_check
    _
  $region11: #{_device_forward.3} parent=0 // pred_check_branch
    %17 = sbr.rel (0) target = $region13
  $region12: #{_device_forward.3} parent=0 // pred_region
    _
  $region13: #{_device_forward.3} parent=0 // pred_fallthru
    _
  // Predicated region
  $region14: #{_device_forward.3} parent=0 // pred_check
    _
  $region15: #{_device_forward.3} parent=0 // pred_check_branch
    %19 = sbr.rel (0) target = $region17
  $region16: #{_device_forward.3} parent=0 // pred_region
    _
  $region17: #{_device_forward.3} parent=0 // pred_fallthru
    _
  // Predicated region
  $region18: #{_device_forward.3} parent=0 // pred_check
    _
  $region19: #{_device_forward.3} parent=0 // pred_check_branch
    %21 = sbr.rel (0) target = $region21
  $region20: #{_device_forward.3} parent=0 // pred_region
    _
  $region21: #{_device_forward.3} parent=0 // pred_fallthru
    _
  // Predicated region
  $region22: #{_device_forward.3} parent=0 // pred_check
    _
  $region23: #{_device_forward.3} parent=0 // pred_check_branch
    %23 = sbr.rel (0) target = $region25
  $region24: #{_device_forward.3} parent=0 // pred_region
    _
  $region25: #{_device_forward.3} parent=0 // pred_fallthru
    _
  // Predicated region
  $region26: #{_device_forward.3} parent=0 // pred_check
    _
  $region27: #{_device_forward.3} parent=0 // pred_check_branch
    %25 = sbr.rel (0) target = $region29
  $region28: #{_device_forward.3} parent=0 // pred_region
    _
  $region29: #{_device_forward.3} parent=0 // pred_fallthru
    _
  %v26 = vld [vmem:[%s1] sm:$0xff]
  %v27 = vld [vmem:[%s1 + $0x8] sm:$0xff]
  %v28 = vld [vmem:[%s1 + $0x10] sm:$0xff]
  %v29 = vld [vmem:[%s1 + $0x18] sm:$0xff]
  %v30 = vld [vmem:[%s5] sm:$0xff]
  %v31 = vld [vmem:[%s5 + $0x8] sm:$0xff]
  %v32 = vld [vmem:[%s5 + $0x10] sm:$0xff]
  %v33 = vld [vmem:[%s5 + $0x18] sm:$0xff]
  %v34 = vld [vmem:[%s6] sm:$0xff]
  %v35 = vld [vmem:[%s6 + $0x8] sm:$0xff]
  %v36 = vld [vmem:[%s6 + $0x10] sm:$0xff]
  %v37 = vld [vmem:[%s6 + $0x18] sm:$0xff]
  %v38 = vld [vmem:[%s0] sm:$0xff]
  %v39 = vld [vmem:[%s0 + $0x8] sm:$0xff]
  %v40 = vld [vmem:[%s0 + $0x10] sm:$0xff]
  %v41 = vld [vmem:[%s0 + $0x18] sm:$0xff]
  %v42 = vpack.c.bf16 %v39, %v38
  %v43 = vpack.c.bf16 %v41, %v40
  %v44 = vld [vmem:[%s2] sm:$0xf]
  %v45 = vld [vmem:[%s2 + $0x4] sm:$0xf]
  %v46 = vld [vmem:[%s2 + $0x8] sm:$0xf]
  %v47 = vld [vmem:[%s2 + $0xc] sm:$0xf]
  %v48 = vld [vmem:[%s2 + $0x10] sm:$0xf]
  %v49 = vld [vmem:[%s2 + $0x14] sm:$0xf]
  %v50 = vld [vmem:[%s2 + $0x18] sm:$0xf]
  %v51 = vld [vmem:[%s2 + $0x1c] sm:$0xf]
  %v52 = vld [vmem:[%s2 + $0x20] sm:$0xf]
  %v53 = vld [vmem:[%s2 + $0x24] sm:$0xf]
  %v54 = vld [vmem:[%s2 + $0x28] sm:$0xf]
  %v55 = vld [vmem:[%s2 + $0x2c] sm:$0xf]
  %v56 = vld [vmem:[%s2 + $0x30] sm:$0xf]
  %v57 = vld [vmem:[%s2 + $0x34] sm:$0xf]
  %v58 = vld [vmem:[%s2 + $0x38] sm:$0xf]
  %v59 = vld [vmem:[%s2 + $0x3c] sm:$0xf]
  %v76 = vunpack.c.l.b16 %v44
  %v77 = vunpack.c.l.b16 %v45
  %v78 = vunpack.c.l.b16 %v46
  %v79 = vunpack.c.l.b16 %v47
  %v80 = vunpack.c.l.b16 %v48
  %v81 = vunpack.c.l.b16 %v49
  %v82 = vunpack.c.l.b16 %v50
  %v83 = vunpack.c.l.b16 %v51
  %v84 = vunpack.c.l.b16 %v52
  %v85 = vunpack.c.l.b16 %v53
  %v86 = vunpack.c.l.b16 %v54
  %v87 = vunpack.c.l.b16 %v55
  %v88 = vunpack.c.l.b16 %v56
  %v89 = vunpack.c.l.b16 %v57
  %v90 = vunpack.c.l.b16 %v58
  %v91 = vunpack.c.l.b16 %v59
  %v92 = vpack.c.b16 %v77, %v76
  %v93 = vpack.c.b16 %v79, %v78
  %v94 = vpack.c.b16 %v81, %v80
  %v95 = vpack.c.b16 %v83, %v82
  %v96 = vpack.c.b16 %v85, %v84
  %v97 = vpack.c.b16 %v87, %v86
  %v98 = vpack.c.b16 %v89, %v88
  %v99 = vpack.c.b16 %v91, %v90
  %108 = vmatpush.bf16.msra.mxu0 %v99
  %109 = vmatpush.bf16.msra.mxu0 %v98
  %110 = vmatpush.bf16.msra.mxu0 %v97
  %111 = vmatpush.bf16.msra.mxu0 %v96
  %112 = vmatpush.bf16.msra.mxu0 %v95
  %113 = vmatpush.bf16.msra.mxu0 %v94
  %114 = vmatpush.bf16.msra.mxu0 %v93
  %115 = vmatpush.bf16.msra.mxu0 %v92
  %116 = vmatmul.bf16.gmra.mxu0 %v42
  %v117 = vpop.f32.mrf.mxu0
  %v118 = vadd.f32 0.0, %v117
  %v119 = vpop.f32.mrf.mxu0
  %v120 = vadd.f32 0.0, %v119
  %121 = vmatmul.bf16.gmra.mxu0 %v43
  %v122 = vpop.f32.mrf.mxu0
  %v123 = vadd.f32 0.0, %v122
  %v124 = vpop.f32.mrf.mxu0
  %v125 = vadd.f32 0.0, %v124
  %126 = vdwg.mxu0
  %v127 = vpack.c.bf16 %v118, %v118
  %v128 = vpack.c.bf16 %v120, %v120
  %v129 = vpack.c.bf16 %v123, %v123
  %v130 = vpack.c.bf16 %v125, %v125
  %131 = vst [vmem:[#allocation2] sm:$0xf] %v127
  %132 = vst [vmem:[#allocation2 + $0x4] sm:$0xf] %v128
  %133 = vst [vmem:[#allocation2 + $0x8] sm:$0xf] %v129
  %134 = vst [vmem:[#allocation2 + $0xc] sm:$0xf] %v130
  %s135 = scalar_lea.vmem %s2, 64
  %v136 = vld [vmem:[%s135] sm:$0xf]
  %v137 = vld [vmem:[%s135 + $0x4] sm:$0xf]
  %v138 = vld [vmem:[%s135 + $0x8] sm:$0xf]
  %v139 = vld [vmem:[%s135 + $0xc] sm:$0xf]
  %v140 = vld [vmem:[%s135 + $0x10] sm:$0xf]
  %v141 = vld [vmem:[%s135 + $0x14] sm:$0xf]
  %v142 = vld [vmem:[%s135 + $0x18] sm:$0xf]
  %v143 = vld [vmem:[%s135 + $0x1c] sm:$0xf]
  %v144 = vld [vmem:[%s135 + $0x20] sm:$0xf]
  %v145 = vld [vmem:[%s135 + $0x24] sm:$0xf]
  %v146 = vld [vmem:[%s135 + $0x28] sm:$0xf]
  %v147 = vld [vmem:[%s135 + $0x2c] sm:$0xf]
  %v148 = vld [vmem:[%s135 + $0x30] sm:$0xf]
  %v149 = vld [vmem:[%s135 + $0x34] sm:$0xf]
  %v150 = vld [vmem:[%s135 + $0x38] sm:$0xf]
  %v151 = vld [vmem:[%s135 + $0x3c] sm:$0xf]
  %v168 = vunpack.c.l.b16 %v136
  %v169 = vunpack.c.l.b16 %v137
  %v170 = vunpack.c.l.b16 %v138
  %v171 = vunpack.c.l.b16 %v139
  %v172 = vunpack.c.l.b16 %v140
  %v173 = vunpack.c.l.b16 %v141
  %v174 = vunpack.c.l.b16 %v142
  %v175 = vunpack.c.l.b16 %v143
  %v176 = vunpack.c.l.b16 %v144
  %v177 = vunpack.c.l.b16 %v145
  %v178 = vunpack.c.l.b16 %v146
  %v179 = vunpack.c.l.b16 %v147
  %v180 = vunpack.c.l.b16 %v148
  %v181 = vunpack.c.l.b16 %v149
  %v182 = vunpack.c.l.b16 %v150
  %v183 = vunpack.c.l.b16 %v151
  %v184 = vpack.c.b16 %v169, %v168
  %v185 = vpack.c.b16 %v171, %v170
  %v186 = vpack.c.b16 %v173, %v172
  %v187 = vpack.c.b16 %v175, %v174
  %v188 = vpack.c.b16 %v177, %v176
  %v189 = vpack.c.b16 %v179, %v178
  %v190 = vpack.c.b16 %v181, %v180
  %v191 = vpack.c.b16 %v183, %v182
  %200 = vmatpush.bf16.msra.mxu0 %v191
  %201 = vmatpush.bf16.msra.mxu0 %v190
  %202 = vmatpush.bf16.msra.mxu0 %v189
  %203 = vmatpush.bf16.msra.mxu0 %v188
  %204 = vmatpush.bf16.msra.mxu0 %v187
  %205 = vmatpush.bf16.msra.mxu0 %v186
  %206 = vmatpush.bf16.msra.mxu0 %v185
  %207 = vmatpush.bf16.msra.mxu0 %v184
  %208 = vmatmul.bf16.gmra.mxu0 %v42
  %v209 = vpop.f32.mrf.mxu0
  %v210 = vadd.f32 0.0, %v209
  %v211 = vpop.f32.mrf.mxu0
  %v212 = vadd.f32 0.0, %v211
  %213 = vmatmul.bf16.gmra.mxu0 %v43
  %v214 = vpop.f32.mrf.mxu0
  %v215 = vadd.f32 0.0, %v214
  %v216 = vpop.f32.mrf.mxu0
  %v217 = vadd.f32 0.0, %v216
  %218 = vdwg.mxu0
  %v219 = vpack.c.bf16 %v210, %v210
  %v220 = vpack.c.bf16 %v212, %v212
  %v221 = vpack.c.bf16 %v215, %v215
  %v222 = vpack.c.bf16 %v217, %v217
  %223 = vst [vmem:[#allocation2 + $0x10] sm:$0xf] %v219
  %224 = vst [vmem:[#allocation2 + $0x14] sm:$0xf] %v220
  %225 = vst [vmem:[#allocation2 + $0x18] sm:$0xf] %v221
  %226 = vst [vmem:[#allocation2 + $0x1c] sm:$0xf] %v222
  %s227 = scalar_lea.vmem %s2, 128
  %v228 = vld [vmem:[%s227] sm:$0xf]
  %v229 = vld [vmem:[%s227 + $0x4] sm:$0xf]
  %v230 = vld [vmem:[%s227 + $0x8] sm:$0xf]
  %v231 = vld [vmem:[%s227 + $0xc] sm:$0xf]
  %v232 = vld [vmem:[%s227 + $0x10] sm:$0xf]
  %v233 = vld [vmem:[%s227 + $0x14] sm:$0xf]
  %v234 = vld [vmem:[%s227 + $0x18] sm:$0xf]
  %v235 = vld [vmem:[%s227 + $0x1c] sm:$0xf]
  %v236 = vld [vmem:[%s227 + $0x20] sm:$0xf]
  %v237 = vld [vmem:[%s227 + $0x24] sm:$0xf]
  %v238 = vld [vmem:[%s227 + $0x28] sm:$0xf]
  %v239 = vld [vmem:[%s227 + $0x2c] sm:$0xf]
  %v240 = vld [vmem:[%s227 + $0x30] sm:$0xf]
  %v241 = vld [vmem:[%s227 + $0x34] sm:$0xf]
  %v242 = vld [vmem:[%s227 + $0x38] sm:$0xf]
  %v243 = vld [vmem:[%s227 + $0x3c] sm:$0xf]
  %v260 = vunpack.c.l.b16 %v228
  %v261 = vunpack.c.l.b16 %v229
  %v262 = vunpack.c.l.b16 %v230
  %v263 = vunpack.c.l.b16 %v231
  %v264 = vunpack.c.l.b16 %v232
  %v265 = vunpack.c.l.b16 %v233
  %v266 = vunpack.c.l.b16 %v234
  %v267 = vunpack.c.l.b16 %v235
  %v268 = vunpack.c.l.b16 %v236
  %v269 = vunpack.c.l.b16 %v237
  %v270 = vunpack.c.l.b16 %v238
  %v271 = vunpack.c.l.b16 %v239
  %v272 = vunpack.c.l.b16 %v240
  %v273 = vunpack.c.l.b16 %v241
  %v274 = vunpack.c.l.b16 %v242
  %v275 = vunpack.c.l.b16 %v243
  %v276 = vpack.c.b16 %v261, %v260
  %v277 = vpack.c.b16 %v263, %v262
  %v278 = vpack.c.b16 %v265, %v264
  %v279 = vpack.c.b16 %v267, %v266
  %v280 = vpack.c.b16 %v269, %v268
  %v281 = vpack.c.b16 %v271, %v270
  %v282 = vpack.c.b16 %v273, %v272
  %v283 = vpack.c.b16 %v275, %v274
  %292 = vmatpush.bf16.msra.mxu0 %v283
  %293 = vmatpush.bf16.msra.mxu0 %v282
  %294 = vmatpush.bf16.msra.mxu0 %v281
  %295 = vmatpush.bf16.msra.mxu0 %v280
  %296 = vmatpush.bf16.msra.mxu0 %v279
  %297 = vmatpush.bf16.msra.mxu0 %v278
  %298 = vmatpush.bf16.msra.mxu0 %v277
  %299 = vmatpush.bf16.msra.mxu0 %v276
  %300 = vmatmul.bf16.gmra.mxu0 %v42
  %v301 = vpop.f32.mrf.mxu0
  %v302 = vadd.f32 0.0, %v301
  %v303 = vpop.f32.mrf.mxu0
  %v304 = vadd.f32 0.0, %v303
  %305 = vmatmul.bf16.gmra.mxu0 %v43
  %v306 = vpop.f32.mrf.mxu0
  %v307 = vadd.f32 0.0, %v306
  %v308 = vpop.f32.mrf.mxu0
  %v309 = vadd.f32 0.0, %v308
  %310 = vdwg.mxu0
  %v311 = vpack.c.bf16 %v302, %v302
  %v312 = vpack.c.bf16 %v304, %v304
  %v313 = vpack.c.bf16 %v307, %v307
  %v314 = vpack.c.bf16 %v309, %v309
  %315 = vst [vmem:[#allocation2 + $0x20] sm:$0xf] %v311
  %316 = vst [vmem:[#allocation2 + $0x24] sm:$0xf] %v312
  %317 = vst [vmem:[#allocation2 + $0x28] sm:$0xf] %v313
  %318 = vst [vmem:[#allocation2 + $0x2c] sm:$0xf] %v314
  %s319 = scalar_lea.vmem %s2, 192
  %v320 = vld [vmem:[%s319] sm:$0xf]
  %v321 = vld [vmem:[%s319 + $0x4] sm:$0xf]
  %v322 = vld [vmem:[%s319 + $0x8] sm:$0xf]
  %v323 = vld [vmem:[%s319 + $0xc] sm:$0xf]
  %v324 = vld [vmem:[%s319 + $0x10] sm:$0xf]
  %v325 = vld [vmem:[%s319 + $0x14] sm:$0xf]
  %v326 = vld [vmem:[%s319 + $0x18] sm:$0xf]
  %v327 = vld [vmem:[%s319 + $0x1c] sm:$0xf]
  %v328 = vld [vmem:[%s319 + $0x20] sm:$0xf]
  %v329 = vld [vmem:[%s319 + $0x24] sm:$0xf]
  %v330 = vld [vmem:[%s319 + $0x28] sm:$0xf]
  %v331 = vld [vmem:[%s319 + $0x2c] sm:$0xf]
  %v332 = vld [vmem:[%s319 + $0x30] sm:$0xf]
  %v333 = vld [vmem:[%s319 + $0x34] sm:$0xf]
  %v334 = vld [vmem:[%s319 + $0x38] sm:$0xf]
  %v335 = vld [vmem:[%s319 + $0x3c] sm:$0xf]
  %v352 = vunpack.c.l.b16 %v320
  %v353 = vunpack.c.l.b16 %v321
  %v354 = vunpack.c.l.b16 %v322
  %v355 = vunpack.c.l.b16 %v323
  %v356 = vunpack.c.l.b16 %v324
  %v357 = vunpack.c.l.b16 %v325
  %v358 = vunpack.c.l.b16 %v326
  %v359 = vunpack.c.l.b16 %v327
  %v360 = vunpack.c.l.b16 %v328
  %v361 = vunpack.c.l.b16 %v329
  %v362 = vunpack.c.l.b16 %v330
  %v363 = vunpack.c.l.b16 %v331
  %v364 = vunpack.c.l.b16 %v332
  %v365 = vunpack.c.l.b16 %v333
  %v366 = vunpack.c.l.b16 %v334
  %v367 = vunpack.c.l.b16 %v335
  %v368 = vpack.c.b16 %v353, %v352
  %v369 = vpack.c.b16 %v355, %v354
  %v370 = vpack.c.b16 %v357, %v356
  %v371 = vpack.c.b16 %v359, %v358
  %v372 = vpack.c.b16 %v361, %v360
  %v373 = vpack.c.b16 %v363, %v362
  %v374 = vpack.c.b16 %v365, %v364
  %v375 = vpack.c.b16 %v367, %v366
  %384 = vmatpush.bf16.msra.mxu0 %v375
  %385 = vmatpush.bf16.msra.mxu0 %v374
  %386 = vmatpush.bf16.msra.mxu0 %v373
  %387 = vmatpush.bf16.msra.mxu0 %v372
  %388 = vmatpush.bf16.msra.mxu0 %v371
  %389 = vmatpush.bf16.msra.mxu0 %v370
  %390 = vmatpush.bf16.msra.mxu0 %v369
  %391 = vmatpush.bf16.msra.mxu0 %v368
  %392 = vmatmul.bf16.gmra.mxu0 %v42
  %v393 = vpop.f32.mrf.mxu0
  %v394 = vadd.f32 0.0, %v393
  %v395 = vpop.f32.mrf.mxu0
  %v396 = vadd.f32 0.0, %v395
  %397 = vmatmul.bf16.gmra.mxu0 %v43
  %v398 = vpop.f32.mrf.mxu0
  %v399 = vadd.f32 0.0, %v398
  %v400 = vpop.f32.mrf.mxu0
  %v401 = vadd.f32 0.0, %v400
  %402 = vdwg.mxu0
  %v403 = vpack.c.bf16 %v394, %v394
  %v404 = vpack.c.bf16 %v396, %v396
  %v405 = vpack.c.bf16 %v399, %v399
  %v406 = vpack.c.bf16 %v401, %v401
  %407 = vst [vmem:[#allocation2 + $0x30] sm:$0xf] %v403
  %408 = vst [vmem:[#allocation2 + $0x34] sm:$0xf] %v404
  %409 = vst [vmem:[#allocation2 + $0x38] sm:$0xf] %v405
  %410 = vst [vmem:[#allocation2 + $0x3c] sm:$0xf] %v406
  %s411 = scalar_lea.vmem %s2, 256
  %v412 = vld [vmem:[%s411] sm:$0xf]
  %v413 = vld [vmem:[%s411 + $0x4] sm:$0xf]
  %v414 = vld [vmem:[%s411 + $0x8] sm:$0xf]
  %v415 = vld [vmem:[%s411 + $0xc] sm:$0xf]
  %v416 = vld [vmem:[%s411 + $0x10] sm:$0xf]
  %v417 = vld [vmem:[%s411 + $0x14] sm:$0xf]
  %v418 = vld [vmem:[%s411 + $0x18] sm:$0xf]
  %v419 = vld [vmem:[%s411 + $0x1c] sm:$0xf]
  %v420 = vld [vmem:[%s411 + $0x20] sm:$0xf]
  %v421 = vld [vmem:[%s411 + $0x24] sm:$0xf]
  %v422 = vld [vmem:[%s411 + $0x28] sm:$0xf]
  %v423 = vld [vmem:[%s411 + $0x2c] sm:$0xf]
  %v424 = vld [vmem:[%s411 + $0x30] sm:$0xf]
  %v425 = vld [vmem:[%s411 + $0x34] sm:$0xf]
  %v426 = vld [vmem:[%s411 + $0x38] sm:$0xf]
  %v427 = vld [vmem:[%s411 + $0x3c] sm:$0xf]
  %v444 = vunpack.c.l.b16 %v412
  %v445 = vunpack.c.l.b16 %v413
  %v446 = vunpack.c.l.b16 %v414
  %v447 = vunpack.c.l.b16 %v415
  %v448 = vunpack.c.l.b16 %v416
  %v449 = vunpack.c.l.b16 %v417
  %v450 = vunpack.c.l.b16 %v418
  %v451 = vunpack.c.l.b16 %v419
  %v452 = vunpack.c.l.b16 %v420
  %v453 = vunpack.c.l.b16 %v421
  %v454 = vunpack.c.l.b16 %v422
  %v455 = vunpack.c.l.b16 %v423
  %v456 = vunpack.c.l.b16 %v424
  %v457 = vunpack.c.l.b16 %v425
  %v458 = vunpack.c.l.b16 %v426
  %v459 = vunpack.c.l.b16 %v427
  %v460 = vpack.c.b16 %v445, %v444
  %v461 = vpack.c.b16 %v447, %v446
  %v462 = vpack.c.b16 %v449, %v448
  %v463 = vpack.c.b16 %v451, %v450
  %v464 = vpack.c.b16 %v453, %v452
  %v465 = vpack.c.b16 %v455, %v454
  %v466 = vpack.c.b16 %v457, %v456
  %v467 = vpack.c.b16 %v459, %v458
  %476 = vmatpush.bf16.msra.mxu0 %v467
  %477 = vmatpush.bf16.msra.mxu0 %v466
  %478 = vmatpush.bf16.msra.mxu0 %v465
  %479 = vmatpush.bf16.msra.mxu0 %v464
  %480 = vmatpush.bf16.msra.mxu0 %v463
  %481 = vmatpush.bf16.msra.mxu0 %v462
  %482 = vmatpush.bf16.msra.mxu0 %v461
  %483 = vmatpush.bf16.msra.mxu0 %v460
  %484 = vmatmul.bf16.gmra.mxu0 %v42
  %v485 = vpop.f32.mrf.mxu0
  %v486 = vadd.f32 0.0, %v485
  %v487 = vpop.f32.mrf.mxu0
  %v488 = vadd.f32 0.0, %v487
  %489 = vmatmul.bf16.gmra.mxu0 %v43
  %v490 = vpop.f32.mrf.mxu0
  %v491 = vadd.f32 0.0, %v490
  %v492 = vpop.f32.mrf.mxu0
  %v493 = vadd.f32 0.0, %v492
  %494 = vdwg.mxu0
  %v495 = vpack.c.bf16 %v486, %v486
  %v496 = vpack.c.bf16 %v488, %v488
  %v497 = vpack.c.bf16 %v491, %v491
  %v498 = vpack.c.bf16 %v493, %v493
  %499 = vst [vmem:[#allocation2 + $0x40] sm:$0xf] %v495
  %500 = vst [vmem:[#allocation2 + $0x44] sm:$0xf] %v496
  %501 = vst [vmem:[#allocation2 + $0x48] sm:$0xf] %v497
  %502 = vst [vmem:[#allocation2 + $0x4c] sm:$0xf] %v498
  %s503 = scalar_lea.vmem %s2, 320
  %v504 = vld [vmem:[%s503] sm:$0xf]
  %v505 = vld [vmem:[%s503 + $0x4] sm:$0xf]
  %v506 = vld [vmem:[%s503 + $0x8] sm:$0xf]
  %v507 = vld [vmem:[%s503 + $0xc] sm:$0xf]
  %v508 = vld [vmem:[%s503 + $0x10] sm:$0xf]
  %v509 = vld [vmem:[%s503 + $0x14] sm:$0xf]
  %v510 = vld [vmem:[%s503 + $0x18] sm:$0xf]
  %v511 = vld [vmem:[%s503 + $0x1c] sm:$0xf]
  %v512 = vld [vmem:[%s503 + $0x20] sm:$0xf]
  %v513 = vld [vmem:[%s503 + $0x24] sm:$0xf]
  %v514 = vld [vmem:[%s503 + $0x28] sm:$0xf]
  %v515 = vld [vmem:[%s503 + $0x2c] sm:$0xf]
  %v516 = vld [vmem:[%s503 + $0x30] sm:$0xf]
  %v517 = vld [vmem:[%s503 + $0x34] sm:$0xf]
  %v518 = vld [vmem:[%s503 + $0x38] sm:$0xf]
  %v519 = vld [vmem:[%s503 + $0x3c] sm:$0xf]
  %v536 = vunpack.c.l.b16 %v504
  %v537 = vunpack.c.l.b16 %v505
  %v538 = vunpack.c.l.b16 %v506
  %v539 = vunpack.c.l.b16 %v507
  %v540 = vunpack.c.l.b16 %v508
  %v541 = vunpack.c.l.b16 %v509
  %v542 = vunpack.c.l.b16 %v510
  %v543 = vunpack.c.l.b16 %v511
  %v544 = vunpack.c.l.b16 %v512
  %v545 = vunpack.c.l.b16 %v513
  %v546 = vunpack.c.l.b16 %v514
  %v547 = vunpack.c.l.b16 %v515
  %v548 = vunpack.c.l.b16 %v516
  %v549 = vunpack.c.l.b16 %v517
  %v550 = vunpack.c.l.b16 %v518
  %v551 = vunpack.c.l.b16 %v519
  %v552 = vpack.c.b16 %v537, %v536
  %v553 = vpack.c.b16 %v539, %v538
  %v554 = vpack.c.b16 %v541, %v540
  %v555 = vpack.c.b16 %v543, %v542
  %v556 = vpack.c.b16 %v545, %v544
  %v557 = vpack.c.b16 %v547, %v546
  %v558 = vpack.c.b16 %v549, %v548
  %v559 = vpack.c.b16 %v551, %v550
  %568 = vmatpush.bf16.msra.mxu0 %v559
  %569 = vmatpush.bf16.msra.mxu0 %v558
  %570 = vmatpush.bf16.msra.mxu0 %v557
  %571 = vmatpush.bf16.msra.mxu0 %v556
  %572 = vmatpush.bf16.msra.mxu0 %v555
  %573 = vmatpush.bf16.msra.mxu0 %v554
  %574 = vmatpush.bf16.msra.mxu0 %v553
  %575 = vmatpush.bf16.msra.mxu0 %v552
  %576 = vmatmul.bf16.gmra.mxu0 %v42
  %v577 = vpop.f32.mrf.mxu0
  %v578 = vadd.f32 0.0, %v577
  %v579 = vpop.f32.mrf.mxu0
  %v580 = vadd.f32 0.0, %v579
  %581 = vmatmul.bf16.gmra.mxu0 %v43
  %v582 = vpop.f32.mrf.mxu0
  %v583 = vadd.f32 0.0, %v582
  %v584 = vpop.f32.mrf.mxu0
  %v585 = vadd.f32 0.0, %v584
  %586 = vdwg.mxu0
  %v587 = vpack.c.bf16 %v578, %v578
  %v588 = vpack.c.bf16 %v580, %v580
  %v589 = vpack.c.bf16 %v583, %v583
  %v590 = vpack.c.bf16 %v585, %v585
  %591 = vst [vmem:[#allocation2 + $0x50] sm:$0xf] %v587
  %592 = vst [vmem:[#allocation2 + $0x54] sm:$0xf] %v588
  %593 = vst [vmem:[#allocation2 + $0x58] sm:$0xf] %v589
  %594 = vst [vmem:[#allocation2 + $0x5c] sm:$0xf] %v590
  %s595 = scalar_lea.vmem %s2, 384
  %v596 = vld [vmem:[%s595] sm:$0xf]
  %v597 = vld [vmem:[%s595 + $0x4] sm:$0xf]
  %v598 = vld [vmem:[%s595 + $0x8] sm:$0xf]
  %v599 = vld [vmem:[%s595 + $0xc] sm:$0xf]
  %v600 = vld [vmem:[%s595 + $0x10] sm:$0xf]
  %v601 = vld [vmem:[%s595 + $0x14] sm:$0xf]
  %v602 = vld [vmem:[%s595 + $0x18] sm:$0xf]
  %v603 = vld [vmem:[%s595 + $0x1c] sm:$0xf]
  %v604 = vld [vmem:[%s595 + $0x20] sm:$0xf]
  %v605 = vld [vmem:[%s595 + $0x24] sm:$0xf]
  %v606 = vld [vmem:[%s595 + $0x28] sm:$0xf]
  %v607 = vld [vmem:[%s595 + $0x2c] sm:$0xf]
  %v608 = vld [vmem:[%s595 + $0x30] sm:$0xf]
  %v609 = vld [vmem:[%s595 + $0x34] sm:$0xf]
  %v610 = vld [vmem:[%s595 + $0x38] sm:$0xf]
  %v611 = vld [vmem:[%s595 + $0x3c] sm:$0xf]
  %v628 = vunpack.c.l.b16 %v596
  %v629 = vunpack.c.l.b16 %v597
  %v630 = vunpack.c.l.b16 %v598
  %v631 = vunpack.c.l.b16 %v599
  %v632 = vunpack.c.l.b16 %v600
  %v633 = vunpack.c.l.b16 %v601
  %v634 = vunpack.c.l.b16 %v602
  %v635 = vunpack.c.l.b16 %v603
  %v636 = vunpack.c.l.b16 %v604
  %v637 = vunpack.c.l.b16 %v605
  %v638 = vunpack.c.l.b16 %v606
  %v639 = vunpack.c.l.b16 %v607
  %v640 = vunpack.c.l.b16 %v608
  %v641 = vunpack.c.l.b16 %v609
  %v642 = vunpack.c.l.b16 %v610
  %v643 = vunpack.c.l.b16 %v611
  %v644 = vpack.c.b16 %v629, %v628
  %v645 = vpack.c.b16 %v631, %v630
  %v646 = vpack.c.b16 %v633, %v632
  %v647 = vpack.c.b16 %v635, %v634
  %v648 = vpack.c.b16 %v637, %v636
  %v649 = vpack.c.b16 %v639, %v638
  %v650 = vpack.c.b16 %v641, %v640
  %v651 = vpack.c.b16 %v643, %v642
  %660 = vmatpush.bf16.msra.mxu0 %v651
  %661 = vmatpush.bf16.msra.mxu0 %v650
  %662 = vmatpush.bf16.msra.mxu0 %v649
  %663 = vmatpush.bf16.msra.mxu0 %v648
  %664 = vmatpush.bf16.msra.mxu0 %v647
  %665 = vmatpush.bf16.msra.mxu0 %v646
  %666 = vmatpush.bf16.msra.mxu0 %v645
  %667 = vmatpush.bf16.msra.mxu0 %v644
  %668 = vmatmul.bf16.gmra.mxu0 %v42
  %v669 = vpop.f32.mrf.mxu0
  %v670 = vadd.f32 0.0, %v669
  %v671 = vpop.f32.mrf.mxu0
  %v672 = vadd.f32 0.0, %v671
  %673 = vmatmul.bf16.gmra.mxu0 %v43
  %v674 = vpop.f32.mrf.mxu0
  %v675 = vadd.f32 0.0, %v674
  %v676 = vpop.f32.mrf.mxu0
  %v677 = vadd.f32 0.0, %v676
  %678 = vdwg.mxu0
  %v679 = vpack.c.bf16 %v670, %v670
  %v680 = vpack.c.bf16 %v672, %v672
  %v681 = vpack.c.bf16 %v675, %v675
  %v682 = vpack.c.bf16 %v677, %v677
  %683 = vst [vmem:[#allocation2 + $0x60] sm:$0xf] %v679
  %684 = vst [vmem:[#allocation2 + $0x64] sm:$0xf] %v680
  %685 = vst [vmem:[#allocation2 + $0x68] sm:$0xf] %v681
  %686 = vst [vmem:[#allocation2 + $0x6c] sm:$0xf] %v682
  %s687 = scalar_lea.vmem %s2, 448
  %v688 = vld [vmem:[%s687] sm:$0xf]
  %v689 = vld [vmem:[%s687 + $0x4] sm:$0xf]
  %v690 = vld [vmem:[%s687 + $0x8] sm:$0xf]
  %v691 = vld [vmem:[%s687 + $0xc] sm:$0xf]
  %v692 = vld [vmem:[%s687 + $0x10] sm:$0xf]
  %v693 = vld [vmem:[%s687 + $0x14] sm:$0xf]
  %v694 = vld [vmem:[%s687 + $0x18] sm:$0xf]
  %v695 = vld [vmem:[%s687 + $0x1c] sm:$0xf]
  %v696 = vld [vmem:[%s687 + $0x20] sm:$0xf]
  %v697 = vld [vmem:[%s687 + $0x24] sm:$0xf]
  %v698 = vld [vmem:[%s687 + $0x28] sm:$0xf]
  %v699 = vld [vmem:[%s687 + $0x2c] sm:$0xf]
  %v700 = vld [vmem:[%s687 + $0x30] sm:$0xf]
  %v701 = vld [vmem:[%s687 + $0x34] sm:$0xf]
  %v702 = vld [vmem:[%s687 + $0x38] sm:$0xf]
  %v703 = vld [vmem:[%s687 + $0x3c] sm:$0xf]
  %v720 = vunpack.c.l.b16 %v688
  %v721 = vunpack.c.l.b16 %v689
  %v722 = vunpack.c.l.b16 %v690
  %v723 = vunpack.c.l.b16 %v691
  %v724 = vunpack.c.l.b16 %v692
  %v725 = vunpack.c.l.b16 %v693
  %v726 = vunpack.c.l.b16 %v694
  %v727 = vunpack.c.l.b16 %v695
  %v728 = vunpack.c.l.b16 %v696
  %v729 = vunpack.c.l.b16 %v697
  %v730 = vunpack.c.l.b16 %v698
  %v731 = vunpack.c.l.b16 %v699
  %v732 = vunpack.c.l.b16 %v700
  %v733 = vunpack.c.l.b16 %v701
  %v734 = vunpack.c.l.b16 %v702
  %v735 = vunpack.c.l.b16 %v703
  %v736 = vpack.c.b16 %v721, %v720
  %v737 = vpack.c.b16 %v723, %v722
  %v738 = vpack.c.b16 %v725, %v724
  %v739 = vpack.c.b16 %v727, %v726
  %v740 = vpack.c.b16 %v729, %v728
  %v741 = vpack.c.b16 %v731, %v730
  %v742 = vpack.c.b16 %v733, %v732
  %v743 = vpack.c.b16 %v735, %v734
  %752 = vmatpush.bf16.msra.mxu0 %v743
  %753 = vmatpush.bf16.msra.mxu0 %v742
  %754 = vmatpush.bf16.msra.mxu0 %v741
  %755 = vmatpush.bf16.msra.mxu0 %v740
  %756 = vmatpush.bf16.msra.mxu0 %v739
  %757 = vmatpush.bf16.msra.mxu0 %v738
  %758 = vmatpush.bf16.msra.mxu0 %v737
  %759 = vmatpush.bf16.msra.mxu0 %v736
  %760 = vmatmul.bf16.gmra.mxu0 %v42
  %v761 = vpop.f32.mrf.mxu0
  %v762 = vadd.f32 0.0, %v761
  %v763 = vpop.f32.mrf.mxu0
  %v764 = vadd.f32 0.0, %v763
  %765 = vmatmul.bf16.gmra.mxu0 %v43
  %v766 = vpop.f32.mrf.mxu0
  %v767 = vadd.f32 0.0, %v766
  %v768 = vpop.f32.mrf.mxu0
  %v769 = vadd.f32 0.0, %v768
  %770 = vdwg.mxu0
  %v771 = vpack.c.bf16 %v762, %v762
  %v772 = vpack.c.bf16 %v764, %v764
  %v773 = vpack.c.bf16 %v767, %v767
  %v774 = vpack.c.bf16 %v769, %v769
  %775 = vst [vmem:[#allocation2 + $0x70] sm:$0xf] %v771
  %776 = vst [vmem:[#allocation2 + $0x74] sm:$0xf] %v772
  %777 = vst [vmem:[#allocation2 + $0x78] sm:$0xf] %v773
  %778 = vst [vmem:[#allocation2 + $0x7c] sm:$0xf] %v774
  %v779 = vld [vmem:[#allocation2] sm:$0xf]
  %v780 = vld [vmem:[#allocation2 + $0x4] sm:$0xf]
  %v781 = vld [vmem:[#allocation2 + $0x8] sm:$0xf]
  %v782 = vld [vmem:[#allocation2 + $0xc] sm:$0xf]
  %v783 = vld [vmem:[#allocation2 + $0x10] sm:$0xf]
  %v784 = vld [vmem:[#allocation2 + $0x14] sm:$0xf]
  %v785 = vld [vmem:[#allocation2 + $0x18] sm:$0xf]
  %v786 = vld [vmem:[#allocation2 + $0x1c] sm:$0xf]
  %v787 = vld [vmem:[#allocation2 + $0x20] sm:$0xf]
  %v788 = vld [vmem:[#allocation2 + $0x24] sm:$0xf]
  %v789 = vld [vmem:[#allocation2 + $0x28] sm:$0xf]
  %v790 = vld [vmem:[#allocation2 + $0x2c] sm:$0xf]
  %v791 = vld [vmem:[#allocation2 + $0x30] sm:$0xf]
  %v792 = vld [vmem:[#allocation2 + $0x34] sm:$0xf]
  %v793 = vld [vmem:[#allocation2 + $0x38] sm:$0xf]
  %v794 = vld [vmem:[#allocation2 + $0x3c] sm:$0xf]
  %v795 = vld [vmem:[#allocation2 + $0x40] sm:$0xf]
  %v796 = vld [vmem:[#allocation2 + $0x44] sm:$0xf]
  %v797 = vld [vmem:[#allocation2 + $0x48] sm:$0xf]
  %v798 = vld [vmem:[#allocation2 + $0x4c] sm:$0xf]
  %v799 = vld [vmem:[#allocation2 + $0x50] sm:$0xf]
  %v800 = vld [vmem:[#allocation2 + $0x54] sm:$0xf]
  %v801 = vld [vmem:[#allocation2 + $0x58] sm:$0xf]
  %v802 = vld [vmem:[#allocation2 + $0x5c] sm:$0xf]
  %v803 = vld [vmem:[#allocation2 + $0x60] sm:$0xf]
  %v804 = vld [vmem:[#allocation2 + $0x64] sm:$0xf]
  %v805 = vld [vmem:[#allocation2 + $0x68] sm:$0xf]
  %v806 = vld [vmem:[#allocation2 + $0x6c] sm:$0xf]
  %v807 = vld [vmem:[#allocation2 + $0x70] sm:$0xf]
  %v808 = vld [vmem:[#allocation2 + $0x74] sm:$0xf]
  %v809 = vld [vmem:[#allocation2 + $0x78] sm:$0xf]
  %v810 = vld [vmem:[#allocation2 + $0x7c] sm:$0xf]
  %v815 = vunpack.c.l.b16 %v26
  %v816 = vunpack.c.h.b16 %v26
  %v817 = vunpack.c.l.b16 %v27
  %v818 = vunpack.c.h.b16 %v27
  %v819 = vunpack.c.l.b16 %v28
  %v820 = vunpack.c.h.b16 %v28
  %v821 = vunpack.c.l.b16 %v29
  %v822 = vunpack.c.h.b16 %v29
  %v823 = vpack.c.b16 %v817, %v815
  %v824 = vpack.c.b16 %v818, %v816
  %v825 = vpack.c.b16 %v821, %v819
  %v826 = vpack.c.b16 %v822, %v820
  %v863 = vunpack.c.l.b16 %v779
  %v864 = vunpack.c.l.b16 %v780
  %v865 = vunpack.c.l.b16 %v781
  %v866 = vunpack.c.l.b16 %v782
  %v867 = vunpack.c.l.b16 %v783
  %v868 = vunpack.c.l.b16 %v784
  %v869 = vunpack.c.l.b16 %v785
  %v870 = vunpack.c.l.b16 %v786
  %v871 = vunpack.c.l.b16 %v787
  %v872 = vunpack.c.l.b16 %v788
  %v873 = vunpack.c.l.b16 %v789
  %v874 = vunpack.c.l.b16 %v790
  %v875 = vunpack.c.l.b16 %v791
  %v876 = vunpack.c.l.b16 %v792
  %v877 = vunpack.c.l.b16 %v793
  %v878 = vunpack.c.l.b16 %v794
  %v879 = vunpack.c.l.b16 %v795
  %v880 = vunpack.c.l.b16 %v796
  %v881 = vunpack.c.l.b16 %v797
  %v882 = vunpack.c.l.b16 %v798
  %v883 = vunpack.c.l.b16 %v799
  %v884 = vunpack.c.l.b16 %v800
  %v885 = vunpack.c.l.b16 %v801
  %v886 = vunpack.c.l.b16 %v802
  %v887 = vunpack.c.l.b16 %v803
  %v888 = vunpack.c.l.b16 %v804
  %v889 = vunpack.c.l.b16 %v805
  %v890 = vunpack.c.l.b16 %v806
  %v891 = vunpack.c.l.b16 %v807
  %v892 = vunpack.c.l.b16 %v808
  %v893 = vunpack.c.l.b16 %v809
  %v894 = vunpack.c.l.b16 %v810
  %v895 = vpack.c.b16 %v864, %v863
  %v896 = vpack.c.b16 %v866, %v865
  %v897 = vpack.c.b16 %v868, %v867
  %v898 = vpack.c.b16 %v870, %v869
  %v899 = vpack.c.b16 %v872, %v871
  %v900 = vpack.c.b16 %v874, %v873
  %v901 = vpack.c.b16 %v876, %v875
  %v902 = vpack.c.b16 %v878, %v877
  %v903 = vpack.c.b16 %v880, %v879
  %v904 = vpack.c.b16 %v882, %v881
  %v905 = vpack.c.b16 %v884, %v883
  %v906 = vpack.c.b16 %v886, %v885
  %v907 = vpack.c.b16 %v888, %v887
  %v908 = vpack.c.b16 %v890, %v889
  %v909 = vpack.c.b16 %v892, %v891
  %v910 = vpack.c.b16 %v894, %v893
  %927 = vmatpush.bf16.msra.mxu0 %v902
  %928 = vmatpush.bf16.msra.mxu0 %v901
  %929 = vmatpush.bf16.msra.mxu0 %v900
  %930 = vmatpush.bf16.msra.mxu0 %v899
  %931 = vmatpush.bf16.msra.mxu0 %v898
  %932 = vmatpush.bf16.msra.mxu0 %v897
  %933 = vmatpush.bf16.msra.mxu0 %v896
  %934 = vmatpush.bf16.msra.mxu0 %v895
  %935 = vmatmul.bf16.gmra.mxu0 %v823
  %v936 = vpop.f32.mrf.mxu0
  %v937 = vadd.f32 0.0, %v936
  %v938 = vpop.f32.mrf.mxu0
  %v939 = vadd.f32 0.0, %v938
  %940 = vmatmul.bf16.gmra.mxu0 %v825
  %v941 = vpop.f32.mrf.mxu0
  %v942 = vadd.f32 0.0, %v941
  %v943 = vpop.f32.mrf.mxu0
  %v944 = vadd.f32 0.0, %v943
  %945 = vdwg.mxu0
  %946 = vmatpush.bf16.msra.mxu0 %v910
  %947 = vmatpush.bf16.msra.mxu0 %v909
  %948 = vmatpush.bf16.msra.mxu0 %v908
  %949 = vmatpush.bf16.msra.mxu0 %v907
  %950 = vmatpush.bf16.msra.mxu0 %v906
  %951 = vmatpush.bf16.msra.mxu0 %v905
  %952 = vmatpush.bf16.msra.mxu0 %v904
  %953 = vmatpush.bf16.msra.mxu0 %v903
  %954 = vmatmul.bf16.gmra.mxu0 %v824
  %v955 = vpop.f32.mrf.mxu0
  %v956 = vadd.f32 %v937, %v955
  %v957 = vpop.f32.mrf.mxu0
  %v958 = vadd.f32 %v939, %v957
  %959 = vmatmul.bf16.gmra.mxu0 %v826
  %v960 = vpop.f32.mrf.mxu0
  %v961 = vadd.f32 %v942, %v960
  %v962 = vpop.f32.mrf.mxu0
  %v963 = vadd.f32 %v944, %v962
  %964 = vdwg.mxu0
  %966 = vset.pattern.permute.xlu0 0
  %967 = vperm.xlu0 %966, %v30
  %v968 = vpop.permute.xlu0 %967
  %971 = vset.pattern.permute.xlu0 0
  %972 = vperm.xlu0 %971, %v31
  %v973 = vpop.permute.xlu0 %972
  %976 = vset.pattern.permute.xlu0 0
  %977 = vperm.xlu0 %976, %v32
  %v978 = vpop.permute.xlu0 %977
  %981 = vset.pattern.permute.xlu0 0
  %982 = vperm.xlu0 %981, %v33
  %v983 = vpop.permute.xlu0 %982
  %v985 = vmul.f32 %v956, %v968
  %v986 = vmul.f32 %v958, %v973
  %v987 = vmul.f32 %v961, %v978
  %v988 = vmul.f32 %v963, %v983
  %vm989 = vcmp.gt.f32.partialorder %v985, 0.0
  %vm990 = vcmp.gt.f32.partialorder %v986, 0.0
  %vm991 = vcmp.gt.f32.partialorder %v987, 0.0
  %vm992 = vcmp.gt.f32.partialorder %v988, 0.0
  %v993 = vmin.f32 %v985, 0.0
  %v994 = vmin.f32 %v986, 0.0
  %v995 = vmin.f32 %v987, 0.0
  %v996 = vmin.f32 %v988, 0.0
  %v997 = vmul.f32 %v993, 1.442695
  %v998 = vpow.pop %v997
  %v999 = vmul.f32 %v994, 1.442695
  %v1000 = vpow.pop %v999
  %v1001 = vmul.f32 %v995, 1.442695
  %v1002 = vpow.pop %v1001
  %v1003 = vmul.f32 %v996, 1.442695
  %v1004 = vpow.pop %v1003
  %v1005 = vsub.f32 %v998, 1.0
  %v1006 = vsub.f32 %v1000, 1.0
  %v1007 = vsub.f32 %v1002, 1.0
  %v1008 = vsub.f32 %v1004, 1.0
  %v1009 = vsel %vm989, %v985, %v1005
  %v1010 = vsel %vm990, %v986, %v1006
  %v1011 = vsel %vm991, %v987, %v1007
  %v1012 = vsel %vm992, %v988, %v1008
  %1014 = vset.pattern.permute.xlu0 0
  %1015 = vperm.xlu0 %1014, %v34
  %v1016 = vpop.permute.xlu0 %1015
  %1019 = vset.pattern.permute.xlu0 0
  %1020 = vperm.xlu0 %1019, %v35
  %v1021 = vpop.permute.xlu0 %1020
  %1024 = vset.pattern.permute.xlu0 0
  %1025 = vperm.xlu0 %1024, %v36
  %v1026 = vpop.permute.xlu0 %1025
  %1029 = vset.pattern.permute.xlu0 0
  %1030 = vperm.xlu0 %1029, %v37
  %v1031 = vpop.permute.xlu0 %1030
  %v1033 = vmul.f32 %v1009, %v1016
  %v1034 = vmul.f32 %v1010, %v1021
  %v1035 = vmul.f32 %v1011, %v1026
  %v1036 = vmul.f32 %v1012, %v1031
  %v1037 = vadd.f32 %v1033, %v1034
  %v1038 = vadd.f32 %v1037, %v1035
  %v1039 = vadd.f32 %v1038, %v1036
  %v1040 = vrot.slane %v1039, 4
  %v1041 = vadd.f32 %v1039, %v1040
  %v1042 = vrot.slane %v1041, 2
  %v1043 = vadd.f32 %v1041, %v1042
  %v1044 = vrot.slane %v1043, 1
  %v1045 = vadd.f32 %v1043, %v1044
  %v1046 = vmul.f32 %v1045, 0.037037037
  %v1047 = vsub.f32 %v1009, %v1046
  %v1048 = vsub.f32 %v1010, %v1046
  %v1049 = vsub.f32 %v1011, %v1046
  %v1050 = vsub.f32 %v1012, %v1046
  %v1051 = vmul.f32 %v1047, %v1016
  %v1052 = vmul.f32 %v1048, %v1021
  %v1053 = vmul.f32 %v1049, %v1026
  %v1054 = vmul.f32 %v1050, %v1031
  %v1055 = vmul.f32 %v1051, %v1051
  %v1056 = vmul.f32 %v1052, %v1052
  %v1057 = vmul.f32 %v1053, %v1053
  %v1058 = vmul.f32 %v1054, %v1054
  %v1059 = vadd.f32 %v1055, %v1056
  %v1060 = vadd.f32 %v1059, %v1057
  %v1061 = vadd.f32 %v1060, %v1058
  %v1062 = vrot.slane %v1061, 4
  %v1063 = vadd.f32 %v1061, %v1062
  %v1064 = vrot.slane %v1063, 2
  %v1065 = vadd.f32 %v1063, %v1064
  %v1066 = vrot.slane %v1065, 1
  %v1067 = vadd.f32 %v1065, %v1066
  %v1068 = vmul.f32 %v1067, 0.037037037
  %v1069 = vadd.f32 %v1068, 1e-05
  %v1070 = vrsqrt.pop %v1069
  %v1071 = vmul.f32 %v1070, %v1069
  %v1072 = vmul.f32 %v1071, %v1070
  %v1073 = vmul.f32 0.5, %v1072
  %v1074 = vsub.f32 1.5, %v1073
  %v1075 = vmul.f32 %v1070, %v1074
  %vm1076 = vweird.f32 %v1069
  %vm1077 = vweird.f32 %v1070
  %vm1078 = vmor %vm1076, %vm1077
  %v1079 = vsel %vm1078, %v1070, %v1075
  %v1080 = vmul.f32 %v1047, %v1079
  %v1081 = vmul.f32 %v1048, %v1079
  %v1082 = vmul.f32 %v1049, %v1079
  %v1083 = vmul.f32 %v1050, %v1079
  %v1084 = vld [vmem:[%s3] sm:$0x1]
  %v1086 = vperm.slane %v1084, 0
  %v1088 = vmul.f32 %v1080, %v1086
  %v1089 = vmul.f32 %v1081, %v1086
  %v1090 = vmul.f32 %v1082, %v1086
  %v1091 = vmul.f32 %v1083, %v1086
  %v1092 = vld [vmem:[%s4] sm:$0x1]
  %v1094 = vperm.slane %v1092, 0
  %v1096 = vadd.f32 %v1088, %v1094
  %v1097 = vadd.f32 %v1089, %v1094
  %v1098 = vadd.f32 %v1090, %v1094
  %v1099 = vadd.f32 %v1091, %v1094
  %v1100 = vmul.f32 %v1096, %v1016
  %v1101 = vmul.f32 %v1097, %v1021
  %v1102 = vmul.f32 %v1098, %v1026
  %v1103 = vmul.f32 %v1099, %v1031
  %v1104 = vpack.c.bf16 %v1101, %v1100
  %v1105 = vpack.c.bf16 %v1103, %v1102
  %s1106 = scalar_lea.vmem %s2, 512
  %v1107 = vld [vmem:[%s1106] sm:$0xf]
  %v1108 = vld [vmem:[%s1106 + $0x4] sm:$0xf]
  %v1109 = vld [vmem:[%s1106 + $0x8] sm:$0xf]
  %v1110 = vld [vmem:[%s1106 + $0xc] sm:$0xf]
  %v1111 = vld [vmem:[%s1106 + $0x10] sm:$0xf]
  %v1112 = vld [vmem:[%s1106 + $0x14] sm:$0xf]
  %v1113 = vld [vmem:[%s1106 + $0x18] sm:$0xf]
  %v1114 = vld [vmem:[%s1106 + $0x1c] sm:$0xf]
  %v1115 = vld [vmem:[%s1106 + $0x20] sm:$0xf]
  %v1116 = vld [vmem:[%s1106 + $0x24] sm:$0xf]
  %v1117 = vld [vmem:[%s1106 + $0x28] sm:$0xf]
  %v1118 = vld [vmem:[%s1106 + $0x2c] sm:$0xf]
  %v1119 = vld [vmem:[%s1106 + $0x30] sm:$0xf]
  %v1120 = vld [vmem:[%s1106 + $0x34] sm:$0xf]
  %v1121 = vld [vmem:[%s1106 + $0x38] sm:$0xf]
  %v1122 = vld [vmem:[%s1106 + $0x3c] sm:$0xf]
  %v1139 = vunpack.c.l.b16 %v1107
  %v1140 = vunpack.c.l.b16 %v1108
  %v1141 = vunpack.c.l.b16 %v1109
  %v1142 = vunpack.c.l.b16 %v1110
  %v1143 = vunpack.c.l.b16 %v1111
  %v1144 = vunpack.c.l.b16 %v1112
  %v1145 = vunpack.c.l.b16 %v1113
  %v1146 = vunpack.c.l.b16 %v1114
  %v1147 = vunpack.c.l.b16 %v1115
  %v1148 = vunpack.c.l.b16 %v1116
  %v1149 = vunpack.c.l.b16 %v1117
  %v1150 = vunpack.c.l.b16 %v1118
  %v1151 = vunpack.c.l.b16 %v1119
  %v1152 = vunpack.c.l.b16 %v1120
  %v1153 = vunpack.c.l.b16 %v1121
  %v1154 = vunpack.c.l.b16 %v1122
  %v1155 = vpack.c.b16 %v1140, %v1139
  %v1156 = vpack.c.b16 %v1142, %v1141
  %v1157 = vpack.c.b16 %v1144, %v1143
  %v1158 = vpack.c.b16 %v1146, %v1145
  %v1159 = vpack.c.b16 %v1148, %v1147
  %v1160 = vpack.c.b16 %v1150, %v1149
  %v1161 = vpack.c.b16 %v1152, %v1151
  %v1162 = vpack.c.b16 %v1154, %v1153
  %1171 = vmatpush.bf16.msra.mxu0 %v1162
  %1172 = vmatpush.bf16.msra.mxu0 %v1161
  %1173 = vmatpush.bf16.msra.mxu0 %v1160
  %1174 = vmatpush.bf16.msra.mxu0 %v1159
  %1175 = vmatpush.bf16.msra.mxu0 %v1158
  %1176 = vmatpush.bf16.msra.mxu0 %v1157
  %1177 = vmatpush.bf16.msra.mxu0 %v1156
  %1178 = vmatpush.bf16.msra.mxu0 %v1155
  %1179 = vmatmul.bf16.gmra.mxu0 %v1104
  %v1180 = vpop.f32.mrf.mxu0
  %v1181 = vadd.f32 0.0, %v1180
  %v1182 = vpop.f32.mrf.mxu0
  %v1183 = vadd.f32 0.0, %v1182
  %1184 = vmatmul.bf16.gmra.mxu0 %v1105
  %v1185 = vpop.f32.mrf.mxu0
  %v1186 = vadd.f32 0.0, %v1185
  %v1187 = vpop.f32.mrf.mxu0
  %v1188 = vadd.f32 0.0, %v1187
  %1189 = vdwg.mxu0
  %v1190 = vpack.c.bf16 %v1181, %v1181
  %v1191 = vpack.c.bf16 %v1183, %v1183
  %v1192 = vpack.c.bf16 %v1186, %v1186
  %v1193 = vpack.c.bf16 %v1188, %v1188
  %1194 = vst [vmem:[#allocation2] sm:$0xf] %v1190
  %1195 = vst [vmem:[#allocation2 + $0x4] sm:$0xf] %v1191
  %1196 = vst [vmem:[#allocation2 + $0x8] sm:$0xf] %v1192
  %1197 = vst [vmem:[#allocation2 + $0xc] sm:$0xf] %v1193
  %s1198 = scalar_lea.vmem %s2, 576
  %v1199 = vld [vmem:[%s1198] sm:$0xf]
  %v1200 = vld [vmem:[%s1198 + $0x4] sm:$0xf]
  %v1201 = vld [vmem:[%s1198 + $0x8] sm:$0xf]
  %v1202 = vld [vmem:[%s1198 + $0xc] sm:$0xf]
  %v1203 = vld [vmem:[%s1198 + $0x10] sm:$0xf]
  %v1204 = vld [vmem:[%s1198 + $0x14] sm:$0xf]
  %v1205 = vld [vmem:[%s1198 + $0x18] sm:$0xf]
  %v1206 = vld [vmem:[%s1198 + $0x1c] sm:$0xf]
  %v1207 = vld [vmem:[%s1198 + $0x20] sm:$0xf]
  %v1208 = vld [vmem:[%s1198 + $0x24] sm:$0xf]
  %v1209 = vld [vmem:[%s1198 + $0x28] sm:$0xf]
  %v1210 = vld [vmem:[%s1198 + $0x2c] sm:$0xf]
  %v1211 = vld [vmem:[%s1198 + $0x30] sm:$0xf]
  %v1212 = vld [vmem:[%s1198 + $0x34] sm:$0xf]
  %v1213 = vld [vmem:[%s1198 + $0x38] sm:$0xf]
  %v1214 = vld [vmem:[%s1198 + $0x3c] sm:$0xf]
  %v1231 = vunpack.c.l.b16 %v1199
  %v1232 = vunpack.c.l.b16 %v1200
  %v1233 = vunpack.c.l.b16 %v1201
  %v1234 = vunpack.c.l.b16 %v1202
  %v1235 = vunpack.c.l.b16 %v1203
  %v1236 = vunpack.c.l.b16 %v1204
  %v1237 = vunpack.c.l.b16 %v1205
  %v1238 = vunpack.c.l.b16 %v1206
  %v1239 = vunpack.c.l.b16 %v1207
  %v1240 = vunpack.c.l.b16 %v1208
  %v1241 = vunpack.c.l.b16 %v1209
  %v1242 = vunpack.c.l.b16 %v1210
  %v1243 = vunpack.c.l.b16 %v1211
  %v1244 = vunpack.c.l.b16 %v1212
  %v1245 = vunpack.c.l.b16 %v1213
  %v1246 = vunpack.c.l.b16 %v1214
  %v1247 = vpack.c.b16 %v1232, %v1231
  %v1248 = vpack.c.b16 %v1234, %v1233
  %v1249 = vpack.c.b16 %v1236, %v1235
  %v1250 = vpack.c.b16 %v1238, %v1237
  %v1251 = vpack.c.b16 %v1240, %v1239
  %v1252 = vpack.c.b16 %v1242, %v1241
  %v1253 = vpack.c.b16 %v1244, %v1243
  %v1254 = vpack.c.b16 %v1246, %v1245
  %1263 = vmatpush.bf16.msra.mxu0 %v1254
  %1264 = vmatpush.bf16.msra.mxu0 %v1253
  %1265 = vmatpush.bf16.msra.mxu0 %v1252
  %1266 = vmatpush.bf16.msra.mxu0 %v1251
  %1267 = vmatpush.bf16.msra.mxu0 %v1250
  %1268 = vmatpush.bf16.msra.mxu0 %v1249
  %1269 = vmatpush.bf16.msra.mxu0 %v1248
  %1270 = vmatpush.bf16.msra.mxu0 %v1247
  %1271 = vmatmul.bf16.gmra.mxu0 %v1104
  %v1272 = vpop.f32.mrf.mxu0
  %v1273 = vadd.f32 0.0, %v1272
  %v1274 = vpop.f32.mrf.mxu0
  %v1275 = vadd.f32 0.0, %v1274
  %1276 = vmatmul.bf16.gmra.mxu0 %v1105
  %v1277 = vpop.f32.mrf.mxu0
  %v1278 = vadd.f32 0.0, %v1277
  %v1279 = vpop.f32.mrf.mxu0
  %v1280 = vadd.f32 0.0, %v1279
  %1281 = vdwg.mxu0
  %v1282 = vpack.c.bf16 %v1273, %v1273
  %v1283 = vpack.c.bf16 %v1275, %v1275
  %v1284 = vpack.c.bf16 %v1278, %v1278
  %v1285 = vpack.c.bf16 %v1280, %v1280
  %1286 = vst [vmem:[#allocation2 + $0x10] sm:$0xf] %v1282
  %1287 = vst [vmem:[#allocation2 + $0x14] sm:$0xf] %v1283
  %1288 = vst [vmem:[#allocation2 + $0x18] sm:$0xf] %v1284
  %1289 = vst [vmem:[#allocation2 + $0x1c] sm:$0xf] %v1285
  %s1290 = scalar_lea.vmem %s2, 640
  %v1291 = vld [vmem:[%s1290] sm:$0xf]
  %v1292 = vld [vmem:[%s1290 + $0x4] sm:$0xf]
  %v1293 = vld [vmem:[%s1290 + $0x8] sm:$0xf]
  %v1294 = vld [vmem:[%s1290 + $0xc] sm:$0xf]
  %v1295 = vld [vmem:[%s1290 + $0x10] sm:$0xf]
  %v1296 = vld [vmem:[%s1290 + $0x14] sm:$0xf]
  %v1297 = vld [vmem:[%s1290 + $0x18] sm:$0xf]
  %v1298 = vld [vmem:[%s1290 + $0x1c] sm:$0xf]
  %v1299 = vld [vmem:[%s1290 + $0x20] sm:$0xf]
  %v1300 = vld [vmem:[%s1290 + $0x24] sm:$0xf]
  %v1301 = vld [vmem:[%s1290 + $0x28] sm:$0xf]
  %v1302 = vld [vmem:[%s1290 + $0x2c] sm:$0xf]
  %v1303 = vld [vmem:[%s1290 + $0x30] sm:$0xf]
  %v1304 = vld [vmem:[%s1290 + $0x34] sm:$0xf]
  %v1305 = vld [vmem:[%s1290 + $0x38] sm:$0xf]
  %v1306 = vld [vmem:[%s1290 + $0x3c] sm:$0xf]
  %v1323 = vunpack.c.l.b16 %v1291
  %v1324 = vunpack.c.l.b16 %v1292
  %v1325 = vunpack.c.l.b16 %v1293
  %v1326 = vunpack.c.l.b16 %v1294
  %v1327 = vunpack.c.l.b16 %v1295
  %v1328 = vunpack.c.l.b16 %v1296
  %v1329 = vunpack.c.l.b16 %v1297
  %v1330 = vunpack.c.l.b16 %v1298
  %v1331 = vunpack.c.l.b16 %v1299
  %v1332 = vunpack.c.l.b16 %v1300
  %v1333 = vunpack.c.l.b16 %v1301
  %v1334 = vunpack.c.l.b16 %v1302
  %v1335 = vunpack.c.l.b16 %v1303
  %v1336 = vunpack.c.l.b16 %v1304
  %v1337 = vunpack.c.l.b16 %v1305
  %v1338 = vunpack.c.l.b16 %v1306
  %v1339 = vpack.c.b16 %v1324, %v1323
  %v1340 = vpack.c.b16 %v1326, %v1325
  %v1341 = vpack.c.b16 %v1328, %v1327
  %v1342 = vpack.c.b16 %v1330, %v1329
  %v1343 = vpack.c.b16 %v1332, %v1331
  %v1344 = vpack.c.b16 %v1334, %v1333
  %v1345 = vpack.c.b16 %v1336, %v1335
  %v1346 = vpack.c.b16 %v1338, %v1337
  %1355 = vmatpush.bf16.msra.mxu0 %v1346
  %1356 = vmatpush.bf16.msra.mxu0 %v1345
  %1357 = vmatpush.bf16.msra.mxu0 %v1344
  %1358 = vmatpush.bf16.msra.mxu0 %v1343
  %1359 = vmatpush.bf16.msra.mxu0 %v1342
  %1360 = vmatpush.bf16.msra.mxu0 %v1341
  %1361 = vmatpush.bf16.msra.mxu0 %v1340
  %1362 = vmatpush.bf16.msra.mxu0 %v1339
  %1363 = vmatmul.bf16.gmra.mxu0 %v1104
  %v1364 = vpop.f32.mrf.mxu0
  %v1365 = vadd.f32 0.0, %v1364
  %v1366 = vpop.f32.mrf.mxu0
  %v1367 = vadd.f32 0.0, %v1366
  %1368 = vmatmul.bf16.gmra.mxu0 %v1105
  %v1369 = vpop.f32.mrf.mxu0
  %v1370 = vadd.f32 0.0, %v1369
  %v1371 = vpop.f32.mrf.mxu0
  %v1372 = vadd.f32 0.0, %v1371
  %1373 = vdwg.mxu0
  %v1374 = vpack.c.bf16 %v1365, %v1365
  %v1375 = vpack.c.bf16 %v1367, %v1367
  %v1376 = vpack.c.bf16 %v1370, %v1370
  %v1377 = vpack.c.bf16 %v1372, %v1372
  %1378 = vst [vmem:[#allocation2 + $0x20] sm:$0xf] %v1374
  %1379 = vst [vmem:[#allocation2 + $0x24] sm:$0xf] %v1375
  %1380 = vst [vmem:[#allocation2 + $0x28] sm:$0xf] %v1376
  %1381 = vst [vmem:[#allocation2 + $0x2c] sm:$0xf] %v1377
  %s1382 = scalar_lea.vmem %s2, 704
  %v1383 = vld [vmem:[%s1382] sm:$0xf]
  %v1384 = vld [vmem:[%s1382 + $0x4] sm:$0xf]
  %v1385 = vld [vmem:[%s1382 + $0x8] sm:$0xf]
  %v1386 = vld [vmem:[%s1382 + $0xc] sm:$0xf]
  %v1387 = vld [vmem:[%s1382 + $0x10] sm:$0xf]
  %v1388 = vld [vmem:[%s1382 + $0x14] sm:$0xf]
  %v1389 = vld [vmem:[%s1382 + $0x18] sm:$0xf]
  %v1390 = vld [vmem:[%s1382 + $0x1c] sm:$0xf]
  %v1391 = vld [vmem:[%s1382 + $0x20] sm:$0xf]
  %v1392 = vld [vmem:[%s1382 + $0x24] sm:$0xf]
  %v1393 = vld [vmem:[%s1382 + $0x28] sm:$0xf]
  %v1394 = vld [vmem:[%s1382 + $0x2c] sm:$0xf]
  %v1395 = vld [vmem:[%s1382 + $0x30] sm:$0xf]
  %v1396 = vld [vmem:[%s1382 + $0x34] sm:$0xf]
  %v1397 = vld [vmem:[%s1382 + $0x38] sm:$0xf]
  %v1398 = vld [vmem:[%s1382 + $0x3c] sm:$0xf]
  %v1415 = vunpack.c.l.b16 %v1383
  %v1416 = vunpack.c.l.b16 %v1384
  %v1417 = vunpack.c.l.b16 %v1385
  %v1418 = vunpack.c.l.b16 %v1386
  %v1419 = vunpack.c.l.b16 %v1387
  %v1420 = vunpack.c.l.b16 %v1388
  %v1421 = vunpack.c.l.b16 %v1389
  %v1422 = vunpack.c.l.b16 %v1390
  %v1423 = vunpack.c.l.b16 %v1391
  %v1424 = vunpack.c.l.b16 %v1392
  %v1425 = vunpack.c.l.b16 %v1393
  %v1426 = vunpack.c.l.b16 %v1394
  %v1427 = vunpack.c.l.b16 %v1395
  %v1428 = vunpack.c.l.b16 %v1396
  %v1429 = vunpack.c.l.b16 %v1397
  %v1430 = vunpack.c.l.b16 %v1398
  %v1431 = vpack.c.b16 %v1416, %v1415
  %v1432 = vpack.c.b16 %v1418, %v1417
  %v1433 = vpack.c.b16 %v1420, %v1419
  %v1434 = vpack.c.b16 %v1422, %v1421
  %v1435 = vpack.c.b16 %v1424, %v1423
  %v1436 = vpack.c.b16 %v1426, %v1425
  %v1437 = vpack.c.b16 %v1428, %v1427
  %v1438 = vpack.c.b16 %v1430, %v1429
  %1447 = vmatpush.bf16.msra.mxu0 %v1438
  %1448 = vmatpush.bf16.msra.mxu0 %v1437
  %1449 = vmatpush.bf16.msra.mxu0 %v1436
  %1450 = vmatpush.bf16.msra.mxu0 %v1435
  %1451 = vmatpush.bf16.msra.mxu0 %v1434
  %1452 = vmatpush.bf16.msra.mxu0 %v1433
  %1453 = vmatpush.bf16.msra.mxu0 %v1432
  %1454 = vmatpush.bf16.msra.mxu0 %v1431
  %1455 = vmatmul.bf16.gmra.mxu0 %v1104
  %v1456 = vpop.f32.mrf.mxu0
  %v1457 = vadd.f32 0.0, %v1456
  %v1458 = vpop.f32.mrf.mxu0
  %v1459 = vadd.f32 0.0, %v1458
  %1460 = vmatmul.bf16.gmra.mxu0 %v1105
  %v1461 = vpop.f32.mrf.mxu0
  %v1462 = vadd.f32 0.0, %v1461
  %v1463 = vpop.f32.mrf.mxu0
  %v1464 = vadd.f32 0.0, %v1463
  %1465 = vdwg.mxu0
  %v1466 = vpack.c.bf16 %v1457, %v1457
  %v1467 = vpack.c.bf16 %v1459, %v1459
  %v1468 = vpack.c.bf16 %v1462, %v1462
  %v1469 = vpack.c.bf16 %v1464, %v1464
  %1470 = vst [vmem:[#allocation2 + $0x30] sm:$0xf] %v1466
  %1471 = vst [vmem:[#allocation2 + $0x34] sm:$0xf] %v1467
  %1472 = vst [vmem:[#allocation2 + $0x38] sm:$0xf] %v1468
  %1473 = vst [vmem:[#allocation2 + $0x3c] sm:$0xf] %v1469
  %s1474 = scalar_lea.vmem %s2, 768
  %v1475 = vld [vmem:[%s1474] sm:$0xf]
  %v1476 = vld [vmem:[%s1474 + $0x4] sm:$0xf]
  %v1477 = vld [vmem:[%s1474 + $0x8] sm:$0xf]
  %v1478 = vld [vmem:[%s1474 + $0xc] sm:$0xf]
  %v1479 = vld [vmem:[%s1474 + $0x10] sm:$0xf]
  %v1480 = vld [vmem:[%s1474 + $0x14] sm:$0xf]
  %v1481 = vld [vmem:[%s1474 + $0x18] sm:$0xf]
  %v1482 = vld [vmem:[%s1474 + $0x1c] sm:$0xf]
  %v1483 = vld [vmem:[%s1474 + $0x20] sm:$0xf]
  %v1484 = vld [vmem:[%s1474 + $0x24] sm:$0xf]
  %v1485 = vld [vmem:[%s1474 + $0x28] sm:$0xf]
  %v1486 = vld [vmem:[%s1474 + $0x2c] sm:$0xf]
  %v1487 = vld [vmem:[%s1474 + $0x30] sm:$0xf]
  %v1488 = vld [vmem:[%s1474 + $0x34] sm:$0xf]
  %v1489 = vld [vmem:[%s1474 + $0x38] sm:$0xf]
  %v1490 = vld [vmem:[%s1474 + $0x3c] sm:$0xf]
  %v1507 = vunpack.c.l.b16 %v1475
  %v1508 = vunpack.c.l.b16 %v1476
  %v1509 = vunpack.c.l.b16 %v1477
  %v1510 = vunpack.c.l.b16 %v1478
  %v1511 = vunpack.c.l.b16 %v1479
  %v1512 = vunpack.c.l.b16 %v1480
  %v1513 = vunpack.c.l.b16 %v1481
  %v1514 = vunpack.c.l.b16 %v1482
  %v1515 = vunpack.c.l.b16 %v1483
  %v1516 = vunpack.c.l.b16 %v1484
  %v1517 = vunpack.c.l.b16 %v1485
  %v1518 = vunpack.c.l.b16 %v1486
  %v1519 = vunpack.c.l.b16 %v1487
  %v1520 = vunpack.c.l.b16 %v1488
  %v1521 = vunpack.c.l.b16 %v1489
  %v1522 = vunpack.c.l.b16 %v1490
  %v1523 = vpack.c.b16 %v1508, %v1507
  %v1524 = vpack.c.b16 %v1510, %v1509
  %v1525 = vpack.c.b16 %v1512, %v1511
  %v1526 = vpack.c.b16 %v1514, %v1513
  %v1527 = vpack.c.b16 %v1516, %v1515
  %v1528 = vpack.c.b16 %v1518, %v1517
  %v1529 = vpack.c.b16 %v1520, %v1519
  %v1530 = vpack.c.b16 %v1522, %v1521
  %1539 = vmatpush.bf16.msra.mxu0 %v1530
  %1540 = vmatpush.bf16.msra.mxu0 %v1529
  %1541 = vmatpush.bf16.msra.mxu0 %v1528
  %1542 = vmatpush.bf16.msra.mxu0 %v1527
  %1543 = vmatpush.bf16.msra.mxu0 %v1526
  %1544 = vmatpush.bf16.msra.mxu0 %v1525
  %1545 = vmatpush.bf16.msra.mxu0 %v1524
  %1546 = vmatpush.bf16.msra.mxu0 %v1523
  %1547 = vmatmul.bf16.gmra.mxu0 %v1104
  %v1548 = vpop.f32.mrf.mxu0
  %v1549 = vadd.f32 0.0, %v1548
  %v1550 = vpop.f32.mrf.mxu0
  %v1551 = vadd.f32 0.0, %v1550
  %1552 = vmatmul.bf16.gmra.mxu0 %v1105
  %v1553 = vpop.f32.mrf.mxu0
  %v1554 = vadd.f32 0.0, %v1553
  %v1555 = vpop.f32.mrf.mxu0
  %v1556 = vadd.f32 0.0, %v1555
  %1557 = vdwg.mxu0
  %v1558 = vpack.c.bf16 %v1549, %v1549
  %v1559 = vpack.c.bf16 %v1551, %v1551
  %v1560 = vpack.c.bf16 %v1554, %v1554
  %v1561 = vpack.c.bf16 %v1556, %v1556
  %1562 = vst [vmem:[#allocation2 + $0x40] sm:$0xf] %v1558
  %1563 = vst [vmem:[#allocation2 + $0x44] sm:$0xf] %v1559
  %1564 = vst [vmem:[#allocation2 + $0x48] sm:$0xf] %v1560
  %1565 = vst [vmem:[#allocation2 + $0x4c] sm:$0xf] %v1561
  %s1566 = scalar_lea.vmem %s2, 832
  %v1567 = vld [vmem:[%s1566] sm:$0xf]
  %v1568 = vld [vmem:[%s1566 + $0x4] sm:$0xf]
  %v1569 = vld [vmem:[%s1566 + $0x8] sm:$0xf]
  %v1570 = vld [vmem:[%s1566 + $0xc] sm:$0xf]
  %v1571 = vld [vmem:[%s1566 + $0x10] sm:$0xf]
  %v1572 = vld [vmem:[%s1566 + $0x14] sm:$0xf]
  %v1573 = vld [vmem:[%s1566 + $0x18] sm:$0xf]
  %v1574 = vld [vmem:[%s1566 + $0x1c] sm:$0xf]
  %v1575 = vld [vmem:[%s1566 + $0x20] sm:$0xf]
  %v1576 = vld [vmem:[%s1566 + $0x24] sm:$0xf]
  %v1577 = vld [vmem:[%s1566 + $0x28] sm:$0xf]
  %v1578 = vld [vmem:[%s1566 + $0x2c] sm:$0xf]
  %v1579 = vld [vmem:[%s1566 + $0x30] sm:$0xf]
  %v1580 = vld [vmem:[%s1566 + $0x34] sm:$0xf]
  %v1581 = vld [vmem:[%s1566 + $0x38] sm:$0xf]
  %v1582 = vld [vmem:[%s1566 + $0x3c] sm:$0xf]
  %v1599 = vunpack.c.l.b16 %v1567
  %v1600 = vunpack.c.l.b16 %v1568
  %v1601 = vunpack.c.l.b16 %v1569
  %v1602 = vunpack.c.l.b16 %v1570
  %v1603 = vunpack.c.l.b16 %v1571
  %v1604 = vunpack.c.l.b16 %v1572
  %v1605 = vunpack.c.l.b16 %v1573
  %v1606 = vunpack.c.l.b16 %v1574
  %v1607 = vunpack.c.l.b16 %v1575
  %v1608 = vunpack.c.l.b16 %v1576
  %v1609 = vunpack.c.l.b16 %v1577
  %v1610 = vunpack.c.l.b16 %v1578
  %v1611 = vunpack.c.l.b16 %v1579
  %v1612 = vunpack.c.l.b16 %v1580
  %v1613 = vunpack.c.l.b16 %v1581
  %v1614 = vunpack.c.l.b16 %v1582
  %v1615 = vpack.c.b16 %v1600, %v1599
  %v1616 = vpack.c.b16 %v1602, %v1601
  %v1617 = vpack.c.b16 %v1604, %v1603
  %v1618 = vpack.c.b16 %v1606, %v1605
  %v1619 = vpack.c.b16 %v1608, %v1607
  %v1620 = vpack.c.b16 %v1610, %v1609
  %v1621 = vpack.c.b16 %v1612, %v1611
  %v1622 = vpack.c.b16 %v1614, %v1613
  %1631 = vmatpush.bf16.msra.mxu0 %v1622
  %1632 = vmatpush.bf16.msra.mxu0 %v1621
  %1633 = vmatpush.bf16.msra.mxu0 %v1620
  %1634 = vmatpush.bf16.msra.mxu0 %v1619
  %1635 = vmatpush.bf16.msra.mxu0 %v1618
  %1636 = vmatpush.bf16.msra.mxu0 %v1617
  %1637 = vmatpush.bf16.msra.mxu0 %v1616
  %1638 = vmatpush.bf16.msra.mxu0 %v1615
  %1639 = vmatmul.bf16.gmra.mxu0 %v1104
  %v1640 = vpop.f32.mrf.mxu0
  %v1641 = vadd.f32 0.0, %v1640
  %v1642 = vpop.f32.mrf.mxu0
  %v1643 = vadd.f32 0.0, %v1642
  %1644 = vmatmul.bf16.gmra.mxu0 %v1105
  %v1645 = vpop.f32.mrf.mxu0
  %v1646 = vadd.f32 0.0, %v1645
  %v1647 = vpop.f32.mrf.mxu0
  %v1648 = vadd.f32 0.0, %v1647
  %1649 = vdwg.mxu0
  %v1650 = vpack.c.bf16 %v1641, %v1641
  %v1651 = vpack.c.bf16 %v1643, %v1643
  %v1652 = vpack.c.bf16 %v1646, %v1646
  %v1653 = vpack.c.bf16 %v1648, %v1648
  %1654 = vst [vmem:[#allocation2 + $0x50] sm:$0xf] %v1650
  %1655 = vst [vmem:[#allocation2 + $0x54] sm:$0xf] %v1651
  %1656 = vst [vmem:[#allocation2 + $0x58] sm:$0xf] %v1652
  %1657 = vst [vmem:[#allocation2 + $0x5c] sm:$0xf] %v1653
  %s1658 = scalar_lea.vmem %s2, 896
  %v1659 = vld [vmem:[%s1658] sm:$0xf]
  %v1660 = vld [vmem:[%s1658 + $0x4] sm:$0xf]
  %v1661 = vld [vmem:[%s1658 + $0x8] sm:$0xf]
  %v1662 = vld [vmem:[%s1658 + $0xc] sm:$0xf]
  %v1663 = vld [vmem:[%s1658 + $0x10] sm:$0xf]
  %v1664 = vld [vmem:[%s1658 + $0x14] sm:$0xf]
  %v1665 = vld [vmem:[%s1658 + $0x18] sm:$0xf]
  %v1666 = vld [vmem:[%s1658 + $0x1c] sm:$0xf]
  %v1667 = vld [vmem:[%s1658 + $0x20] sm:$0xf]
  %v1668 = vld [vmem:[%s1658 + $0x24] sm:$0xf]
  %v1669 = vld [vmem:[%s1658 + $0x28] sm:$0xf]
  %v1670 = vld [vmem:[%s1658 + $0x2c] sm:$0xf]
  %v1671 = vld [vmem:[%s1658 + $0x30] sm:$0xf]
  %v1672 = vld [vmem:[%s1658 + $0x34] sm:$0xf]
  %v1673 = vld [vmem:[%s1658 + $0x38] sm:$0xf]
  %v1674 = vld [vmem:[%s1658 + $0x3c] sm:$0xf]
  %v1691 = vunpack.c.l.b16 %v1659
  %v1692 = vunpack.c.l.b16 %v1660
  %v1693 = vunpack.c.l.b16 %v1661
  %v1694 = vunpack.c.l.b16 %v1662
  %v1695 = vunpack.c.l.b16 %v1663
  %v1696 = vunpack.c.l.b16 %v1664
  %v1697 = vunpack.c.l.b16 %v1665
  %v1698 = vunpack.c.l.b16 %v1666
  %v1699 = vunpack.c.l.b16 %v1667
  %v1700 = vunpack.c.l.b16 %v1668
  %v1701 = vunpack.c.l.b16 %v1669
  %v1702 = vunpack.c.l.b16 %v1670
  %v1703 = vunpack.c.l.b16 %v1671
  %v1704 = vunpack.c.l.b16 %v1672
  %v1705 = vunpack.c.l.b16 %v1673
  %v1706 = vunpack.c.l.b16 %v1674
  %v1707 = vpack.c.b16 %v1692, %v1691
  %v1708 = vpack.c.b16 %v1694, %v1693
  %v1709 = vpack.c.b16 %v1696, %v1695
  %v1710 = vpack.c.b16 %v1698, %v1697
  %v1711 = vpack.c.b16 %v1700, %v1699
  %v1712 = vpack.c.b16 %v1702, %v1701
  %v1713 = vpack.c.b16 %v1704, %v1703
  %v1714 = vpack.c.b16 %v1706, %v1705
  %1723 = vmatpush.bf16.msra.mxu0 %v1714
  %1724 = vmatpush.bf16.msra.mxu0 %v1713
  %1725 = vmatpush.bf16.msra.mxu0 %v1712
  %1726 = vmatpush.bf16.msra.mxu0 %v1711
  %1727 = vmatpush.bf16.msra.mxu0 %v1710
  %1728 = vmatpush.bf16.msra.mxu0 %v1709
  %1729 = vmatpush.bf16.msra.mxu0 %v1708
  %1730 = vmatpush.bf16.msra.mxu0 %v1707
  %1731 = vmatmul.bf16.gmra.mxu0 %v1104
  %v1732 = vpop.f32.mrf.mxu0
  %v1733 = vadd.f32 0.0, %v1732
  %v1734 = vpop.f32.mrf.mxu0
  %v1735 = vadd.f32 0.0, %v1734
  %1736 = vmatmul.bf16.gmra.mxu0 %v1105
  %v1737 = vpop.f32.mrf.mxu0
  %v1738 = vadd.f32 0.0, %v1737
  %v1739 = vpop.f32.mrf.mxu0
  %v1740 = vadd.f32 0.0, %v1739
  %1741 = vdwg.mxu0
  %v1742 = vpack.c.bf16 %v1733, %v1733
  %v1743 = vpack.c.bf16 %v1735, %v1735
  %v1744 = vpack.c.bf16 %v1738, %v1738
  %v1745 = vpack.c.bf16 %v1740, %v1740
  %1746 = vst [vmem:[#allocation2 + $0x60] sm:$0xf] %v1742
  %1747 = vst [vmem:[#allocation2 + $0x64] sm:$0xf] %v1743
  %1748 = vst [vmem:[#allocation2 + $0x68] sm:$0xf] %v1744
  %1749 = vst [vmem:[#allocation2 + $0x6c] sm:$0xf] %v1745
  %s1750 = scalar_lea.vmem %s2, 960
  %v1751 = vld [vmem:[%s1750] sm:$0xf]
  %v1752 = vld [vmem:[%s1750 + $0x4] sm:$0xf]
  %v1753 = vld [vmem:[%s1750 + $0x8] sm:$0xf]
  %v1754 = vld [vmem:[%s1750 + $0xc] sm:$0xf]
  %v1755 = vld [vmem:[%s1750 + $0x10] sm:$0xf]
  %v1756 = vld [vmem:[%s1750 + $0x14] sm:$0xf]
  %v1757 = vld [vmem:[%s1750 + $0x18] sm:$0xf]
  %v1758 = vld [vmem:[%s1750 + $0x1c] sm:$0xf]
  %v1759 = vld [vmem:[%s1750 + $0x20] sm:$0xf]
  %v1760 = vld [vmem:[%s1750 + $0x24] sm:$0xf]
  %v1761 = vld [vmem:[%s1750 + $0x28] sm:$0xf]
  %v1762 = vld [vmem:[%s1750 + $0x2c] sm:$0xf]
  %v1763 = vld [vmem:[%s1750 + $0x30] sm:$0xf]
  %v1764 = vld [vmem:[%s1750 + $0x34] sm:$0xf]
  %v1765 = vld [vmem:[%s1750 + $0x38] sm:$0xf]
  %v1766 = vld [vmem:[%s1750 + $0x3c] sm:$0xf]
  %v1783 = vunpack.c.l.b16 %v1751
  %v1784 = vunpack.c.l.b16 %v1752
  %v1785 = vunpack.c.l.b16 %v1753
  %v1786 = vunpack.c.l.b16 %v1754
  %v1787 = vunpack.c.l.b16 %v1755
  %v1788 = vunpack.c.l.b16 %v1756
  %v1789 = vunpack.c.l.b16 %v1757
  %v1790 = vunpack.c.l.b16 %v1758
  %v1791 = vunpack.c.l.b16 %v1759
  %v1792 = vunpack.c.l.b16 %v1760
  %v1793 = vunpack.c.l.b16 %v1761
  %v1794 = vunpack.c.l.b16 %v1762
  %v1795 = vunpack.c.l.b16 %v1763
  %v1796 = vunpack.c.l.b16 %v1764
  %v1797 = vunpack.c.l.b16 %v1765
  %v1798 = vunpack.c.l.b16 %v1766
  %v1799 = vpack.c.b16 %v1784, %v1783
  %v1800 = vpack.c.b16 %v1786, %v1785
  %v1801 = vpack.c.b16 %v1788, %v1787
  %v1802 = vpack.c.b16 %v1790, %v1789
  %v1803 = vpack.c.b16 %v1792, %v1791
  %v1804 = vpack.c.b16 %v1794, %v1793
  %v1805 = vpack.c.b16 %v1796, %v1795
  %v1806 = vpack.c.b16 %v1798, %v1797
  %1815 = vmatpush.bf16.msra.mxu0 %v1806
  %1816 = vmatpush.bf16.msra.mxu0 %v1805
  %1817 = vmatpush.bf16.msra.mxu0 %v1804
  %1818 = vmatpush.bf16.msra.mxu0 %v1803
  %1819 = vmatpush.bf16.msra.mxu0 %v1802
  %1820 = vmatpush.bf16.msra.mxu0 %v1801
  %1821 = vmatpush.bf16.msra.mxu0 %v1800
  %1822 = vmatpush.bf16.msra.mxu0 %v1799
  %1823 = vmatmul.bf16.gmra.mxu0 %v1104
  %v1824 = vpop.f32.mrf.mxu0
  %v1825 = vadd.f32 0.0, %v1824
  %v1826 = vpop.f32.mrf.mxu0
  %v1827 = vadd.f32 0.0, %v1826
  %1828 = vmatmul.bf16.gmra.mxu0 %v1105
  %v1829 = vpop.f32.mrf.mxu0
  %v1830 = vadd.f32 0.0, %v1829
  %v1831 = vpop.f32.mrf.mxu0
  %v1832 = vadd.f32 0.0, %v1831
  %1833 = vdwg.mxu0
  %v1834 = vpack.c.bf16 %v1825, %v1825
  %v1835 = vpack.c.bf16 %v1827, %v1827
  %v1836 = vpack.c.bf16 %v1830, %v1830
  %v1837 = vpack.c.bf16 %v1832, %v1832
  %1838 = vst [vmem:[#allocation2 + $0x70] sm:$0xf] %v1834
  %1839 = vst [vmem:[#allocation2 + $0x74] sm:$0xf] %v1835
  %1840 = vst [vmem:[#allocation2 + $0x78] sm:$0xf] %v1836
  %1841 = vst [vmem:[#allocation2 + $0x7c] sm:$0xf] %v1837
  %v1842 = vld [vmem:[#allocation2] sm:$0xf]
  %v1843 = vld [vmem:[#allocation2 + $0x4] sm:$0xf]
  %v1844 = vld [vmem:[#allocation2 + $0x8] sm:$0xf]
  %v1845 = vld [vmem:[#allocation2 + $0xc] sm:$0xf]
  %v1846 = vld [vmem:[#allocation2 + $0x10] sm:$0xf]
  %v1847 = vld [vmem:[#allocation2 + $0x14] sm:$0xf]
  %v1848 = vld [vmem:[#allocation2 + $0x18] sm:$0xf]
  %v1849 = vld [vmem:[#allocation2 + $0x1c] sm:$0xf]
  %v1850 = vld [vmem:[#allocation2 + $0x20] sm:$0xf]
  %v1851 = vld [vmem:[#allocation2 + $0x24] sm:$0xf]
  %v1852 = vld [vmem:[#allocation2 + $0x28] sm:$0xf]
  %v1853 = vld [vmem:[#allocation2 + $0x2c] sm:$0xf]
  %v1854 = vld [vmem:[#allocation2 + $0x30] sm:$0xf]
  %v1855 = vld [vmem:[#allocation2 + $0x34] sm:$0xf]
  %v1856 = vld [vmem:[#allocation2 + $0x38] sm:$0xf]
  %v1857 = vld [vmem:[#allocation2 + $0x3c] sm:$0xf]
  %v1858 = vld [vmem:[#allocation2 + $0x40] sm:$0xf]
  %v1859 = vld [vmem:[#allocation2 + $0x44] sm:$0xf]
  %v1860 = vld [vmem:[#allocation2 + $0x48] sm:$0xf]
  %v1861 = vld [vmem:[#allocation2 + $0x4c] sm:$0xf]
  %v1862 = vld [vmem:[#allocation2 + $0x50] sm:$0xf]
  %v1863 = vld [vmem:[#allocation2 + $0x54] sm:$0xf]
  %v1864 = vld [vmem:[#allocation2 + $0x58] sm:$0xf]
  %v1865 = vld [vmem:[#allocation2 + $0x5c] sm:$0xf]
  %v1866 = vld [vmem:[#allocation2 + $0x60] sm:$0xf]
  %v1867 = vld [vmem:[#allocation2 + $0x64] sm:$0xf]
  %v1868 = vld [vmem:[#allocation2 + $0x68] sm:$0xf]
  %v1869 = vld [vmem:[#allocation2 + $0x6c] sm:$0xf]
  %v1870 = vld [vmem:[#allocation2 + $0x70] sm:$0xf]
  %v1871 = vld [vmem:[#allocation2 + $0x74] sm:$0xf]
  %v1872 = vld [vmem:[#allocation2 + $0x78] sm:$0xf]
  %v1873 = vld [vmem:[#allocation2 + $0x7c] sm:$0xf]
  %v1906 = vunpack.c.l.b16 %v1842
  %v1907 = vunpack.c.l.b16 %v1843
  %v1908 = vunpack.c.l.b16 %v1844
  %v1909 = vunpack.c.l.b16 %v1845
  %v1910 = vunpack.c.l.b16 %v1846
  %v1911 = vunpack.c.l.b16 %v1847
  %v1912 = vunpack.c.l.b16 %v1848
  %v1913 = vunpack.c.l.b16 %v1849
  %v1914 = vunpack.c.l.b16 %v1850
  %v1915 = vunpack.c.l.b16 %v1851
  %v1916 = vunpack.c.l.b16 %v1852
  %v1917 = vunpack.c.l.b16 %v1853
  %v1918 = vunpack.c.l.b16 %v1854
  %v1919 = vunpack.c.l.b16 %v1855
  %v1920 = vunpack.c.l.b16 %v1856
  %v1921 = vunpack.c.l.b16 %v1857
  %v1922 = vunpack.c.l.b16 %v1858
  %v1923 = vunpack.c.l.b16 %v1859
  %v1924 = vunpack.c.l.b16 %v1860
  %v1925 = vunpack.c.l.b16 %v1861
  %v1926 = vunpack.c.l.b16 %v1862
  %v1927 = vunpack.c.l.b16 %v1863
  %v1928 = vunpack.c.l.b16 %v1864
  %v1929 = vunpack.c.l.b16 %v1865
  %v1930 = vunpack.c.l.b16 %v1866
  %v1931 = vunpack.c.l.b16 %v1867
  %v1932 = vunpack.c.l.b16 %v1868
  %v1933 = vunpack.c.l.b16 %v1869
  %v1934 = vunpack.c.l.b16 %v1870
  %v1935 = vunpack.c.l.b16 %v1871
  %v1936 = vunpack.c.l.b16 %v1872
  %v1937 = vunpack.c.l.b16 %v1873
  %v1938 = vpack.c.b16 %v1907, %v1906
  %v1939 = vpack.c.b16 %v1909, %v1908
  %v1940 = vpack.c.b16 %v1911, %v1910
  %v1941 = vpack.c.b16 %v1913, %v1912
  %v1942 = vpack.c.b16 %v1915, %v1914
  %v1943 = vpack.c.b16 %v1917, %v1916
  %v1944 = vpack.c.b16 %v1919, %v1918
  %v1945 = vpack.c.b16 %v1921, %v1920
  %v1946 = vpack.c.b16 %v1923, %v1922
  %v1947 = vpack.c.b16 %v1925, %v1924
  %v1948 = vpack.c.b16 %v1927, %v1926
  %v1949 = vpack.c.b16 %v1929, %v1928
  %v1950 = vpack.c.b16 %v1931, %v1930
  %v1951 = vpack.c.b16 %v1933, %v1932
  %v1952 = vpack.c.b16 %v1935, %v1934
  %v1953 = vpack.c.b16 %v1937, %v1936
  %1970 = vmatpush.bf16.msra.mxu0 %v1945
  %1971 = vmatpush.bf16.msra.mxu0 %v1944
  %1972 = vmatpush.bf16.msra.mxu0 %v1943
  %1973 = vmatpush.bf16.msra.mxu0 %v1942
  %1974 = vmatpush.bf16.msra.mxu0 %v1941
  %1975 = vmatpush.bf16.msra.mxu0 %v1940
  %1976 = vmatpush.bf16.msra.mxu0 %v1939
  %1977 = vmatpush.bf16.msra.mxu0 %v1938
  %1978 = vmatmul.bf16.gmra.mxu0 %v823
  %v1979 = vpop.f32.mrf.mxu0
  %v1980 = vadd.f32 0.0, %v1979
  %v1981 = vpop.f32.mrf.mxu0
  %v1982 = vadd.f32 0.0, %v1981
  %1983 = vmatmul.bf16.gmra.mxu0 %v825
  %v1984 = vpop.f32.mrf.mxu0
  %v1985 = vadd.f32 0.0, %v1984
  %v1986 = vpop.f32.mrf.mxu0
  %v1987 = vadd.f32 0.0, %v1986
  %1988 = vdwg.mxu0
  %1989 = vmatpush.bf16.msra.mxu0 %v1953
  %1990 = vmatpush.bf16.msra.mxu0 %v1952
  %1991 = vmatpush.bf16.msra.mxu0 %v1951
  %1992 = vmatpush.bf16.msra.mxu0 %v1950
  %1993 = vmatpush.bf16.msra.mxu0 %v1949
  %1994 = vmatpush.bf16.msra.mxu0 %v1948
  %1995 = vmatpush.bf16.msra.mxu0 %v1947
  %1996 = vmatpush.bf16.msra.mxu0 %v1946
  %1997 = vmatmul.bf16.gmra.mxu0 %v824
  %v1998 = vpop.f32.mrf.mxu0
  %v1999 = vadd.f32 %v1980, %v1998
  %v2000 = vpop.f32.mrf.mxu0
  %v2001 = vadd.f32 %v1982, %v2000
  %2002 = vmatmul.bf16.gmra.mxu0 %v826
  %v2003 = vpop.f32.mrf.mxu0
  %v2004 = vadd.f32 %v1985, %v2003
  %v2005 = vpop.f32.mrf.mxu0
  %v2006 = vadd.f32 %v1987, %v2005
  %2007 = vdwg.mxu0
  %v2008 = vmul.f32 %v1999, %v968
  %v2009 = vmul.f32 %v2001, %v973
  %v2010 = vmul.f32 %v2004, %v978
  %v2011 = vmul.f32 %v2006, %v983
  %vm2012 = vcmp.gt.f32.partialorder %v2008, 0.0
  %vm2013 = vcmp.gt.f32.partialorder %v2009, 0.0
  %vm2014 = vcmp.gt.f32.partialorder %v2010, 0.0
  %vm2015 = vcmp.gt.f32.partialorder %v2011, 0.0
  %v2016 = vmin.f32 %v2008, 0.0
  %v2017 = vmin.f32 %v2009, 0.0
  %v2018 = vmin.f32 %v2010, 0.0
  %v2019 = vmin.f32 %v2011, 0.0
  %v2020 = vmul.f32 %v2016, 1.442695
  %v2021 = vpow.pop %v2020
  %v2022 = vmul.f32 %v2017, 1.442695
  %v2023 = vpow.pop %v2022
  %v2024 = vmul.f32 %v2018, 1.442695
  %v2025 = vpow.pop %v2024
  %v2026 = vmul.f32 %v2019, 1.442695
  %v2027 = vpow.pop %v2026
  %v2028 = vsub.f32 %v2021, 1.0
  %v2029 = vsub.f32 %v2023, 1.0
  %v2030 = vsub.f32 %v2025, 1.0
  %v2031 = vsub.f32 %v2027, 1.0
  %v2032 = vsel %vm2012, %v2008, %v2028
  %v2033 = vsel %vm2013, %v2009, %v2029
  %v2034 = vsel %vm2014, %v2010, %v2030
  %v2035 = vsel %vm2015, %v2011, %v2031
  %v2036 = vmul.f32 %v2032, %v1016
  %v2037 = vmul.f32 %v2033, %v1021
  %v2038 = vmul.f32 %v2034, %v1026
  %v2039 = vmul.f32 %v2035, %v1031
  %v2040 = vadd.f32 %v2036, %v2037
  %v2041 = vadd.f32 %v2040, %v2038
  %v2042 = vadd.f32 %v2041, %v2039
  %v2043 = vrot.slane %v2042, 4
  %v2044 = vadd.f32 %v2042, %v2043
  %v2045 = vrot.slane %v2044, 2
  %v2046 = vadd.f32 %v2044, %v2045
  %v2047 = vrot.slane %v2046, 1
  %v2048 = vadd.f32 %v2046, %v2047
  %v2049 = vmul.f32 %v2048, 0.037037037
  %v2050 = vsub.f32 %v2032, %v2049
  %v2051 = vsub.f32 %v2033, %v2049
  %v2052 = vsub.f32 %v2034, %v2049
  %v2053 = vsub.f32 %v2035, %v2049
  %v2054 = vmul.f32 %v2050, %v1016
  %v2055 = vmul.f32 %v2051, %v1021
  %v2056 = vmul.f32 %v2052, %v1026
  %v2057 = vmul.f32 %v2053, %v1031
  %v2058 = vmul.f32 %v2054, %v2054
  %v2059 = vmul.f32 %v2055, %v2055
  %v2060 = vmul.f32 %v2056, %v2056
  %v2061 = vmul.f32 %v2057, %v2057
  %v2062 = vadd.f32 %v2058, %v2059
  %v2063 = vadd.f32 %v2062, %v2060
  %v2064 = vadd.f32 %v2063, %v2061
  %v2065 = vrot.slane %v2064, 4
  %v2066 = vadd.f32 %v2064, %v2065
  %v2067 = vrot.slane %v2066, 2
  %v2068 = vadd.f32 %v2066, %v2067
  %v2069 = vrot.slane %v2068, 1
  %v2070 = vadd.f32 %v2068, %v2069
  %v2071 = vmul.f32 %v2070, 0.037037037
  %v2072 = vadd.f32 %v2071, 1e-05
  %v2073 = vrsqrt.pop %v2072
  %v2074 = vmul.f32 %v2073, %v2072
  %v2075 = vmul.f32 %v2074, %v2073
  %v2076 = vmul.f32 0.5, %v2075
  %v2077 = vsub.f32 1.5, %v2076
  %v2078 = vmul.f32 %v2073, %v2077
  %vm2079 = vweird.f32 %v2072
  %vm2080 = vweird.f32 %v2073
  %vm2081 = vmor %vm2079, %vm2080
  %v2082 = vsel %vm2081, %v2073, %v2078
  %v2083 = vmul.f32 %v2050, %v2082
  %v2084 = vmul.f32 %v2051, %v2082
  %v2085 = vmul.f32 %v2052, %v2082
  %v2086 = vmul.f32 %v2053, %v2082
  %s2087 = scalar_lea.vmem %s3, 1
  %v2088 = vld [vmem:[%s2087] sm:$0x1]
  %v2090 = vperm.slane %v2088, 0
  %v2092 = vmul.f32 %v2083, %v2090
  %v2093 = vmul.f32 %v2084, %v2090
  %v2094 = vmul.f32 %v2085, %v2090
  %v2095 = vmul.f32 %v2086, %v2090
  %s2096 = scalar_lea.vmem %s4, 1
  %v2097 = vld [vmem:[%s2096] sm:$0x1]
  %v2099 = vperm.slane %v2097, 0
  %v2101 = vadd.f32 %v2092, %v2099
  %v2102 = vadd.f32 %v2093, %v2099
  %v2103 = vadd.f32 %v2094, %v2099
  %v2104 = vadd.f32 %v2095, %v2099
  %v2105 = vmul.f32 %v2101, %v1016
  %v2106 = vmul.f32 %v2102, %v1021
  %v2107 = vmul.f32 %v2103, %v1026
  %v2108 = vmul.f32 %v2104, %v1031
  %v2109 = vadd.f32 %v2105, %v38
  %v2110 = vadd.f32 %v2106, %v39
  %v2111 = vadd.f32 %v2107, %v40
  %v2112 = vadd.f32 %v2108, %v41
  %2113 = vst [vmem:[%s7] sm:$0xff] %v2109
  %2114 = vst [vmem:[%s7 + $0x8] sm:$0xff] %v2110
  %2115 = vst [vmem:[%s7 + $0x10] sm:$0xff] %v2111
  %2116 = vst [vmem:[%s7 + $0x18] sm:$0xff] %v2112
  // Predicated region
  $region30: #{_device_forward.3} parent=0 // pred_check
    _
  $region31: #{_device_forward.3} parent=0 // pred_check_branch
    %2118 = sbr.rel (0) target = $region33
  $region32: #{_device_forward.3} parent=0 // pred_region
    _
  $region33: #{_device_forward.3} parent=0 // pred_fallthru
    _
  // Predicated region
  $region34: #{_device_forward.3} parent=0 // pred_check
    _
  $region35: #{_device_forward.3} parent=0 // pred_check_branch
    %2120 = sbr.rel (0) target = $region37
  $region36: #{_device_forward.3} parent=0 // pred_region
    _
  $region37: #{_device_forward.3} parent=0 // pred_fallthru
    _

// kernel: _device_forward.2
$region0: #{_device_forward.2}
  #allocation0 [shape = 'u32[]', space=smem, size = 0x4, offset = 0x4, fixed_abs, tag = 'smem constant byte address 0x4 - core index']
  #allocation1 [shape = 'u32[72,128]{1,0:T(1,128)}', space=vmem, size = 0x9000, scoped, tag = 'internal scratch']
  #allocation2 [shape = 'bf16[512,128]{1,0:T(8,128)(2,1)}', space=vmem, size = 0x20000, scoped, tag = 'scratch operand']
  %s0 = inlined_call_operand.vmem [shape: f32[64,128], index: 0, kind: input, shape index: {}]
  %s1 = inlined_call_operand.vmem [shape: bf16[64,512], index: 1, kind: input, shape index: {}]
  %s2 = inlined_call_operand.vmem [shape: bf16[40,128,128], index: 2, kind: input, shape index: {}]
  %s3 = inlined_call_operand.vmem [shape: f32[5,1,128], index: 3, kind: input, shape index: {}]
  %s4 = inlined_call_operand.vmem [shape: f32[5,1,128], index: 4, kind: input, shape index: {}]
  %s5 = inlined_call_operand.vmem [shape: f32[64,1], index: 5, kind: input, shape index: {}]
  %s6 = inlined_call_operand.vmem [shape: f32[64,1], index: 6, kind: input, shape index: {}]
  %s7 = inlined_call_operand.vmem [shape: f32[64,64], index: 7, kind: input, shape index: {}]
  %s8 = inlined_call_operand.vmem [shape: f32[64,128], index: 8, kind: output, shape index: {}]
  %s9 = sld [smem:[#allocation0]]
  $region42: #{_device_forward.2} parent=0
    _
  %s11 = ssub.s32 1, %s9
  %s12 = scalar_select 0, %s11, %s9
  // Predicated region
  $region2: #{_device_forward.2} parent=0 // pred_check
    _
  $region3: #{_device_forward.2} parent=0 // pred_check_branch
    %14 = sbr.rel (0) target = $region5
  $region4: #{_device_forward.2} parent=0 // pred_region
    _
  $region5: #{_device_forward.2} parent=0 // pred_fallthru
    _
  // Predicated region
  $region6: #{_device_forward.2} parent=0 // pred_check
    _
  $region7: #{_device_forward.2} parent=0 // pred_check_branch
    %16 = sbr.rel (0) target = $region9
  $region8: #{_device_forward.2} parent=0 // pred_region
    _
  $region9: #{_device_forward.2} parent=0 // pred_fallthru
    _
  // Predicated region
  $region10: #{_device_forward.2} parent=0 // pred_check
    _
  $region11: #{_device_forward.2} parent=0 // pred_check_branch
    %18 = sbr.rel (0) target = $region13
  $region12: #{_device_forward.2} parent=0 // pred_region
    _
  $region13: #{_device_forward.2} parent=0 // pred_fallthru
    _
  // Predicated region
  $region14: #{_device_forward.2} parent=0 // pred_check
    _
  $region15: #{_device_forward.2} parent=0 // pred_check_branch
    %20 = sbr.rel (0) target = $region17
  $region16: #{_device_forward.2} parent=0 // pred_region
    _
  $region17: #{_device_forward.2} parent=0 // pred_fallthru
    _
  // Predicated region
  $region18: #{_device_forward.2} parent=0 // pred_check
    _
  $region19: #{_device_forward.2} parent=0 // pred_check_branch
    %22 = sbr.rel (0) target = $region21
  $region20: #{_device_forward.2} parent=0 // pred_region
    _
  $region21: #{_device_forward.2} parent=0 // pred_fallthru
    _
  // Predicated region
  $region22: #{_device_forward.2} parent=0 // pred_check
    _
  $region23: #{_device_forward.2} parent=0 // pred_check_branch
    %24 = sbr.rel (0) target = $region25
  $region24: #{_device_forward.2} parent=0 // pred_region
    _
  $region25: #{_device_forward.2} parent=0 // pred_fallthru
    _
  // Predicated region
  $region26: #{_device_forward.2} parent=0 // pred_check
    _
  $region27: #{_device_forward.2} parent=0 // pred_check_branch
    %26 = sbr.rel (0) target = $region29
  $region28: #{_device_forward.2} parent=0 // pred_region
    _
  $region29: #{_device_forward.2} parent=0 // pred_fallthru
    _
  // Predicated region
  $region30: #{_device_forward.2} parent=0 // pred_check
    _
  $region31: #{_device_forward.2} parent=0 // pred_check_branch
    %28 = sbr.rel (0) target = $region33
  $region32: #{_device_forward.2} parent=0 // pred_region
    _
  $region33: #{_device_forward.2} parent=0 // pred_fallthru
    _
  %v29 = vld [vmem:[%s1] sm:$0xff]
  %v30 = vld [vmem:[%s1 + $0x8] sm:$0xff]
  %v31 = vld [vmem:[%s1 + $0x10] sm:$0xff]
  %v32 = vld [vmem:[%s1 + $0x18] sm:$0xff]
  %v33 = vld [vmem:[%s1 + $0x20] sm:$0xff]
  %v34 = vld [vmem:[%s1 + $0x28] sm:$0xff]
  %v35 = vld [vmem:[%s1 + $0x30] sm:$0xff]
  %v36 = vld [vmem:[%s1 + $0x38] sm:$0xff]
  %v37 = vld [vmem:[%s1 + $0x40] sm:$0xff]
  %v38 = vld [vmem:[%s1 + $0x48] sm:$0xff]
  %v39 = vld [vmem:[%s1 + $0x50] sm:$0xff]
  %v40 = vld [vmem:[%s1 + $0x58] sm:$0xff]
  %v41 = vld [vmem:[%s1 + $0x60] sm:$0xff]
  %v42 = vld [vmem:[%s1 + $0x68] sm:$0xff]
  %v43 = vld [vmem:[%s1 + $0x70] sm:$0xff]
  %v44 = vld [vmem:[%s1 + $0x78] sm:$0xff]
  %v45 = vld [vmem:[%s5] sm:$0xff]
  %v46 = vld [vmem:[%s5 + $0x8] sm:$0xff]
  %v47 = vld [vmem:[%s5 + $0x10] sm:$0xff]
  %v48 = vld [vmem:[%s5 + $0x18] sm:$0xff]
  %v49 = vld [vmem:[%s5 + $0x20] sm:$0xff]
  %v50 = vld [vmem:[%s5 + $0x28] sm:$0xff]
  %v51 = vld [vmem:[%s5 + $0x30] sm:$0xff]
  %v52 = vld [vmem:[%s5 + $0x38] sm:$0xff]
  %v53 = vld [vmem:[%s6] sm:$0xff]
  %v54 = vld [vmem:[%s6 + $0x8] sm:$0xff]
  %v55 = vld [vmem:[%s6 + $0x10] sm:$0xff]
  %v56 = vld [vmem:[%s6 + $0x18] sm:$0xff]
  %v57 = vld [vmem:[%s6 + $0x20] sm:$0xff]
  %v58 = vld [vmem:[%s6 + $0x28] sm:$0xff]
  %v59 = vld [vmem:[%s6 + $0x30] sm:$0xff]
  %v60 = vld [vmem:[%s6 + $0x38] sm:$0xff]
  %v61 = vld [vmem:[%s0] sm:$0xff]
  %v62 = vld [vmem:[%s0 + $0x8] sm:$0xff]
  %v63 = vld [vmem:[%s0 + $0x10] sm:$0xff]
  %v64 = vld [vmem:[%s0 + $0x18] sm:$0xff]
  %v65 = vld [vmem:[%s0 + $0x20] sm:$0xff]
  %v66 = vld [vmem:[%s0 + $0x28] sm:$0xff]
  %v67 = vld [vmem:[%s0 + $0x30] sm:$0xff]
  %v68 = vld [vmem:[%s0 + $0x38] sm:$0xff]
  %v69 = vpack.c.bf16 %v62, %v61
  %v70 = vpack.c.bf16 %v64, %v63
  %v71 = vpack.c.bf16 %v66, %v65
  %v72 = vpack.c.bf16 %v68, %v67
  %v73 = vld [vmem:[%s2] sm:$0xf]
  %v74 = vld [vmem:[%s2 + $0x4] sm:$0xf]
  %v75 = vld [vmem:[%s2 + $0x8] sm:$0xf]
  %v76 = vld [vmem:[%s2 + $0xc] sm:$0xf]
  %v77 = vld [vmem:[%s2 + $0x10] sm:$0xf]
  %v78 = vld [vmem:[%s2 + $0x14] sm:$0xf]
  %v79 = vld [vmem:[%s2 + $0x18] sm:$0xf]
  %v80 = vld [vmem:[%s2 + $0x1c] sm:$0xf]
  %v81 = vld [vmem:[%s2 + $0x20] sm:$0xf]
  %v82 = vld [vmem:[%s2 + $0x24] sm:$0xf]
  %v83 = vld [vmem:[%s2 + $0x28] sm:$0xf]
  %v84 = vld [vmem:[%s2 + $0x2c] sm:$0xf]
  %v85 = vld [vmem:[%s2 + $0x30] sm:$0xf]
  %v86 = vld [vmem:[%s2 + $0x34] sm:$0xf]
  %v87 = vld [vmem:[%s2 + $0x38] sm:$0xf]
  %v88 = vld [vmem:[%s2 + $0x3c] sm:$0xf]
  %v105 = vunpack.c.l.b16 %v73
  %v106 = vunpack.c.l.b16 %v74
  %v107 = vunpack.c.l.b16 %v75
  %v108 = vunpack.c.l.b16 %v76
  %v109 = vunpack.c.l.b16 %v77
  %v110 = vunpack.c.l.b16 %v78
  %v111 = vunpack.c.l.b16 %v79
  %v112 = vunpack.c.l.b16 %v80
  %v113 = vunpack.c.l.b16 %v81
  %v114 = vunpack.c.l.b16 %v82
  %v115 = vunpack.c.l.b16 %v83
  %v116 = vunpack.c.l.b16 %v84
  %v117 = vunpack.c.l.b16 %v85
  %v118 = vunpack.c.l.b16 %v86
  %v119 = vunpack.c.l.b16 %v87
  %v120 = vunpack.c.l.b16 %v88
  %v121 = vpack.c.b16 %v106, %v105
  %v122 = vpack.c.b16 %v108, %v107
  %v123 = vpack.c.b16 %v110, %v109
  %v124 = vpack.c.b16 %v112, %v111
  %v125 = vpack.c.b16 %v114, %v113
  %v126 = vpack.c.b16 %v116, %v115
  %v127 = vpack.c.b16 %v118, %v117
  %v128 = vpack.c.b16 %v120, %v119
  %137 = vmatpush.bf16.msra.mxu0 %v128
  %138 = vmatpush.bf16.msra.mxu0 %v127
  %139 = vmatpush.bf16.msra.mxu0 %v126
  %140 = vmatpush.bf16.msra.mxu0 %v125
  %141 = vmatpush.bf16.msra.mxu0 %v124
  %142 = vmatpush.bf16.msra.mxu0 %v123
  %143 = vmatpush.bf16.msra.mxu0 %v122
  %144 = vmatpush.bf16.msra.mxu0 %v121
  %145 = vmatmul.bf16.gmra.mxu0 %v69
  %v146 = vpop.f32.mrf.mxu0
  %v147 = vadd.f32 0.0, %v146
  %v148 = vpop.f32.mrf.mxu0
  %v149 = vadd.f32 0.0, %v148
  %150 = vmatmul.bf16.gmra.mxu0 %v70
  %v151 = vpop.f32.mrf.mxu0
  %v152 = vadd.f32 0.0, %v151
  %v153 = vpop.f32.mrf.mxu0
  %v154 = vadd.f32 0.0, %v153
  %155 = vmatmul.bf16.gmra.mxu0 %v71
  %v156 = vpop.f32.mrf.mxu0
  %v157 = vadd.f32 0.0, %v156
  %v158 = vpop.f32.mrf.mxu0
  %v159 = vadd.f32 0.0, %v158
  %160 = vmatmul.bf16.gmra.mxu0 %v72
  %v161 = vpop.f32.mrf.mxu0
  %v162 = vadd.f32 0.0, %v161
  %v163 = vpop.f32.mrf.mxu0
  %v164 = vadd.f32 0.0, %v163
  %165 = vdwg.mxu0
  %v166 = vpack.c.bf16 %v147, %v147
  %v167 = vpack.c.bf16 %v149, %v149
  %v168 = vpack.c.bf16 %v152, %v152
  %v169 = vpack.c.bf16 %v154, %v154
  %v170 = vpack.c.bf16 %v157, %v157
  %v171 = vpack.c.bf16 %v159, %v159
  %v172 = vpack.c.bf16 %v162, %v162
  %v173 = vpack.c.bf16 %v164, %v164
  %174 = vst [vmem:[#allocation2] sm:$0xf] %v166
  %175 = vst [vmem:[#allocation2 + $0x4] sm:$0xf] %v167
  %176 = vst [vmem:[#allocation2 + $0x8] sm:$0xf] %v168
  %177 = vst [vmem:[#allocation2 + $0xc] sm:$0xf] %v169
  %178 = vst [vmem:[#allocation2 + $0x10] sm:$0xf] %v170
  %179 = vst [vmem:[#allocation2 + $0x14] sm:$0xf] %v171
  %180 = vst [vmem:[#allocation2 + $0x18] sm:$0xf] %v172
  %181 = vst [vmem:[#allocation2 + $0x1c] sm:$0xf] %v173
  %s182 = scalar_lea.vmem %s2, 64
  %v183 = vld [vmem:[%s182] sm:$0xf]
  %v184 = vld [vmem:[%s182 + $0x4] sm:$0xf]
  %v185 = vld [vmem:[%s182 + $0x8] sm:$0xf]
  %v186 = vld [vmem:[%s182 + $0xc] sm:$0xf]
  %v187 = vld [vmem:[%s182 + $0x10] sm:$0xf]
  %v188 = vld [vmem:[%s182 + $0x14] sm:$0xf]
  %v189 = vld [vmem:[%s182 + $0x18] sm:$0xf]
  %v190 = vld [vmem:[%s182 + $0x1c] sm:$0xf]
  %v191 = vld [vmem:[%s182 + $0x20] sm:$0xf]
  %v192 = vld [vmem:[%s182 + $0x24] sm:$0xf]
  %v193 = vld [vmem:[%s182 + $0x28] sm:$0xf]
  %v194 = vld [vmem:[%s182 + $0x2c] sm:$0xf]
  %v195 = vld [vmem:[%s182 + $0x30] sm:$0xf]
  %v196 = vld [vmem:[%s182 + $0x34] sm:$0xf]
  %v197 = vld [vmem:[%s182 + $0x38] sm:$0xf]
  %v198 = vld [vmem:[%s182 + $0x3c] sm:$0xf]
  %v215 = vunpack.c.l.b16 %v183
  %v216 = vunpack.c.l.b16 %v184
  %v217 = vunpack.c.l.b16 %v185
  %v218 = vunpack.c.l.b16 %v186
  %v219 = vunpack.c.l.b16 %v187
  %v220 = vunpack.c.l.b16 %v188
  %v221 = vunpack.c.l.b16 %v189
  %v222 = vunpack.c.l.b16 %v190
  %v223 = vunpack.c.l.b16 %v191
  %v224 = vunpack.c.l.b16 %v192
  %v225 = vunpack.c.l.b16 %v193
  %v226 = vunpack.c.l.b16 %v194
  %v227 = vunpack.c.l.b16 %v195
  %v228 = vunpack.c.l.b16 %v196
  %v229 = vunpack.c.l.b16 %v197
  %v230 = vunpack.c.l.b16 %v198
  %v231 = vpack.c.b16 %v216, %v215
  %v232 = vpack.c.b16 %v218, %v217
  %v233 = vpack.c.b16 %v220, %v219
  %v234 = vpack.c.b16 %v222, %v221
  %v235 = vpack.c.b16 %v224, %v223
  %v236 = vpack.c.b16 %v226, %v225
  %v237 = vpack.c.b16 %v228, %v227
  %v238 = vpack.c.b16 %v230, %v229
  %247 = vmatpush.bf16.msra.mxu0 %v238
  %248 = vmatpush.bf16.msra.mxu0 %v237
  %249 = vmatpush.bf16.msra.mxu0 %v236
  %250 = vmatpush.bf16.msra.mxu0 %v235
  %251 = vmatpush.bf16.msra.mxu0 %v234
  %252 = vmatpush.bf16.msra.mxu0 %v233
  %253 = vmatpush.bf16.msra.mxu0 %v232
  %254 = vmatpush.bf16.msra.mxu0 %v231
  %255 = vmatmul.bf16.gmra.mxu0 %v69
  %v256 = vpop.f32.mrf.mxu0
  %v257 = vadd.f32 0.0, %v256
  %v258 = vpop.f32.mrf.mxu0
  %v259 = vadd.f32 0.0, %v258
  %260 = vmatmul.bf16.gmra.mxu0 %v70
  %v261 = vpop.f32.mrf.mxu0
  %v262 = vadd.f32 0.0, %v261
  %v263 = vpop.f32.mrf.mxu0
  %v264 = vadd.f32 0.0, %v263
  %265 = vmatmul.bf16.gmra.mxu0 %v71
  %v266 = vpop.f32.mrf.mxu0
  %v267 = vadd.f32 0.0, %v266
  %v268 = vpop.f32.mrf.mxu0
  %v269 = vadd.f32 0.0, %v268
  %270 = vmatmul.bf16.gmra.mxu0 %v72
  %v271 = vpop.f32.mrf.mxu0
  %v272 = vadd.f32 0.0, %v271
  %v273 = vpop.f32.mrf.mxu0
  %v274 = vadd.f32 0.0, %v273
  %275 = vdwg.mxu0
  %v276 = vpack.c.bf16 %v257, %v257
  %v277 = vpack.c.bf16 %v259, %v259
  %v278 = vpack.c.bf16 %v262, %v262
  %v279 = vpack.c.bf16 %v264, %v264
  %v280 = vpack.c.bf16 %v267, %v267
  %v281 = vpack.c.bf16 %v269, %v269
  %v282 = vpack.c.bf16 %v272, %v272
  %v283 = vpack.c.bf16 %v274, %v274
  %284 = vst [vmem:[#allocation2 + $0x20] sm:$0xf] %v276
  %285 = vst [vmem:[#allocation2 + $0x24] sm:$0xf] %v277
  %286 = vst [vmem:[#allocation2 + $0x28] sm:$0xf] %v278
  %287 = vst [vmem:[#allocation2 + $0x2c] sm:$0xf] %v279
  %288 = vst [vmem:[#allocation2 + $0x30] sm:$0xf] %v280
  %289 = vst [vmem:[#allocation2 + $0x34] sm:$0xf] %v281
  %290 = vst [vmem:[#allocation2 + $0x38] sm:$0xf] %v282
  %291 = vst [vmem:[#allocation2 + $0x3c] sm:$0xf] %v283
  %s292 = scalar_lea.vmem %s2, 128
  %v293 = vld [vmem:[%s292] sm:$0xf]
  %v294 = vld [vmem:[%s292 + $0x4] sm:$0xf]
  %v295 = vld [vmem:[%s292 + $0x8] sm:$0xf]
  %v296 = vld [vmem:[%s292 + $0xc] sm:$0xf]
  %v297 = vld [vmem:[%s292 + $0x10] sm:$0xf]
  %v298 = vld [vmem:[%s292 + $0x14] sm:$0xf]
  %v299 = vld [vmem:[%s292 + $0x18] sm:$0xf]
  %v300 = vld [vmem:[%s292 + $0x1c] sm:$0xf]
  %v301 = vld [vmem:[%s292 + $0x20] sm:$0xf]
  %v302 = vld [vmem:[%s292 + $0x24] sm:$0xf]
  %v303 = vld [vmem:[%s292 + $0x28] sm:$0xf]
  %v304 = vld [vmem:[%s292 + $0x2c] sm:$0xf]
  %v305 = vld [vmem:[%s292 + $0x30] sm:$0xf]
  %v306 = vld [vmem:[%s292 + $0x34] sm:$0xf]
  %v307 = vld [vmem:[%s292 + $0x38] sm:$0xf]
  %v308 = vld [vmem:[%s292 + $0x3c] sm:$0xf]
  %v325 = vunpack.c.l.b16 %v293
  %v326 = vunpack.c.l.b16 %v294
  %v327 = vunpack.c.l.b16 %v295
  %v328 = vunpack.c.l.b16 %v296
  %v329 = vunpack.c.l.b16 %v297
  %v330 = vunpack.c.l.b16 %v298
  %v331 = vunpack.c.l.b16 %v299
  %v332 = vunpack.c.l.b16 %v300
  %v333 = vunpack.c.l.b16 %v301
  %v334 = vunpack.c.l.b16 %v302
  %v335 = vunpack.c.l.b16 %v303
  %v336 = vunpack.c.l.b16 %v304
  %v337 = vunpack.c.l.b16 %v305
  %v338 = vunpack.c.l.b16 %v306
  %v339 = vunpack.c.l.b16 %v307
  %v340 = vunpack.c.l.b16 %v308
  %v341 = vpack.c.b16 %v326, %v325
  %v342 = vpack.c.b16 %v328, %v327
  %v343 = vpack.c.b16 %v330, %v329
  %v344 = vpack.c.b16 %v332, %v331
  %v345 = vpack.c.b16 %v334, %v333
  %v346 = vpack.c.b16 %v336, %v335
  %v347 = vpack.c.b16 %v338, %v337
  %v348 = vpack.c.b16 %v340, %v339
  %357 = vmatpush.bf16.msra.mxu0 %v348
  %358 = vmatpush.bf16.msra.mxu0 %v347
  %359 = vmatpush.bf16.msra.mxu0 %v346
  %360 = vmatpush.bf16.msra.mxu0 %v345
  %361 = vmatpush.bf16.msra.mxu0 %v344
  %362 = vmatpush.bf16.msra.mxu0 %v343
  %363 = vmatpush.bf16.msra.mxu0 %v342
  %364 = vmatpush.bf16.msra.mxu0 %v341
  %365 = vmatmul.bf16.gmra.mxu0 %v69
  %v366 = vpop.f32.mrf.mxu0
  %v367 = vadd.f32 0.0, %v366
  %v368 = vpop.f32.mrf.mxu0
  %v369 = vadd.f32 0.0, %v368
  %370 = vmatmul.bf16.gmra.mxu0 %v70
  %v371 = vpop.f32.mrf.mxu0
  %v372 = vadd.f32 0.0, %v371
  %v373 = vpop.f32.mrf.mxu0
  %v374 = vadd.f32 0.0, %v373
  %375 = vmatmul.bf16.gmra.mxu0 %v71
  %v376 = vpop.f32.mrf.mxu0
  %v377 = vadd.f32 0.0, %v376
  %v378 = vpop.f32.mrf.mxu0
  %v379 = vadd.f32 0.0, %v378
  %380 = vmatmul.bf16.gmra.mxu0 %v72
  %v381 = vpop.f32.mrf.mxu0
  %v382 = vadd.f32 0.0, %v381
  %v383 = vpop.f32.mrf.mxu0
  %v384 = vadd.f32 0.0, %v383
  %385 = vdwg.mxu0
  %v386 = vpack.c.bf16 %v367, %v367
  %v387 = vpack.c.bf16 %v369, %v369
  %v388 = vpack.c.bf16 %v372, %v372
  %v389 = vpack.c.bf16 %v374, %v374
  %v390 = vpack.c.bf16 %v377, %v377
  %v391 = vpack.c.bf16 %v379, %v379
  %v392 = vpack.c.bf16 %v382, %v382
  %v393 = vpack.c.bf16 %v384, %v384
  %394 = vst [vmem:[#allocation2 + $0x40] sm:$0xf] %v386
  %395 = vst [vmem:[#allocation2 + $0x44] sm:$0xf] %v387
  %396 = vst [vmem:[#allocation2 + $0x48] sm:$0xf] %v388
  %397 = vst [vmem:[#allocation2 + $0x4c] sm:$0xf] %v389
  %398 = vst [vmem:[#allocation2 + $0x50] sm:$0xf] %v390
  %399 = vst [vmem:[#allocation2 + $0x54] sm:$0xf] %v391
  %400 = vst [vmem:[#allocation2 + $0x58] sm:$0xf] %v392
  %401 = vst [vmem:[#allocation2 + $0x5c] sm:$0xf] %v393
  %s402 = scalar_lea.vmem %s2, 192
  %v403 = vld [vmem:[%s402] sm:$0xf]
  %v404 = vld [vmem:[%s402 + $0x4] sm:$0xf]
  %v405 = vld [vmem:[%s402 + $0x8] sm:$0xf]
  %v406 = vld [vmem:[%s402 + $0xc] sm:$0xf]
  %v407 = vld [vmem:[%s402 + $0x10] sm:$0xf]
  %v408 = vld [vmem:[%s402 + $0x14] sm:$0xf]
  %v409 = vld [vmem:[%s402 + $0x18] sm:$0xf]
  %v410 = vld [vmem:[%s402 + $0x1c] sm:$0xf]
  %v411 = vld [vmem:[%s402 + $0x20] sm:$0xf]
  %v412 = vld [vmem:[%s402 + $0x24] sm:$0xf]
  %v413 = vld [vmem:[%s402 + $0x28] sm:$0xf]
  %v414 = vld [vmem:[%s402 + $0x2c] sm:$0xf]
  %v415 = vld [vmem:[%s402 + $0x30] sm:$0xf]
  %v416 = vld [vmem:[%s402 + $0x34] sm:$0xf]
  %v417 = vld [vmem:[%s402 + $0x38] sm:$0xf]
  %v418 = vld [vmem:[%s402 + $0x3c] sm:$0xf]
  %v435 = vunpack.c.l.b16 %v403
  %v436 = vunpack.c.l.b16 %v404
  %v437 = vunpack.c.l.b16 %v405
  %v438 = vunpack.c.l.b16 %v406
  %v439 = vunpack.c.l.b16 %v407
  %v440 = vunpack.c.l.b16 %v408
  %v441 = vunpack.c.l.b16 %v409
  %v442 = vunpack.c.l.b16 %v410
  %v443 = vunpack.c.l.b16 %v411
  %v444 = vunpack.c.l.b16 %v412
  %v445 = vunpack.c.l.b16 %v413
  %v446 = vunpack.c.l.b16 %v414
  %v447 = vunpack.c.l.b16 %v415
  %v448 = vunpack.c.l.b16 %v416
  %v449 = vunpack.c.l.b16 %v417
  %v450 = vunpack.c.l.b16 %v418
  %v451 = vpack.c.b16 %v436, %v435
  %v452 = vpack.c.b16 %v438, %v437
  %v453 = vpack.c.b16 %v440, %v439
  %v454 = vpack.c.b16 %v442, %v441
  %v455 = vpack.c.b16 %v444, %v443
  %v456 = vpack.c.b16 %v446, %v445
  %v457 = vpack.c.b16 %v448, %v447
  %v458 = vpack.c.b16 %v450, %v449
  %467 = vmatpush.bf16.msra.mxu0 %v458
  %468 = vmatpush.bf16.msra.mxu0 %v457
  %469 = vmatpush.bf16.msra.mxu0 %v456
  %470 = vmatpush.bf16.msra.mxu0 %v455
  %471 = vmatpush.bf16.msra.mxu0 %v454
  %472 = vmatpush.bf16.msra.mxu0 %v453
  %473 = vmatpush.bf16.msra.mxu0 %v452
  %474 = vmatpush.bf16.msra.mxu0 %v451
  %475 = vmatmul.bf16.gmra.mxu0 %v69
  %v476 = vpop.f32.mrf.mxu0
  %v477 = vadd.f32 0.0, %v476
  %v478 = vpop.f32.mrf.mxu0
  %v479 = vadd.f32 0.0, %v478
  %480 = vmatmul.bf16.gmra.mxu0 %v70
  %v481 = vpop.f32.mrf.mxu0
  %v482 = vadd.f32 0.0, %v481
  %v483 = vpop.f32.mrf.mxu0
  %v484 = vadd.f32 0.0, %v483
  %485 = vmatmul.bf16.gmra.mxu0 %v71
  %v486 = vpop.f32.mrf.mxu0
  %v487 = vadd.f32 0.0, %v486
  %v488 = vpop.f32.mrf.mxu0
  %v489 = vadd.f32 0.0, %v488
  %490 = vmatmul.bf16.gmra.mxu0 %v72
  %v491 = vpop.f32.mrf.mxu0
  %v492 = vadd.f32 0.0, %v491
  %v493 = vpop.f32.mrf.mxu0
  %v494 = vadd.f32 0.0, %v493
  %495 = vdwg.mxu0
  %v496 = vpack.c.bf16 %v477, %v477
  %v497 = vpack.c.bf16 %v479, %v479
  %v498 = vpack.c.bf16 %v482, %v482
  %v499 = vpack.c.bf16 %v484, %v484
  %v500 = vpack.c.bf16 %v487, %v487
  %v501 = vpack.c.bf16 %v489, %v489
  %v502 = vpack.c.bf16 %v492, %v492
  %v503 = vpack.c.bf16 %v494, %v494
  %504 = vst [vmem:[#allocation2 + $0x60] sm:$0xf] %v496
  %505 = vst [vmem:[#allocation2 + $0x64] sm:$0xf] %v497
  %506 = vst [vmem:[#allocation2 + $0x68] sm:$0xf] %v498
  %507 = vst [vmem:[#allocation2 + $0x6c] sm:$0xf] %v499
  %508 = vst [vmem:[#allocation2 + $0x70] sm:$0xf] %v500
  %509 = vst [vmem:[#allocation2 + $0x74] sm:$0xf] %v501
  %510 = vst [vmem:[#allocation2 + $0x78] sm:$0xf] %v502
  %511 = vst [vmem:[#allocation2 + $0x7c] sm:$0xf] %v503
  %s512 = scalar_lea.vmem %s2, 256
  %v513 = vld [vmem:[%s512] sm:$0xf]
  %v514 = vld [vmem:[%s512 + $0x4] sm:$0xf]
  %v515 = vld [vmem:[%s512 + $0x8] sm:$0xf]
  %v516 = vld [vmem:[%s512 + $0xc] sm:$0xf]
  %v517 = vld [vmem:[%s512 + $0x10] sm:$0xf]
  %v518 = vld [vmem:[%s512 + $0x14] sm:$0xf]
  %v519 = vld [vmem:[%s512 + $0x18] sm:$0xf]
  %v520 = vld [vmem:[%s512 + $0x1c] sm:$0xf]
  %v521 = vld [vmem:[%s512 + $0x20] sm:$0xf]
  %v522 = vld [vmem:[%s512 + $0x24] sm:$0xf]
  %v523 = vld [vmem:[%s512 + $0x28] sm:$0xf]
  %v524 = vld [vmem:[%s512 + $0x2c] sm:$0xf]
  %v525 = vld [vmem:[%s512 + $0x30] sm:$0xf]
  %v526 = vld [vmem:[%s512 + $0x34] sm:$0xf]
  %v527 = vld [vmem:[%s512 + $0x38] sm:$0xf]
  %v528 = vld [vmem:[%s512 + $0x3c] sm:$0xf]
  %v545 = vunpack.c.l.b16 %v513
  %v546 = vunpack.c.l.b16 %v514
  %v547 = vunpack.c.l.b16 %v515
  %v548 = vunpack.c.l.b16 %v516
  %v549 = vunpack.c.l.b16 %v517
  %v550 = vunpack.c.l.b16 %v518
  %v551 = vunpack.c.l.b16 %v519
  %v552 = vunpack.c.l.b16 %v520
  %v553 = vunpack.c.l.b16 %v521
  %v554 = vunpack.c.l.b16 %v522
  %v555 = vunpack.c.l.b16 %v523
  %v556 = vunpack.c.l.b16 %v524
  %v557 = vunpack.c.l.b16 %v525
  %v558 = vunpack.c.l.b16 %v526
  %v559 = vunpack.c.l.b16 %v527
  %v560 = vunpack.c.l.b16 %v528
  %v561 = vpack.c.b16 %v546, %v545
  %v562 = vpack.c.b16 %v548, %v547
  %v563 = vpack.c.b16 %v550, %v549
  %v564 = vpack.c.b16 %v552, %v551
  %v565 = vpack.c.b16 %v554, %v553
  %v566 = vpack.c.b16 %v556, %v555
  %v567 = vpack.c.b16 %v558, %v557
  %v568 = vpack.c.b16 %v560, %v559
  %577 = vmatpush.bf16.msra.mxu0 %v568
  %578 = vmatpush.bf16.msra.mxu0 %v567
  %579 = vmatpush.bf16.msra.mxu0 %v566
  %580 = vmatpush.bf16.msra.mxu0 %v565
  %581 = vmatpush.bf16.msra.mxu0 %v564
  %582 = vmatpush.bf16.msra.mxu0 %v563
  %583 = vmatpush.bf16.msra.mxu0 %v562
  %584 = vmatpush.bf16.msra.mxu0 %v561
  %585 = vmatmul.bf16.gmra.mxu0 %v69
  %v586 = vpop.f32.mrf.mxu0
  %v587 = vadd.f32 0.0, %v586
  %v588 = vpop.f32.mrf.mxu0
  %v589 = vadd.f32 0.0, %v588
  %590 = vmatmul.bf16.gmra.mxu0 %v70
  %v591 = vpop.f32.mrf.mxu0
  %v592 = vadd.f32 0.0, %v591
  %v593 = vpop.f32.mrf.mxu0
  %v594 = vadd.f32 0.0, %v593
  %595 = vmatmul.bf16.gmra.mxu0 %v71
  %v596 = vpop.f32.mrf.mxu0
  %v597 = vadd.f32 0.0, %v596
  %v598 = vpop.f32.mrf.mxu0
  %v599 = vadd.f32 0.0, %v598
  %600 = vmatmul.bf16.gmra.mxu0 %v72
  %v601 = vpop.f32.mrf.mxu0
  %v602 = vadd.f32 0.0, %v601
  %v603 = vpop.f32.mrf.mxu0
  %v604 = vadd.f32 0.0, %v603
  %605 = vdwg.mxu0
  %v606 = vpack.c.bf16 %v587, %v587
  %v607 = vpack.c.bf16 %v589, %v589
  %v608 = vpack.c.bf16 %v592, %v592
  %v609 = vpack.c.bf16 %v594, %v594
  %v610 = vpack.c.bf16 %v597, %v597
  %v611 = vpack.c.bf16 %v599, %v599
  %v612 = vpack.c.bf16 %v602, %v602
  %v613 = vpack.c.bf16 %v604, %v604
  %614 = vst [vmem:[#allocation2 + $0x80] sm:$0xf] %v606
  %615 = vst [vmem:[#allocation2 + $0x84] sm:$0xf] %v607
  %616 = vst [vmem:[#allocation2 + $0x88] sm:$0xf] %v608
  %617 = vst [vmem:[#allocation2 + $0x8c] sm:$0xf] %v609
  %618 = vst [vmem:[#allocation2 + $0x90] sm:$0xf] %v610
  %619 = vst [vmem:[#allocation2 + $0x94] sm:$0xf] %v611
  %620 = vst [vmem:[#allocation2 + $0x98] sm:$0xf] %v612
  %621 = vst [vmem:[#allocation2 + $0x9c] sm:$0xf] %v613
  %s622 = scalar_lea.vmem %s2, 320
  %v623 = vld [vmem:[%s622] sm:$0xf]
  %v624 = vld [vmem:[%s622 + $0x4] sm:$0xf]
  %v625 = vld [vmem:[%s622 + $0x8] sm:$0xf]
  %v626 = vld [vmem:[%s622 + $0xc] sm:$0xf]
  %v627 = vld [vmem:[%s622 + $0x10] sm:$0xf]
  %v628 = vld [vmem:[%s622 + $0x14] sm:$0xf]
  %v629 = vld [vmem:[%s622 + $0x18] sm:$0xf]
  %v630 = vld [vmem:[%s622 + $0x1c] sm:$0xf]
  %v631 = vld [vmem:[%s622 + $0x20] sm:$0xf]
  %v632 = vld [vmem:[%s622 + $0x24] sm:$0xf]
  %v633 = vld [vmem:[%s622 + $0x28] sm:$0xf]
  %v634 = vld [vmem:[%s622 + $0x2c] sm:$0xf]
  %v635 = vld [vmem:[%s622 + $0x30] sm:$0xf]
  %v636 = vld [vmem:[%s622 + $0x34] sm:$0xf]
  %v637 = vld [vmem:[%s622 + $0x38] sm:$0xf]
  %v638 = vld [vmem:[%s622 + $0x3c] sm:$0xf]
  %v655 = vunpack.c.l.b16 %v623
  %v656 = vunpack.c.l.b16 %v624
  %v657 = vunpack.c.l.b16 %v625
  %v658 = vunpack.c.l.b16 %v626
  %v659 = vunpack.c.l.b16 %v627
  %v660 = vunpack.c.l.b16 %v628
  %v661 = vunpack.c.l.b16 %v629
  %v662 = vunpack.c.l.b16 %v630
  %v663 = vunpack.c.l.b16 %v631
  %v664 = vunpack.c.l.b16 %v632
  %v665 = vunpack.c.l.b16 %v633
  %v666 = vunpack.c.l.b16 %v634
  %v667 = vunpack.c.l.b16 %v635
  %v668 = vunpack.c.l.b16 %v636
  %v669 = vunpack.c.l.b16 %v637
  %v670 = vunpack.c.l.b16 %v638
  %v671 = vpack.c.b16 %v656, %v655
  %v672 = vpack.c.b16 %v658, %v657
  %v673 = vpack.c.b16 %v660, %v659
  %v674 = vpack.c.b16 %v662, %v661
  %v675 = vpack.c.b16 %v664, %v663
  %v676 = vpack.c.b16 %v666, %v665
  %v677 = vpack.c.b16 %v668, %v667
  %v678 = vpack.c.b16 %v670, %v669
  %687 = vmatpush.bf16.msra.mxu0 %v678
  %688 = vmatpush.bf16.msra.mxu0 %v677
  %689 = vmatpush.bf16.msra.mxu0 %v676
  %690 = vmatpush.bf16.msra.mxu0 %v675
  %691 = vmatpush.bf16.msra.mxu0 %v674
  %692 = vmatpush.bf16.msra.mxu0 %v673
  %693 = vmatpush.bf16.msra.mxu0 %v672
  %694 = vmatpush.bf16.msra.mxu0 %v671
  %695 = vmatmul.bf16.gmra.mxu0 %v69
  %v696 = vpop.f32.mrf.mxu0
  %v697 = vadd.f32 0.0, %v696
  %v698 = vpop.f32.mrf.mxu0
  %v699 = vadd.f32 0.0, %v698
  %700 = vmatmul.bf16.gmra.mxu0 %v70
  %v701 = vpop.f32.mrf.mxu0
  %v702 = vadd.f32 0.0, %v701
  %v703 = vpop.f32.mrf.mxu0
  %v704 = vadd.f32 0.0, %v703
  %705 = vmatmul.bf16.gmra.mxu0 %v71
  %v706 = vpop.f32.mrf.mxu0
  %v707 = vadd.f32 0.0, %v706
  %v708 = vpop.f32.mrf.mxu0
  %v709 = vadd.f32 0.0, %v708
  %710 = vmatmul.bf16.gmra.mxu0 %v72
  %v711 = vpop.f32.mrf.mxu0
  %v712 = vadd.f32 0.0, %v711
  %v713 = vpop.f32.mrf.mxu0
  %v714 = vadd.f32 0.0, %v713
  %715 = vdwg.mxu0
  %v716 = vpack.c.bf16 %v697, %v697
  %v717 = vpack.c.bf16 %v699, %v699
  %v718 = vpack.c.bf16 %v702, %v702
  %v719 = vpack.c.bf16 %v704, %v704
  %v720 = vpack.c.bf16 %v707, %v707
  %v721 = vpack.c.bf16 %v709, %v709
  %v722 = vpack.c.bf16 %v712, %v712
  %v723 = vpack.c.bf16 %v714, %v714
  %724 = vst [vmem:[#allocation2 + $0xa0] sm:$0xf] %v716
  %725 = vst [vmem:[#allocation2 + $0xa4] sm:$0xf] %v717
  %726 = vst [vmem:[#allocation2 + $0xa8] sm:$0xf] %v718
  %727 = vst [vmem:[#allocation2 + $0xac] sm:$0xf] %v719
  %728 = vst [vmem:[#allocation2 + $0xb0] sm:$0xf] %v720
  %729 = vst [vmem:[#allocation2 + $0xb4] sm:$0xf] %v721
  %730 = vst [vmem:[#allocation2 + $0xb8] sm:$0xf] %v722
  %731 = vst [vmem:[#allocation2 + $0xbc] sm:$0xf] %v723
  %s732 = scalar_lea.vmem %s2, 384
  %v733 = vld [vmem:[%s732] sm:$0xf]
  %v734 = vld [vmem:[%s732 + $0x4] sm:$0xf]
  %v735 = vld [vmem:[%s732 + $0x8] sm:$0xf]
  %v736 = vld [vmem:[%s732 + $0xc] sm:$0xf]
  %v737 = vld [vmem:[%s732 + $0x10] sm:$0xf]
  %v738 = vld [vmem:[%s732 + $0x14] sm:$0xf]
  %v739 = vld [vmem:[%s732 + $0x18] sm:$0xf]
  %v740 = vld [vmem:[%s732 + $0x1c] sm:$0xf]
  %v741 = vld [vmem:[%s732 + $0x20] sm:$0xf]
  %v742 = vld [vmem:[%s732 + $0x24] sm:$0xf]
  %v743 = vld [vmem:[%s732 + $0x28] sm:$0xf]
  %v744 = vld [vmem:[%s732 + $0x2c] sm:$0xf]
  %v745 = vld [vmem:[%s732 + $0x30] sm:$0xf]
  %v746 = vld [vmem:[%s732 + $0x34] sm:$0xf]
  %v747 = vld [vmem:[%s732 + $0x38] sm:$0xf]
  %v748 = vld [vmem:[%s732 + $0x3c] sm:$0xf]
  %v765 = vunpack.c.l.b16 %v733
  %v766 = vunpack.c.l.b16 %v734
  %v767 = vunpack.c.l.b16 %v735
  %v768 = vunpack.c.l.b16 %v736
  %v769 = vunpack.c.l.b16 %v737
  %v770 = vunpack.c.l.b16 %v738
  %v771 = vunpack.c.l.b16 %v739
  %v772 = vunpack.c.l.b16 %v740
  %v773 = vunpack.c.l.b16 %v741
  %v774 = vunpack.c.l.b16 %v742
  %v775 = vunpack.c.l.b16 %v743
  %v776 = vunpack.c.l.b16 %v744
  %v777 = vunpack.c.l.b16 %v745
  %v778 = vunpack.c.l.b16 %v746
  %v779 = vunpack.c.l.b16 %v747
  %v780 = vunpack.c.l.b16 %v748
  %v781 = vpack.c.b16 %v766, %v765
  %v782 = vpack.c.b16 %v768, %v767
  %v783 = vpack.c.b16 %v770, %v769
  %v784 = vpack.c.b16 %v772, %v771
  %v785 = vpack.c.b16 %v774, %v773
  %v786 = vpack.c.b16 %v776, %v775
  %v787 = vpack.c.b16 %v778, %v777
  %v788 = vpack.c.b16 %v780, %v779
  %797 = vmatpush.bf16.msra.mxu0 %v788
  %798 = vmatpush.bf16.msra.mxu0 %v787
  %799 = vmatpush.bf16.msra.mxu0 %v786
  %800 = vmatpush.bf16.msra.mxu0 %v785
  %801 = vmatpush.bf16.msra.mxu0 %v784
  %802 = vmatpush.bf16.msra.mxu0 %v783
  %803 = vmatpush.bf16.msra.mxu0 %v782
  %804 = vmatpush.bf16.msra.mxu0 %v781
  %805 = vmatmul.bf16.gmra.mxu0 %v69
  %v806 = vpop.f32.mrf.mxu0
  %v807 = vadd.f32 0.0, %v806
  %v808 = vpop.f32.mrf.mxu0
  %v809 = vadd.f32 0.0, %v808
  %810 = vmatmul.bf16.gmra.mxu0 %v70
  %v811 = vpop.f32.mrf.mxu0
  %v812 = vadd.f32 0.0, %v811
  %v813 = vpop.f32.mrf.mxu0
  %v814 = vadd.f32 0.0, %v813
  %815 = vmatmul.bf16.gmra.mxu0 %v71
  %v816 = vpop.f32.mrf.mxu0
  %v817 = vadd.f32 0.0, %v816
  %v818 = vpop.f32.mrf.mxu0
  %v819 = vadd.f32 0.0, %v818
  %820 = vmatmul.bf16.gmra.mxu0 %v72
  %v821 = vpop.f32.mrf.mxu0
  %v822 = vadd.f32 0.0, %v821
  %v823 = vpop.f32.mrf.mxu0
  %v824 = vadd.f32 0.0, %v823
  %825 = vdwg.mxu0
  %v826 = vpack.c.bf16 %v807, %v807
  %v827 = vpack.c.bf16 %v809, %v809
  %v828 = vpack.c.bf16 %v812, %v812
  %v829 = vpack.c.bf16 %v814, %v814
  %v830 = vpack.c.bf16 %v817, %v817
  %v831 = vpack.c.bf16 %v819, %v819
  %v832 = vpack.c.bf16 %v822, %v822
  %v833 = vpack.c.bf16 %v824, %v824
  %834 = vst [vmem:[#allocation2 + $0xc0] sm:$0xf] %v826
  %835 = vst [vmem:[#allocation2 + $0xc4] sm:$0xf] %v827
  %836 = vst [vmem:[#allocation2 + $0xc8] sm:$0xf] %v828
  %837 = vst [vmem:[#allocation2 + $0xcc] sm:$0xf] %v829
  %838 = vst [vmem:[#allocation2 + $0xd0] sm:$0xf] %v830
  %839 = vst [vmem:[#allocation2 + $0xd4] sm:$0xf] %v831
  %840 = vst [vmem:[#allocation2 + $0xd8] sm:$0xf] %v832
  %841 = vst [vmem:[#allocation2 + $0xdc] sm:$0xf] %v833
  %s842 = scalar_lea.vmem %s2, 448
  %v843 = vld [vmem:[%s842] sm:$0xf]
  %v844 = vld [vmem:[%s842 + $0x4] sm:$0xf]
  %v845 = vld [vmem:[%s842 + $0x8] sm:$0xf]
  %v846 = vld [vmem:[%s842 + $0xc] sm:$0xf]
  %v847 = vld [vmem:[%s842 + $0x10] sm:$0xf]
  %v848 = vld [vmem:[%s842 + $0x14] sm:$0xf]
  %v849 = vld [vmem:[%s842 + $0x18] sm:$0xf]
  %v850 = vld [vmem:[%s842 + $0x1c] sm:$0xf]
  %v851 = vld [vmem:[%s842 + $0x20] sm:$0xf]
  %v852 = vld [vmem:[%s842 + $0x24] sm:$0xf]
  %v853 = vld [vmem:[%s842 + $0x28] sm:$0xf]
  %v854 = vld [vmem:[%s842 + $0x2c] sm:$0xf]
  %v855 = vld [vmem:[%s842 + $0x30] sm:$0xf]
  %v856 = vld [vmem:[%s842 + $0x34] sm:$0xf]
  %v857 = vld [vmem:[%s842 + $0x38] sm:$0xf]
  %v858 = vld [vmem:[%s842 + $0x3c] sm:$0xf]
  %v875 = vunpack.c.l.b16 %v843
  %v876 = vunpack.c.l.b16 %v844
  %v877 = vunpack.c.l.b16 %v845
  %v878 = vunpack.c.l.b16 %v846
  %v879 = vunpack.c.l.b16 %v847
  %v880 = vunpack.c.l.b16 %v848
  %v881 = vunpack.c.l.b16 %v849
  %v882 = vunpack.c.l.b16 %v850
  %v883 = vunpack.c.l.b16 %v851
  %v884 = vunpack.c.l.b16 %v852
  %v885 = vunpack.c.l.b16 %v853
  %v886 = vunpack.c.l.b16 %v854
  %v887 = vunpack.c.l.b16 %v855
  %v888 = vunpack.c.l.b16 %v856
  %v889 = vunpack.c.l.b16 %v857
  %v890 = vunpack.c.l.b16 %v858
  %v891 = vpack.c.b16 %v876, %v875
  %v892 = vpack.c.b16 %v878, %v877
  %v893 = vpack.c.b16 %v880, %v879
  %v894 = vpack.c.b16 %v882, %v881
  %v895 = vpack.c.b16 %v884, %v883
  %v896 = vpack.c.b16 %v886, %v885
  %v897 = vpack.c.b16 %v888, %v887
  %v898 = vpack.c.b16 %v890, %v889
  %907 = vmatpush.bf16.msra.mxu0 %v898
  %908 = vmatpush.bf16.msra.mxu0 %v897
  %909 = vmatpush.bf16.msra.mxu0 %v896
  %910 = vmatpush.bf16.msra.mxu0 %v895
  %911 = vmatpush.bf16.msra.mxu0 %v894
  %912 = vmatpush.bf16.msra.mxu0 %v893
  %913 = vmatpush.bf16.msra.mxu0 %v892
  %914 = vmatpush.bf16.msra.mxu0 %v891
  %915 = vmatmul.bf16.gmra.mxu0 %v69
  %v916 = vpop.f32.mrf.mxu0
  %v917 = vadd.f32 0.0, %v916
  %v918 = vpop.f32.mrf.mxu0
  %v919 = vadd.f32 0.0, %v918
  %920 = vmatmul.bf16.gmra.mxu0 %v70
  %v921 = vpop.f32.mrf.mxu0
  %v922 = vadd.f32 0.0, %v921
  %v923 = vpop.f32.mrf.mxu0
  %v924 = vadd.f32 0.0, %v923
  %925 = vmatmul.bf16.gmra.mxu0 %v71
  %v926 = vpop.f32.mrf.mxu0
  %v927 = vadd.f32 0.0, %v926
  %v928 = vpop.f32.mrf.mxu0
  %v929 = vadd.f32 0.0, %v928
  %930 = vmatmul.bf16.gmra.mxu0 %v72
  %v931 = vpop.f32.mrf.mxu0
  %v932 = vadd.f32 0.0, %v931
  %v933 = vpop.f32.mrf.mxu0
  %v934 = vadd.f32 0.0, %v933
  %935 = vdwg.mxu0
  %v936 = vpack.c.bf16 %v917, %v917
  %v937 = vpack.c.bf16 %v919, %v919
  %v938 = vpack.c.bf16 %v922, %v922
  %v939 = vpack.c.bf16 %v924, %v924
  %v940 = vpack.c.bf16 %v927, %v927
  %v941 = vpack.c.bf16 %v929, %v929
  %v942 = vpack.c.bf16 %v932, %v932
  %v943 = vpack.c.bf16 %v934, %v934
  %944 = vst [vmem:[#allocation2 + $0xe0] sm:$0xf] %v936
  %945 = vst [vmem:[#allocation2 + $0xe4] sm:$0xf] %v937
  %946 = vst [vmem:[#allocation2 + $0xe8] sm:$0xf] %v938
  %947 = vst [vmem:[#allocation2 + $0xec] sm:$0xf] %v939
  %948 = vst [vmem:[#allocation2 + $0xf0] sm:$0xf] %v940
  %949 = vst [vmem:[#allocation2 + $0xf4] sm:$0xf] %v941
  %950 = vst [vmem:[#allocation2 + $0xf8] sm:$0xf] %v942
  %951 = vst [vmem:[#allocation2 + $0xfc] sm:$0xf] %v943
  %v952 = vld [vmem:[#allocation2] sm:$0xf]
  %v953 = vld [vmem:[#allocation2 + $0x4] sm:$0xf]
  %v954 = vld [vmem:[#allocation2 + $0x8] sm:$0xf]
  %v955 = vld [vmem:[#allocation2 + $0xc] sm:$0xf]
  %v956 = vld [vmem:[#allocation2 + $0x10] sm:$0xf]
  %v957 = vld [vmem:[#allocation2 + $0x14] sm:$0xf]
  %v958 = vld [vmem:[#allocation2 + $0x18] sm:$0xf]
  %v959 = vld [vmem:[#allocation2 + $0x1c] sm:$0xf]
  %v960 = vld [vmem:[#allocation2 + $0x20] sm:$0xf]
  %v961 = vld [vmem:[#allocation2 + $0x24] sm:$0xf]
  %v962 = vld [vmem:[#allocation2 + $0x28] sm:$0xf]
  %v963 = vld [vmem:[#allocation2 + $0x2c] sm:$0xf]
  %v964 = vld [vmem:[#allocation2 + $0x30] sm:$0xf]
  %v965 = vld [vmem:[#allocation2 + $0x34] sm:$0xf]
  %v966 = vld [vmem:[#allocation2 + $0x38] sm:$0xf]
  %v967 = vld [vmem:[#allocation2 + $0x3c] sm:$0xf]
  %v968 = vld [vmem:[#allocation2 + $0x40] sm:$0xf]
  %v969 = vld [vmem:[#allocation2 + $0x44] sm:$0xf]
  %v970 = vld [vmem:[#allocation2 + $0x48] sm:$0xf]
  %v971 = vld [vmem:[#allocation2 + $0x4c] sm:$0xf]
  %v972 = vld [vmem:[#allocation2 + $0x50] sm:$0xf]
  %v973 = vld [vmem:[#allocation2 + $0x54] sm:$0xf]
  %v974 = vld [vmem:[#allocation2 + $0x58] sm:$0xf]
  %v975 = vld [vmem:[#allocation2 + $0x5c] sm:$0xf]
  %v976 = vld [vmem:[#allocation2 + $0x60] sm:$0xf]
  %v977 = vld [vmem:[#allocation2 + $0x64] sm:$0xf]
  %v978 = vld [vmem:[#allocation2 + $0x68] sm:$0xf]
  %v979 = vld [vmem:[#allocation2 + $0x6c] sm:$0xf]
  %v980 = vld [vmem:[#allocation2 + $0x70] sm:$0xf]
  %v981 = vld [vmem:[#allocation2 + $0x74] sm:$0xf]
  %v982 = vld [vmem:[#allocation2 + $0x78] sm:$0xf]
  %v983 = vld [vmem:[#allocation2 + $0x7c] sm:$0xf]
  %v984 = vld [vmem:[#allocation2 + $0x80] sm:$0xf]
  %v985 = vld [vmem:[#allocation2 + $0x84] sm:$0xf]
  %v986 = vld [vmem:[#allocation2 + $0x88] sm:$0xf]
  %v987 = vld [vmem:[#allocation2 + $0x8c] sm:$0xf]
  %v988 = vld [vmem:[#allocation2 + $0x90] sm:$0xf]
  %v989 = vld [vmem:[#allocation2 + $0x94] sm:$0xf]
  %v990 = vld [vmem:[#allocation2 + $0x98] sm:$0xf]
  %v991 = vld [vmem:[#allocation2 + $0x9c] sm:$0xf]
  %v992 = vld [vmem:[#allocation2 + $0xa0] sm:$0xf]
  %v993 = vld [vmem:[#allocation2 + $0xa4] sm:$0xf]
  %v994 = vld [vmem:[#allocation2 + $0xa8] sm:$0xf]
  %v995 = vld [vmem:[#allocation2 + $0xac] sm:$0xf]
  %v996 = vld [vmem:[#allocation2 + $0xb0] sm:$0xf]
  %v997 = vld [vmem:[#allocation2 + $0xb4] sm:$0xf]
  %v998 = vld [vmem:[#allocation2 + $0xb8] sm:$0xf]
  %v999 = vld [vmem:[#allocation2 + $0xbc] sm:$0xf]
  %v1000 = vld [vmem:[#allocation2 + $0xc0] sm:$0xf]
  %v1001 = vld [vmem:[#allocation2 + $0xc4] sm:$0xf]
  %v1002 = vld [vmem:[#allocation2 + $0xc8] sm:$0xf]
  %v1003 = vld [vmem:[#allocation2 + $0xcc] sm:$0xf]
  %v1004 = vld [vmem:[#allocation2 + $0xd0] sm:$0xf]
  %v1005 = vld [vmem:[#allocation2 + $0xd4] sm:$0xf]
  %v1006 = vld [vmem:[#allocation2 + $0xd8] sm:$0xf]
  %v1007 = vld [vmem:[#allocation2 + $0xdc] sm:$0xf]
  %v1008 = vld [vmem:[#allocation2 + $0xe0] sm:$0xf]
  %v1009 = vld [vmem:[#allocation2 + $0xe4] sm:$0xf]
  %v1010 = vld [vmem:[#allocation2 + $0xe8] sm:$0xf]
  %v1011 = vld [vmem:[#allocation2 + $0xec] sm:$0xf]
  %v1012 = vld [vmem:[#allocation2 + $0xf0] sm:$0xf]
  %v1013 = vld [vmem:[#allocation2 + $0xf4] sm:$0xf]
  %v1014 = vld [vmem:[#allocation2 + $0xf8] sm:$0xf]
  %v1015 = vld [vmem:[#allocation2 + $0xfc] sm:$0xf]
  %v1032 = vunpack.c.l.b16 %v29
  %v1033 = vunpack.c.h.b16 %v29
  %v1034 = vunpack.c.l.b16 %v30
  %v1035 = vunpack.c.h.b16 %v30
  %v1036 = vunpack.c.l.b16 %v31
  %v1037 = vunpack.c.h.b16 %v31
  %v1038 = vunpack.c.l.b16 %v32
  %v1039 = vunpack.c.h.b16 %v32
  %v1040 = vunpack.c.l.b16 %v33
  %v1041 = vunpack.c.h.b16 %v33
  %v1042 = vunpack.c.l.b16 %v34
  %v1043 = vunpack.c.h.b16 %v34
  %v1044 = vunpack.c.l.b16 %v35
  %v1045 = vunpack.c.h.b16 %v35
  %v1046 = vunpack.c.l.b16 %v36
  %v1047 = vunpack.c.h.b16 %v36
  %v1048 = vunpack.c.l.b16 %v37
  %v1049 = vunpack.c.h.b16 %v37
  %v1050 = vunpack.c.l.b16 %v38
  %v1051 = vunpack.c.h.b16 %v38
  %v1052 = vunpack.c.l.b16 %v39
  %v1053 = vunpack.c.h.b16 %v39
  %v1054 = vunpack.c.l.b16 %v40
  %v1055 = vunpack.c.h.b16 %v40
  %v1056 = vunpack.c.l.b16 %v41
  %v1057 = vunpack.c.h.b16 %v41
  %v1058 = vunpack.c.l.b16 %v42
  %v1059 = vunpack.c.h.b16 %v42
  %v1060 = vunpack.c.l.b16 %v43
  %v1061 = vunpack.c.h.b16 %v43
  %v1062 = vunpack.c.l.b16 %v44
  %v1063 = vunpack.c.h.b16 %v44
  %v1064 = vpack.c.b16 %v1036, %v1032
  %v1065 = vpack.c.b16 %v1037, %v1033
  %v1066 = vpack.c.b16 %v1038, %v1034
  %v1067 = vpack.c.b16 %v1039, %v1035
  %v1068 = vpack.c.b16 %v1044, %v1040
  %v1069 = vpack.c.b16 %v1045, %v1041
  %v1070 = vpack.c.b16 %v1046, %v1042
  %v1071 = vpack.c.b16 %v1047, %v1043
  %v1072 = vpack.c.b16 %v1052, %v1048
  %v1073 = vpack.c.b16 %v1053, %v1049
  %v1074 = vpack.c.b16 %v1054, %v1050
  %v1075 = vpack.c.b16 %v1055, %v1051
  %v1076 = vpack.c.b16 %v1060, %v1056
  %v1077 = vpack.c.b16 %v1061, %v1057
  %v1078 = vpack.c.b16 %v1062, %v1058
  %v1079 = vpack.c.b16 %v1063, %v1059
  %v1160 = vunpack.c.l.b16 %v952
  %v1161 = vunpack.c.l.b16 %v953
  %v1162 = vunpack.c.l.b16 %v954
  %v1163 = vunpack.c.l.b16 %v955
  %v1164 = vunpack.c.l.b16 %v956
  %v1165 = vunpack.c.l.b16 %v957
  %v1166 = vunpack.c.l.b16 %v958
  %v1167 = vunpack.c.l.b16 %v959
  %v1168 = vunpack.c.l.b16 %v960
  %v1169 = vunpack.c.l.b16 %v961
  %v1170 = vunpack.c.l.b16 %v962
  %v1171 = vunpack.c.l.b16 %v963
  %v1172 = vunpack.c.l.b16 %v964
  %v1173 = vunpack.c.l.b16 %v965
  %v1174 = vunpack.c.l.b16 %v966
  %v1175 = vunpack.c.l.b16 %v967
  %v1176 = vunpack.c.l.b16 %v968
  %v1177 = vunpack.c.l.b16 %v969
  %v1178 = vunpack.c.l.b16 %v970
  %v1179 = vunpack.c.l.b16 %v971
  %v1180 = vunpack.c.l.b16 %v972
  %v1181 = vunpack.c.l.b16 %v973
  %v1182 = vunpack.c.l.b16 %v974
  %v1183 = vunpack.c.l.b16 %v975
  %v1184 = vunpack.c.l.b16 %v976
  %v1185 = vunpack.c.l.b16 %v977
  %v1186 = vunpack.c.l.b16 %v978
  %v1187 = vunpack.c.l.b16 %v979
  %v1188 = vunpack.c.l.b16 %v980
  %v1189 = vunpack.c.l.b16 %v981
  %v1190 = vunpack.c.l.b16 %v982
  %v1191 = vunpack.c.l.b16 %v983
  %v1192 = vunpack.c.l.b16 %v984
  %v1193 = vunpack.c.l.b16 %v985
  %v1194 = vunpack.c.l.b16 %v986
  %v1195 = vunpack.c.l.b16 %v987
  %v1196 = vunpack.c.l.b16 %v988
  %v1197 = vunpack.c.l.b16 %v989
  %v1198 = vunpack.c.l.b16 %v990
  %v1199 = vunpack.c.l.b16 %v991
  %v1200 = vunpack.c.l.b16 %v992
  %v1201 = vunpack.c.l.b16 %v993
  %v1202 = vunpack.c.l.b16 %v994
  %v1203 = vunpack.c.l.b16 %v995
  %v1204 = vunpack.c.l.b16 %v996
  %v1205 = vunpack.c.l.b16 %v997
  %v1206 = vunpack.c.l.b16 %v998
  %v1207 = vunpack.c.l.b16 %v999
  %v1208 = vunpack.c.l.b16 %v1000
  %v1209 = vunpack.c.l.b16 %v1001
  %v1210 = vunpack.c.l.b16 %v1002
  %v1211 = vunpack.c.l.b16 %v1003
  %v1212 = vunpack.c.l.b16 %v1004
  %v1213 = vunpack.c.l.b16 %v1005
  %v1214 = vunpack.c.l.b16 %v1006
  %v1215 = vunpack.c.l.b16 %v1007
  %v1216 = vunpack.c.l.b16 %v1008
  %v1217 = vunpack.c.l.b16 %v1009
  %v1218 = vunpack.c.l.b16 %v1010
  %v1219 = vunpack.c.l.b16 %v1011
  %v1220 = vunpack.c.l.b16 %v1012
  %v1221 = vunpack.c.l.b16 %v1013
  %v1222 = vunpack.c.l.b16 %v1014
  %v1223 = vunpack.c.l.b16 %v1015
  %v1224 = vpack.c.b16 %v1161, %v1160
  %v1225 = vpack.c.b16 %v1163, %v1162
  %v1226 = vpack.c.b16 %v1165, %v1164
  %v1227 = vpack.c.b16 %v1167, %v1166
  %v1228 = vpack.c.b16 %v1169, %v1168
  %v1229 = vpack.c.b16 %v1171, %v1170
  %v1230 = vpack.c.b16 %v1173, %v1172
  %v1231 = vpack.c.b16 %v1175, %v1174
  %v1232 = vpack.c.b16 %v1177, %v1176
  %v1233 = vpack.c.b16 %v1179, %v1178
  %v1234 = vpack.c.b16 %v1181, %v1180
  %v1235 = vpack.c.b16 %v1183, %v1182
  %v1236 = vpack.c.b16 %v1185, %v1184
  %v1237 = vpack.c.b16 %v1187, %v1186
  %v1238 = vpack.c.b16 %v1189, %v1188
  %v1239 = vpack.c.b16 %v1191, %v1190
  %v1240 = vpack.c.b16 %v1193, %v1192
  %v1241 = vpack.c.b16 %v1195, %v1194
  %v1242 = vpack.c.b16 %v1197, %v1196
  %v1243 = vpack.c.b16 %v1199, %v1198
  %v1244 = vpack.c.b16 %v1201, %v1200
  %v1245 = vpack.c.b16 %v1203, %v1202
  %v1246 = vpack.c.b16 %v1205, %v1204
  %v1247 = vpack.c.b16 %v1207, %v1206
  %v1248 = vpack.c.b16 %v1209, %v1208
  %v1249 = vpack.c.b16 %v1211, %v1210
  %v1250 = vpack.c.b16 %v1213, %v1212
  %v1251 = vpack.c.b16 %v1215, %v1214
  %v1252 = vpack.c.b16 %v1217, %v1216
  %v1253 = vpack.c.b16 %v1219, %v1218
  %v1254 = vpack.c.b16 %v1221, %v1220
  %v1255 = vpack.c.b16 %v1223, %v1222
  %1288 = vmatpush.bf16.msra.mxu0 %v1231
  %1289 = vmatpush.bf16.msra.mxu0 %v1230
  %1290 = vmatpush.bf16.msra.mxu0 %v1229
  %1291 = vmatpush.bf16.msra.mxu0 %v1228
  %1292 = vmatpush.bf16.msra.mxu0 %v1227
  %1293 = vmatpush.bf16.msra.mxu0 %v1226
  %1294 = vmatpush.bf16.msra.mxu0 %v1225
  %1295 = vmatpush.bf16.msra.mxu0 %v1224
  %1296 = vmatmul.bf16.gmra.mxu0 %v1064
  %v1297 = vpop.f32.mrf.mxu0
  %v1298 = vadd.f32 0.0, %v1297
  %v1299 = vpop.f32.mrf.mxu0
  %v1300 = vadd.f32 0.0, %v1299
  %1301 = vmatmul.bf16.gmra.mxu0 %v1068
  %v1302 = vpop.f32.mrf.mxu0
  %v1303 = vadd.f32 0.0, %v1302
  %v1304 = vpop.f32.mrf.mxu0
  %v1305 = vadd.f32 0.0, %v1304
  %1306 = vmatmul.bf16.gmra.mxu0 %v1072
  %v1307 = vpop.f32.mrf.mxu0
  %v1308 = vadd.f32 0.0, %v1307
  %v1309 = vpop.f32.mrf.mxu0
  %v1310 = vadd.f32 0.0, %v1309
  %1311 = vmatmul.bf16.gmra.mxu0 %v1076
  %v1312 = vpop.f32.mrf.mxu0
  %v1313 = vadd.f32 0.0, %v1312
  %v1314 = vpop.f32.mrf.mxu0
  %v1315 = vadd.f32 0.0, %v1314
  %1316 = vdwg.mxu0
  %1317 = vmatpush.bf16.msra.mxu0 %v1239
  %1318 = vmatpush.bf16.msra.mxu0 %v1238
  %1319 = vmatpush.bf16.msra.mxu0 %v1237
  %1320 = vmatpush.bf16.msra.mxu0 %v1236
  %1321 = vmatpush.bf16.msra.mxu0 %v1235
  %1322 = vmatpush.bf16.msra.mxu0 %v1234
  %1323 = vmatpush.bf16.msra.mxu0 %v1233
  %1324 = vmatpush.bf16.msra.mxu0 %v1232
  %1325 = vmatmul.bf16.gmra.mxu0 %v1065
  %v1326 = vpop.f32.mrf.mxu0
  %v1327 = vadd.f32 %v1298, %v1326
  %v1328 = vpop.f32.mrf.mxu0
  %v1329 = vadd.f32 %v1300, %v1328
  %1330 = vmatmul.bf16.gmra.mxu0 %v1069
  %v1331 = vpop.f32.mrf.mxu0
  %v1332 = vadd.f32 %v1303, %v1331
  %v1333 = vpop.f32.mrf.mxu0
  %v1334 = vadd.f32 %v1305, %v1333
  %1335 = vmatmul.bf16.gmra.mxu0 %v1073
  %v1336 = vpop.f32.mrf.mxu0
  %v1337 = vadd.f32 %v1308, %v1336
  %v1338 = vpop.f32.mrf.mxu0
  %v1339 = vadd.f32 %v1310, %v1338
  %1340 = vmatmul.bf16.gmra.mxu0 %v1077
  %v1341 = vpop.f32.mrf.mxu0
  %v1342 = vadd.f32 %v1313, %v1341
  %v1343 = vpop.f32.mrf.mxu0
  %v1344 = vadd.f32 %v1315, %v1343
  %1345 = vdwg.mxu0
  %1346 = vmatpush.bf16.msra.mxu0 %v1247
  %1347 = vmatpush.bf16.msra.mxu0 %v1246
  %1348 = vmatpush.bf16.msra.mxu0 %v1245
  %1349 = vmatpush.bf16.msra.mxu0 %v1244
  %1350 = vmatpush.bf16.msra.mxu0 %v1243
  %1351 = vmatpush.bf16.msra.mxu0 %v1242
  %1352 = vmatpush.bf16.msra.mxu0 %v1241
  %1353 = vmatpush.bf16.msra.mxu0 %v1240
  %1354 = vmatmul.bf16.gmra.mxu0 %v1066
  %v1355 = vpop.f32.mrf.mxu0
  %v1356 = vadd.f32 %v1327, %v1355
  %v1357 = vpop.f32.mrf.mxu0
  %v1358 = vadd.f32 %v1329, %v1357
  %1359 = vmatmul.bf16.gmra.mxu0 %v1070
  %v1360 = vpop.f32.mrf.mxu0
  %v1361 = vadd.f32 %v1332, %v1360
  %v1362 = vpop.f32.mrf.mxu0
  %v1363 = vadd.f32 %v1334, %v1362
  %1364 = vmatmul.bf16.gmra.mxu0 %v1074
  %v1365 = vpop.f32.mrf.mxu0
  %v1366 = vadd.f32 %v1337, %v1365
  %v1367 = vpop.f32.mrf.mxu0
  %v1368 = vadd.f32 %v1339, %v1367
  %1369 = vmatmul.bf16.gmra.mxu0 %v1078
  %v1370 = vpop.f32.mrf.mxu0
  %v1371 = vadd.f32 %v1342, %v1370
  %v1372 = vpop.f32.mrf.mxu0
  %v1373 = vadd.f32 %v1344, %v1372
  %1374 = vdwg.mxu0
  %1375 = vmatpush.bf16.msra.mxu0 %v1255
  %1376 = vmatpush.bf16.msra.mxu0 %v1254
  %1377 = vmatpush.bf16.msra.mxu0 %v1253
  %1378 = vmatpush.bf16.msra.mxu0 %v1252
  %1379 = vmatpush.bf16.msra.mxu0 %v1251
  %1380 = vmatpush.bf16.msra.mxu0 %v1250
  %1381 = vmatpush.bf16.msra.mxu0 %v1249
  %1382 = vmatpush.bf16.msra.mxu0 %v1248
  %1383 = vmatmul.bf16.gmra.mxu0 %v1067
  %v1384 = vpop.f32.mrf.mxu0
  %v1385 = vadd.f32 %v1356, %v1384
  %v1386 = vpop.f32.mrf.mxu0
  %v1387 = vadd.f32 %v1358, %v1386
  %1388 = vmatmul.bf16.gmra.mxu0 %v1071
  %v1389 = vpop.f32.mrf.mxu0
  %v1390 = vadd.f32 %v1361, %v1389
  %v1391 = vpop.f32.mrf.mxu0
  %v1392 = vadd.f32 %v1363, %v1391
  %1393 = vmatmul.bf16.gmra.mxu0 %v1075
  %v1394 = vpop.f32.mrf.mxu0
  %v1395 = vadd.f32 %v1366, %v1394
  %v1396 = vpop.f32.mrf.mxu0
  %v1397 = vadd.f32 %v1368, %v1396
  %1398 = vmatmul.bf16.gmra.mxu0 %v1079
  %v1399 = vpop.f32.mrf.mxu0
  %v1400 = vadd.f32 %v1371, %v1399
  %v1401 = vpop.f32.mrf.mxu0
  %v1402 = vadd.f32 %v1373, %v1401
  %1403 = vdwg.mxu0
  %1405 = vset.pattern.permute.xlu0 0
  %1406 = vperm.xlu0 %1405, %v45
  %v1407 = vpop.permute.xlu0 %1406
  %1410 = vset.pattern.permute.xlu0 0
  %1411 = vperm.xlu0 %1410, %v46
  %v1412 = vpop.permute.xlu0 %1411
  %1415 = vset.pattern.permute.xlu0 0
  %1416 = vperm.xlu0 %1415, %v47
  %v1417 = vpop.permute.xlu0 %1416
  %1420 = vset.pattern.permute.xlu0 0
  %1421 = vperm.xlu0 %1420, %v48
  %v1422 = vpop.permute.xlu0 %1421
  %1425 = vset.pattern.permute.xlu0 0
  %1426 = vperm.xlu0 %1425, %v49
  %v1427 = vpop.permute.xlu0 %1426
  %1430 = vset.pattern.permute.xlu0 0
  %1431 = vperm.xlu0 %1430, %v50
  %v1432 = vpop.permute.xlu0 %1431
  %1435 = vset.pattern.permute.xlu0 0
  %1436 = vperm.xlu0 %1435, %v51
  %v1437 = vpop.permute.xlu0 %1436
  %1440 = vset.pattern.permute.xlu0 0
  %1441 = vperm.xlu0 %1440, %v52
  %v1442 = vpop.permute.xlu0 %1441
  %v1444 = vmul.f32 %v1385, %v1407
  %v1445 = vmul.f32 %v1387, %v1412
  %v1446 = vmul.f32 %v1390, %v1417
  %v1447 = vmul.f32 %v1392, %v1422
  %v1448 = vmul.f32 %v1395, %v1427
  %v1449 = vmul.f32 %v1397, %v1432
  %v1450 = vmul.f32 %v1400, %v1437
  %v1451 = vmul.f32 %v1402, %v1442
  %vm1452 = vcmp.gt.f32.partialorder %v1444, 0.0
  %vm1453 = vcmp.gt.f32.partialorder %v1445, 0.0
  %vm1454 = vcmp.gt.f32.partialorder %v1446, 0.0
  %vm1455 = vcmp.gt.f32.partialorder %v1447, 0.0
  %vm1456 = vcmp.gt.f32.partialorder %v1448, 0.0
  %vm1457 = vcmp.gt.f32.partialorder %v1449, 0.0
  %vm1458 = vcmp.gt.f32.partialorder %v1450, 0.0
  %vm1459 = vcmp.gt.f32.partialorder %v1451, 0.0
  %v1460 = vmin.f32 %v1444, 0.0
  %v1461 = vmin.f32 %v1445, 0.0
  %v1462 = vmin.f32 %v1446, 0.0
  %v1463 = vmin.f32 %v1447, 0.0
  %v1464 = vmin.f32 %v1448, 0.0
  %v1465 = vmin.f32 %v1449, 0.0
  %v1466 = vmin.f32 %v1450, 0.0
  %v1467 = vmin.f32 %v1451, 0.0
  %v1468 = vmul.f32 %v1460, 1.442695
  %v1469 = vpow.pop %v1468
  %v1470 = vmul.f32 %v1461, 1.442695
  %v1471 = vpow.pop %v1470
  %v1472 = vmul.f32 %v1462, 1.442695
  %v1473 = vpow.pop %v1472
  %v1474 = vmul.f32 %v1463, 1.442695
  %v1475 = vpow.pop %v1474
  %v1476 = vmul.f32 %v1464, 1.442695
  %v1477 = vpow.pop %v1476
  %v1478 = vmul.f32 %v1465, 1.442695
  %v1479 = vpow.pop %v1478
  %v1480 = vmul.f32 %v1466, 1.442695
  %v1481 = vpow.pop %v1480
  %v1482 = vmul.f32 %v1467, 1.442695
  %v1483 = vpow.pop %v1482
  %v1484 = vsub.f32 %v1469, 1.0
  %v1485 = vsub.f32 %v1471, 1.0
  %v1486 = vsub.f32 %v1473, 1.0
  %v1487 = vsub.f32 %v1475, 1.0
  %v1488 = vsub.f32 %v1477, 1.0
  %v1489 = vsub.f32 %v1479, 1.0
  %v1490 = vsub.f32 %v1481, 1.0
  %v1491 = vsub.f32 %v1483, 1.0
  %v1492 = vsel %vm1452, %v1444, %v1484
  %v1493 = vsel %vm1453, %v1445, %v1485
  %v1494 = vsel %vm1454, %v1446, %v1486
  %v1495 = vsel %vm1455, %v1447, %v1487
  %v1496 = vsel %vm1456, %v1448, %v1488
  %v1497 = vsel %vm1457, %v1449, %v1489
  %v1498 = vsel %vm1458, %v1450, %v1490
  %v1499 = vsel %vm1459, %v1451, %v1491
  %1501 = vset.pattern.permute.xlu0 0
  %1502 = vperm.xlu0 %1501, %v53
  %v1503 = vpop.permute.xlu0 %1502
  %1506 = vset.pattern.permute.xlu0 0
  %1507 = vperm.xlu0 %1506, %v54
  %v1508 = vpop.permute.xlu0 %1507
  %1511 = vset.pattern.permute.xlu0 0
  %1512 = vperm.xlu0 %1511, %v55
  %v1513 = vpop.permute.xlu0 %1512
  %1516 = vset.pattern.permute.xlu0 0
  %1517 = vperm.xlu0 %1516, %v56
  %v1518 = vpop.permute.xlu0 %1517
  %1521 = vset.pattern.permute.xlu0 0
  %1522 = vperm.xlu0 %1521, %v57
  %v1523 = vpop.permute.xlu0 %1522
  %1526 = vset.pattern.permute.xlu0 0
  %1527 = vperm.xlu0 %1526, %v58
  %v1528 = vpop.permute.xlu0 %1527
  %1531 = vset.pattern.permute.xlu0 0
  %1532 = vperm.xlu0 %1531, %v59
  %v1533 = vpop.permute.xlu0 %1532
  %1536 = vset.pattern.permute.xlu0 0
  %1537 = vperm.xlu0 %1536, %v60
  %v1538 = vpop.permute.xlu0 %1537
  %v1540 = vmul.f32 %v1492, %v1503
  %v1541 = vmul.f32 %v1493, %v1508
  %v1542 = vmul.f32 %v1494, %v1513
  %v1543 = vmul.f32 %v1495, %v1518
  %v1544 = vmul.f32 %v1496, %v1523
  %v1545 = vmul.f32 %v1497, %v1528
  %v1546 = vmul.f32 %v1498, %v1533
  %v1547 = vmul.f32 %v1499, %v1538
  %v1548 = vadd.f32 %v1540, %v1541
  %v1549 = vadd.f32 %v1548, %v1542
  %v1550 = vadd.f32 %v1549, %v1543
  %v1551 = vadd.f32 %v1550, %v1544
  %v1552 = vadd.f32 %v1551, %v1545
  %v1553 = vadd.f32 %v1552, %v1546
  %v1554 = vadd.f32 %v1553, %v1547
  %v1555 = vrot.slane %v1554, 4
  %v1556 = vadd.f32 %v1554, %v1555
  %v1557 = vrot.slane %v1556, 2
  %v1558 = vadd.f32 %v1556, %v1557
  %v1559 = vrot.slane %v1558, 1
  %v1560 = vadd.f32 %v1558, %v1559
  %v1561 = vmul.f32 %v1560, 0.015625
  %v1562 = vsub.f32 %v1492, %v1561
  %v1563 = vsub.f32 %v1493, %v1561
  %v1564 = vsub.f32 %v1494, %v1561
  %v1565 = vsub.f32 %v1495, %v1561
  %v1566 = vsub.f32 %v1496, %v1561
  %v1567 = vsub.f32 %v1497, %v1561
  %v1568 = vsub.f32 %v1498, %v1561
  %v1569 = vsub.f32 %v1499, %v1561
  %v1570 = vmul.f32 %v1562, %v1503
  %v1571 = vmul.f32 %v1563, %v1508
  %v1572 = vmul.f32 %v1564, %v1513
  %v1573 = vmul.f32 %v1565, %v1518
  %v1574 = vmul.f32 %v1566, %v1523
  %v1575 = vmul.f32 %v1567, %v1528
  %v1576 = vmul.f32 %v1568, %v1533
  %v1577 = vmul.f32 %v1569, %v1538
  %v1578 = vmul.f32 %v1570, %v1570
  %v1579 = vmul.f32 %v1571, %v1571
  %v1580 = vmul.f32 %v1572, %v1572
  %v1581 = vmul.f32 %v1573, %v1573
  %v1582 = vmul.f32 %v1574, %v1574
  %v1583 = vmul.f32 %v1575, %v1575
  %v1584 = vmul.f32 %v1576, %v1576
  %v1585 = vmul.f32 %v1577, %v1577
  %v1586 = vadd.f32 %v1578, %v1579
  %v1587 = vadd.f32 %v1586, %v1580
  %v1588 = vadd.f32 %v1587, %v1581
  %v1589 = vadd.f32 %v1588, %v1582
  %v1590 = vadd.f32 %v1589, %v1583
  %v1591 = vadd.f32 %v1590, %v1584
  %v1592 = vadd.f32 %v1591, %v1585
  %v1593 = vrot.slane %v1592, 4
  %v1594 = vadd.f32 %v1592, %v1593
  %v1595 = vrot.slane %v1594, 2
  %v1596 = vadd.f32 %v1594, %v1595
  %v1597 = vrot.slane %v1596, 1
  %v1598 = vadd.f32 %v1596, %v1597
  %v1599 = vmul.f32 %v1598, 0.015625
  %v1600 = vadd.f32 %v1599, 1e-05
  %v1601 = vrsqrt.pop %v1600
  %v1602 = vmul.f32 %v1601, %v1600
  %v1603 = vmul.f32 %v1602, %v1601
  %v1604 = vmul.f32 0.5, %v1603
  %v1605 = vsub.f32 1.5, %v1604
  %v1606 = vmul.f32 %v1601, %v1605
  %vm1607 = vweird.f32 %v1600
  %vm1608 = vweird.f32 %v1601
  %vm1609 = vmor %vm1607, %vm1608
  %v1610 = vsel %vm1609, %v1601, %v1606
  %v1611 = vmul.f32 %v1562, %v1610
  %v1612 = vmul.f32 %v1563, %v1610
  %v1613 = vmul.f32 %v1564, %v1610
  %v1614 = vmul.f32 %v1565, %v1610
  %v1615 = vmul.f32 %v1566, %v1610
  %v1616 = vmul.f32 %v1567, %v1610
  %v1617 = vmul.f32 %v1568, %v1610
  %v1618 = vmul.f32 %v1569, %v1610
  %v1619 = vld [vmem:[%s3] sm:$0x1]
  %v1621 = vperm.slane %v1619, 0
  %v1623 = vmul.f32 %v1611, %v1621
  %v1624 = vmul.f32 %v1612, %v1621
  %v1625 = vmul.f32 %v1613, %v1621
  %v1626 = vmul.f32 %v1614, %v1621
  %v1627 = vmul.f32 %v1615, %v1621
  %v1628 = vmul.f32 %v1616, %v1621
  %v1629 = vmul.f32 %v1617, %v1621
  %v1630 = vmul.f32 %v1618, %v1621
  %v1631 = vld [vmem:[%s4] sm:$0x1]
  %v1633 = vperm.slane %v1631, 0
  %v1635 = vadd.f32 %v1623, %v1633
  %v1636 = vadd.f32 %v1624, %v1633
  %v1637 = vadd.f32 %v1625, %v1633
  %v1638 = vadd.f32 %v1626, %v1633
  %v1639 = vadd.f32 %v1627, %v1633
  %v1640 = vadd.f32 %v1628, %v1633
  %v1641 = vadd.f32 %v1629, %v1633
  %v1642 = vadd.f32 %v1630, %v1633
  %v1643 = vmul.f32 %v1635, %v1503
  %v1644 = vmul.f32 %v1636, %v1508
  %v1645 = vmul.f32 %v1637, %v1513
  %v1646 = vmul.f32 %v1638, %v1518
  %v1647 = vmul.f32 %v1639, %v1523
  %v1648 = vmul.f32 %v1640, %v1528
  %v1649 = vmul.f32 %v1641, %v1533
  %v1650 = vmul.f32 %v1642, %v1538
  %v1651 = vpack.c.bf16 %v1644, %v1643
  %v1652 = vpack.c.bf16 %v1646, %v1645
  %v1653 = vpack.c.bf16 %v1648, %v1647
  %v1654 = vpack.c.bf16 %v1650, %v1649
  %s1655 = scalar_lea.vmem %s2, 512
  %v1656 = vld [vmem:[%s1655] sm:$0xf]
  %v1657 = vld [vmem:[%s1655 + $0x4] sm:$0xf]
  %v1658 = vld [vmem:[%s1655 + $0x8] sm:$0xf]
  %v1659 = vld [vmem:[%s1655 + $0xc] sm:$0xf]
  %v1660 = vld [vmem:[%s1655 + $0x10] sm:$0xf]
  %v1661 = vld [vmem:[%s1655 + $0x14] sm:$0xf]
  %v1662 = vld [vmem:[%s1655 + $0x18] sm:$0xf]
  %v1663 = vld [vmem:[%s1655 + $0x1c] sm:$0xf]
  %v1664 = vld [vmem:[%s1655 + $0x20] sm:$0xf]
  %v1665 = vld [vmem:[%s1655 + $0x24] sm:$0xf]
  %v1666 = vld [vmem:[%s1655 + $0x28] sm:$0xf]
  %v1667 = vld [vmem:[%s1655 + $0x2c] sm:$0xf]
  %v1668 = vld [vmem:[%s1655 + $0x30] sm:$0xf]
  %v1669 = vld [vmem:[%s1655 + $0x34] sm:$0xf]
  %v1670 = vld [vmem:[%s1655 + $0x38] sm:$0xf]
  %v1671 = vld [vmem:[%s1655 + $0x3c] sm:$0xf]
  %v1688 = vunpack.c.l.b16 %v1656
  %v1689 = vunpack.c.l.b16 %v1657
  %v1690 = vunpack.c.l.b16 %v1658
  %v1691 = vunpack.c.l.b16 %v1659
  %v1692 = vunpack.c.l.b16 %v1660
  %v1693 = vunpack.c.l.b16 %v1661
  %v1694 = vunpack.c.l.b16 %v1662
  %v1695 = vunpack.c.l.b16 %v1663
  %v1696 = vunpack.c.l.b16 %v1664
  %v1697 = vunpack.c.l.b16 %v1665
  %v1698 = vunpack.c.l.b16 %v1666
  %v1699 = vunpack.c.l.b16 %v1667
  %v1700 = vunpack.c.l.b16 %v1668
  %v1701 = vunpack.c.l.b16 %v1669
  %v1702 = vunpack.c.l.b16 %v1670
  %v1703 = vunpack.c.l.b16 %v1671
  %v1704 = vpack.c.b16 %v1689, %v1688
  %v1705 = vpack.c.b16 %v1691, %v1690
  %v1706 = vpack.c.b16 %v1693, %v1692
  %v1707 = vpack.c.b16 %v1695, %v1694
  %v1708 = vpack.c.b16 %v1697, %v1696
  %v1709 = vpack.c.b16 %v1699, %v1698
  %v1710 = vpack.c.b16 %v1701, %v1700
  %v1711 = vpack.c.b16 %v1703, %v1702
  %1720 = vmatpush.bf16.msra.mxu0 %v1711
  %1721 = vmatpush.bf16.msra.mxu0 %v1710
  %1722 = vmatpush.bf16.msra.mxu0 %v1709
  %1723 = vmatpush.bf16.msra.mxu0 %v1708
  %1724 = vmatpush.bf16.msra.mxu0 %v1707
  %1725 = vmatpush.bf16.msra.mxu0 %v1706
  %1726 = vmatpush.bf16.msra.mxu0 %v1705
  %1727 = vmatpush.bf16.msra.mxu0 %v1704
  %1728 = vmatmul.bf16.gmra.mxu0 %v1651
  %v1729 = vpop.f32.mrf.mxu0
  %v1730 = vadd.f32 0.0, %v1729
  %v1731 = vpop.f32.mrf.mxu0
  %v1732 = vadd.f32 0.0, %v1731
  %1733 = vmatmul.bf16.gmra.mxu0 %v1652
  %v1734 = vpop.f32.mrf.mxu0
  %v1735 = vadd.f32 0.0, %v1734
  %v1736 = vpop.f32.mrf.mxu0
  %v1737 = vadd.f32 0.0, %v1736
  %1738 = vmatmul.bf16.gmra.mxu0 %v1653
  %v1739 = vpop.f32.mrf.mxu0
  %v1740 = vadd.f32 0.0, %v1739
  %v1741 = vpop.f32.mrf.mxu0
  %v1742 = vadd.f32 0.0, %v1741
  %1743 = vmatmul.bf16.gmra.mxu0 %v1654
  %v1744 = vpop.f32.mrf.mxu0
  %v1745 = vadd.f32 0.0, %v1744
  %v1746 = vpop.f32.mrf.mxu0
  %v1747 = vadd.f32 0.0, %v1746
  %1748 = vdwg.mxu0
  %v1749 = vpack.c.bf16 %v1730, %v1730
  %v1750 = vpack.c.bf16 %v1732, %v1732
  %v1751 = vpack.c.bf16 %v1735, %v1735
  %v1752 = vpack.c.bf16 %v1737, %v1737
  %v1753 = vpack.c.bf16 %v1740, %v1740
  %v1754 = vpack.c.bf16 %v1742, %v1742
  %v1755 = vpack.c.bf16 %v1745, %v1745
  %v1756 = vpack.c.bf16 %v1747, %v1747
  %1757 = vst [vmem:[#allocation2] sm:$0xf] %v1749
  %1758 = vst [vmem:[#allocation2 + $0x4] sm:$0xf] %v1750
  %1759 = vst [vmem:[#allocation2 + $0x8] sm:$0xf] %v1751
  %1760 = vst [vmem:[#allocation2 + $0xc] sm:$0xf] %v1752
  %1761 = vst [vmem:[#allocation2 + $0x10] sm:$0xf] %v1753
  %1762 = vst [vmem:[#allocation2 + $0x14] sm:$0xf] %v1754
  %1763 = vst [vmem:[#allocation2 + $0x18] sm:$0xf] %v1755
  %1764 = vst [vmem:[#allocation2 + $0x1c] sm:$0xf] %v1756
  %s1765 = scalar_lea.vmem %s2, 576
  %v1766 = vld [vmem:[%s1765] sm:$0xf]
  %v1767 = vld [vmem:[%s1765 + $0x4] sm:$0xf]
  %v1768 = vld [vmem:[%s1765 + $0x8] sm:$0xf]
  %v1769 = vld [vmem:[%s1765 + $0xc] sm:$0xf]
  %v1770 = vld [vmem:[%s1765 + $0x10] sm:$0xf]
  %v1771 = vld [vmem:[%s1765 + $0x14] sm:$0xf]
  %v1772 = vld [vmem:[%s1765 + $0x18] sm:$0xf]
  %v1773 = vld [vmem:[%s1765 + $0x1c] sm:$0xf]
  %v1774 = vld [vmem:[%s1765 + $0x20] sm:$0xf]
  %v1775 = vld [vmem:[%s1765 + $0x24] sm:$0xf]
  %v1776 = vld [vmem:[%s1765 + $0x28] sm:$0xf]
  %v1777 = vld [vmem:[%s1765 + $0x2c] sm:$0xf]
  %v1778 = vld [vmem:[%s1765 + $0x30] sm:$0xf]
  %v1779 = vld [vmem:[%s1765 + $0x34] sm:$0xf]
  %v1780 = vld [vmem:[%s1765 + $0x38] sm:$0xf]
  %v1781 = vld [vmem:[%s1765 + $0x3c] sm:$0xf]
  %v1798 = vunpack.c.l.b16 %v1766
  %v1799 = vunpack.c.l.b16 %v1767
  %v1800 = vunpack.c.l.b16 %v1768
  %v1801 = vunpack.c.l.b16 %v1769
  %v1802 = vunpack.c.l.b16 %v1770
  %v1803 = vunpack.c.l.b16 %v1771
  %v1804 = vunpack.c.l.b16 %v1772
  %v1805 = vunpack.c.l.b16 %v1773
  %v1806 = vunpack.c.l.b16 %v1774
  %v1807 = vunpack.c.l.b16 %v1775
  %v1808 = vunpack.c.l.b16 %v1776
  %v1809 = vunpack.c.l.b16 %v1777
  %v1810 = vunpack.c.l.b16 %v1778
  %v1811 = vunpack.c.l.b16 %v1779
  %v1812 = vunpack.c.l.b16 %v1780
  %v1813 = vunpack.c.l.b16 %v1781
  %v1814 = vpack.c.b16 %v1799, %v1798
  %v1815 = vpack.c.b16 %v1801, %v1800
  %v1816 = vpack.c.b16 %v1803, %v1802
  %v1817 = vpack.c.b16 %v1805, %v1804
  %v1818 = vpack.c.b16 %v1807, %v1806
  %v1819 = vpack.c.b16 %v1809, %v1808
  %v1820 = vpack.c.b16 %v1811, %v1810
  %v1821 = vpack.c.b16 %v1813, %v1812
  %1830 = vmatpush.bf16.msra.mxu0 %v1821
  %1831 = vmatpush.bf16.msra.mxu0 %v1820
  %1832 = vmatpush.bf16.msra.mxu0 %v1819
  %1833 = vmatpush.bf16.msra.mxu0 %v1818
  %1834 = vmatpush.bf16.msra.mxu0 %v1817
  %1835 = vmatpush.bf16.msra.mxu0 %v1816
  %1836 = vmatpush.bf16.msra.mxu0 %v1815
  %1837 = vmatpush.bf16.msra.mxu0 %v1814
  %1838 = vmatmul.bf16.gmra.mxu0 %v1651
  %v1839 = vpop.f32.mrf.mxu0
  %v1840 = vadd.f32 0.0, %v1839
  %v1841 = vpop.f32.mrf.mxu0
  %v1842 = vadd.f32 0.0, %v1841
  %1843 = vmatmul.bf16.gmra.mxu0 %v1652
  %v1844 = vpop.f32.mrf.mxu0
  %v1845 = vadd.f32 0.0, %v1844
  %v1846 = vpop.f32.mrf.mxu0
  %v1847 = vadd.f32 0.0, %v1846
  %1848 = vmatmul.bf16.gmra.mxu0 %v1653
  %v1849 = vpop.f32.mrf.mxu0
  %v1850 = vadd.f32 0.0, %v1849
  %v1851 = vpop.f32.mrf.mxu0
  %v1852 = vadd.f32 0.0, %v1851
  %1853 = vmatmul.bf16.gmra.mxu0 %v1654
  %v1854 = vpop.f32.mrf.mxu0
  %v1855 = vadd.f32 0.0, %v1854
  %v1856 = vpop.f32.mrf.mxu0
  %v1857 = vadd.f32 0.0, %v1856
  %1858 = vdwg.mxu0
  %v1859 = vpack.c.bf16 %v1840, %v1840
  %v1860 = vpack.c.bf16 %v1842, %v1842
  %v1861 = vpack.c.bf16 %v1845, %v1845
  %v1862 = vpack.c.bf16 %v1847, %v1847
  %v1863 = vpack.c.bf16 %v1850, %v1850
  %v1864 = vpack.c.bf16 %v1852, %v1852
  %v1865 = vpack.c.bf16 %v1855, %v1855
  %v1866 = vpack.c.bf16 %v1857, %v1857
  %1867 = vst [vmem:[#allocation2 + $0x20] sm:$0xf] %v1859
  %1868 = vst [vmem:[#allocation2 + $0x24] sm:$0xf] %v1860
  %1869 = vst [vmem:[#allocation2 + $0x28] sm:$0xf] %v1861
  %1870 = vst [vmem:[#allocation2 + $0x2c] sm:$0xf] %v1862
  %1871 = vst [vmem:[#allocation2 + $0x30] sm:$0xf] %v1863
  %1872 = vst [vmem:[#allocation2 + $0x34] sm:$0xf] %v1864
  %1873 = vst [vmem:[#allocation2 + $0x38] sm:$0xf] %v1865
  %1874 = vst [vmem:[#allocation2 + $0x3c] sm:$0xf] %v1866
  %s1875 = scalar_lea.vmem %s2, 640
  %v1876 = vld [vmem:[%s1875] sm:$0xf]
  %v1877 = vld [vmem:[%s1875 + $0x4] sm:$0xf]
  %v1878 = vld [vmem:[%s1875 + $0x8] sm:$0xf]
  %v1879 = vld [vmem:[%s1875 + $0xc] sm:$0xf]
  %v1880 = vld [vmem:[%s1875 + $0x10] sm:$0xf]
  %v1881 = vld [vmem:[%s1875 + $0x14] sm:$0xf]
  %v1882 = vld [vmem:[%s1875 + $0x18] sm:$0xf]
  %v1883 = vld [vmem:[%s1875 + $0x1c] sm:$0xf]
  %v1884 = vld [vmem:[%s1875 + $0x20] sm:$0xf]
  %v1885 = vld [vmem:[%s1875 + $0x24] sm:$0xf]
  %v1886 = vld [vmem:[%s1875 + $0x28] sm:$0xf]
  %v1887 = vld [vmem:[%s1875 + $0x2c] sm:$0xf]
  %v1888 = vld [vmem:[%s1875 + $0x30] sm:$0xf]
  %v1889 = vld [vmem:[%s1875 + $0x34] sm:$0xf]
  %v1890 = vld [vmem:[%s1875 + $0x38] sm:$0xf]
  %v1891 = vld [vmem:[%s1875 + $0x3c] sm:$0xf]
  %v1908 = vunpack.c.l.b16 %v1876
  %v1909 = vunpack.c.l.b16 %v1877
  %v1910 = vunpack.c.l.b16 %v1878
  %v1911 = vunpack.c.l.b16 %v1879
  %v1912 = vunpack.c.l.b16 %v1880
  %v1913 = vunpack.c.l.b16 %v1881
  %v1914 = vunpack.c.l.b16 %v1882
  %v1915 = vunpack.c.l.b16 %v1883
  %v1916 = vunpack.c.l.b16 %v1884
  %v1917 = vunpack.c.l.b16 %v1885
  %v1918 = vunpack.c.l.b16 %v1886
  %v1919 = vunpack.c.l.b16 %v1887
  %v1920 = vunpack.c.l.b16 %v1888
  %v1921 = vunpack.c.l.b16 %v1889
  %v1922 = vunpack.c.l.b16 %v1890
  %v1923 = vunpack.c.l.b16 %v1891
  %v1924 = vpack.c.b16 %v1909, %v1908
  %v1925 = vpack.c.b16 %v1911, %v1910
  %v1926 = vpack.c.b16 %v1913, %v1912
  %v1927 = vpack.c.b16 %v1915, %v1914
  %v1928 = vpack.c.b16 %v1917, %v1916
  %v1929 = vpack.c.b16 %v1919, %v1918
  %v1930 = vpack.c.b16 %v1921, %v1920
  %v1931 = vpack.c.b16 %v1923, %v1922
  %1940 = vmatpush.bf16.msra.mxu0 %v1931
  %1941 = vmatpush.bf16.msra.mxu0 %v1930
  %1942 = vmatpush.bf16.msra.mxu0 %v1929
  %1943 = vmatpush.bf16.msra.mxu0 %v1928
  %1944 = vmatpush.bf16.msra.mxu0 %v1927
  %1945 = vmatpush.bf16.msra.mxu0 %v1926
  %1946 = vmatpush.bf16.msra.mxu0 %v1925
  %1947 = vmatpush.bf16.msra.mxu0 %v1924
  %1948 = vmatmul.bf16.gmra.mxu0 %v1651
  %v1949 = vpop.f32.mrf.mxu0
  %v1950 = vadd.f32 0.0, %v1949
  %v1951 = vpop.f32.mrf.mxu0
  %v1952 = vadd.f32 0.0, %v1951
  %1953 = vmatmul.bf16.gmra.mxu0 %v1652
  %v1954 = vpop.f32.mrf.mxu0
  %v1955 = vadd.f32 0.0, %v1954
  %v1956 = vpop.f32.mrf.mxu0
  %v1957 = vadd.f32 0.0, %v1956
  %1958 = vmatmul.bf16.gmra.mxu0 %v1653
  %v1959 = vpop.f32.mrf.mxu0
  %v1960 = vadd.f32 0.0, %v1959
  %v1961 = vpop.f32.mrf.mxu0
  %v1962 = vadd.f32 0.0, %v1961
  %1963 = vmatmul.bf16.gmra.mxu0 %v1654
  %v1964 = vpop.f32.mrf.mxu0
  %v1965 = vadd.f32 0.0, %v1964
  %v1966 = vpop.f32.mrf.mxu0
  %v1967 = vadd.f32 0.0, %v1966
  %1968 = vdwg.mxu0
  %v1969 = vpack.c.bf16 %v1950, %v1950
  %v1970 = vpack.c.bf16 %v1952, %v1952
  %v1971 = vpack.c.bf16 %v1955, %v1955
  %v1972 = vpack.c.bf16 %v1957, %v1957
  %v1973 = vpack.c.bf16 %v1960, %v1960
  %v1974 = vpack.c.bf16 %v1962, %v1962
  %v1975 = vpack.c.bf16 %v1965, %v1965
  %v1976 = vpack.c.bf16 %v1967, %v1967
  %1977 = vst [vmem:[#allocation2 + $0x40] sm:$0xf] %v1969
  %1978 = vst [vmem:[#allocation2 + $0x44] sm:$0xf] %v1970
  %1979 = vst [vmem:[#allocation2 + $0x48] sm:$0xf] %v1971
  %1980 = vst [vmem:[#allocation2 + $0x4c] sm:$0xf] %v1972
  %1981 = vst [vmem:[#allocation2 + $0x50] sm:$0xf] %v1973
  %1982 = vst [vmem:[#allocation2 + $0x54] sm:$0xf] %v1974
  %1983 = vst [vmem:[#allocation2 + $0x58] sm:$0xf] %v1975
  %1984 = vst [vmem:[#allocation2 + $0x5c] sm:$0xf] %v1976
  %s1985 = scalar_lea.vmem %s2, 704
  %v1986 = vld [vmem:[%s1985] sm:$0xf]
  %v1987 = vld [vmem:[%s1985 + $0x4] sm:$0xf]
  %v1988 = vld [vmem:[%s1985 + $0x8] sm:$0xf]
  %v1989 = vld [vmem:[%s1985 + $0xc] sm:$0xf]
  %v1990 = vld [vmem:[%s1985 + $0x10] sm:$0xf]
  %v1991 = vld [vmem:[%s1985 + $0x14] sm:$0xf]
  %v1992 = vld [vmem:[%s1985 + $0x18] sm:$0xf]
  %v1993 = vld [vmem:[%s1985 + $0x1c] sm:$0xf]
  %v1994 = vld [vmem:[%s1985 + $0x20] sm:$0xf]
  %v1995 = vld [vmem:[%s1985 + $0x24] sm:$0xf]
  %v1996 = vld [vmem:[%s1985 + $0x28] sm:$0xf]
  %v1997 = vld [vmem:[%s1985 + $0x2c] sm:$0xf]
  %v1998 = vld [vmem:[%s1985 + $0x30] sm:$0xf]
  %v1999 = vld [vmem:[%s1985 + $0x34] sm:$0xf]
  %v2000 = vld [vmem:[%s1985 + $0x38] sm:$0xf]
  %v2001 = vld [vmem:[%s1985 + $0x3c] sm:$0xf]
  %v2018 = vunpack.c.l.b16 %v1986
  %v2019 = vunpack.c.l.b16 %v1987
  %v2020 = vunpack.c.l.b16 %v1988
  %v2021 = vunpack.c.l.b16 %v1989
  %v2022 = vunpack.c.l.b16 %v1990
  %v2023 = vunpack.c.l.b16 %v1991
  %v2024 = vunpack.c.l.b16 %v1992
  %v2025 = vunpack.c.l.b16 %v1993
  %v2026 = vunpack.c.l.b16 %v1994
  %v2027 = vunpack.c.l.b16 %v1995
  %v2028 = vunpack.c.l.b16 %v1996
  %v2029 = vunpack.c.l.b16 %v1997
  %v2030 = vunpack.c.l.b16 %v1998
  %v2031 = vunpack.c.l.b16 %v1999
  %v2032 = vunpack.c.l.b16 %v2000
  %v2033 = vunpack.c.l.b16 %v2001
  %v2034 = vpack.c.b16 %v2019, %v2018
  %v2035 = vpack.c.b16 %v2021, %v2020
  %v2036 = vpack.c.b16 %v2023, %v2022
  %v2037 = vpack.c.b16 %v2025, %v2024
  %v2038 = vpack.c.b16 %v2027, %v2026
  %v2039 = vpack.c.b16 %v2029, %v2028
  %v2040 = vpack.c.b16 %v2031, %v2030
  %v2041 = vpack.c.b16 %v2033, %v2032
  %2050 = vmatpush.bf16.msra.mxu0 %v2041
  %2051 = vmatpush.bf16.msra.mxu0 %v2040
  %2052 = vmatpush.bf16.msra.mxu0 %v2039
  %2053 = vmatpush.bf16.msra.mxu0 %v2038
  %2054 = vmatpush.bf16.msra.mxu0 %v2037
  %2055 = vmatpush.bf16.msra.mxu0 %v2036
  %2056 = vmatpush.bf16.msra.mxu0 %v2035
  %2057 = vmatpush.bf16.msra.mxu0 %v2034
  %2058 = vmatmul.bf16.gmra.mxu0 %v1651
  %v2059 = vpop.f32.mrf.mxu0
  %v2060 = vadd.f32 0.0, %v2059
  %v2061 = vpop.f32.mrf.mxu0
  %v2062 = vadd.f32 0.0, %v2061
  %2063 = vmatmul.bf16.gmra.mxu0 %v1652
  %v2064 = vpop.f32.mrf.mxu0
  %v2065 = vadd.f32 0.0, %v2064
  %v2066 = vpop.f32.mrf.mxu0
  %v2067 = vadd.f32 0.0, %v2066
  %2068 = vmatmul.bf16.gmra.mxu0 %v1653
  %v2069 = vpop.f32.mrf.mxu0
  %v2070 = vadd.f32 0.0, %v2069
  %v2071 = vpop.f32.mrf.mxu0
  %v2072 = vadd.f32 0.0, %v2071
  %2073 = vmatmul.bf16.gmra.mxu0 %v1654
  %v2074 = vpop.f32.mrf.mxu0
  %v2075 = vadd.f32 0.0, %v2074
  %v2076 = vpop.f32.mrf.mxu0
  %v2077 = vadd.f32 0.0, %v2076
  %2078 = vdwg.mxu0
  %v2079 = vpack.c.bf16 %v2060, %v2060
  %v2080 = vpack.c.bf16 %v2062, %v2062
  %v2081 = vpack.c.bf16 %v2065, %v2065
  %v2082 = vpack.c.bf16 %v2067, %v2067
  %v2083 = vpack.c.bf16 %v2070, %v2070
  %v2084 = vpack.c.bf16 %v2072, %v2072
  %v2085 = vpack.c.bf16 %v2075, %v2075
  %v2086 = vpack.c.bf16 %v2077, %v2077
  %2087 = vst [vmem:[#allocation2 + $0x60] sm:$0xf] %v2079
  %2088 = vst [vmem:[#allocation2 + $0x64] sm:$0xf] %v2080
  %2089 = vst [vmem:[#allocation2 + $0x68] sm:$0xf] %v2081
  %2090 = vst [vmem:[#allocation2 + $0x6c] sm:$0xf] %v2082
  %2091 = vst [vmem:[#allocation2 + $0x70] sm:$0xf] %v2083
  %2092 = vst [vmem:[#allocation2 + $0x74] sm:$0xf] %v2084
  %2093 = vst [vmem:[#allocation2 + $0x78] sm:$0xf] %v2085
  %2094 = vst [vmem:[#allocation2 + $0x7c] sm:$0xf] %v2086
  %s2095 = scalar_lea.vmem %s2, 768
  %v2096 = vld [vmem:[%s2095] sm:$0xf]
  %v2097 = vld [vmem:[%s2095 + $0x4] sm:$0xf]
  %v2098 = vld [vmem:[%s2095 + $0x8] sm:$0xf]
  %v2099 = vld [vmem:[%s2095 + $0xc] sm:$0xf]
  %v2100 = vld [vmem:[%s2095 + $0x10] sm:$0xf]
  %v2101 = vld [vmem:[%s2095 + $0x14] sm:$0xf]
  %v2102 = vld [vmem:[%s2095 + $0x18] sm:$0xf]
  %v2103 = vld [vmem:[%s2095 + $0x1c] sm:$0xf]
  %v2104 = vld [vmem:[%s2095 + $0x20] sm:$0xf]
  %v2105 = vld [vmem:[%s2095 + $0x24] sm:$0xf]
  %v2106 = vld [vmem:[%s2095 + $0x28] sm:$0xf]
  %v2107 = vld [vmem:[%s2095 + $0x2c] sm:$0xf]
  %v2108 = vld [vmem:[%s2095 + $0x30] sm:$0xf]
  %v2109 = vld [vmem:[%s2095 + $0x34] sm:$0xf]
  %v2110 = vld [vmem:[%s2095 + $0x38] sm:$0xf]
  %v2111 = vld [vmem:[%s2095 + $0x3c] sm:$0xf]
  %v2128 = vunpack.c.l.b16 %v2096
  %v2129 = vunpack.c.l.b16 %v2097
  %v2130 = vunpack.c.l.b16 %v2098
  %v2131 = vunpack.c.l.b16 %v2099
  %v2132 = vunpack.c.l.b16 %v2100
  %v2133 = vunpack.c.l.b16 %v2101
  %v2134 = vunpack.c.l.b16 %v2102
  %v2135 = vunpack.c.l.b16 %v2103
  %v2136 = vunpack.c.l.b16 %v2104
  %v2137 = vunpack.c.l.b16 %v2105
  %v2138 = vunpack.c.l.b16 %v2106
  %v2139 = vunpack.c.l.b16 %v2107
  %v2140 = vunpack.c.l.b16 %v2108
  %v2141 = vunpack.c.l.b16 %v2109
  %v2142 = vunpack.c.l.b16 %v2110
  %v2143 = vunpack.c.l.b16 %v2111
  %v2144 = vpack.c.b16 %v2129, %v2128
  %v2145 = vpack.c.b16 %v2131, %v2130
  %v2146 = vpack.c.b16 %v2133, %v2132
  %v2147 = vpack.c.b16 %v2135, %v2134
  %v2148 = vpack.c.b16 %v2137, %v2136
  %v2149 = vpack.c.b16 %v2139, %v2138
  %v2150 = vpack.c.b16 %v2141, %v2140
  %v2151 = vpack.c.b16 %v2143, %v2142
  %2160 = vmatpush.bf16.msra.mxu0 %v2151
  %2161 = vmatpush.bf16.msra.mxu0 %v2150
  %2162 = vmatpush.bf16.msra.mxu0 %v2149
  %2163 = vmatpush.bf16.msra.mxu0 %v2148
  %2164 = vmatpush.bf16.msra.mxu0 %v2147
  %2165 = vmatpush.bf16.msra.mxu0 %v2146
  %2166 = vmatpush.bf16.msra.mxu0 %v2145
  %2167 = vmatpush.bf16.msra.mxu0 %v2144
  %2168 = vmatmul.bf16.gmra.mxu0 %v1651
  %v2169 = vpop.f32.mrf.mxu0
  %v2170 = vadd.f32 0.0, %v2169
  %v2171 = vpop.f32.mrf.mxu0
  %v2172 = vadd.f32 0.0, %v2171
  %2173 = vmatmul.bf16.gmra.mxu0 %v1652
  %v2174 = vpop.f32.mrf.mxu0
  %v2175 = vadd.f32 0.0, %v2174
  %v2176 = vpop.f32.mrf.mxu0
  %v2177 = vadd.f32 0.0, %v2176
  %2178 = vmatmul.bf16.gmra.mxu0 %v1653
  %v2179 = vpop.f32.mrf.mxu0
  %v2180 = vadd.f32 0.0, %v2179
  %v2181 = vpop.f32.mrf.mxu0
  %v2182 = vadd.f32 0.0, %v2181
  %2183 = vmatmul.bf16.gmra.mxu0 %v1654
  %v2184 = vpop.f32.mrf.mxu0
  %v2185 = vadd.f32 0.0, %v2184
  %v2186 = vpop.f32.mrf.mxu0
  %v2187 = vadd.f32 0.0, %v2186
  %2188 = vdwg.mxu0
  %v2189 = vpack.c.bf16 %v2170, %v2170
  %v2190 = vpack.c.bf16 %v2172, %v2172
  %v2191 = vpack.c.bf16 %v2175, %v2175
  %v2192 = vpack.c.bf16 %v2177, %v2177
  %v2193 = vpack.c.bf16 %v2180, %v2180
  %v2194 = vpack.c.bf16 %v2182, %v2182
  %v2195 = vpack.c.bf16 %v2185, %v2185
  %v2196 = vpack.c.bf16 %v2187, %v2187
  %2197 = vst [vmem:[#allocation2 + $0x80] sm:$0xf] %v2189
  %2198 = vst [vmem:[#allocation2 + $0x84] sm:$0xf] %v2190
  %2199 = vst [vmem:[#allocation2 + $0x88] sm:$0xf] %v2191
  %2200 = vst [vmem:[#allocation2 + $0x8c] sm:$0xf] %v2192
  %2201 = vst [vmem:[#allocation2 + $0x90] sm:$0xf] %v2193
  %2202 = vst [vmem:[#allocation2 + $0x94] sm:$0xf] %v2194
  %2203 = vst [vmem:[#allocation2 + $0x98] sm:$0xf] %v2195
  %2204 = vst [vmem:[#allocation2 + $0x9c] sm:$0xf] %v2196
  %s2205 = scalar_lea.vmem %s2, 832
  %v2206 = vld [vmem:[%s2205] sm:$0xf]
  %v2207 = vld [vmem:[%s2205 + $0x4] sm:$0xf]
  %v2208 = vld [vmem:[%s2205 + $0x8] sm:$0xf]
  %v2209 = vld [vmem:[%s2205 + $0xc] sm:$0xf]
  %v2210 = vld [vmem:[%s2205 + $0x10] sm:$0xf]
  %v2211 = vld [vmem:[%s2205 + $0x14] sm:$0xf]
  %v2212 = vld [vmem:[%s2205 + $0x18] sm:$0xf]
  %v2213 = vld [vmem:[%s2205 + $0x1c] sm:$0xf]
  %v2214 = vld [vmem:[%s2205 + $0x20] sm:$0xf]
  %v2215 = vld [vmem:[%s2205 + $0x24] sm:$0xf]
  %v2216 = vld [vmem:[%s2205 + $0x28] sm:$0xf]
  %v2217 = vld [vmem:[%s2205 + $0x2c] sm:$0xf]
  %v2218 = vld [vmem:[%s2205 + $0x30] sm:$0xf]
  %v2219 = vld [vmem:[%s2205 + $0x34] sm:$0xf]
  %v2220 = vld [vmem:[%s2205 + $0x38] sm:$0xf]
  %v2221 = vld [vmem:[%s2205 + $0x3c] sm:$0xf]
  %v2238 = vunpack.c.l.b16 %v2206
  %v2239 = vunpack.c.l.b16 %v2207
  %v2240 = vunpack.c.l.b16 %v2208
  %v2241 = vunpack.c.l.b16 %v2209
  %v2242 = vunpack.c.l.b16 %v2210
  %v2243 = vunpack.c.l.b16 %v2211
  %v2244 = vunpack.c.l.b16 %v2212
  %v2245 = vunpack.c.l.b16 %v2213
  %v2246 = vunpack.c.l.b16 %v2214
  %v2247 = vunpack.c.l.b16 %v2215
  %v2248 = vunpack.c.l.b16 %v2216
  %v2249 = vunpack.c.l.b16 %v2217
  %v2250 = vunpack.c.l.b16 %v2218
  %v2251 = vunpack.c.l.b16 %v2219
  %v2252 = vunpack.c.l.b16 %v2220
  %v2253 = vunpack.c.l.b16 %v2221
  %v2254 = vpack.c.b16 %v2239, %v2238
  %v2255 = vpack.c.b16 %v2241, %v2240
  %v2256 = vpack.c.b16 %v2243, %v2242
  %v2257 = vpack.c.b16 %v2245, %v2244
  %v2258 = vpack.c.b16 %v2247, %v2246
  %v2259 = vpack.c.b16 %v2249, %v2248
  %v2260 = vpack.c.b16 %v2251, %v2250
  %v2261 = vpack.c.b16 %v2253, %v2252
  %2270 = vmatpush.bf16.msra.mxu0 %v2261
  %2271 = vmatpush.bf16.msra.mxu0 %v2260
  %2272 = vmatpush.bf16.msra.mxu0 %v2259
  %2273 = vmatpush.bf16.msra.mxu0 %v2258
  %2274 = vmatpush.bf16.msra.mxu0 %v2257
  %2275 = vmatpush.bf16.msra.mxu0 %v2256
  %2276 = vmatpush.bf16.msra.mxu0 %v2255
  %2277 = vmatpush.bf16.msra.mxu0 %v2254
  %2278 = vmatmul.bf16.gmra.mxu0 %v1651
  %v2279 = vpop.f32.mrf.mxu0
  %v2280 = vadd.f32 0.0, %v2279
  %v2281 = vpop.f32.mrf.mxu0
  %v2282 = vadd.f32 0.0, %v2281
  %2283 = vmatmul.bf16.gmra.mxu0 %v1652
  %v2284 = vpop.f32.mrf.mxu0
  %v2285 = vadd.f32 0.0, %v2284
  %v2286 = vpop.f32.mrf.mxu0
  %v2287 = vadd.f32 0.0, %v2286
  %2288 = vmatmul.bf16.gmra.mxu0 %v1653
  %v2289 = vpop.f32.mrf.mxu0
  %v2290 = vadd.f32 0.0, %v2289
  %v2291 = vpop.f32.mrf.mxu0
  %v2292 = vadd.f32 0.0, %v2291
  %2293 = vmatmul.bf16.gmra.mxu0 %v1654
  %v2294 = vpop.f32.mrf.mxu0
  %v2295 = vadd.f32 0.0, %v2294
  %v2296 = vpop.f32.mrf.mxu0
  %v2297 = vadd.f32 0.0, %v2296
  %2298 = vdwg.mxu0
  %v2299 = vpack.c.bf16 %v2280, %v2280
  %v2300 = vpack.c.bf16 %v2282, %v2282
  %v2301 = vpack.c.bf16 %v2285, %v2285
  %v2302 = vpack.c.bf16 %v2287, %v2287
  %v2303 = vpack.c.bf16 %v2290, %v2290
  %v2304 = vpack.c.bf16 %v2292, %v2292
  %v2305 = vpack.c.bf16 %v2295, %v2295
  %v2306 = vpack.c.bf16 %v2297, %v2297
  %2307 = vst [vmem:[#allocation2 + $0xa0] sm:$0xf] %v2299
  %2308 = vst [vmem:[#allocation2 + $0xa4] sm:$0xf] %v2300
  %2309 = vst [vmem:[#allocation2 + $0xa8] sm:$0xf] %v2301
  %2310 = vst [vmem:[#allocation2 + $0xac] sm:$0xf] %v2302
  %2311 = vst [vmem:[#allocation2 + $0xb0] sm:$0xf] %v2303
  %2312 = vst [vmem:[#allocation2 + $0xb4] sm:$0xf] %v2304
  %2313 = vst [vmem:[#allocation2 + $0xb8] sm:$0xf] %v2305
  %2314 = vst [vmem:[#allocation2 + $0xbc] sm:$0xf] %v2306
  %s2315 = scalar_lea.vmem %s2, 896
  %v2316 = vld [vmem:[%s2315] sm:$0xf]
  %v2317 = vld [vmem:[%s2315 + $0x4] sm:$0xf]
  %v2318 = vld [vmem:[%s2315 + $0x8] sm:$0xf]
  %v2319 = vld [vmem:[%s2315 + $0xc] sm:$0xf]
  %v2320 = vld [vmem:[%s2315 + $0x10] sm:$0xf]
  %v2321 = vld [vmem:[%s2315 + $0x14] sm:$0xf]
  %v2322 = vld [vmem:[%s2315 + $0x18] sm:$0xf]
  %v2323 = vld [vmem:[%s2315 + $0x1c] sm:$0xf]
  %v2324 = vld [vmem:[%s2315 + $0x20] sm:$0xf]
  %v2325 = vld [vmem:[%s2315 + $0x24] sm:$0xf]
  %v2326 = vld [vmem:[%s2315 + $0x28] sm:$0xf]
  %v2327 = vld [vmem:[%s2315 + $0x2c] sm:$0xf]
  %v2328 = vld [vmem:[%s2315 + $0x30] sm:$0xf]
  %v2329 = vld [vmem:[%s2315 + $0x34] sm:$0xf]
  %v2330 = vld [vmem:[%s2315 + $0x38] sm:$0xf]
  %v2331 = vld [vmem:[%s2315 + $0x3c] sm:$0xf]
  %v2348 = vunpack.c.l.b16 %v2316
  %v2349 = vunpack.c.l.b16 %v2317
  %v2350 = vunpack.c.l.b16 %v2318
  %v2351 = vunpack.c.l.b16 %v2319
  %v2352 = vunpack.c.l.b16 %v2320
  %v2353 = vunpack.c.l.b16 %v2321
  %v2354 = vunpack.c.l.b16 %v2322
  %v2355 = vunpack.c.l.b16 %v2323
  %v2356 = vunpack.c.l.b16 %v2324
  %v2357 = vunpack.c.l.b16 %v2325
  %v2358 = vunpack.c.l.b16 %v2326
  %v2359 = vunpack.c.l.b16 %v2327
  %v2360 = vunpack.c.l.b16 %v2328
  %v2361 = vunpack.c.l.b16 %v2329
  %v2362 = vunpack.c.l.b16 %v2330
  %v2363 = vunpack.c.l.b16 %v2331
  %v2364 = vpack.c.b16 %v2349, %v2348
  %v2365 = vpack.c.b16 %v2351, %v2350
  %v2366 = vpack.c.b16 %v2353, %v2352
  %v2367 = vpack.c.b16 %v2355, %v2354
  %v2368 = vpack.c.b16 %v2357, %v2356
  %v2369 = vpack.c.b16 %v2359, %v2358
  %v2370 = vpack.c.b16 %v2361, %v2360
  %v2371 = vpack.c.b16 %v2363, %v2362
  %2380 = vmatpush.bf16.msra.mxu0 %v2371
  %2381 = vmatpush.bf16.msra.mxu0 %v2370
  %2382 = vmatpush.bf16.msra.mxu0 %v2369
  %2383 = vmatpush.bf16.msra.mxu0 %v2368
  %2384 = vmatpush.bf16.msra.mxu0 %v2367
  %2385 = vmatpush.bf16.msra.mxu0 %v2366
  %2386 = vmatpush.bf16.msra.mxu0 %v2365
  %2387 = vmatpush.bf16.msra.mxu0 %v2364
  %2388 = vmatmul.bf16.gmra.mxu0 %v1651
  %v2389 = vpop.f32.mrf.mxu0
  %v2390 = vadd.f32 0.0, %v2389
  %v2391 = vpop.f32.mrf.mxu0
  %v2392 = vadd.f32 0.0, %v2391
  %2393 = vmatmul.bf16.gmra.mxu0 %v1652
  %v2394 = vpop.f32.mrf.mxu0
  %v2395 = vadd.f32 0.0, %v2394
  %v2396 = vpop.f32.mrf.mxu0
  %v2397 = vadd.f32 0.0, %v2396
  %2398 = vmatmul.bf16.gmra.mxu0 %v1653
  %v2399 = vpop.f32.mrf.mxu0
  %v2400 = vadd.f32 0.0, %v2399
  %v2401 = vpop.f32.mrf.mxu0
  %v2402 = vadd.f32 0.0, %v2401
  %2403 = vmatmul.bf16.gmra.mxu0 %v1654
  %v2404 = vpop.f32.mrf.mxu0
  %v2405 = vadd.f32 0.0, %v2404
  %v2406 = vpop.f32.mrf.mxu0
  %v2407 = vadd.f32 0.0, %v2406
  %2408 = vdwg.mxu0
  %v2409 = vpack.c.bf16 %v2390, %v2390
  %v2410 = vpack.c.bf16 %v2392, %v2392
  %v2411 = vpack.c.bf16 %v2395, %v2395
  %v2412 = vpack.c.bf16 %v2397, %v2397
  %v2413 = vpack.c.bf16 %v2400, %v2400
  %v2414 = vpack.c.bf16 %v2402, %v2402
  %v2415 = vpack.c.bf16 %v2405, %v2405
  %v2416 = vpack.c.bf16 %v2407, %v2407
  %2417 = vst [vmem:[#allocation2 + $0xc0] sm:$0xf] %v2409
  %2418 = vst [vmem:[#allocation2 + $0xc4] sm:$0xf] %v2410
  %2419 = vst [vmem:[#allocation2 + $0xc8] sm:$0xf] %v2411
  %2420 = vst [vmem:[#allocation2 + $0xcc] sm:$0xf] %v2412
  %2421 = vst [vmem:[#allocation2 + $0xd0] sm:$0xf] %v2413
  %2422 = vst [vmem:[#allocation2 + $0xd4] sm:$0xf] %v2414
  %2423 = vst [vmem:[#allocation2 + $0xd8] sm:$0xf] %v2415
  %2424 = vst [vmem:[#allocation2 + $0xdc] sm:$0xf] %v2416
  %s2425 = scalar_lea.vmem %s2, 960
  %v2426 = vld [vmem:[%s2425] sm:$0xf]
  %v2427 = vld [vmem:[%s2425 + $0x4] sm:$0xf]
  %v2428 = vld [vmem:[%s2425 + $0x8] sm:$0xf]
  %v2429 = vld [vmem:[%s2425 + $0xc] sm:$0xf]
  %v2430 = vld [vmem:[%s2425 + $0x10] sm:$0xf]
  %v2431 = vld [vmem:[%s2425 + $0x14] sm:$0xf]
  %v2432 = vld [vmem:[%s2425 + $0x18] sm:$0xf]
  %v2433 = vld [vmem:[%s2425 + $0x1c] sm:$0xf]
  %v2434 = vld [vmem:[%s2425 + $0x20] sm:$0xf]
  %v2435 = vld [vmem:[%s2425 + $0x24] sm:$0xf]
  %v2436 = vld [vmem:[%s2425 + $0x28] sm:$0xf]
  %v2437 = vld [vmem:[%s2425 + $0x2c] sm:$0xf]
  %v2438 = vld [vmem:[%s2425 + $0x30] sm:$0xf]
  %v2439 = vld [vmem:[%s2425 + $0x34] sm:$0xf]
  %v2440 = vld [vmem:[%s2425 + $0x38] sm:$0xf]
  %v2441 = vld [vmem:[%s2425 + $0x3c] sm:$0xf]
  %v2458 = vunpack.c.l.b16 %v2426
  %v2459 = vunpack.c.l.b16 %v2427
  %v2460 = vunpack.c.l.b16 %v2428
  %v2461 = vunpack.c.l.b16 %v2429
  %v2462 = vunpack.c.l.b16 %v2430
  %v2463 = vunpack.c.l.b16 %v2431
  %v2464 = vunpack.c.l.b16 %v2432
  %v2465 = vunpack.c.l.b16 %v2433
  %v2466 = vunpack.c.l.b16 %v2434
  %v2467 = vunpack.c.l.b16 %v2435
  %v2468 = vunpack.c.l.b16 %v2436
  %v2469 = vunpack.c.l.b16 %v2437
  %v2470 = vunpack.c.l.b16 %v2438
  %v2471 = vunpack.c.l.b16 %v2439
  %v2472 = vunpack.c.l.b16 %v2440
  %v2473 = vunpack.c.l.b16 %v2441
  %v2474 = vpack.c.b16 %v2459, %v2458
  %v2475 = vpack.c.b16 %v2461, %v2460
  %v2476 = vpack.c.b16 %v2463, %v2462
  %v2477 = vpack.c.b16 %v2465, %v2464
  %v2478 = vpack.c.b16 %v2467, %v2466
  %v2479 = vpack.c.b16 %v2469, %v2468
  %v2480 = vpack.c.b16 %v2471, %v2470
  %v2481 = vpack.c.b16 %v2473, %v2472
  %2490 = vmatpush.bf16.msra.mxu0 %v2481
  %2491 = vmatpush.bf16.msra.mxu0 %v2480
  %2492 = vmatpush.bf16.msra.mxu0 %v2479
  %2493 = vmatpush.bf16.msra.mxu0 %v2478
  %2494 = vmatpush.bf16.msra.mxu0 %v2477
  %2495 = vmatpush.bf16.msra.mxu0 %v2476
  %2496 = vmatpush.bf16.msra.mxu0 %v2475
  %2497 = vmatpush.bf16.msra.mxu0 %v2474
  %2498 = vmatmul.bf16.gmra.mxu0 %v1651
  %v2499 = vpop.f32.mrf.mxu0
  %v2500 = vadd.f32 0.0, %v2499
  %v2501 = vpop.f32.mrf.mxu0
  %v2502 = vadd.f32 0.0, %v2501
  %2503 = vmatmul.bf16.gmra.mxu0 %v1652
  %v2504 = vpop.f32.mrf.mxu0
  %v2505 = vadd.f32 0.0, %v2504
  %v2506 = vpop.f32.mrf.mxu0
  %v2507 = vadd.f32 0.0, %v2506
  %2508 = vmatmul.bf16.gmra.mxu0 %v1653
  %v2509 = vpop.f32.mrf.mxu0
  %v2510 = vadd.f32 0.0, %v2509
  %v2511 = vpop.f32.mrf.mxu0
  %v2512 = vadd.f32 0.0, %v2511
  %2513 = vmatmul.bf16.gmra.mxu0 %v1654
  %v2514 = vpop.f32.mrf.mxu0
  %v2515 = vadd.f32 0.0, %v2514
  %v2516 = vpop.f32.mrf.mxu0
  %v2517 = vadd.f32 0.0, %v2516
  %2518 = vdwg.mxu0
  %v2519 = vpack.c.bf16 %v2500, %v2500
  %v2520 = vpack.c.bf16 %v2502, %v2502
  %v2521 = vpack.c.bf16 %v2505, %v2505
  %v2522 = vpack.c.bf16 %v2507, %v2507
  %v2523 = vpack.c.bf16 %v2510, %v2510
  %v2524 = vpack.c.bf16 %v2512, %v2512
  %v2525 = vpack.c.bf16 %v2515, %v2515
  %v2526 = vpack.c.bf16 %v2517, %v2517
  %2527 = vst [vmem:[#allocation2 + $0xe0] sm:$0xf] %v2519
  %2528 = vst [vmem:[#allocation2 + $0xe4] sm:$0xf] %v2520
  %2529 = vst [vmem:[#allocation2 + $0xe8] sm:$0xf] %v2521
  %2530 = vst [vmem:[#allocation2 + $0xec] sm:$0xf] %v2522
  %2531 = vst [vmem:[#allocation2 + $0xf0] sm:$0xf] %v2523
  %2532 = vst [vmem:[#allocation2 + $0xf4] sm:$0xf] %v2524
  %2533 = vst [vmem:[#allocation2 + $0xf8] sm:$0xf] %v2525
  %2534 = vst [vmem:[#allocation2 + $0xfc] sm:$0xf] %v2526
  %v2535 = vld [vmem:[#allocation2] sm:$0xf]
  %v2536 = vld [vmem:[#allocation2 + $0x4] sm:$0xf]
  %v2537 = vld [vmem:[#allocation2 + $0x8] sm:$0xf]
  %v2538 = vld [vmem:[#allocation2 + $0xc] sm:$0xf]
  %v2539 = vld [vmem:[#allocation2 + $0x10] sm:$0xf]
  %v2540 = vld [vmem:[#allocation2 + $0x14] sm:$0xf]
  %v2541 = vld [vmem:[#allocation2 + $0x18] sm:$0xf]
  %v2542 = vld [vmem:[#allocation2 + $0x1c] sm:$0xf]
  %v2543 = vld [vmem:[#allocation2 + $0x20] sm:$0xf]
  %v2544 = vld [vmem:[#allocation2 + $0x24] sm:$0xf]
  %v2545 = vld [vmem:[#allocation2 + $0x28] sm:$0xf]
  %v2546 = vld [vmem:[#allocation2 + $0x2c] sm:$0xf]
  %v2547 = vld [vmem:[#allocation2 + $0x30] sm:$0xf]
  %v2548 = vld [vmem:[#allocation2 + $0x34] sm:$0xf]
  %v2549 = vld [vmem:[#allocation2 + $0x38] sm:$0xf]
  %v2550 = vld [vmem:[#allocation2 + $0x3c] sm:$0xf]
  %v2551 = vld [vmem:[#allocation2 + $0x40] sm:$0xf]
  %v2552 = vld [vmem:[#allocation2 + $0x44] sm:$0xf]
  %v2553 = vld [vmem:[#allocation2 + $0x48] sm:$0xf]
  %v2554 = vld [vmem:[#allocation2 + $0x4c] sm:$0xf]
  %v2555 = vld [vmem:[#allocation2 + $0x50] sm:$0xf]
  %v2556 = vld [vmem:[#allocation2 + $0x54] sm:$0xf]
  %v2557 = vld [vmem:[#allocation2 + $0x58] sm:$0xf]
  %v2558 = vld [vmem:[#allocation2 + $0x5c] sm:$0xf]
  %v2559 = vld [vmem:[#allocation2 + $0x60] sm:$0xf]
  %v2560 = vld [vmem:[#allocation2 + $0x64] sm:$0xf]
  %v2561 = vld [vmem:[#allocation2 + $0x68] sm:$0xf]
  %v2562 = vld [vmem:[#allocation2 + $0x6c] sm:$0xf]
  %v2563 = vld [vmem:[#allocation2 + $0x70] sm:$0xf]
  %v2564 = vld [vmem:[#allocation2 + $0x74] sm:$0xf]
  %v2565 = vld [vmem:[#allocation2 + $0x78] sm:$0xf]
  %v2566 = vld [vmem:[#allocation2 + $0x7c] sm:$0xf]
  %v2567 = vld [vmem:[#allocation2 + $0x80] sm:$0xf]
  %v2568 = vld [vmem:[#allocation2 + $0x84] sm:$0xf]
  %v2569 = vld [vmem:[#allocation2 + $0x88] sm:$0xf]
  %v2570 = vld [vmem:[#allocation2 + $0x8c] sm:$0xf]
  %v2571 = vld [vmem:[#allocation2 + $0x90] sm:$0xf]
  %v2572 = vld [vmem:[#allocation2 + $0x94] sm:$0xf]
  %v2573 = vld [vmem:[#allocation2 + $0x98] sm:$0xf]
  %v2574 = vld [vmem:[#allocation2 + $0x9c] sm:$0xf]
  %v2575 = vld [vmem:[#allocation2 + $0xa0] sm:$0xf]
  %v2576 = vld [vmem:[#allocation2 + $0xa4] sm:$0xf]
  %v2577 = vld [vmem:[#allocation2 + $0xa8] sm:$0xf]
  %v2578 = vld [vmem:[#allocation2 + $0xac] sm:$0xf]
  %v2579 = vld [vmem:[#allocation2 + $0xb0] sm:$0xf]
  %v2580 = vld [vmem:[#allocation2 + $0xb4] sm:$0xf]
  %v2581 = vld [vmem:[#allocation2 + $0xb8] sm:$0xf]
  %v2582 = vld [vmem:[#allocation2 + $0xbc] sm:$0xf]
  %v2583 = vld [vmem:[#allocation2 + $0xc0] sm:$0xf]
  %v2584 = vld [vmem:[#allocation2 + $0xc4] sm:$0xf]
  %v2585 = vld [vmem:[#allocation2 + $0xc8] sm:$0xf]
  %v2586 = vld [vmem:[#allocation2 + $0xcc] sm:$0xf]
  %v2587 = vld [vmem:[#allocation2 + $0xd0] sm:$0xf]
  %v2588 = vld [vmem:[#allocation2 + $0xd4] sm:$0xf]
  %v2589 = vld [vmem:[#allocation2 + $0xd8] sm:$0xf]
  %v2590 = vld [vmem:[#allocation2 + $0xdc] sm:$0xf]
  %v2591 = vld [vmem:[#allocation2 + $0xe0] sm:$0xf]
  %v2592 = vld [vmem:[#allocation2 + $0xe4] sm:$0xf]
  %v2593 = vld [vmem:[#allocation2 + $0xe8] sm:$0xf]
  %v2594 = vld [vmem:[#allocation2 + $0xec] sm:$0xf]
  %v2595 = vld [vmem:[#allocation2 + $0xf0] sm:$0xf]
  %v2596 = vld [vmem:[#allocation2 + $0xf4] sm:$0xf]
  %v2597 = vld [vmem:[#allocation2 + $0xf8] sm:$0xf]
  %v2598 = vld [vmem:[#allocation2 + $0xfc] sm:$0xf]
  %v2663 = vunpack.c.l.b16 %v2535
  %v2664 = vunpack.c.l.b16 %v2536
  %v2665 = vunpack.c.l.b16 %v2537
  %v2666 = vunpack.c.l.b16 %v2538
  %v2667 = vunpack.c.l.b16 %v2539
  %v2668 = vunpack.c.l.b16 %v2540
  %v2669 = vunpack.c.l.b16 %v2541
  %v2670 = vunpack.c.l.b16 %v2542
  %v2671 = vunpack.c.l.b16 %v2543
  %v2672 = vunpack.c.l.b16 %v2544
  %v2673 = vunpack.c.l.b16 %v2545
  %v2674 = vunpack.c.l.b16 %v2546
  %v2675 = vunpack.c.l.b16 %v2547
  %v2676 = vunpack.c.l.b16 %v2548
  %v2677 = vunpack.c.l.b16 %v2549
  %v2678 = vunpack.c.l.b16 %v2550
  %v2679 = vunpack.c.l.b16 %v2551
  %v2680 = vunpack.c.l.b16 %v2552
  %v2681 = vunpack.c.l.b16 %v2553
  %v2682 = vunpack.c.l.b16 %v2554
  %v2683 = vunpack.c.l.b16 %v2555
  %v2684 = vunpack.c.l.b16 %v2556
  %v2685 = vunpack.c.l.b16 %v2557
  %v2686 = vunpack.c.l.b16 %v2558
  %v2687 = vunpack.c.l.b16 %v2559
  %v2688 = vunpack.c.l.b16 %v2560
  %v2689 = vunpack.c.l.b16 %v2561
  %v2690 = vunpack.c.l.b16 %v2562
  %v2691 = vunpack.c.l.b16 %v2563
  %v2692 = vunpack.c.l.b16 %v2564
  %v2693 = vunpack.c.l.b16 %v2565
  %v2694 = vunpack.c.l.b16 %v2566
  %v2695 = vunpack.c.l.b16 %v2567
  %v2696 = vunpack.c.l.b16 %v2568
  %v2697 = vunpack.c.l.b16 %v2569
  %v2698 = vunpack.c.l.b16 %v2570
  %v2699 = vunpack.c.l.b16 %v2571
  %v2700 = vunpack.c.l.b16 %v2572
  %v2701 = vunpack.c.l.b16 %v2573
  %v2702 = vunpack.c.l.b16 %v2574
  %v2703 = vunpack.c.l.b16 %v2575
  %v2704 = vunpack.c.l.b16 %v2576
  %v2705 = vunpack.c.l.b16 %v2577
  %v2706 = vunpack.c.l.b16 %v2578
  %v2707 = vunpack.c.l.b16 %v2579
  %v2708 = vunpack.c.l.b16 %v2580
  %v2709 = vunpack.c.l.b16 %v2581
  %v2710 = vunpack.c.l.b16 %v2582
  %v2711 = vunpack.c.l.b16 %v2583
  %v2712 = vunpack.c.l.b16 %v2584
  %v2713 = vunpack.c.l.b16 %v2585
  %v2714 = vunpack.c.l.b16 %v2586
  %v2715 = vunpack.c.l.b16 %v2587
  %v2716 = vunpack.c.l.b16 %v2588
  %v2717 = vunpack.c.l.b16 %v2589
  %v2718 = vunpack.c.l.b16 %v2590
  %v2719 = vunpack.c.l.b16 %v2591
  %v2720 = vunpack.c.l.b16 %v2592
  %v2721 = vunpack.c.l.b16 %v2593
  %v2722 = vunpack.c.l.b16 %v2594
  %v2723 = vunpack.c.l.b16 %v2595
  %v2724 = vunpack.c.l.b16 %v2596
  %v2725 = vunpack.c.l.b16 %v2597
  %v2726 = vunpack.c.l.b16 %v2598
  %v2727 = vpack.c.b16 %v2664, %v2663
  %v2728 = vpack.c.b16 %v2666, %v2665
  %v2729 = vpack.c.b16 %v2668, %v2667
  %v2730 = vpack.c.b16 %v2670, %v2669
  %v2731 = vpack.c.b16 %v2672, %v2671
  %v2732 = vpack.c.b16 %v2674, %v2673
  %v2733 = vpack.c.b16 %v2676, %v2675
  %v2734 = vpack.c.b16 %v2678, %v2677
  %v2735 = vpack.c.b16 %v2680, %v2679
  %v2736 = vpack.c.b16 %v2682, %v2681
  %v2737 = vpack.c.b16 %v2684, %v2683
  %v2738 = vpack.c.b16 %v2686, %v2685
  %v2739 = vpack.c.b16 %v2688, %v2687
  %v2740 = vpack.c.b16 %v2690, %v2689
  %v2741 = vpack.c.b16 %v2692, %v2691
  %v2742 = vpack.c.b16 %v2694, %v2693
  %v2743 = vpack.c.b16 %v2696, %v2695
  %v2744 = vpack.c.b16 %v2698, %v2697
  %v2745 = vpack.c.b16 %v2700, %v2699
  %v2746 = vpack.c.b16 %v2702, %v2701
  %v2747 = vpack.c.b16 %v2704, %v2703
  %v2748 = vpack.c.b16 %v2706, %v2705
  %v2749 = vpack.c.b16 %v2708, %v2707
  %v2750 = vpack.c.b16 %v2710, %v2709
  %v2751 = vpack.c.b16 %v2712, %v2711
  %v2752 = vpack.c.b16 %v2714, %v2713
  %v2753 = vpack.c.b16 %v2716, %v2715
  %v2754 = vpack.c.b16 %v2718, %v2717
  %v2755 = vpack.c.b16 %v2720, %v2719
  %v2756 = vpack.c.b16 %v2722, %v2721
  %v2757 = vpack.c.b16 %v2724, %v2723
  %v2758 = vpack.c.b16 %v2726, %v2725
  %2791 = vmatpush.bf16.msra.mxu0 %v2734
  %2792 = vmatpush.bf16.msra.mxu0 %v2733
  %2793 = vmatpush.bf16.msra.mxu0 %v2732
  %2794 = vmatpush.bf16.msra.mxu0 %v2731
  %2795 = vmatpush.bf16.msra.mxu0 %v2730
  %2796 = vmatpush.bf16.msra.mxu0 %v2729
  %2797 = vmatpush.bf16.msra.mxu0 %v2728
  %2798 = vmatpush.bf16.msra.mxu0 %v2727
  %2799 = vmatmul.bf16.gmra.mxu0 %v1064
  %v2800 = vpop.f32.mrf.mxu0
  %v2801 = vadd.f32 0.0, %v2800
  %v2802 = vpop.f32.mrf.mxu0
  %v2803 = vadd.f32 0.0, %v2802
  %2804 = vmatmul.bf16.gmra.mxu0 %v1068
  %v2805 = vpop.f32.mrf.mxu0
  %v2806 = vadd.f32 0.0, %v2805
  %v2807 = vpop.f32.mrf.mxu0
  %v2808 = vadd.f32 0.0, %v2807
  %2809 = vmatmul.bf16.gmra.mxu0 %v1072
  %v2810 = vpop.f32.mrf.mxu0
  %v2811 = vadd.f32 0.0, %v2810
  %v2812 = vpop.f32.mrf.mxu0
  %v2813 = vadd.f32 0.0, %v2812
  %2814 = vmatmul.bf16.gmra.mxu0 %v1076
  %v2815 = vpop.f32.mrf.mxu0
  %v2816 = vadd.f32 0.0, %v2815
  %v2817 = vpop.f32.mrf.mxu0
  %v2818 = vadd.f32 0.0, %v2817
  %2819 = vdwg.mxu0
  %2820 = vmatpush.bf16.msra.mxu0 %v2742
  %2821 = vmatpush.bf16.msra.mxu0 %v2741
  %2822 = vmatpush.bf16.msra.mxu0 %v2740
  %2823 = vmatpush.bf16.msra.mxu0 %v2739
  %2824 = vmatpush.bf16.msra.mxu0 %v2738
  %2825 = vmatpush.bf16.msra.mxu0 %v2737
  %2826 = vmatpush.bf16.msra.mxu0 %v2736
  %2827 = vmatpush.bf16.msra.mxu0 %v2735
  %2828 = vmatmul.bf16.gmra.mxu0 %v1065
  %v2829 = vpop.f32.mrf.mxu0
  %v2830 = vadd.f32 %v2801, %v2829
  %v2831 = vpop.f32.mrf.mxu0
  %v2832 = vadd.f32 %v2803, %v2831
  %2833 = vmatmul.bf16.gmra.mxu0 %v1069
  %v2834 = vpop.f32.mrf.mxu0
  %v2835 = vadd.f32 %v2806, %v2834
  %v2836 = vpop.f32.mrf.mxu0
  %v2837 = vadd.f32 %v2808, %v2836
  %2838 = vmatmul.bf16.gmra.mxu0 %v1073
  %v2839 = vpop.f32.mrf.mxu0
  %v2840 = vadd.f32 %v2811, %v2839
  %v2841 = vpop.f32.mrf.mxu0
  %v2842 = vadd.f32 %v2813, %v2841
  %2843 = vmatmul.bf16.gmra.mxu0 %v1077
  %v2844 = vpop.f32.mrf.mxu0
  %v2845 = vadd.f32 %v2816, %v2844
  %v2846 = vpop.f32.mrf.mxu0
  %v2847 = vadd.f32 %v2818, %v2846
  %2848 = vdwg.mxu0
  %2849 = vmatpush.bf16.msra.mxu0 %v2750
  %2850 = vmatpush.bf16.msra.mxu0 %v2749
  %2851 = vmatpush.bf16.msra.mxu0 %v2748
  %2852 = vmatpush.bf16.msra.mxu0 %v2747
  %2853 = vmatpush.bf16.msra.mxu0 %v2746
  %2854 = vmatpush.bf16.msra.mxu0 %v2745
  %2855 = vmatpush.bf16.msra.mxu0 %v2744
  %2856 = vmatpush.bf16.msra.mxu0 %v2743
  %2857 = vmatmul.bf16.gmra.mxu0 %v1066
  %v2858 = vpop.f32.mrf.mxu0
  %v2859 = vadd.f32 %v2830, %v2858
  %v2860 = vpop.f32.mrf.mxu0
  %v2861 = vadd.f32 %v2832, %v2860
  %2862 = vmatmul.bf16.gmra.mxu0 %v1070
  %v2863 = vpop.f32.mrf.mxu0
  %v2864 = vadd.f32 %v2835, %v2863
  %v2865 = vpop.f32.mrf.mxu0
  %v2866 = vadd.f32 %v2837, %v2865
  %2867 = vmatmul.bf16.gmra.mxu0 %v1074
  %v2868 = vpop.f32.mrf.mxu0
  %v2869 = vadd.f32 %v2840, %v2868
  %v2870 = vpop.f32.mrf.mxu0
  %v2871 = vadd.f32 %v2842, %v2870
  %2872 = vmatmul.bf16.gmra.mxu0 %v1078
  %v2873 = vpop.f32.mrf.mxu0
  %v2874 = vadd.f32 %v2845, %v2873
  %v2875 = vpop.f32.mrf.mxu0
  %v2876 = vadd.f32 %v2847, %v2875
  %2877 = vdwg.mxu0
  %2878 = vmatpush.bf16.msra.mxu0 %v2758
  %2879 = vmatpush.bf16.msra.mxu0 %v2757
  %2880 = vmatpush.bf16.msra.mxu0 %v2756
  %2881 = vmatpush.bf16.msra.mxu0 %v2755
  %2882 = vmatpush.bf16.msra.mxu0 %v2754
  %2883 = vmatpush.bf16.msra.mxu0 %v2753
  %2884 = vmatpush.bf16.msra.mxu0 %v2752
  %2885 = vmatpush.bf16.msra.mxu0 %v2751
  %2886 = vmatmul.bf16.gmra.mxu0 %v1067
  %v2887 = vpop.f32.mrf.mxu0
  %v2888 = vadd.f32 %v2859, %v2887
  %v2889 = vpop.f32.mrf.mxu0
  %v2890 = vadd.f32 %v2861, %v2889
  %2891 = vmatmul.bf16.gmra.mxu0 %v1071
  %v2892 = vpop.f32.mrf.mxu0
  %v2893 = vadd.f32 %v2864, %v2892
  %v2894 = vpop.f32.mrf.mxu0
  %v2895 = vadd.f32 %v2866, %v2894
  %2896 = vmatmul.bf16.gmra.mxu0 %v1075
  %v2897 = vpop.f32.mrf.mxu0
  %v2898 = vadd.f32 %v2869, %v2897
  %v2899 = vpop.f32.mrf.mxu0
  %v2900 = vadd.f32 %v2871, %v2899
  %2901 = vmatmul.bf16.gmra.mxu0 %v1079
  %v2902 = vpop.f32.mrf.mxu0
  %v2903 = vadd.f32 %v2874, %v2902
  %v2904 = vpop.f32.mrf.mxu0
  %v2905 = vadd.f32 %v2876, %v2904
  %2906 = vdwg.mxu0
  %v2907 = vmul.f32 %v2888, %v1407
  %v2908 = vmul.f32 %v2890, %v1412
  %v2909 = vmul.f32 %v2893, %v1417
  %v2910 = vmul.f32 %v2895, %v1422
  %v2911 = vmul.f32 %v2898, %v1427
  %v2912 = vmul.f32 %v2900, %v1432
  %v2913 = vmul.f32 %v2903, %v1437
  %v2914 = vmul.f32 %v2905, %v1442
  %vm2915 = vcmp.gt.f32.partialorder %v2907, 0.0
  %vm2916 = vcmp.gt.f32.partialorder %v2908, 0.0
  %vm2917 = vcmp.gt.f32.partialorder %v2909, 0.0
  %vm2918 = vcmp.gt.f32.partialorder %v2910, 0.0
  %vm2919 = vcmp.gt.f32.partialorder %v2911, 0.0
  %vm2920 = vcmp.gt.f32.partialorder %v2912, 0.0
  %vm2921 = vcmp.gt.f32.partialorder %v2913, 0.0
  %vm2922 = vcmp.gt.f32.partialorder %v2914, 0.0
  %v2923 = vmin.f32 %v2907, 0.0
  %v2924 = vmin.f32 %v2908, 0.0
  %v2925 = vmin.f32 %v2909, 0.0
  %v2926 = vmin.f32 %v2910, 0.0
  %v2927 = vmin.f32 %v2911, 0.0
  %v2928 = vmin.f32 %v2912, 0.0
  %v2929 = vmin.f32 %v2913, 0.0
  %v2930 = vmin.f32 %v2914, 0.0
  %v2931 = vmul.f32 %v2923, 1.442695
  %v2932 = vpow.pop %v2931
  %v2933 = vmul.f32 %v2924, 1.442695
  %v2934 = vpow.pop %v2933
  %v2935 = vmul.f32 %v2925, 1.442695
  %v2936 = vpow.pop %v2935
  %v2937 = vmul.f32 %v2926, 1.442695
  %v2938 = vpow.pop %v2937
  %v2939 = vmul.f32 %v2927, 1.442695
  %v2940 = vpow.pop %v2939
  %v2941 = vmul.f32 %v2928, 1.442695
  %v2942 = vpow.pop %v2941
  %v2943 = vmul.f32 %v2929, 1.442695
  %v2944 = vpow.pop %v2943
  %v2945 = vmul.f32 %v2930, 1.442695
  %v2946 = vpow.pop %v2945
  %v2947 = vsub.f32 %v2932, 1.0
  %v2948 = vsub.f32 %v2934, 1.0
  %v2949 = vsub.f32 %v2936, 1.0
  %v2950 = vsub.f32 %v2938, 1.0
  %v2951 = vsub.f32 %v2940, 1.0
  %v2952 = vsub.f32 %v2942, 1.0
  %v2953 = vsub.f32 %v2944, 1.0
  %v2954 = vsub.f32 %v2946, 1.0
  %v2955 = vsel %vm2915, %v2907, %v2947
  %v2956 = vsel %vm2916, %v2908, %v2948
  %v2957 = vsel %vm2917, %v2909, %v2949
  %v2958 = vsel %vm2918, %v2910, %v2950
  %v2959 = vsel %vm2919, %v2911, %v2951
  %v2960 = vsel %vm2920, %v2912, %v2952
  %v2961 = vsel %vm2921, %v2913, %v2953
  %v2962 = vsel %vm2922, %v2914, %v2954
  %v2963 = vmul.f32 %v2955, %v1503
  %v2964 = vmul.f32 %v2956, %v1508
  %v2965 = vmul.f32 %v2957, %v1513
  %v2966 = vmul.f32 %v2958, %v1518
  %v2967 = vmul.f32 %v2959, %v1523
  %v2968 = vmul.f32 %v2960, %v1528
  %v2969 = vmul.f32 %v2961, %v1533
  %v2970 = vmul.f32 %v2962, %v1538
  %v2971 = vadd.f32 %v2963, %v2964
  %v2972 = vadd.f32 %v2971, %v2965
  %v2973 = vadd.f32 %v2972, %v2966
  %v2974 = vadd.f32 %v2973, %v2967
  %v2975 = vadd.f32 %v2974, %v2968
  %v2976 = vadd.f32 %v2975, %v2969
  %v2977 = vadd.f32 %v2976, %v2970
  %v2978 = vrot.slane %v2977, 4
  %v2979 = vadd.f32 %v2977, %v2978
  %v2980 = vrot.slane %v2979, 2
  %v2981 = vadd.f32 %v2979, %v2980
  %v2982 = vrot.slane %v2981, 1
  %v2983 = vadd.f32 %v2981, %v2982
  %v2984 = vmul.f32 %v2983, 0.015625
  %v2985 = vsub.f32 %v2955, %v2984
  %v2986 = vsub.f32 %v2956, %v2984
  %v2987 = vsub.f32 %v2957, %v2984
  %v2988 = vsub.f32 %v2958, %v2984
  %v2989 = vsub.f32 %v2959, %v2984
  %v2990 = vsub.f32 %v2960, %v2984
  %v2991 = vsub.f32 %v2961, %v2984
  %v2992 = vsub.f32 %v2962, %v2984
  %v2993 = vmul.f32 %v2985, %v1503
  %v2994 = vmul.f32 %v2986, %v1508
  %v2995 = vmul.f32 %v2987, %v1513
  %v2996 = vmul.f32 %v2988, %v1518
  %v2997 = vmul.f32 %v2989, %v1523
  %v2998 = vmul.f32 %v2990, %v1528
  %v2999 = vmul.f32 %v2991, %v1533
  %v3000 = vmul.f32 %v2992, %v1538
  %v3001 = vmul.f32 %v2993, %v2993
  %v3002 = vmul.f32 %v2994, %v2994
  %v3003 = vmul.f32 %v2995, %v2995
  %v3004 = vmul.f32 %v2996, %v2996
  %v3005 = vmul.f32 %v2997, %v2997
  %v3006 = vmul.f32 %v2998, %v2998
  %v3007 = vmul.f32 %v2999, %v2999
  %v3008 = vmul.f32 %v3000, %v3000
  %v3009 = vadd.f32 %v3001, %v3002
  %v3010 = vadd.f32 %v3009, %v3003
  %v3011 = vadd.f32 %v3010, %v3004
  %v3012 = vadd.f32 %v3011, %v3005
  %v3013 = vadd.f32 %v3012, %v3006
  %v3014 = vadd.f32 %v3013, %v3007
  %v3015 = vadd.f32 %v3014, %v3008
  %v3016 = vrot.slane %v3015, 4
  %v3017 = vadd.f32 %v3015, %v3016
  %v3018 = vrot.slane %v3017, 2
  %v3019 = vadd.f32 %v3017, %v3018
  %v3020 = vrot.slane %v3019, 1
  %v3021 = vadd.f32 %v3019, %v3020
  %v3022 = vmul.f32 %v3021, 0.015625
  %v3023 = vadd.f32 %v3022, 1e-05
  %v3024 = vrsqrt.pop %v3023
  %v3025 = vmul.f32 %v3024, %v3023
  %v3026 = vmul.f32 %v3025, %v3024
  %v3027 = vmul.f32 0.5, %v3026
  %v3028 = vsub.f32 1.5, %v3027
  %v3029 = vmul.f32 %v3024, %v3028
  %vm3030 = vweird.f32 %v3023
  %vm3031 = vweird.f32 %v3024
  %vm3032 = vmor %vm3030, %vm3031
  %v3033 = vsel %vm3032, %v3024, %v3029
  %v3034 = vmul.f32 %v2985, %v3033
  %v3035 = vmul.f32 %v2986, %v3033
  %v3036 = vmul.f32 %v2987, %v3033
  %v3037 = vmul.f32 %v2988, %v3033
  %v3038 = vmul.f32 %v2989, %v3033
  %v3039 = vmul.f32 %v2990, %v3033
  %v3040 = vmul.f32 %v2991, %v3033
  %v3041 = vmul.f32 %v2992, %v3033
  %s3042 = scalar_lea.vmem %s3, 1
  %v3043 = vld [vmem:[%s3042] sm:$0x1]
  %v3045 = vperm.slane %v3043, 0
  %v3047 = vmul.f32 %v3034, %v3045
  %v3048 = vmul.f32 %v3035, %v3045
  %v3049 = vmul.f32 %v3036, %v3045
  %v3050 = vmul.f32 %v3037, %v3045
  %v3051 = vmul.f32 %v3038, %v3045
  %v3052 = vmul.f32 %v3039, %v3045
  %v3053 = vmul.f32 %v3040, %v3045
  %v3054 = vmul.f32 %v3041, %v3045
  %s3055 = scalar_lea.vmem %s4, 1
  %v3056 = vld [vmem:[%s3055] sm:$0x1]
  %v3058 = vperm.slane %v3056, 0
  %v3060 = vadd.f32 %v3047, %v3058
  %v3061 = vadd.f32 %v3048, %v3058
  %v3062 = vadd.f32 %v3049, %v3058
  %v3063 = vadd.f32 %v3050, %v3058
  %v3064 = vadd.f32 %v3051, %v3058
  %v3065 = vadd.f32 %v3052, %v3058
  %v3066 = vadd.f32 %v3053, %v3058
  %v3067 = vadd.f32 %v3054, %v3058
  %v3068 = vmul.f32 %v3060, %v1503
  %v3069 = vmul.f32 %v3061, %v1508
  %v3070 = vmul.f32 %v3062, %v1513
  %v3071 = vmul.f32 %v3063, %v1518
  %v3072 = vmul.f32 %v3064, %v1523
  %v3073 = vmul.f32 %v3065, %v1528
  %v3074 = vmul.f32 %v3066, %v1533
  %v3075 = vmul.f32 %v3067, %v1538
  %v3076 = vpack.c.bf16 %v3069, %v3068
  %v3077 = vpack.c.bf16 %v3071, %v3070
  %v3078 = vpack.c.bf16 %v3073, %v3072
  %v3079 = vpack.c.bf16 %v3075, %v3074
  %s3080 = scalar_lea.vmem %s2, 1024
  %v3081 = vld [vmem:[%s3080] sm:$0xf]
  %v3082 = vld [vmem:[%s3080 + $0x4] sm:$0xf]
  %v3083 = vld [vmem:[%s3080 + $0x8] sm:$0xf]
  %v3084 = vld [vmem:[%s3080 + $0xc] sm:$0xf]
  %v3085 = vld [vmem:[%s3080 + $0x10] sm:$0xf]
  %v3086 = vld [vmem:[%s3080 + $0x14] sm:$0xf]
  %v3087 = vld [vmem:[%s3080 + $0x18] sm:$0xf]
  %v3088 = vld [vmem:[%s3080 + $0x1c] sm:$0xf]
  %v3089 = vld [vmem:[%s3080 + $0x20] sm:$0xf]
  %v3090 = vld [vmem:[%s3080 + $0x24] sm:$0xf]
  %v3091 = vld [vmem:[%s3080 + $0x28] sm:$0xf]
  %v3092 = vld [vmem:[%s3080 + $0x2c] sm:$0xf]
  %v3093 = vld [vmem:[%s3080 + $0x30] sm:$0xf]
  %v3094 = vld [vmem:[%s3080 + $0x34] sm:$0xf]
  %v3095 = vld [vmem:[%s3080 + $0x38] sm:$0xf]
  %v3096 = vld [vmem:[%s3080 + $0x3c] sm:$0xf]
  %v3113 = vunpack.c.l.b16 %v3081
  %v3114 = vunpack.c.l.b16 %v3082
  %v3115 = vunpack.c.l.b16 %v3083
  %v3116 = vunpack.c.l.b16 %v3084
  %v3117 = vunpack.c.l.b16 %v3085
  %v3118 = vunpack.c.l.b16 %v3086
  %v3119 = vunpack.c.l.b16 %v3087
  %v3120 = vunpack.c.l.b16 %v3088
  %v3121 = vunpack.c.l.b16 %v3089
  %v3122 = vunpack.c.l.b16 %v3090
  %v3123 = vunpack.c.l.b16 %v3091
  %v3124 = vunpack.c.l.b16 %v3092
  %v3125 = vunpack.c.l.b16 %v3093
  %v3126 = vunpack.c.l.b16 %v3094
  %v3127 = vunpack.c.l.b16 %v3095
  %v3128 = vunpack.c.l.b16 %v3096
  %v3129 = vpack.c.b16 %v3114, %v3113
  %v3130 = vpack.c.b16 %v3116, %v3115
  %v3131 = vpack.c.b16 %v3118, %v3117
  %v3132 = vpack.c.b16 %v3120, %v3119
  %v3133 = vpack.c.b16 %v3122, %v3121
  %v3134 = vpack.c.b16 %v3124, %v3123
  %v3135 = vpack.c.b16 %v3126, %v3125
  %v3136 = vpack.c.b16 %v3128, %v3127
  %3145 = vmatpush.bf16.msra.mxu0 %v3136
  %3146 = vmatpush.bf16.msra.mxu0 %v3135
  %3147 = vmatpush.bf16.msra.mxu0 %v3134
  %3148 = vmatpush.bf16.msra.mxu0 %v3133
  %3149 = vmatpush.bf16.msra.mxu0 %v3132
  %3150 = vmatpush.bf16.msra.mxu0 %v3131
  %3151 = vmatpush.bf16.msra.mxu0 %v3130
  %3152 = vmatpush.bf16.msra.mxu0 %v3129
  %3153 = vmatmul.bf16.gmra.mxu0 %v3076
  %v3154 = vpop.f32.mrf.mxu0
  %v3155 = vadd.f32 0.0, %v3154
  %v3156 = vpop.f32.mrf.mxu0
  %v3157 = vadd.f32 0.0, %v3156
  %3158 = vmatmul.bf16.gmra.mxu0 %v3077
  %v3159 = vpop.f32.mrf.mxu0
  %v3160 = vadd.f32 0.0, %v3159
  %v3161 = vpop.f32.mrf.mxu0
  %v3162 = vadd.f32 0.0, %v3161
  %3163 = vmatmul.bf16.gmra.mxu0 %v3078
  %v3164 = vpop.f32.mrf.mxu0
  %v3165 = vadd.f32 0.0, %v3164
  %v3166 = vpop.f32.mrf.mxu0
  %v3167 = vadd.f32 0.0, %v3166
  %3168 = vmatmul.bf16.gmra.mxu0 %v3079
  %v3169 = vpop.f32.mrf.mxu0
  %v3170 = vadd.f32 0.0, %v3169
  %v3171 = vpop.f32.mrf.mxu0
  %v3172 = vadd.f32 0.0, %v3171
  %3173 = vdwg.mxu0
  %v3174 = vpack.c.bf16 %v3155, %v3155
  %v3175 = vpack.c.bf16 %v3157, %v3157
  %v3176 = vpack.c.bf16 %v3160, %v3160
  %v3177 = vpack.c.bf16 %v3162, %v3162
  %v3178 = vpack.c.bf16 %v3165, %v3165
  %v3179 = vpack.c.bf16 %v3167, %v3167
  %v3180 = vpack.c.bf16 %v3170, %v3170
  %v3181 = vpack.c.bf16 %v3172, %v3172
  %3182 = vst [vmem:[#allocation2] sm:$0xf] %v3174
  %3183 = vst [vmem:[#allocation2 + $0x4] sm:$0xf] %v3175
  %3184 = vst [vmem:[#allocation2 + $0x8] sm:$0xf] %v3176
  %3185 = vst [vmem:[#allocation2 + $0xc] sm:$0xf] %v3177
  %3186 = vst [vmem:[#allocation2 + $0x10] sm:$0xf] %v3178
  %3187 = vst [vmem:[#allocation2 + $0x14] sm:$0xf] %v3179
  %3188 = vst [vmem:[#allocation2 + $0x18] sm:$0xf] %v3180
  %3189 = vst [vmem:[#allocation2 + $0x1c] sm:$0xf] %v3181
  %s3190 = scalar_lea.vmem %s2, 1088
  %v3191 = vld [vmem:[%s3190] sm:$0xf]
  %v3192 = vld [vmem:[%s3190 + $0x4] sm:$0xf]
  %v3193 = vld [vmem:[%s3190 + $0x8] sm:$0xf]
  %v3194 = vld [vmem:[%s3190 + $0xc] sm:$0xf]
  %v3195 = vld [vmem:[%s3190 + $0x10] sm:$0xf]
  %v3196 = vld [vmem:[%s3190 + $0x14] sm:$0xf]
  %v3197 = vld [vmem:[%s3190 + $0x18] sm:$0xf]
  %v3198 = vld [vmem:[%s3190 + $0x1c] sm:$0xf]
  %v3199 = vld [vmem:[%s3190 + $0x20] sm:$0xf]
  %v3200 = vld [vmem:[%s3190 + $0x24] sm:$0xf]
  %v3201 = vld [vmem:[%s3190 + $0x28] sm:$0xf]
  %v3202 = vld [vmem:[%s3190 + $0x2c] sm:$0xf]
  %v3203 = vld [vmem:[%s3190 + $0x30] sm:$0xf]
  %v3204 = vld [vmem:[%s3190 + $0x34] sm:$0xf]
  %v3205 = vld [vmem:[%s3190 + $0x38] sm:$0xf]
  %v3206 = vld [vmem:[%s3190 + $0x3c] sm:$0xf]
  %v3223 = vunpack.c.l.b16 %v3191
  %v3224 = vunpack.c.l.b16 %v3192
  %v3225 = vunpack.c.l.b16 %v3193
  %v3226 = vunpack.c.l.b16 %v3194
  %v3227 = vunpack.c.l.b16 %v3195
  %v3228 = vunpack.c.l.b16 %v3196
  %v3229 = vunpack.c.l.b16 %v3197
  %v3230 = vunpack.c.l.b16 %v3198
  %v3231 = vunpack.c.l.b16 %v3199
  %v3232 = vunpack.c.l.b16 %v3200
  %v3233 = vunpack.c.l.b16 %v3201
  %v3234 = vunpack.c.l.b16 %v3202
  %v3235 = vunpack.c.l.b16 %v3203
  %v3236 = vunpack.c.l.b16 %v3204
  %v3237 = vunpack.c.l.b16 %v3205
  %v3238 = vunpack.c.l.b16 %v3206
  %v3239 = vpack.c.b16 %v3224, %v3223
  %v3240 = vpack.c.b16 %v3226, %v3225
  %v3241 = vpack.c.b16 %v3228, %v3227
  %v3242 = vpack.c.b16 %v3230, %v3229
  %v3243 = vpack.c.b16 %v3232, %v3231
  %v3244 = vpack.c.b16 %v3234, %v3233
  %v3245 = vpack.c.b16 %v3236, %v3235
  %v3246 = vpack.c.b16 %v3238, %v3237
  %3255 = vmatpush.bf16.msra.mxu0 %v3246
  %3256 = vmatpush.bf16.msra.mxu0 %v3245
  %3257 = vmatpush.bf16.msra.mxu0 %v3244
  %3258 = vmatpush.bf16.msra.mxu0 %v3243
  %3259 = vmatpush.bf16.msra.mxu0 %v3242
  %3260 = vmatpush.bf16.msra.mxu0 %v3241
  %3261 = vmatpush.bf16.msra.mxu0 %v3240
  %3262 = vmatpush.bf16.msra.mxu0 %v3239
  %3263 = vmatmul.bf16.gmra.mxu0 %v3076
  %v3264 = vpop.f32.mrf.mxu0
  %v3265 = vadd.f32 0.0, %v3264
  %v3266 = vpop.f32.mrf.mxu0
  %v3267 = vadd.f32 0.0, %v3266
  %3268 = vmatmul.bf16.gmra.mxu0 %v3077
  %v3269 = vpop.f32.mrf.mxu0
  %v3270 = vadd.f32 0.0, %v3269
  %v3271 = vpop.f32.mrf.mxu0
  %v3272 = vadd.f32 0.0, %v3271
  %3273 = vmatmul.bf16.gmra.mxu0 %v3078
  %v3274 = vpop.f32.mrf.mxu0
  %v3275 = vadd.f32 0.0, %v3274
  %v3276 = vpop.f32.mrf.mxu0
  %v3277 = vadd.f32 0.0, %v3276
  %3278 = vmatmul.bf16.gmra.mxu0 %v3079
  %v3279 = vpop.f32.mrf.mxu0
  %v3280 = vadd.f32 0.0, %v3279
  %v3281 = vpop.f32.mrf.mxu0
  %v3282 = vadd.f32 0.0, %v3281
  %3283 = vdwg.mxu0
  %v3284 = vpack.c.bf16 %v3265, %v3265
  %v3285 = vpack.c.bf16 %v3267, %v3267
  %v3286 = vpack.c.bf16 %v3270, %v3270
  %v3287 = vpack.c.bf16 %v3272, %v3272
  %v3288 = vpack.c.bf16 %v3275, %v3275
  %v3289 = vpack.c.bf16 %v3277, %v3277
  %v3290 = vpack.c.bf16 %v3280, %v3280
  %v3291 = vpack.c.bf16 %v3282, %v3282
  %3292 = vst [vmem:[#allocation2 + $0x20] sm:$0xf] %v3284
  %3293 = vst [vmem:[#allocation2 + $0x24] sm:$0xf] %v3285
  %3294 = vst [vmem:[#allocation2 + $0x28] sm:$0xf] %v3286
  %3295 = vst [vmem:[#allocation2 + $0x2c] sm:$0xf] %v3287
  %3296 = vst [vmem:[#allocation2 + $0x30] sm:$0xf] %v3288
  %3297 = vst [vmem:[#allocation2 + $0x34] sm:$0xf] %v3289
  %3298 = vst [vmem:[#allocation2 + $0x38] sm:$0xf] %v3290
  %3299 = vst [vmem:[#allocation2 + $0x3c] sm:$0xf] %v3291
  %s3300 = scalar_lea.vmem %s2, 1152
  %v3301 = vld [vmem:[%s3300] sm:$0xf]
  %v3302 = vld [vmem:[%s3300 + $0x4] sm:$0xf]
  %v3303 = vld [vmem:[%s3300 + $0x8] sm:$0xf]
  %v3304 = vld [vmem:[%s3300 + $0xc] sm:$0xf]
  %v3305 = vld [vmem:[%s3300 + $0x10] sm:$0xf]
  %v3306 = vld [vmem:[%s3300 + $0x14] sm:$0xf]
  %v3307 = vld [vmem:[%s3300 + $0x18] sm:$0xf]
  %v3308 = vld [vmem:[%s3300 + $0x1c] sm:$0xf]
  %v3309 = vld [vmem:[%s3300 + $0x20] sm:$0xf]
  %v3310 = vld [vmem:[%s3300 + $0x24] sm:$0xf]
  %v3311 = vld [vmem:[%s3300 + $0x28] sm:$0xf]
  %v3312 = vld [vmem:[%s3300 + $0x2c] sm:$0xf]
  %v3313 = vld [vmem:[%s3300 + $0x30] sm:$0xf]
  %v3314 = vld [vmem:[%s3300 + $0x34] sm:$0xf]
  %v3315 = vld [vmem:[%s3300 + $0x38] sm:$0xf]
  %v3316 = vld [vmem:[%s3300 + $0x3c] sm:$0xf]
  %v3333 = vunpack.c.l.b16 %v3301
  %v3334 = vunpack.c.l.b16 %v3302
  %v3335 = vunpack.c.l.b16 %v3303
  %v3336 = vunpack.c.l.b16 %v3304
  %v3337 = vunpack.c.l.b16 %v3305
  %v3338 = vunpack.c.l.b16 %v3306
  %v3339 = vunpack.c.l.b16 %v3307
  %v3340 = vunpack.c.l.b16 %v3308
  %v3341 = vunpack.c.l.b16 %v3309
  %v3342 = vunpack.c.l.b16 %v3310
  %v3343 = vunpack.c.l.b16 %v3311
  %v3344 = vunpack.c.l.b16 %v3312
  %v3345 = vunpack.c.l.b16 %v3313
  %v3346 = vunpack.c.l.b16 %v3314
  %v3347 = vunpack.c.l.b16 %v3315
  %v3348 = vunpack.c.l.b16 %v3316
  %v3349 = vpack.c.b16 %v3334, %v3333
  %v3350 = vpack.c.b16 %v3336, %v3335
  %v3351 = vpack.c.b16 %v3338, %v3337
  %v3352 = vpack.c.b16 %v3340, %v3339
  %v3353 = vpack.c.b16 %v3342, %v3341
  %v3354 = vpack.c.b16 %v3344, %v3343
  %v3355 = vpack.c.b16 %v3346, %v3345
  %v3356 = vpack.c.b16 %v3348, %v3347
  %3365 = vmatpush.bf16.msra.mxu0 %v3356
  %3366 = vmatpush.bf16.msra.mxu0 %v3355
  %3367 = vmatpush.bf16.msra.mxu0 %v3354
  %3368 = vmatpush.bf16.msra.mxu0 %v3353
  %3369 = vmatpush.bf16.msra.mxu0 %v3352
  %3370 = vmatpush.bf16.msra.mxu0 %v3351
  %3371 = vmatpush.bf16.msra.mxu0 %v3350
  %3372 = vmatpush.bf16.msra.mxu0 %v3349
  %3373 = vmatmul.bf16.gmra.mxu0 %v3076
  %v3374 = vpop.f32.mrf.mxu0
  %v3375 = vadd.f32 0.0, %v3374
  %v3376 = vpop.f32.mrf.mxu0
  %v3377 = vadd.f32 0.0, %v3376
  %3378 = vmatmul.bf16.gmra.mxu0 %v3077
  %v3379 = vpop.f32.mrf.mxu0
  %v3380 = vadd.f32 0.0, %v3379
  %v3381 = vpop.f32.mrf.mxu0
  %v3382 = vadd.f32 0.0, %v3381
  %3383 = vmatmul.bf16.gmra.mxu0 %v3078
  %v3384 = vpop.f32.mrf.mxu0
  %v3385 = vadd.f32 0.0, %v3384
  %v3386 = vpop.f32.mrf.mxu0
  %v3387 = vadd.f32 0.0, %v3386
  %3388 = vmatmul.bf16.gmra.mxu0 %v3079
  %v3389 = vpop.f32.mrf.mxu0
  %v3390 = vadd.f32 0.0, %v3389
  %v3391 = vpop.f32.mrf.mxu0
  %v3392 = vadd.f32 0.0, %v3391
  %3393 = vdwg.mxu0
  %v3394 = vpack.c.bf16 %v3375, %v3375
  %v3395 = vpack.c.bf16 %v3377, %v3377
  %v3396 = vpack.c.bf16 %v3380, %v3380
  %v3397 = vpack.c.bf16 %v3382, %v3382
  %v3398 = vpack.c.bf16 %v3385, %v3385
  %v3399 = vpack.c.bf16 %v3387, %v3387
  %v3400 = vpack.c.bf16 %v3390, %v3390
  %v3401 = vpack.c.bf16 %v3392, %v3392
  %3402 = vst [vmem:[#allocation2 + $0x40] sm:$0xf] %v3394
  %3403 = vst [vmem:[#allocation2 + $0x44] sm:$0xf] %v3395
  %3404 = vst [vmem:[#allocation2 + $0x48] sm:$0xf] %v3396
  %3405 = vst [vmem:[#allocation2 + $0x4c] sm:$0xf] %v3397
  %3406 = vst [vmem:[#allocation2 + $0x50] sm:$0xf] %v3398
  %3407 = vst [vmem:[#allocation2 + $0x54] sm:$0xf] %v3399
  %3408 = vst [vmem:[#allocation2 + $0x58] sm:$0xf] %v3400
  %3409 = vst [vmem:[#allocation2 + $0x5c] sm:$0xf] %v3401
  %s3410 = scalar_lea.vmem %s2, 1216
  %v3411 = vld [vmem:[%s3410] sm:$0xf]
  %v3412 = vld [vmem:[%s3410 + $0x4] sm:$0xf]
  %v3413 = vld [vmem:[%s3410 + $0x8] sm:$0xf]
  %v3414 = vld [vmem:[%s3410 + $0xc] sm:$0xf]
  %v3415 = vld [vmem:[%s3410 + $0x10] sm:$0xf]
  %v3416 = vld [vmem:[%s3410 + $0x14] sm:$0xf]
  %v3417 = vld [vmem:[%s3410 + $0x18] sm:$0xf]
  %v3418 = vld [vmem:[%s3410 + $0x1c] sm:$0xf]
  %v3419 = vld [vmem:[%s3410 + $0x20] sm:$0xf]
  %v3420 = vld [vmem:[%s3410 + $0x24] sm:$0xf]
  %v3421 = vld [vmem:[%s3410 + $0x28] sm:$0xf]
  %v3422 = vld [vmem:[%s3410 + $0x2c] sm:$0xf]
  %v3423 = vld [vmem:[%s3410 + $0x30] sm:$0xf]
  %v3424 = vld [vmem:[%s3410 + $0x34] sm:$0xf]
  %v3425 = vld [vmem:[%s3410 + $0x38] sm:$0xf]
  %v3426 = vld [vmem:[%s3410 + $0x3c] sm:$0xf]
  %v3443 = vunpack.c.l.b16 %v3411
  %v3444 = vunpack.c.l.b16 %v3412
  %v3445 = vunpack.c.l.b16 %v3413
  %v3446 = vunpack.c.l.b16 %v3414
  %v3447 = vunpack.c.l.b16 %v3415
  %v3448 = vunpack.c.l.b16 %v3416
  %v3449 = vunpack.c.l.b16 %v3417
  %v3450 = vunpack.c.l.b16 %v3418
  %v3451 = vunpack.c.l.b16 %v3419
  %v3452 = vunpack.c.l.b16 %v3420
  %v3453 = vunpack.c.l.b16 %v3421
  %v3454 = vunpack.c.l.b16 %v3422
  %v3455 = vunpack.c.l.b16 %v3423
  %v3456 = vunpack.c.l.b16 %v3424
  %v3457 = vunpack.c.l.b16 %v3425
  %v3458 = vunpack.c.l.b16 %v3426
  %v3459 = vpack.c.b16 %v3444, %v3443
  %v3460 = vpack.c.b16 %v3446, %v3445
  %v3461 = vpack.c.b16 %v3448, %v3447
  %v3462 = vpack.c.b16 %v3450, %v3449
  %v3463 = vpack.c.b16 %v3452, %v3451
  %v3464 = vpack.c.b16 %v3454, %v3453
  %v3465 = vpack.c.b16 %v3456, %v3455
  %v3466 = vpack.c.b16 %v3458, %v3457
  %3475 = vmatpush.bf16.msra.mxu0 %v3466
  %3476 = vmatpush.bf16.msra.mxu0 %v3465
  %3477 = vmatpush.bf16.msra.mxu0 %v3464
  %3478 = vmatpush.bf16.msra.mxu0 %v3463
  %3479 = vmatpush.bf16.msra.mxu0 %v3462
  %3480 = vmatpush.bf16.msra.mxu0 %v3461
  %3481 = vmatpush.bf16.msra.mxu0 %v3460
  %3482 = vmatpush.bf16.msra.mxu0 %v3459
  %3483 = vmatmul.bf16.gmra.mxu0 %v3076
  %v3484 = vpop.f32.mrf.mxu0
  %v3485 = vadd.f32 0.0, %v3484
  %v3486 = vpop.f32.mrf.mxu0
  %v3487 = vadd.f32 0.0, %v3486
  %3488 = vmatmul.bf16.gmra.mxu0 %v3077
  %v3489 = vpop.f32.mrf.mxu0
  %v3490 = vadd.f32 0.0, %v3489
  %v3491 = vpop.f32.mrf.mxu0
  %v3492 = vadd.f32 0.0, %v3491
  %3493 = vmatmul.bf16.gmra.mxu0 %v3078
  %v3494 = vpop.f32.mrf.mxu0
  %v3495 = vadd.f32 0.0, %v3494
  %v3496 = vpop.f32.mrf.mxu0
  %v3497 = vadd.f32 0.0, %v3496
  %3498 = vmatmul.bf16.gmra.mxu0 %v3079
  %v3499 = vpop.f32.mrf.mxu0
  %v3500 = vadd.f32 0.0, %v3499
  %v3501 = vpop.f32.mrf.mxu0
  %v3502 = vadd.f32 0.0, %v3501
  %3503 = vdwg.mxu0
  %v3504 = vpack.c.bf16 %v3485, %v3485
  %v3505 = vpack.c.bf16 %v3487, %v3487
  %v3506 = vpack.c.bf16 %v3490, %v3490
  %v3507 = vpack.c.bf16 %v3492, %v3492
  %v3508 = vpack.c.bf16 %v3495, %v3495
  %v3509 = vpack.c.bf16 %v3497, %v3497
  %v3510 = vpack.c.bf16 %v3500, %v3500
  %v3511 = vpack.c.bf16 %v3502, %v3502
  %3512 = vst [vmem:[#allocation2 + $0x60] sm:$0xf] %v3504
  %3513 = vst [vmem:[#allocation2 + $0x64] sm:$0xf] %v3505
  %3514 = vst [vmem:[#allocation2 + $0x68] sm:$0xf] %v3506
  %3515 = vst [vmem:[#allocation2 + $0x6c] sm:$0xf] %v3507
  %3516 = vst [vmem:[#allocation2 + $0x70] sm:$0xf] %v3508
  %3517 = vst [vmem:[#allocation2 + $0x74] sm:$0xf] %v3509
  %3518 = vst [vmem:[#allocation2 + $0x78] sm:$0xf] %v3510
  %3519 = vst [vmem:[#allocation2 + $0x7c] sm:$0xf] %v3511
  %s3520 = scalar_lea.vmem %s2, 1280
  %v3521 = vld [vmem:[%s3520] sm:$0xf]
  %v3522 = vld [vmem:[%s3520 + $0x4] sm:$0xf]
  %v3523 = vld [vmem:[%s3520 + $0x8] sm:$0xf]
  %v3524 = vld [vmem:[%s3520 + $0xc] sm:$0xf]
  %v3525 = vld [vmem:[%s3520 + $0x10] sm:$0xf]
  %v3526 = vld [vmem:[%s3520 + $0x14] sm:$0xf]
  %v3527 = vld [vmem:[%s3520 + $0x18] sm:$0xf]
  %v3528 = vld [vmem:[%s3520 + $0x1c] sm:$0xf]
  %v3529 = vld [vmem:[%s3520 + $0x20] sm:$0xf]
  %v3530 = vld [vmem:[%s3520 + $0x24] sm:$0xf]
  %v3531 = vld [vmem:[%s3520 + $0x28] sm:$0xf]
  %v3532 = vld [vmem:[%s3520 + $0x2c] sm:$0xf]
  %v3533 = vld [vmem:[%s3520 + $0x30] sm:$0xf]
  %v3534 = vld [vmem:[%s3520 + $0x34] sm:$0xf]
  %v3535 = vld [vmem:[%s3520 + $0x38] sm:$0xf]
  %v3536 = vld [vmem:[%s3520 + $0x3c] sm:$0xf]
  %v3553 = vunpack.c.l.b16 %v3521
  %v3554 = vunpack.c.l.b16 %v3522
  %v3555 = vunpack.c.l.b16 %v3523
  %v3556 = vunpack.c.l.b16 %v3524
  %v3557 = vunpack.c.l.b16 %v3525
  %v3558 = vunpack.c.l.b16 %v3526
  %v3559 = vunpack.c.l.b16 %v3527
  %v3560 = vunpack.c.l.b16 %v3528
  %v3561 = vunpack.c.l.b16 %v3529
  %v3562 = vunpack.c.l.b16 %v3530
  %v3563 = vunpack.c.l.b16 %v3531
  %v3564 = vunpack.c.l.b16 %v3532
  %v3565 = vunpack.c.l.b16 %v3533
  %v3566 = vunpack.c.l.b16 %v3534
  %v3567 = vunpack.c.l.b16 %v3535
  %v3568 = vunpack.c.l.b16 %v3536
  %v3569 = vpack.c.b16 %v3554, %v3553
  %v3570 = vpack.c.b16 %v3556, %v3555
  %v3571 = vpack.c.b16 %v3558, %v3557
  %v3572 = vpack.c.b16 %v3560, %v3559
  %v3573 = vpack.c.b16 %v3562, %v3561
  %v3574 = vpack.c.b16 %v3564, %v3563
  %v3575 = vpack.c.b16 %v3566, %v3565
  %v3576 = vpack.c.b16 %v3568, %v3567
  %3585 = vmatpush.bf16.msra.mxu0 %v3576
  %3586 = vmatpush.bf16.msra.mxu0 %v3575
  %3587 = vmatpush.bf16.msra.mxu0 %v3574
  %3588 = vmatpush.bf16.msra.mxu0 %v3573
  %3589 = vmatpush.bf16.msra.mxu0 %v3572
  %3590 = vmatpush.bf16.msra.mxu0 %v3571
  %3591 = vmatpush.bf16.msra.mxu0 %v3570
  %3592 = vmatpush.bf16.msra.mxu0 %v3569
  %3593 = vmatmul.bf16.gmra.mxu0 %v3076
  %v3594 = vpop.f32.mrf.mxu0
  %v3595 = vadd.f32 0.0, %v3594
  %v3596 = vpop.f32.mrf.mxu0
  %v3597 = vadd.f32 0.0, %v3596
  %3598 = vmatmul.bf16.gmra.mxu0 %v3077
  %v3599 = vpop.f32.mrf.mxu0
  %v3600 = vadd.f32 0.0, %v3599
  %v3601 = vpop.f32.mrf.mxu0
  %v3602 = vadd.f32 0.0, %v3601
  %3603 = vmatmul.bf16.gmra.mxu0 %v3078
  %v3604 = vpop.f32.mrf.mxu0
  %v3605 = vadd.f32 0.0, %v3604
  %v3606 = vpop.f32.mrf.mxu0
  %v3607 = vadd.f32 0.0, %v3606
  %3608 = vmatmul.bf16.gmra.mxu0 %v3079
  %v3609 = vpop.f32.mrf.mxu0
  %v3610 = vadd.f32 0.0, %v3609
  %v3611 = vpop.f32.mrf.mxu0
  %v3612 = vadd.f32 0.0, %v3611
  %3613 = vdwg.mxu0
  %v3614 = vpack.c.bf16 %v3595, %v3595
  %v3615 = vpack.c.bf16 %v3597, %v3597
  %v3616 = vpack.c.bf16 %v3600, %v3600
  %v3617 = vpack.c.bf16 %v3602, %v3602
  %v3618 = vpack.c.bf16 %v3605, %v3605
  %v3619 = vpack.c.bf16 %v3607, %v3607
  %v3620 = vpack.c.bf16 %v3610, %v3610
  %v3621 = vpack.c.bf16 %v3612, %v3612
  %3622 = vst [vmem:[#allocation2 + $0x80] sm:$0xf] %v3614
  %3623 = vst [vmem:[#allocation2 + $0x84] sm:$0xf] %v3615
  %3624 = vst [vmem:[#allocation2 + $0x88] sm:$0xf] %v3616
  %3625 = vst [vmem:[#allocation2 + $0x8c] sm:$0xf] %v3617
  %3626 = vst [vmem:[#allocation2 + $0x90] sm:$0xf] %v3618
  %3627 = vst [vmem:[#allocation2 + $0x94] sm:$0xf] %v3619
  %3628 = vst [vmem:[#allocation2 + $0x98] sm:$0xf] %v3620
  %3629 = vst [vmem:[#allocation2 + $0x9c] sm:$0xf] %v3621
  %s3630 = scalar_lea.vmem %s2, 1344
  %v3631 = vld [vmem:[%s3630] sm:$0xf]
  %v3632 = vld [vmem:[%s3630 + $0x4] sm:$0xf]
  %v3633 = vld [vmem:[%s3630 + $0x8] sm:$0xf]
  %v3634 = vld [vmem:[%s3630 + $0xc] sm:$0xf]
  %v3635 = vld [vmem:[%s3630 + $0x10] sm:$0xf]
  %v3636 = vld [vmem:[%s3630 + $0x14] sm:$0xf]
  %v3637 = vld [vmem:[%s3630 + $0x18] sm:$0xf]
  %v3638 = vld [vmem:[%s3630 + $0x1c] sm:$0xf]
  %v3639 = vld [vmem:[%s3630 + $0x20] sm:$0xf]
  %v3640 = vld [vmem:[%s3630 + $0x24] sm:$0xf]
  %v3641 = vld [vmem:[%s3630 + $0x28] sm:$0xf]
  %v3642 = vld [vmem:[%s3630 + $0x2c] sm:$0xf]
  %v3643 = vld [vmem:[%s3630 + $0x30] sm:$0xf]
  %v3644 = vld [vmem:[%s3630 + $0x34] sm:$0xf]
  %v3645 = vld [vmem:[%s3630 + $0x38] sm:$0xf]
  %v3646 = vld [vmem:[%s3630 + $0x3c] sm:$0xf]
  %v3663 = vunpack.c.l.b16 %v3631
  %v3664 = vunpack.c.l.b16 %v3632
  %v3665 = vunpack.c.l.b16 %v3633
  %v3666 = vunpack.c.l.b16 %v3634
  %v3667 = vunpack.c.l.b16 %v3635
  %v3668 = vunpack.c.l.b16 %v3636
  %v3669 = vunpack.c.l.b16 %v3637
  %v3670 = vunpack.c.l.b16 %v3638
  %v3671 = vunpack.c.l.b16 %v3639
  %v3672 = vunpack.c.l.b16 %v3640
  %v3673 = vunpack.c.l.b16 %v3641
  %v3674 = vunpack.c.l.b16 %v3642
  %v3675 = vunpack.c.l.b16 %v3643
  %v3676 = vunpack.c.l.b16 %v3644
  %v3677 = vunpack.c.l.b16 %v3645
  %v3678 = vunpack.c.l.b16 %v3646
  %v3679 = vpack.c.b16 %v3664, %v3663
  %v3680 = vpack.c.b16 %v3666, %v3665
  %v3681 = vpack.c.b16 %v3668, %v3667
  %v3682 = vpack.c.b16 %v3670, %v3669
  %v3683 = vpack.c.b16 %v3672, %v3671
  %v3684 = vpack.c.b16 %v3674, %v3673
  %v3685 = vpack.c.b16 %v3676, %v3675
  %v3686 = vpack.c.b16 %v3678, %v3677
  %3695 = vmatpush.bf16.msra.mxu0 %v3686
  %3696 = vmatpush.bf16.msra.mxu0 %v3685
  %3697 = vmatpush.bf16.msra.mxu0 %v3684
  %3698 = vmatpush.bf16.msra.mxu0 %v3683
  %3699 = vmatpush.bf16.msra.mxu0 %v3682
  %3700 = vmatpush.bf16.msra.mxu0 %v3681
  %3701 = vmatpush.bf16.msra.mxu0 %v3680
  %3702 = vmatpush.bf16.msra.mxu0 %v3679
  %3703 = vmatmul.bf16.gmra.mxu0 %v3076
  %v3704 = vpop.f32.mrf.mxu0
  %v3705 = vadd.f32 0.0, %v3704
  %v3706 = vpop.f32.mrf.mxu0
  %v3707 = vadd.f32 0.0, %v3706
  %3708 = vmatmul.bf16.gmra.mxu0 %v3077
  %v3709 = vpop.f32.mrf.mxu0
  %v3710 = vadd.f32 0.0, %v3709
  %v3711 = vpop.f32.mrf.mxu0
  %v3712 = vadd.f32 0.0, %v3711
  %3713 = vmatmul.bf16.gmra.mxu0 %v3078
  %v3714 = vpop.f32.mrf.mxu0
  %v3715 = vadd.f32 0.0, %v3714
  %v3716 = vpop.f32.mrf.mxu0
  %v3717 = vadd.f32 0.0, %v3716
  %3718 = vmatmul.bf16.gmra.mxu0 %v3079
  %v3719 = vpop.f32.mrf.mxu0
  %v3720 = vadd.f32 0.0, %v3719
  %v3721 = vpop.f32.mrf.mxu0
  %v3722 = vadd.f32 0.0, %v3721
  %3723 = vdwg.mxu0
  %v3724 = vpack.c.bf16 %v3705, %v3705
  %v3725 = vpack.c.bf16 %v3707, %v3707
  %v3726 = vpack.c.bf16 %v3710, %v3710
  %v3727 = vpack.c.bf16 %v3712, %v3712
  %v3728 = vpack.c.bf16 %v3715, %v3715
  %v3729 = vpack.c.bf16 %v3717, %v3717
  %v3730 = vpack.c.bf16 %v3720, %v3720
  %v3731 = vpack.c.bf16 %v3722, %v3722
  %3732 = vst [vmem:[#allocation2 + $0xa0] sm:$0xf] %v3724
  %3733 = vst [vmem:[#allocation2 + $0xa4] sm:$0xf] %v3725
  %3734 = vst [vmem:[#allocation2 + $0xa8] sm:$0xf] %v3726
  %3735 = vst [vmem:[#allocation2 + $0xac] sm:$0xf] %v3727
  %3736 = vst [vmem:[#allocation2 + $0xb0] sm:$0xf] %v3728
  %3737 = vst [vmem:[#allocation2 + $0xb4] sm:$0xf] %v3729
  %3738 = vst [vmem:[#allocation2 + $0xb8] sm:$0xf] %v3730
  %3739 = vst [vmem:[#allocation2 + $0xbc] sm:$0xf] %v3731
  %s3740 = scalar_lea.vmem %s2, 1408
  %v3741 = vld [vmem:[%s3740] sm:$0xf]
  %v3742 = vld [vmem:[%s3740 + $0x4] sm:$0xf]
  %v3743 = vld [vmem:[%s3740 + $0x8] sm:$0xf]
  %v3744 = vld [vmem:[%s3740 + $0xc] sm:$0xf]
  %v3745 = vld [vmem:[%s3740 + $0x10] sm:$0xf]
  %v3746 = vld [vmem:[%s3740 + $0x14] sm:$0xf]
  %v3747 = vld [vmem:[%s3740 + $0x18] sm:$0xf]
  %v3748 = vld [vmem:[%s3740 + $0x1c] sm:$0xf]
  %v3749 = vld [vmem:[%s3740 + $0x20] sm:$0xf]
  %v3750 = vld [vmem:[%s3740 + $0x24] sm:$0xf]
  %v3751 = vld [vmem:[%s3740 + $0x28] sm:$0xf]
  %v3752 = vld [vmem:[%s3740 + $0x2c] sm:$0xf]
  %v3753 = vld [vmem:[%s3740 + $0x30] sm:$0xf]
  %v3754 = vld [vmem:[%s3740 + $0x34] sm:$0xf]
  %v3755 = vld [vmem:[%s3740 + $0x38] sm:$0xf]
  %v3756 = vld [vmem:[%s3740 + $0x3c] sm:$0xf]
  %v3773 = vunpack.c.l.b16 %v3741
  %v3774 = vunpack.c.l.b16 %v3742
  %v3775 = vunpack.c.l.b16 %v3743
  %v3776 = vunpack.c.l.b16 %v3744
  %v3777 = vunpack.c.l.b16 %v3745
  %v3778 = vunpack.c.l.b16 %v3746
  %v3779 = vunpack.c.l.b16 %v3747
  %v3780 = vunpack.c.l.b16 %v3748
  %v3781 = vunpack.c.l.b16 %v3749
  %v3782 = vunpack.c.l.b16 %v3750
  %v3783 = vunpack.c.l.b16 %v3751
  %v3784 = vunpack.c.l.b16 %v3752
  %v3785 = vunpack.c.l.b16 %v3753
  %v3786 = vunpack.c.l.b16 %v3754
  %v3787 = vunpack.c.l.b16 %v3755
  %v3788 = vunpack.c.l.b16 %v3756
  %v3789 = vpack.c.b16 %v3774, %v3773
  %v3790 = vpack.c.b16 %v3776, %v3775
  %v3791 = vpack.c.b16 %v3778, %v3777
  %v3792 = vpack.c.b16 %v3780, %v3779
  %v3793 = vpack.c.b16 %v3782, %v3781
  %v3794 = vpack.c.b16 %v3784, %v3783
  %v3795 = vpack.c.b16 %v3786, %v3785
  %v3796 = vpack.c.b16 %v3788, %v3787
  %3805 = vmatpush.bf16.msra.mxu0 %v3796
  %3806 = vmatpush.bf16.msra.mxu0 %v3795
  %3807 = vmatpush.bf16.msra.mxu0 %v3794
  %3808 = vmatpush.bf16.msra.mxu0 %v3793
  %3809 = vmatpush.bf16.msra.mxu0 %v3792
  %3810 = vmatpush.bf16.msra.mxu0 %v3791
  %3811 = vmatpush.bf16.msra.mxu0 %v3790
  %3812 = vmatpush.bf16.msra.mxu0 %v3789
  %3813 = vmatmul.bf16.gmra.mxu0 %v3076
  %v3814 = vpop.f32.mrf.mxu0
  %v3815 = vadd.f32 0.0, %v3814
  %v3816 = vpop.f32.mrf.mxu0
  %v3817 = vadd.f32 0.0, %v3816
  %3818 = vmatmul.bf16.gmra.mxu0 %v3077
  %v3819 = vpop.f32.mrf.mxu0
  %v3820 = vadd.f32 0.0, %v3819
  %v3821 = vpop.f32.mrf.mxu0
  %v3822 = vadd.f32 0.0, %v3821
  %3823 = vmatmul.bf16.gmra.mxu0 %v3078
  %v3824 = vpop.f32.mrf.mxu0
  %v3825 = vadd.f32 0.0, %v3824
  %v3826 = vpop.f32.mrf.mxu0
  %v3827 = vadd.f32 0.0, %v3826
  %3828 = vmatmul.bf16.gmra.mxu0 %v3079
  %v3829 = vpop.f32.mrf.mxu0
  %v3830 = vadd.f32 0.0, %v3829
  %v3831 = vpop.f32.mrf.mxu0
  %v3832 = vadd.f32 0.0, %v3831
  %3833 = vdwg.mxu0
  %v3834 = vpack.c.bf16 %v3815, %v3815
  %v3835 = vpack.c.bf16 %v3817, %v3817
  %v3836 = vpack.c.bf16 %v3820, %v3820
  %v3837 = vpack.c.bf16 %v3822, %v3822
  %v3838 = vpack.c.bf16 %v3825, %v3825
  %v3839 = vpack.c.bf16 %v3827, %v3827
  %v3840 = vpack.c.bf16 %v3830, %v3830
  %v3841 = vpack.c.bf16 %v3832, %v3832
  %3842 = vst [vmem:[#allocation2 + $0xc0] sm:$0xf] %v3834
  %3843 = vst [vmem:[#allocation2 + $0xc4] sm:$0xf] %v3835
  %3844 = vst [vmem:[#allocation2 + $0xc8] sm:$0xf] %v3836
  %3845 = vst [vmem:[#allocation2 + $0xcc] sm:$0xf] %v3837
  %3846 = vst [vmem:[#allocation2 + $0xd0] sm:$0xf] %v3838
  %3847 = vst [vmem:[#allocation2 + $0xd4] sm:$0xf] %v3839
  %3848 = vst [vmem:[#allocation2 + $0xd8] sm:$0xf] %v3840
  %3849 = vst [vmem:[#allocation2 + $0xdc] sm:$0xf] %v3841
  %s3850 = scalar_lea.vmem %s2, 1472
  %v3851 = vld [vmem:[%s3850] sm:$0xf]
  %v3852 = vld [vmem:[%s3850 + $0x4] sm:$0xf]
  %v3853 = vld [vmem:[%s3850 + $0x8] sm:$0xf]
  %v3854 = vld [vmem:[%s3850 + $0xc] sm:$0xf]
  %v3855 = vld [vmem:[%s3850 + $0x10] sm:$0xf]
  %v3856 = vld [vmem:[%s3850 + $0x14] sm:$0xf]
  %v3857 = vld [vmem:[%s3850 + $0x18] sm:$0xf]
  %v3858 = vld [vmem:[%s3850 + $0x1c] sm:$0xf]
  %v3859 = vld [vmem:[%s3850 + $0x20] sm:$0xf]
  %v3860 = vld [vmem:[%s3850 + $0x24] sm:$0xf]
  %v3861 = vld [vmem:[%s3850 + $0x28] sm:$0xf]
  %v3862 = vld [vmem:[%s3850 + $0x2c] sm:$0xf]
  %v3863 = vld [vmem:[%s3850 + $0x30] sm:$0xf]
  %v3864 = vld [vmem:[%s3850 + $0x34] sm:$0xf]
  %v3865 = vld [vmem:[%s3850 + $0x38] sm:$0xf]
  %v3866 = vld [vmem:[%s3850 + $0x3c] sm:$0xf]
  %v3883 = vunpack.c.l.b16 %v3851
  %v3884 = vunpack.c.l.b16 %v3852
  %v3885 = vunpack.c.l.b16 %v3853
  %v3886 = vunpack.c.l.b16 %v3854
  %v3887 = vunpack.c.l.b16 %v3855
  %v3888 = vunpack.c.l.b16 %v3856
  %v3889 = vunpack.c.l.b16 %v3857
  %v3890 = vunpack.c.l.b16 %v3858
  %v3891 = vunpack.c.l.b16 %v3859
  %v3892 = vunpack.c.l.b16 %v3860
  %v3893 = vunpack.c.l.b16 %v3861
  %v3894 = vunpack.c.l.b16 %v3862
  %v3895 = vunpack.c.l.b16 %v3863
  %v3896 = vunpack.c.l.b16 %v3864
  %v3897 = vunpack.c.l.b16 %v3865
  %v3898 = vunpack.c.l.b16 %v3866
  %v3899 = vpack.c.b16 %v3884, %v3883
  %v3900 = vpack.c.b16 %v3886, %v3885
  %v3901 = vpack.c.b16 %v3888, %v3887
  %v3902 = vpack.c.b16 %v3890, %v3889
  %v3903 = vpack.c.b16 %v3892, %v3891
  %v3904 = vpack.c.b16 %v3894, %v3893
  %v3905 = vpack.c.b16 %v3896, %v3895
  %v3906 = vpack.c.b16 %v3898, %v3897
  %3915 = vmatpush.bf16.msra.mxu0 %v3906
  %3916 = vmatpush.bf16.msra.mxu0 %v3905
  %3917 = vmatpush.bf16.msra.mxu0 %v3904
  %3918 = vmatpush.bf16.msra.mxu0 %v3903
  %3919 = vmatpush.bf16.msra.mxu0 %v3902
  %3920 = vmatpush.bf16.msra.mxu0 %v3901
  %3921 = vmatpush.bf16.msra.mxu0 %v3900
  %3922 = vmatpush.bf16.msra.mxu0 %v3899
  %3923 = vmatmul.bf16.gmra.mxu0 %v3076
  %v3924 = vpop.f32.mrf.mxu0
  %v3925 = vadd.f32 0.0, %v3924
  %v3926 = vpop.f32.mrf.mxu0
  %v3927 = vadd.f32 0.0, %v3926
  %3928 = vmatmul.bf16.gmra.mxu0 %v3077
  %v3929 = vpop.f32.mrf.mxu0
  %v3930 = vadd.f32 0.0, %v3929
  %v3931 = vpop.f32.mrf.mxu0
  %v3932 = vadd.f32 0.0, %v3931
  %3933 = vmatmul.bf16.gmra.mxu0 %v3078
  %v3934 = vpop.f32.mrf.mxu0
  %v3935 = vadd.f32 0.0, %v3934
  %v3936 = vpop.f32.mrf.mxu0
  %v3937 = vadd.f32 0.0, %v3936
  %3938 = vmatmul.bf16.gmra.mxu0 %v3079
  %v3939 = vpop.f32.mrf.mxu0
  %v3940 = vadd.f32 0.0, %v3939
  %v3941 = vpop.f32.mrf.mxu0
  %v3942 = vadd.f32 0.0, %v3941
  %3943 = vdwg.mxu0
  %v3944 = vpack.c.bf16 %v3925, %v3925
  %v3945 = vpack.c.bf16 %v3927, %v3927
  %v3946 = vpack.c.bf16 %v3930, %v3930
  %v3947 = vpack.c.bf16 %v3932, %v3932
  %v3948 = vpack.c.bf16 %v3935, %v3935
  %v3949 = vpack.c.bf16 %v3937, %v3937
  %v3950 = vpack.c.bf16 %v3940, %v3940
  %v3951 = vpack.c.bf16 %v3942, %v3942
  %3952 = vst [vmem:[#allocation2 + $0xe0] sm:$0xf] %v3944
  %3953 = vst [vmem:[#allocation2 + $0xe4] sm:$0xf] %v3945
  %3954 = vst [vmem:[#allocation2 + $0xe8] sm:$0xf] %v3946
  %3955 = vst [vmem:[#allocation2 + $0xec] sm:$0xf] %v3947
  %3956 = vst [vmem:[#allocation2 + $0xf0] sm:$0xf] %v3948
  %3957 = vst [vmem:[#allocation2 + $0xf4] sm:$0xf] %v3949
  %3958 = vst [vmem:[#allocation2 + $0xf8] sm:$0xf] %v3950
  %3959 = vst [vmem:[#allocation2 + $0xfc] sm:$0xf] %v3951
  %v3960 = vld [vmem:[#allocation2] sm:$0xf]
  %v3961 = vld [vmem:[#allocation2 + $0x4] sm:$0xf]
  %v3962 = vld [vmem:[#allocation2 + $0x8] sm:$0xf]
  %v3963 = vld [vmem:[#allocation2 + $0xc] sm:$0xf]
  %v3964 = vld [vmem:[#allocation2 + $0x10] sm:$0xf]
  %v3965 = vld [vmem:[#allocation2 + $0x14] sm:$0xf]
  %v3966 = vld [vmem:[#allocation2 + $0x18] sm:$0xf]
  %v3967 = vld [vmem:[#allocation2 + $0x1c] sm:$0xf]
  %v3968 = vld [vmem:[#allocation2 + $0x20] sm:$0xf]
  %v3969 = vld [vmem:[#allocation2 + $0x24] sm:$0xf]
  %v3970 = vld [vmem:[#allocation2 + $0x28] sm:$0xf]
  %v3971 = vld [vmem:[#allocation2 + $0x2c] sm:$0xf]
  %v3972 = vld [vmem:[#allocation2 + $0x30] sm:$0xf]
  %v3973 = vld [vmem:[#allocation2 + $0x34] sm:$0xf]
  %v3974 = vld [vmem:[#allocation2 + $0x38] sm:$0xf]
  %v3975 = vld [vmem:[#allocation2 + $0x3c] sm:$0xf]
  %v3976 = vld [vmem:[#allocation2 + $0x40] sm:$0xf]
  %v3977 = vld [vmem:[#allocation2 + $0x44] sm:$0xf]
  %v3978 = vld [vmem:[#allocation2 + $0x48] sm:$0xf]
  %v3979 = vld [vmem:[#allocation2 + $0x4c] sm:$0xf]
  %v3980 = vld [vmem:[#allocation2 + $0x50] sm:$0xf]
  %v3981 = vld [vmem:[#allocation2 + $0x54] sm:$0xf]
  %v3982 = vld [vmem:[#allocation2 + $0x58] sm:$0xf]
  %v3983 = vld [vmem:[#allocation2 + $0x5c] sm:$0xf]
  %v3984 = vld [vmem:[#allocation2 + $0x60] sm:$0xf]
  %v3985 = vld [vmem:[#allocation2 + $0x64] sm:$0xf]
  %v3986 = vld [vmem:[#allocation2 + $0x68] sm:$0xf]
  %v3987 = vld [vmem:[#allocation2 + $0x6c] sm:$0xf]
  %v3988 = vld [vmem:[#allocation2 + $0x70] sm:$0xf]
  %v3989 = vld [vmem:[#allocation2 + $0x74] sm:$0xf]
  %v3990 = vld [vmem:[#allocation2 + $0x78] sm:$0xf]
  %v3991 = vld [vmem:[#allocation2 + $0x7c] sm:$0xf]
  %v3992 = vld [vmem:[#allocation2 + $0x80] sm:$0xf]
  %v3993 = vld [vmem:[#allocation2 + $0x84] sm:$0xf]
  %v3994 = vld [vmem:[#allocation2 + $0x88] sm:$0xf]
  %v3995 = vld [vmem:[#allocation2 + $0x8c] sm:$0xf]
  %v3996 = vld [vmem:[#allocation2 + $0x90] sm:$0xf]
  %v3997 = vld [vmem:[#allocation2 + $0x94] sm:$0xf]
  %v3998 = vld [vmem:[#allocation2 + $0x98] sm:$0xf]
  %v3999 = vld [vmem:[#allocation2 + $0x9c] sm:$0xf]
  %v4000 = vld [vmem:[#allocation2 + $0xa0] sm:$0xf]
  %v4001 = vld [vmem:[#allocation2 + $0xa4] sm:$0xf]
  %v4002 = vld [vmem:[#allocation2 + $0xa8] sm:$0xf]
  %v4003 = vld [vmem:[#allocation2 + $0xac] sm:$0xf]
  %v4004 = vld [vmem:[#allocation2 + $0xb0] sm:$0xf]
  %v4005 = vld [vmem:[#allocation2 + $0xb4] sm:$0xf]
  %v4006 = vld [vmem:[#allocation2 + $0xb8] sm:$0xf]
  %v4007 = vld [vmem:[#allocation2 + $0xbc] sm:$0xf]
  %v4008 = vld [vmem:[#allocation2 + $0xc0] sm:$0xf]
  %v4009 = vld [vmem:[#allocation2 + $0xc4] sm:$0xf]
  %v4010 = vld [vmem:[#allocation2 + $0xc8] sm:$0xf]
  %v4011 = vld [vmem:[#allocation2 + $0xcc] sm:$0xf]
  %v4012 = vld [vmem:[#allocation2 + $0xd0] sm:$0xf]
  %v4013 = vld [vmem:[#allocation2 + $0xd4] sm:$0xf]
  %v4014 = vld [vmem:[#allocation2 + $0xd8] sm:$0xf]
  %v4015 = vld [vmem:[#allocation2 + $0xdc] sm:$0xf]
  %v4016 = vld [vmem:[#allocation2 + $0xe0] sm:$0xf]
  %v4017 = vld [vmem:[#allocation2 + $0xe4] sm:$0xf]
  %v4018 = vld [vmem:[#allocation2 + $0xe8] sm:$0xf]
  %v4019 = vld [vmem:[#allocation2 + $0xec] sm:$0xf]
  %v4020 = vld [vmem:[#allocation2 + $0xf0] sm:$0xf]
  %v4021 = vld [vmem:[#allocation2 + $0xf4] sm:$0xf]
  %v4022 = vld [vmem:[#allocation2 + $0xf8] sm:$0xf]
  %v4023 = vld [vmem:[#allocation2 + $0xfc] sm:$0xf]
  %v4088 = vunpack.c.l.b16 %v3960
  %v4089 = vunpack.c.l.b16 %v3961
  %v4090 = vunpack.c.l.b16 %v3962
  %v4091 = vunpack.c.l.b16 %v3963
  %v4092 = vunpack.c.l.b16 %v3964
  %v4093 = vunpack.c.l.b16 %v3965
  %v4094 = vunpack.c.l.b16 %v3966
  %v4095 = vunpack.c.l.b16 %v3967
  %v4096 = vunpack.c.l.b16 %v3968
  %v4097 = vunpack.c.l.b16 %v3969
  %v4098 = vunpack.c.l.b16 %v3970
  %v4099 = vunpack.c.l.b16 %v3971
  %v4100 = vunpack.c.l.b16 %v3972
  %v4101 = vunpack.c.l.b16 %v3973
  %v4102 = vunpack.c.l.b16 %v3974
  %v4103 = vunpack.c.l.b16 %v3975
  %v4104 = vunpack.c.l.b16 %v3976
  %v4105 = vunpack.c.l.b16 %v3977
  %v4106 = vunpack.c.l.b16 %v3978
  %v4107 = vunpack.c.l.b16 %v3979
  %v4108 = vunpack.c.l.b16 %v3980
  %v4109 = vunpack.c.l.b16 %v3981
  %v4110 = vunpack.c.l.b16 %v3982
  %v4111 = vunpack.c.l.b16 %v3983
  %v4112 = vunpack.c.l.b16 %v3984
  %v4113 = vunpack.c.l.b16 %v3985
  %v4114 = vunpack.c.l.b16 %v3986
  %v4115 = vunpack.c.l.b16 %v3987
  %v4116 = vunpack.c.l.b16 %v3988
  %v4117 = vunpack.c.l.b16 %v3989
  %v4118 = vunpack.c.l.b16 %v3990
  %v4119 = vunpack.c.l.b16 %v3991
  %v4120 = vunpack.c.l.b16 %v3992
  %v4121 = vunpack.c.l.b16 %v3993
  %v4122 = vunpack.c.l.b16 %v3994
  %v4123 = vunpack.c.l.b16 %v3995
  %v4124 = vunpack.c.l.b16 %v3996
  %v4125 = vunpack.c.l.b16 %v3997
  %v4126 = vunpack.c.l.b16 %v3998
  %v4127 = vunpack.c.l.b16 %v3999
  %v4128 = vunpack.c.l.b16 %v4000
  %v4129 = vunpack.c.l.b16 %v4001
  %v4130 = vunpack.c.l.b16 %v4002
  %v4131 = vunpack.c.l.b16 %v4003
  %v4132 = vunpack.c.l.b16 %v4004
  %v4133 = vunpack.c.l.b16 %v4005
  %v4134 = vunpack.c.l.b16 %v4006
  %v4135 = vunpack.c.l.b16 %v4007
  %v4136 = vunpack.c.l.b16 %v4008
  %v4137 = vunpack.c.l.b16 %v4009
  %v4138 = vunpack.c.l.b16 %v4010
  %v4139 = vunpack.c.l.b16 %v4011
  %v4140 = vunpack.c.l.b16 %v4012
  %v4141 = vunpack.c.l.b16 %v4013
  %v4142 = vunpack.c.l.b16 %v4014
  %v4143 = vunpack.c.l.b16 %v4015
  %v4144 = vunpack.c.l.b16 %v4016
  %v4145 = vunpack.c.l.b16 %v4017
  %v4146 = vunpack.c.l.b16 %v4018
  %v4147 = vunpack.c.l.b16 %v4019
  %v4148 = vunpack.c.l.b16 %v4020
  %v4149 = vunpack.c.l.b16 %v4021
  %v4150 = vunpack.c.l.b16 %v4022
  %v4151 = vunpack.c.l.b16 %v4023
  %v4152 = vpack.c.b16 %v4089, %v4088
  %v4153 = vpack.c.b16 %v4091, %v4090
  %v4154 = vpack.c.b16 %v4093, %v4092
  %v4155 = vpack.c.b16 %v4095, %v4094
  %v4156 = vpack.c.b16 %v4097, %v4096
  %v4157 = vpack.c.b16 %v4099, %v4098
  %v4158 = vpack.c.b16 %v4101, %v4100
  %v4159 = vpack.c.b16 %v4103, %v4102
  %v4160 = vpack.c.b16 %v4105, %v4104
  %v4161 = vpack.c.b16 %v4107, %v4106
  %v4162 = vpack.c.b16 %v4109, %v4108
  %v4163 = vpack.c.b16 %v4111, %v4110
  %v4164 = vpack.c.b16 %v4113, %v4112
  %v4165 = vpack.c.b16 %v4115, %v4114
  %v4166 = vpack.c.b16 %v4117, %v4116
  %v4167 = vpack.c.b16 %v4119, %v4118
  %v4168 = vpack.c.b16 %v4121, %v4120
  %v4169 = vpack.c.b16 %v4123, %v4122
  %v4170 = vpack.c.b16 %v4125, %v4124
  %v4171 = vpack.c.b16 %v4127, %v4126
  %v4172 = vpack.c.b16 %v4129, %v4128
  %v4173 = vpack.c.b16 %v4131, %v4130
  %v4174 = vpack.c.b16 %v4133, %v4132
  %v4175 = vpack.c.b16 %v4135, %v4134
  %v4176 = vpack.c.b16 %v4137, %v4136
  %v4177 = vpack.c.b16 %v4139, %v4138
  %v4178 = vpack.c.b16 %v4141, %v4140
  %v4179 = vpack.c.b16 %v4143, %v4142
  %v4180 = vpack.c.b16 %v4145, %v4144
  %v4181 = vpack.c.b16 %v4147, %v4146
  %v4182 = vpack.c.b16 %v4149, %v4148
  %v4183 = vpack.c.b16 %v4151, %v4150
  %4216 = vmatpush.bf16.msra.mxu0 %v4159
  %4217 = vmatpush.bf16.msra.mxu0 %v4158
  %4218 = vmatpush.bf16.msra.mxu0 %v4157
  %4219 = vmatpush.bf16.msra.mxu0 %v4156
  %4220 = vmatpush.bf16.msra.mxu0 %v4155
  %4221 = vmatpush.bf16.msra.mxu0 %v4154
  %4222 = vmatpush.bf16.msra.mxu0 %v4153
  %4223 = vmatpush.bf16.msra.mxu0 %v4152
  %4224 = vmatmul.bf16.gmra.mxu0 %v1064
  %v4225 = vpop.f32.mrf.mxu0
  %v4226 = vadd.f32 0.0, %v4225
  %v4227 = vpop.f32.mrf.mxu0
  %v4228 = vadd.f32 0.0, %v4227
  %4229 = vmatmul.bf16.gmra.mxu0 %v1068
  %v4230 = vpop.f32.mrf.mxu0
  %v4231 = vadd.f32 0.0, %v4230
  %v4232 = vpop.f32.mrf.mxu0
  %v4233 = vadd.f32 0.0, %v4232
  %4234 = vmatmul.bf16.gmra.mxu0 %v1072
  %v4235 = vpop.f32.mrf.mxu0
  %v4236 = vadd.f32 0.0, %v4235
  %v4237 = vpop.f32.mrf.mxu0
  %v4238 = vadd.f32 0.0, %v4237
  %4239 = vmatmul.bf16.gmra.mxu0 %v1076
  %v4240 = vpop.f32.mrf.mxu0
  %v4241 = vadd.f32 0.0, %v4240
  %v4242 = vpop.f32.mrf.mxu0
  %v4243 = vadd.f32 0.0, %v4242
  %4244 = vdwg.mxu0
  %4245 = vmatpush.bf16.msra.mxu0 %v4167
  %4246 = vmatpush.bf16.msra.mxu0 %v4166
  %4247 = vmatpush.bf16.msra.mxu0 %v4165
  %4248 = vmatpush.bf16.msra.mxu0 %v4164
  %4249 = vmatpush.bf16.msra.mxu0 %v4163
  %4250 = vmatpush.bf16.msra.mxu0 %v4162
  %4251 = vmatpush.bf16.msra.mxu0 %v4161
  %4252 = vmatpush.bf16.msra.mxu0 %v4160
  %4253 = vmatmul.bf16.gmra.mxu0 %v1065
  %v4254 = vpop.f32.mrf.mxu0
  %v4255 = vadd.f32 %v4226, %v4254
  %v4256 = vpop.f32.mrf.mxu0
  %v4257 = vadd.f32 %v4228, %v4256
  %4258 = vmatmul.bf16.gmra.mxu0 %v1069
  %v4259 = vpop.f32.mrf.mxu0
  %v4260 = vadd.f32 %v4231, %v4259
  %v4261 = vpop.f32.mrf.mxu0
  %v4262 = vadd.f32 %v4233, %v4261
  %4263 = vmatmul.bf16.gmra.mxu0 %v1073
  %v4264 = vpop.f32.mrf.mxu0
  %v4265 = vadd.f32 %v4236, %v4264
  %v4266 = vpop.f32.mrf.mxu0
  %v4267 = vadd.f32 %v4238, %v4266
  %4268 = vmatmul.bf16.gmra.mxu0 %v1077
  %v4269 = vpop.f32.mrf.mxu0
  %v4270 = vadd.f32 %v4241, %v4269
  %v4271 = vpop.f32.mrf.mxu0
  %v4272 = vadd.f32 %v4243, %v4271
  %4273 = vdwg.mxu0
  %4274 = vmatpush.bf16.msra.mxu0 %v4175
  %4275 = vmatpush.bf16.msra.mxu0 %v4174
  %4276 = vmatpush.bf16.msra.mxu0 %v4173
  %4277 = vmatpush.bf16.msra.mxu0 %v4172
  %4278 = vmatpush.bf16.msra.mxu0 %v4171
  %4279 = vmatpush.bf16.msra.mxu0 %v4170
  %4280 = vmatpush.bf16.msra.mxu0 %v4169
  %4281 = vmatpush.bf16.msra.mxu0 %v4168
  %4282 = vmatmul.bf16.gmra.mxu0 %v1066
  %v4283 = vpop.f32.mrf.mxu0
  %v4284 = vadd.f32 %v4255, %v4283
  %v4285 = vpop.f32.mrf.mxu0
  %v4286 = vadd.f32 %v4257, %v4285
  %4287 = vmatmul.bf16.gmra.mxu0 %v1070
  %v4288 = vpop.f32.mrf.mxu0
  %v4289 = vadd.f32 %v4260, %v4288
  %v4290 = vpop.f32.mrf.mxu0
  %v4291 = vadd.f32 %v4262, %v4290
  %4292 = vmatmul.bf16.gmra.mxu0 %v1074
  %v4293 = vpop.f32.mrf.mxu0
  %v4294 = vadd.f32 %v4265, %v4293
  %v4295 = vpop.f32.mrf.mxu0
  %v4296 = vadd.f32 %v4267, %v4295
  %4297 = vmatmul.bf16.gmra.mxu0 %v1078
  %v4298 = vpop.f32.mrf.mxu0
  %v4299 = vadd.f32 %v4270, %v4298
  %v4300 = vpop.f32.mrf.mxu0
  %v4301 = vadd.f32 %v4272, %v4300
  %4302 = vdwg.mxu0
  %4303 = vmatpush.bf16.msra.mxu0 %v4183
  %4304 = vmatpush.bf16.msra.mxu0 %v4182
  %4305 = vmatpush.bf16.msra.mxu0 %v4181
  %4306 = vmatpush.bf16.msra.mxu0 %v4180
  %4307 = vmatpush.bf16.msra.mxu0 %v4179
  %4308 = vmatpush.bf16.msra.mxu0 %v4178
  %4309 = vmatpush.bf16.msra.mxu0 %v4177
  %4310 = vmatpush.bf16.msra.mxu0 %v4176
  %4311 = vmatmul.bf16.gmra.mxu0 %v1067
  %v4312 = vpop.f32.mrf.mxu0
  %v4313 = vadd.f32 %v4284, %v4312
  %v4314 = vpop.f32.mrf.mxu0
  %v4315 = vadd.f32 %v4286, %v4314
  %4316 = vmatmul.bf16.gmra.mxu0 %v1071
  %v4317 = vpop.f32.mrf.mxu0
  %v4318 = vadd.f32 %v4289, %v4317
  %v4319 = vpop.f32.mrf.mxu0
  %v4320 = vadd.f32 %v4291, %v4319
  %4321 = vmatmul.bf16.gmra.mxu0 %v1075
  %v4322 = vpop.f32.mrf.mxu0
  %v4323 = vadd.f32 %v4294, %v4322
  %v4324 = vpop.f32.mrf.mxu0
  %v4325 = vadd.f32 %v4296, %v4324
  %4326 = vmatmul.bf16.gmra.mxu0 %v1079
  %v4327 = vpop.f32.mrf.mxu0
  %v4328 = vadd.f32 %v4299, %v4327
  %v4329 = vpop.f32.mrf.mxu0
  %v4330 = vadd.f32 %v4301, %v4329
  %4331 = vdwg.mxu0
  %v4332 = vmul.f32 %v4313, %v1407
  %v4333 = vmul.f32 %v4315, %v1412
  %v4334 = vmul.f32 %v4318, %v1417
  %v4335 = vmul.f32 %v4320, %v1422
  %v4336 = vmul.f32 %v4323, %v1427
  %v4337 = vmul.f32 %v4325, %v1432
  %v4338 = vmul.f32 %v4328, %v1437
  %v4339 = vmul.f32 %v4330, %v1442
  %vm4340 = vcmp.gt.f32.partialorder %v4332, 0.0
  %vm4341 = vcmp.gt.f32.partialorder %v4333, 0.0
  %vm4342 = vcmp.gt.f32.partialorder %v4334, 0.0
  %vm4343 = vcmp.gt.f32.partialorder %v4335, 0.0
  %vm4344 = vcmp.gt.f32.partialorder %v4336, 0.0
  %vm4345 = vcmp.gt.f32.partialorder %v4337, 0.0
  %vm4346 = vcmp.gt.f32.partialorder %v4338, 0.0
  %vm4347 = vcmp.gt.f32.partialorder %v4339, 0.0
  %v4348 = vmin.f32 %v4332, 0.0
  %v4349 = vmin.f32 %v4333, 0.0
  %v4350 = vmin.f32 %v4334, 0.0
  %v4351 = vmin.f32 %v4335, 0.0
  %v4352 = vmin.f32 %v4336, 0.0
  %v4353 = vmin.f32 %v4337, 0.0
  %v4354 = vmin.f32 %v4338, 0.0
  %v4355 = vmin.f32 %v4339, 0.0
  %v4356 = vmul.f32 %v4348, 1.442695
  %v4357 = vpow.pop %v4356
  %v4358 = vmul.f32 %v4349, 1.442695
  %v4359 = vpow.pop %v4358
  %v4360 = vmul.f32 %v4350, 1.442695
  %v4361 = vpow.pop %v4360
  %v4362 = vmul.f32 %v4351, 1.442695
  %v4363 = vpow.pop %v4362
  %v4364 = vmul.f32 %v4352, 1.442695
  %v4365 = vpow.pop %v4364
  %v4366 = vmul.f32 %v4353, 1.442695
  %v4367 = vpow.pop %v4366
  %v4368 = vmul.f32 %v4354, 1.442695
  %v4369 = vpow.pop %v4368
  %v4370 = vmul.f32 %v4355, 1.442695
  %v4371 = vpow.pop %v4370
  %v4372 = vsub.f32 %v4357, 1.0
  %v4373 = vsub.f32 %v4359, 1.0
  %v4374 = vsub.f32 %v4361, 1.0
  %v4375 = vsub.f32 %v4363, 1.0
  %v4376 = vsub.f32 %v4365, 1.0
  %v4377 = vsub.f32 %v4367, 1.0
  %v4378 = vsub.f32 %v4369, 1.0
  %v4379 = vsub.f32 %v4371, 1.0
  %v4380 = vsel %vm4340, %v4332, %v4372
  %v4381 = vsel %vm4341, %v4333, %v4373
  %v4382 = vsel %vm4342, %v4334, %v4374
  %v4383 = vsel %vm4343, %v4335, %v4375
  %v4384 = vsel %vm4344, %v4336, %v4376
  %v4385 = vsel %vm4345, %v4337, %v4377
  %v4386 = vsel %vm4346, %v4338, %v4378
  %v4387 = vsel %vm4347, %v4339, %v4379
  %v4388 = vmul.f32 %v4380, %v1503
  %v4389 = vmul.f32 %v4381, %v1508
  %v4390 = vmul.f32 %v4382, %v1513
  %v4391 = vmul.f32 %v4383, %v1518
  %v4392 = vmul.f32 %v4384, %v1523
  %v4393 = vmul.f32 %v4385, %v1528
  %v4394 = vmul.f32 %v4386, %v1533
  %v4395 = vmul.f32 %v4387, %v1538
  %v4396 = vadd.f32 %v4388, %v4389
  %v4397 = vadd.f32 %v4396, %v4390
  %v4398 = vadd.f32 %v4397, %v4391
  %v4399 = vadd.f32 %v4398, %v4392
  %v4400 = vadd.f32 %v4399, %v4393
  %v4401 = vadd.f32 %v4400, %v4394
  %v4402 = vadd.f32 %v4401, %v4395
  %v4403 = vrot.slane %v4402, 4
  %v4404 = vadd.f32 %v4402, %v4403
  %v4405 = vrot.slane %v4404, 2
  %v4406 = vadd.f32 %v4404, %v4405
  %v4407 = vrot.slane %v4406, 1
  %v4408 = vadd.f32 %v4406, %v4407
  %v4409 = vmul.f32 %v4408, 0.015625
  %v4410 = vsub.f32 %v4380, %v4409
  %v4411 = vsub.f32 %v4381, %v4409
  %v4412 = vsub.f32 %v4382, %v4409
  %v4413 = vsub.f32 %v4383, %v4409
  %v4414 = vsub.f32 %v4384, %v4409
  %v4415 = vsub.f32 %v4385, %v4409
  %v4416 = vsub.f32 %v4386, %v4409
  %v4417 = vsub.f32 %v4387, %v4409
  %v4418 = vmul.f32 %v4410, %v1503
  %v4419 = vmul.f32 %v4411, %v1508
  %v4420 = vmul.f32 %v4412, %v1513
  %v4421 = vmul.f32 %v4413, %v1518
  %v4422 = vmul.f32 %v4414, %v1523
  %v4423 = vmul.f32 %v4415, %v1528
  %v4424 = vmul.f32 %v4416, %v1533
  %v4425 = vmul.f32 %v4417, %v1538
  %v4426 = vmul.f32 %v4418, %v4418
  %v4427 = vmul.f32 %v4419, %v4419
  %v4428 = vmul.f32 %v4420, %v4420
  %v4429 = vmul.f32 %v4421, %v4421
  %v4430 = vmul.f32 %v4422, %v4422
  %v4431 = vmul.f32 %v4423, %v4423
  %v4432 = vmul.f32 %v4424, %v4424
  %v4433 = vmul.f32 %v4425, %v4425
  %v4434 = vadd.f32 %v4426, %v4427
  %v4435 = vadd.f32 %v4434, %v4428
  %v4436 = vadd.f32 %v4435, %v4429
  %v4437 = vadd.f32 %v4436, %v4430
  %v4438 = vadd.f32 %v4437, %v4431
  %v4439 = vadd.f32 %v4438, %v4432
  %v4440 = vadd.f32 %v4439, %v4433
  %v4441 = vrot.slane %v4440, 4
  %v4442 = vadd.f32 %v4440, %v4441
  %v4443 = vrot.slane %v4442, 2
  %v4444 = vadd.f32 %v4442, %v4443
  %v4445 = vrot.slane %v4444, 1
  %v4446 = vadd.f32 %v4444, %v4445
  %v4447 = vmul.f32 %v4446, 0.015625
  %v4448 = vadd.f32 %v4447, 1e-05
  %v4449 = vrsqrt.pop %v4448
  %v4450 = vmul.f32 %v4449, %v4448
  %v4451 = vmul.f32 %v4450, %v4449
  %v4452 = vmul.f32 0.5, %v4451
  %v4453 = vsub.f32 1.5, %v4452
  %v4454 = vmul.f32 %v4449, %v4453
  %vm4455 = vweird.f32 %v4448
  %vm4456 = vweird.f32 %v4449
  %vm4457 = vmor %vm4455, %vm4456
  %v4458 = vsel %vm4457, %v4449, %v4454
  %v4459 = vmul.f32 %v4410, %v4458
  %v4460 = vmul.f32 %v4411, %v4458
  %v4461 = vmul.f32 %v4412, %v4458
  %v4462 = vmul.f32 %v4413, %v4458
  %v4463 = vmul.f32 %v4414, %v4458
  %v4464 = vmul.f32 %v4415, %v4458
  %v4465 = vmul.f32 %v4416, %v4458
  %v4466 = vmul.f32 %v4417, %v4458
  %s4467 = scalar_lea.vmem %s3, 2
  %v4468 = vld [vmem:[%s4467] sm:$0x1]
  %v4470 = vperm.slane %v4468, 0
  %v4472 = vmul.f32 %v4459, %v4470
  %v4473 = vmul.f32 %v4460, %v4470
  %v4474 = vmul.f32 %v4461, %v4470
  %v4475 = vmul.f32 %v4462, %v4470
  %v4476 = vmul.f32 %v4463, %v4470
  %v4477 = vmul.f32 %v4464, %v4470
  %v4478 = vmul.f32 %v4465, %v4470
  %v4479 = vmul.f32 %v4466, %v4470
  %s4480 = scalar_lea.vmem %s4, 2
  %v4481 = vld [vmem:[%s4480] sm:$0x1]
  %v4483 = vperm.slane %v4481, 0
  %v4485 = vadd.f32 %v4472, %v4483
  %v4486 = vadd.f32 %v4473, %v4483
  %v4487 = vadd.f32 %v4474, %v4483
  %v4488 = vadd.f32 %v4475, %v4483
  %v4489 = vadd.f32 %v4476, %v4483
  %v4490 = vadd.f32 %v4477, %v4483
  %v4491 = vadd.f32 %v4478, %v4483
  %v4492 = vadd.f32 %v4479, %v4483
  %v4493 = vmul.f32 %v4485, %v1503
  %v4494 = vmul.f32 %v4486, %v1508
  %v4495 = vmul.f32 %v4487, %v1513
  %v4496 = vmul.f32 %v4488, %v1518
  %v4497 = vmul.f32 %v4489, %v1523
  %v4498 = vmul.f32 %v4490, %v1528
  %v4499 = vmul.f32 %v4491, %v1533
  %v4500 = vmul.f32 %v4492, %v1538
  %v4501 = vpack.c.bf16 %v4494, %v4493
  %v4502 = vpack.c.bf16 %v4496, %v4495
  %v4503 = vpack.c.bf16 %v4498, %v4497
  %v4504 = vpack.c.bf16 %v4500, %v4499
  %s4505 = scalar_lea.vmem %s2, 1536
  %v4506 = vld [vmem:[%s4505] sm:$0xf]
  %v4507 = vld [vmem:[%s4505 + $0x4] sm:$0xf]
  %v4508 = vld [vmem:[%s4505 + $0x8] sm:$0xf]
  %v4509 = vld [vmem:[%s4505 + $0xc] sm:$0xf]
  %v4510 = vld [vmem:[%s4505 + $0x10] sm:$0xf]
  %v4511 = vld [vmem:[%s4505 + $0x14] sm:$0xf]
  %v4512 = vld [vmem:[%s4505 + $0x18] sm:$0xf]
  %v4513 = vld [vmem:[%s4505 + $0x1c] sm:$0xf]
  %v4514 = vld [vmem:[%s4505 + $0x20] sm:$0xf]
  %v4515 = vld [vmem:[%s4505 + $0x24] sm:$0xf]
  %v4516 = vld [vmem:[%s4505 + $0x28] sm:$0xf]
  %v4517 = vld [vmem:[%s4505 + $0x2c] sm:$0xf]
  %v4518 = vld [vmem:[%s4505 + $0x30] sm:$0xf]
  %v4519 = vld [vmem:[%s4505 + $0x34] sm:$0xf]
  %v4520 = vld [vmem:[%s4505 + $0x38] sm:$0xf]
  %v4521 = vld [vmem:[%s4505 + $0x3c] sm:$0xf]
  %v4538 = vunpack.c.l.b16 %v4506
  %v4539 = vunpack.c.l.b16 %v4507
  %v4540 = vunpack.c.l.b16 %v4508
  %v4541 = vunpack.c.l.b16 %v4509
  %v4542 = vunpack.c.l.b16 %v4510
  %v4543 = vunpack.c.l.b16 %v4511
  %v4544 = vunpack.c.l.b16 %v4512
  %v4545 = vunpack.c.l.b16 %v4513
  %v4546 = vunpack.c.l.b16 %v4514
  %v4547 = vunpack.c.l.b16 %v4515
  %v4548 = vunpack.c.l.b16 %v4516
  %v4549 = vunpack.c.l.b16 %v4517
  %v4550 = vunpack.c.l.b16 %v4518
  %v4551 = vunpack.c.l.b16 %v4519
  %v4552 = vunpack.c.l.b16 %v4520
  %v4553 = vunpack.c.l.b16 %v4521
  %v4554 = vpack.c.b16 %v4539, %v4538
  %v4555 = vpack.c.b16 %v4541, %v4540
  %v4556 = vpack.c.b16 %v4543, %v4542
  %v4557 = vpack.c.b16 %v4545, %v4544
  %v4558 = vpack.c.b16 %v4547, %v4546
  %v4559 = vpack.c.b16 %v4549, %v4548
  %v4560 = vpack.c.b16 %v4551, %v4550
  %v4561 = vpack.c.b16 %v4553, %v4552
  %4570 = vmatpush.bf16.msra.mxu0 %v4561
  %4571 = vmatpush.bf16.msra.mxu0 %v4560
  %4572 = vmatpush.bf16.msra.mxu0 %v4559
  %4573 = vmatpush.bf16.msra.mxu0 %v4558
  %4574 = vmatpush.bf16.msra.mxu0 %v4557
  %4575 = vmatpush.bf16.msra.mxu0 %v4556
  %4576 = vmatpush.bf16.msra.mxu0 %v4555
  %4577 = vmatpush.bf16.msra.mxu0 %v4554
  %4578 = vmatmul.bf16.gmra.mxu0 %v4501
  %v4579 = vpop.f32.mrf.mxu0
  %v4580 = vadd.f32 0.0, %v4579
  %v4581 = vpop.f32.mrf.mxu0
  %v4582 = vadd.f32 0.0, %v4581
  %4583 = vmatmul.bf16.gmra.mxu0 %v4502
  %v4584 = vpop.f32.mrf.mxu0
  %v4585 = vadd.f32 0.0, %v4584
  %v4586 = vpop.f32.mrf.mxu0
  %v4587 = vadd.f32 0.0, %v4586
  %4588 = vmatmul.bf16.gmra.mxu0 %v4503
  %v4589 = vpop.f32.mrf.mxu0
  %v4590 = vadd.f32 0.0, %v4589
  %v4591 = vpop.f32.mrf.mxu0
  %v4592 = vadd.f32 0.0, %v4591
  %4593 = vmatmul.bf16.gmra.mxu0 %v4504
  %v4594 = vpop.f32.mrf.mxu0
  %v4595 = vadd.f32 0.0, %v4594
  %v4596 = vpop.f32.mrf.mxu0
  %v4597 = vadd.f32 0.0, %v4596
  %4598 = vdwg.mxu0
  %v4599 = vpack.c.bf16 %v4580, %v4580
  %v4600 = vpack.c.bf16 %v4582, %v4582
  %v4601 = vpack.c.bf16 %v4585, %v4585
  %v4602 = vpack.c.bf16 %v4587, %v4587
  %v4603 = vpack.c.bf16 %v4590, %v4590
  %v4604 = vpack.c.bf16 %v4592, %v4592
  %v4605 = vpack.c.bf16 %v4595, %v4595
  %v4606 = vpack.c.bf16 %v4597, %v4597
  %4607 = vst [vmem:[#allocation2] sm:$0xf] %v4599
  %4608 = vst [vmem:[#allocation2 + $0x4] sm:$0xf] %v4600
  %4609 = vst [vmem:[#allocation2 + $0x8] sm:$0xf] %v4601
  %4610 = vst [vmem:[#allocation2 + $0xc] sm:$0xf] %v4602
  %4611 = vst [vmem:[#allocation2 + $0x10] sm:$0xf] %v4603
  %4612 = vst [vmem:[#allocation2 + $0x14] sm:$0xf] %v4604
  %4613 = vst [vmem:[#allocation2 + $0x18] sm:$0xf] %v4605
  %4614 = vst [vmem:[#allocation2 + $0x1c] sm:$0xf] %v4606
  %s4615 = scalar_lea.vmem %s2, 1600
  %v4616 = vld [vmem:[%s4615] sm:$0xf]
  %v4617 = vld [vmem:[%s4615 + $0x4] sm:$0xf]
  %v4618 = vld [vmem:[%s4615 + $0x8] sm:$0xf]
  %v4619 = vld [vmem:[%s4615 + $0xc] sm:$0xf]
  %v4620 = vld [vmem:[%s4615 + $0x10] sm:$0xf]
  %v4621 = vld [vmem:[%s4615 + $0x14] sm:$0xf]
  %v4622 = vld [vmem:[%s4615 + $0x18] sm:$0xf]
  %v4623 = vld [vmem:[%s4615 + $0x1c] sm:$0xf]
  %v4624 = vld [vmem:[%s4615 + $0x20] sm:$0xf]
  %v4625 = vld [vmem:[%s4615 + $0x24] sm:$0xf]
  %v4626 = vld [vmem:[%s4615 + $0x28] sm:$0xf]
  %v4627 = vld [vmem:[%s4615 + $0x2c] sm:$0xf]
  %v4628 = vld [vmem:[%s4615 + $0x30] sm:$0xf]
  %v4629 = vld [vmem:[%s4615 + $0x34] sm:$0xf]
  %v4630 = vld [vmem:[%s4615 + $0x38] sm:$0xf]
  %v4631 = vld [vmem:[%s4615 + $0x3c] sm:$0xf]
  %v4648 = vunpack.c.l.b16 %v4616
  %v4649 = vunpack.c.l.b16 %v4617
  %v4650 = vunpack.c.l.b16 %v4618
  %v4651 = vunpack.c.l.b16 %v4619
  %v4652 = vunpack.c.l.b16 %v4620
  %v4653 = vunpack.c.l.b16 %v4621
  %v4654 = vunpack.c.l.b16 %v4622
  %v4655 = vunpack.c.l.b16 %v4623
  %v4656 = vunpack.c.l.b16 %v4624
  %v4657 = vunpack.c.l.b16 %v4625
  %v4658 = vunpack.c.l.b16 %v4626
  %v4659 = vunpack.c.l.b16 %v4627
  %v4660 = vunpack.c.l.b16 %v4628
  %v4661 = vunpack.c.l.b16 %v4629
  %v4662 = vunpack.c.l.b16 %v4630
  %v4663 = vunpack.c.l.b16 %v4631
  %v4664 = vpack.c.b16 %v4649, %v4648
  %v4665 = vpack.c.b16 %v4651, %v4650
  %v4666 = vpack.c.b16 %v4653, %v4652
  %v4667 = vpack.c.b16 %v4655, %v4654
  %v4668 = vpack.c.b16 %v4657, %v4656
  %v4669 = vpack.c.b16 %v4659, %v4658
  %v4670 = vpack.c.b16 %v4661, %v4660
  %v4671 = vpack.c.b16 %v4663, %v4662
  %4680 = vmatpush.bf16.msra.mxu0 %v4671
  %4681 = vmatpush.bf16.msra.mxu0 %v4670
  %4682 = vmatpush.bf16.msra.mxu0 %v4669
  %4683 = vmatpush.bf16.msra.mxu0 %v4668
  %4684 = vmatpush.bf16.msra.mxu0 %v4667
  %4685 = vmatpush.bf16.msra.mxu0 %v4666
  %4686 = vmatpush.bf16.msra.mxu0 %v4665
  %4687 = vmatpush.bf16.msra.mxu0 %v4664
  %4688 = vmatmul.bf16.gmra.mxu0 %v4501
  %v4689 = vpop.f32.mrf.mxu0
  %v4690 = vadd.f32 0.0, %v4689
  %v4691 = vpop.f32.mrf.mxu0
  %v4692 = vadd.f32 0.0, %v4691
  %4693 = vmatmul.bf16.gmra.mxu0 %v4502
  %v4694 = vpop.f32.mrf.mxu0
  %v4695 = vadd.f32 0.0, %v4694
  %v4696 = vpop.f32.mrf.mxu0
  %v4697 = vadd.f32 0.0, %v4696
  %4698 = vmatmul.bf16.gmra.mxu0 %v4503
  %v4699 = vpop.f32.mrf.mxu0
  %v4700 = vadd.f32 0.0, %v4699
  %v4701 = vpop.f32.mrf.mxu0
  %v4702 = vadd.f32 0.0, %v4701
  %4703 = vmatmul.bf16.gmra.mxu0 %v4504
  %v4704 = vpop.f32.mrf.mxu0
  %v4705 = vadd.f32 0.0, %v4704
  %v4706 = vpop.f32.mrf.mxu0
  %v4707 = vadd.f32 0.0, %v4706
  %4708 = vdwg.mxu0
  %v4709 = vpack.c.bf16 %v4690, %v4690
  %v4710 = vpack.c.bf16 %v4692, %v4692
  %v4711 = vpack.c.bf16 %v4695, %v4695
  %v4712 = vpack.c.bf16 %v4697, %v4697
  %v4713 = vpack.c.bf16 %v4700, %v4700
  %v4714 = vpack.c.bf16 %v4702, %v4702
  %v4715 = vpack.c.bf16 %v4705, %v4705
  %v4716 = vpack.c.bf16 %v4707, %v4707
  %4717 = vst [vmem:[#allocation2 + $0x20] sm:$0xf] %v4709
  %4718 = vst [vmem:[#allocation2 + $0x24] sm:$0xf] %v4710
  %4719 = vst [vmem:[#allocation2 + $0x28] sm:$0xf] %v4711
  %4720 = vst [vmem:[#allocation2 + $0x2c] sm:$0xf] %v4712
  %4721 = vst [vmem:[#allocation2 + $0x30] sm:$0xf] %v4713
  %4722 = vst [vmem:[#allocation2 + $0x34] sm:$0xf] %v4714
  %4723 = vst [vmem:[#allocation2 + $0x38] sm:$0xf] %v4715
  %4724 = vst [vmem:[#allocation2 + $0x3c] sm:$0xf] %v4716
  %s4725 = scalar_lea.vmem %s2, 1664
  %v4726 = vld [vmem:[%s4725] sm:$0xf]
  %v4727 = vld [vmem:[%s4725 + $0x4] sm:$0xf]
  %v4728 = vld [vmem:[%s4725 + $0x8] sm:$0xf]
  %v4729 = vld [vmem:[%s4725 + $0xc] sm:$0xf]
  %v4730 = vld [vmem:[%s4725 + $0x10] sm:$0xf]
  %v4731 = vld [vmem:[%s4725 + $0x14] sm:$0xf]
  %v4732 = vld [vmem:[%s4725 + $0x18] sm:$0xf]
  %v4733 = vld [vmem:[%s4725 + $0x1c] sm:$0xf]
  %v4734 = vld [vmem:[%s4725 + $0x20] sm:$0xf]
  %v4735 = vld [vmem:[%s4725 + $0x24] sm:$0xf]
  %v4736 = vld [vmem:[%s4725 + $0x28] sm:$0xf]
  %v4737 = vld [vmem:[%s4725 + $0x2c] sm:$0xf]
  %v4738 = vld [vmem:[%s4725 + $0x30] sm:$0xf]
  %v4739 = vld [vmem:[%s4725 + $0x34] sm:$0xf]
  %v4740 = vld [vmem:[%s4725 + $0x38] sm:$0xf]
  %v4741 = vld [vmem:[%s4725 + $0x3c] sm:$0xf]
  %v4758 = vunpack.c.l.b16 %v4726
  %v4759 = vunpack.c.l.b16 %v4727
  %v4760 = vunpack.c.l.b16 %v4728
  %v4761 = vunpack.c.l.b16 %v4729
  %v4762 = vunpack.c.l.b16 %v4730
  %v4763 = vunpack.c.l.b16 %v4731
  %v4764 = vunpack.c.l.b16 %v4732
  %v4765 = vunpack.c.l.b16 %v4733
  %v4766 = vunpack.c.l.b16 %v4734
  %v4767 = vunpack.c.l.b16 %v4735
  %v4768 = vunpack.c.l.b16 %v4736
  %v4769 = vunpack.c.l.b16 %v4737
  %v4770 = vunpack.c.l.b16 %v4738
  %v4771 = vunpack.c.l.b16 %v4739
  %v4772 = vunpack.c.l.b16 %v4740
  %v4773 = vunpack.c.l.b16 %v4741
  %v4774 = vpack.c.b16 %v4759, %v4758
  %v4775 = vpack.c.b16 %v4761, %v4760
  %v4776 = vpack.c.b16 %v4763, %v4762
  %v4777 = vpack.c.b16 %v4765, %v4764
  %v4778 = vpack.c.b16 %v4767, %v4766
  %v4779 = vpack.c.b16 %v4769, %v4768
  %v4780 = vpack.c.b16 %v4771, %v4770
  %v4781 = vpack.c.b16 %v4773, %v4772
  %4790 = vmatpush.bf16.msra.mxu0 %v4781
  %4791 = vmatpush.bf16.msra.mxu0 %v4780
  %4792 = vmatpush.bf16.msra.mxu0 %v4779
  %4793 = vmatpush.bf16.msra.mxu0 %v4778
  %4794 = vmatpush.bf16.msra.mxu0 %v4777
  %4795 = vmatpush.bf16.msra.mxu0 %v4776
  %4796 = vmatpush.bf16.msra.mxu0 %v4775
  %4797 = vmatpush.bf16.msra.mxu0 %v4774
  %4798 = vmatmul.bf16.gmra.mxu0 %v4501
  %v4799 = vpop.f32.mrf.mxu0
  %v4800 = vadd.f32 0.0, %v4799
  %v4801 = vpop.f32.mrf.mxu0
  %v4802 = vadd.f32 0.0, %v4801
  %4803 = vmatmul.bf16.gmra.mxu0 %v4502
  %v4804 = vpop.f32.mrf.mxu0
  %v4805 = vadd.f32 0.0, %v4804
  %v4806 = vpop.f32.mrf.mxu0
  %v4807 = vadd.f32 0.0, %v4806
  %4808 = vmatmul.bf16.gmra.mxu0 %v4503
  %v4809 = vpop.f32.mrf.mxu0
  %v4810 = vadd.f32 0.0, %v4809
  %v4811 = vpop.f32.mrf.mxu0
  %v4812 = vadd.f32 0.0, %v4811
  %4813 = vmatmul.bf16.gmra.mxu0 %v4504
  %v4814 = vpop.f32.mrf.mxu0
  %v4815 = vadd.f32 0.0, %v4814
  %v4816 = vpop.f32.mrf.mxu0
  %v4817 = vadd.f32 0.0, %v4816
  %4818 = vdwg.mxu0
  %v4819 = vpack.c.bf16 %v4800, %v4800
  %v4820 = vpack.c.bf16 %v4802, %v4802
  %v4821 = vpack.c.bf16 %v4805, %v4805
  %v4822 = vpack.c.bf16 %v4807, %v4807
  %v4823 = vpack.c.bf16 %v4810, %v4810
  %v4824 = vpack.c.bf16 %v4812, %v4812
  %v4825 = vpack.c.bf16 %v4815, %v4815
  %v4826 = vpack.c.bf16 %v4817, %v4817
  %4827 = vst [vmem:[#allocation2 + $0x40] sm:$0xf] %v4819
  %4828 = vst [vmem:[#allocation2 + $0x44] sm:$0xf] %v4820
  %4829 = vst [vmem:[#allocation2 + $0x48] sm:$0xf] %v4821
  %4830 = vst [vmem:[#allocation2 + $0x4c] sm:$0xf] %v4822
  %4831 = vst [vmem:[#allocation2 + $0x50] sm:$0xf] %v4823
  %4832 = vst [vmem:[#allocation2 + $0x54] sm:$0xf] %v4824
  %4833 = vst [vmem:[#allocation2 + $0x58] sm:$0xf] %v4825
  %4834 = vst [vmem:[#allocation2 + $0x5c] sm:$0xf] %v4826
  %s4835 = scalar_lea.vmem %s2, 1728
  %v4836 = vld [vmem:[%s4835] sm:$0xf]
  %v4837 = vld [vmem:[%s4835 + $0x4] sm:$0xf]
  %v4838 = vld [vmem:[%s4835 + $0x8] sm:$0xf]
  %v4839 = vld [vmem:[%s4835 + $0xc] sm:$0xf]
  %v4840 = vld [vmem:[%s4835 + $0x10] sm:$0xf]
  %v4841 = vld [vmem:[%s4835 + $0x14] sm:$0xf]
  %v4842 = vld [vmem:[%s4835 + $0x18] sm:$0xf]
  %v4843 = vld [vmem:[%s4835 + $0x1c] sm:$0xf]
  %v4844 = vld [vmem:[%s4835 + $0x20] sm:$0xf]
  %v4845 = vld [vmem:[%s4835 + $0x24] sm:$0xf]
  %v4846 = vld [vmem:[%s4835 + $0x28] sm:$0xf]
  %v4847 = vld [vmem:[%s4835 + $0x2c] sm:$0xf]
  %v4848 = vld [vmem:[%s4835 + $0x30] sm:$0xf]
  %v4849 = vld [vmem:[%s4835 + $0x34] sm:$0xf]
  %v4850 = vld [vmem:[%s4835 + $0x38] sm:$0xf]
  %v4851 = vld [vmem:[%s4835 + $0x3c] sm:$0xf]
  %v4868 = vunpack.c.l.b16 %v4836
  %v4869 = vunpack.c.l.b16 %v4837
  %v4870 = vunpack.c.l.b16 %v4838
  %v4871 = vunpack.c.l.b16 %v4839
  %v4872 = vunpack.c.l.b16 %v4840
  %v4873 = vunpack.c.l.b16 %v4841
  %v4874 = vunpack.c.l.b16 %v4842
  %v4875 = vunpack.c.l.b16 %v4843
  %v4876 = vunpack.c.l.b16 %v4844
  %v4877 = vunpack.c.l.b16 %v4845
  %v4878 = vunpack.c.l.b16 %v4846
  %v4879 = vunpack.c.l.b16 %v4847
  %v4880 = vunpack.c.l.b16 %v4848
  %v4881 = vunpack.c.l.b16 %v4849
  %v4882 = vunpack.c.l.b16 %v4850
  %v4883 = vunpack.c.l.b16 %v4851
  %v4884 = vpack.c.b16 %v4869, %v4868
  %v4885 = vpack.c.b16 %v4871, %v4870
  %v4886 = vpack.c.b16 %v4873, %v4872
  %v4887 = vpack.c.b16 %v4875, %v4874
  %v4888 = vpack.c.b16 %v4877, %v4876
  %v4889 = vpack.c.b16 %v4879, %v4878
  %v4890 = vpack.c.b16 %v4881, %v4880
  %v4891 = vpack.c.b16 %v4883, %v4882
  %4900 = vmatpush.bf16.msra.mxu0 %v4891
  %4901 = vmatpush.bf16.msra.mxu0 %v4890
  %4902 = vmatpush.bf16.msra.mxu0 %v4889
  %4903 = vmatpush.bf16.msra.mxu0 %v4888
  %4904 = vmatpush.bf16.msra.mxu0 %v4887
  %4905 = vmatpush.bf16.msra.mxu0 %v4886
  %4906 = vmatpush.bf16.msra.mxu0 %v4885
  %4907 = vmatpush.bf16.msra.mxu0 %v4884
  %4908 = vmatmul.bf16.gmra.mxu0 %v4501
  %v4909 = vpop.f32.mrf.mxu0
  %v4910 = vadd.f32 0.0, %v4909
  %v4911 = vpop.f32.mrf.mxu0
  %v4912 = vadd.f32 0.0, %v4911
  %4913 = vmatmul.bf16.gmra.mxu0 %v4502
  %v4914 = vpop.f32.mrf.mxu0
  %v4915 = vadd.f32 0.0, %v4914
  %v4916 = vpop.f32.mrf.mxu0
  %v4917 = vadd.f32 0.0, %v4916
  %4918 = vmatmul.bf16.gmra.mxu0 %v4503
  %v4919 = vpop.f32.mrf.mxu0
  %v4920 = vadd.f32 0.0, %v4919
  %v4921 = vpop.f32.mrf.mxu0
  %v4922 = vadd.f32 0.0, %v4921
  %4923 = vmatmul.bf16.gmra.mxu0 %v4504
  %v4924 = vpop.f32.mrf.mxu0
  %v4925 = vadd.f32 0.0, %v4924
  %v4926 = vpop.f32.mrf.mxu0
  %v4927 = vadd.f32 0.0, %v4926
  %4928 = vdwg.mxu0
  %v4929 = vpack.c.bf16 %v4910, %v4910
  %v4930 = vpack.c.bf16 %v4912, %v4912
  %v4931 = vpack.c.bf16 %v4915, %v4915
  %v4932 = vpack.c.bf16 %v4917, %v4917
  %v4933 = vpack.c.bf16 %v4920, %v4920
  %v4934 = vpack.c.bf16 %v4922, %v4922
  %v4935 = vpack.c.bf16 %v4925, %v4925
  %v4936 = vpack.c.bf16 %v4927, %v4927
  %4937 = vst [vmem:[#allocation2 + $0x60] sm:$0xf] %v4929
  %4938 = vst [vmem:[#allocation2 + $0x64] sm:$0xf] %v4930
  %4939 = vst [vmem:[#allocation2 + $0x68] sm:$0xf] %v4931
  %4940 = vst [vmem:[#allocation2 + $0x6c] sm:$0xf] %v4932
  %4941 = vst [vmem:[#allocation2 + $0x70] sm:$0xf] %v4933
  %4942 = vst [vmem:[#allocation2 + $0x74] sm:$0xf] %v4934
  %4943 = vst [vmem:[#allocation2 + $0x78] sm:$0xf] %v4935
  %4944 = vst [vmem:[#allocation2 + $0x7c] sm:$0xf] %v4936
  %s4945 = scalar_lea.vmem %s2, 1792
  %v4946 = vld [vmem:[%s4945] sm:$0xf]
  %v4947 = vld [vmem:[%s4945 + $0x4] sm:$0xf]
  %v4948 = vld [vmem:[%s4945 + $0x8] sm:$0xf]
  %v4949 = vld [vmem:[%s4945 + $0xc] sm:$0xf]
  %v4950 = vld [vmem:[%s4945 + $0x10] sm:$0xf]
  %v4951 = vld [vmem:[%s4945 + $0x14] sm:$0xf]
  %v4952 = vld [vmem:[%s4945 + $0x18] sm:$0xf]
  %v4953 = vld [vmem:[%s4945 + $0x1c] sm:$0xf]
  %v4954 = vld [vmem:[%s4945 + $0x20] sm:$0xf]
  %v4955 = vld [vmem:[%s4945 + $0x24] sm:$0xf]
  %v4956 = vld [vmem:[%s4945 + $0x28] sm:$0xf]
  %v4957 = vld [vmem:[%s4945 + $0x2c] sm:$0xf]
  %v4958 = vld [vmem:[%s4945 + $0x30] sm:$0xf]
  %v4959 = vld [vmem:[%s4945 + $0x34] sm:$0xf]
  %v4960 = vld [vmem:[%s4945 + $0x38] sm:$0xf]
  %v4961 = vld [vmem:[%s4945 + $0x3c] sm:$0xf]
  %v4978 = vunpack.c.l.b16 %v4946
  %v4979 = vunpack.c.l.b16 %v4947
  %v4980 = vunpack.c.l.b16 %v4948
  %v4981 = vunpack.c.l.b16 %v4949
  %v4982 = vunpack.c.l.b16 %v4950
  %v4983 = vunpack.c.l.b16 %v4951
  %v4984 = vunpack.c.l.b16 %v4952
  %v4985 = vunpack.c.l.b16 %v4953
  %v4986 = vunpack.c.l.b16 %v4954
  %v4987 = vunpack.c.l.b16 %v4955
  %v4988 = vunpack.c.l.b16 %v4956
  %v4989 = vunpack.c.l.b16 %v4957
  %v4990 = vunpack.c.l.b16 %v4958
  %v4991 = vunpack.c.l.b16 %v4959
  %v4992 = vunpack.c.l.b16 %v4960
  %v4993 = vunpack.c.l.b16 %v4961
  %v4994 = vpack.c.b16 %v4979, %v4978
  %v4995 = vpack.c.b16 %v4981, %v4980
  %v4996 = vpack.c.b16 %v4983, %v4982
  %v4997 = vpack.c.b16 %v4985, %v4984
  %v4998 = vpack.c.b16 %v4987, %v4986
  %v4999 = vpack.c.b16 %v4989, %v4988
  %v5000 = vpack.c.b16 %v4991, %v4990
  %v5001 = vpack.c.b16 %v4993, %v4992
  %5010 = vmatpush.bf16.msra.mxu0 %v5001
  %5011 = vmatpush.bf16.msra.mxu0 %v5000
  %5012 = vmatpush.bf16.msra.mxu0 %v4999
  %5013 = vmatpush.bf16.msra.mxu0 %v4998
  %5014 = vmatpush.bf16.msra.mxu0 %v4997
  %5015 = vmatpush.bf16.msra.mxu0 %v4996
  %5016 = vmatpush.bf16.msra.mxu0 %v4995
  %5017 = vmatpush.bf16.msra.mxu0 %v4994
  %5018 = vmatmul.bf16.gmra.mxu0 %v4501
  %v5019 = vpop.f32.mrf.mxu0
  %v5020 = vadd.f32 0.0, %v5019
  %v5021 = vpop.f32.mrf.mxu0
  %v5022 = vadd.f32 0.0, %v5021
  %5023 = vmatmul.bf16.gmra.mxu0 %v4502
  %v5024 = vpop.f32.mrf.mxu0
  %v5025 = vadd.f32 0.0, %v5024
  %v5026 = vpop.f32.mrf.mxu0
  %v5027 = vadd.f32 0.0, %v5026
  %5028 = vmatmul.bf16.gmra.mxu0 %v4503
  %v5029 = vpop.f32.mrf.mxu0
  %v5030 = vadd.f32 0.0, %v5029
  %v5031 = vpop.f32.mrf.mxu0
  %v5032 = vadd.f32 0.0, %v5031
  %5033 = vmatmul.bf16.gmra.mxu0 %v4504
  %v5034 = vpop.f32.mrf.mxu0
  %v5035 = vadd.f32 0.0, %v5034
  %v5036 = vpop.f32.mrf.mxu0
  %v5037 = vadd.f32 0.0, %v5036
  %5038 = vdwg.mxu0
  %v5039 = vpack.c.bf16 %v5020, %v5020
  %v5040 = vpack.c.bf16 %v5022, %v5022
  %v5041 = vpack.c.bf16 %v5025, %v5025
  %v5042 = vpack.c.bf16 %v5027, %v5027
  %v5043 = vpack.c.bf16 %v5030, %v5030
  %v5044 = vpack.c.bf16 %v5032, %v5032
  %v5045 = vpack.c.bf16 %v5035, %v5035
  %v5046 = vpack.c.bf16 %v5037, %v5037
  %5047 = vst [vmem:[#allocation2 + $0x80] sm:$0xf] %v5039
  %5048 = vst [vmem:[#allocation2 + $0x84] sm:$0xf] %v5040
  %5049 = vst [vmem:[#allocation2 + $0x88] sm:$0xf] %v5041
  %5050 = vst [vmem:[#allocation2 + $0x8c] sm:$0xf] %v5042
  %5051 = vst [vmem:[#allocation2 + $0x90] sm:$0xf] %v5043
  %5052 = vst [vmem:[#allocation2 + $0x94] sm:$0xf] %v5044
  %5053 = vst [vmem:[#allocation2 + $0x98] sm:$0xf] %v5045
  %5054 = vst [vmem:[#allocation2 + $0x9c] sm:$0xf] %v5046
  %s5055 = scalar_lea.vmem %s2, 1856
  %v5056 = vld [vmem:[%s5055] sm:$0xf]
  %v5057 = vld [vmem:[%s5055 + $0x4] sm:$0xf]
  %v5058 = vld [vmem:[%s5055 + $0x8] sm:$0xf]
  %v5059 = vld [vmem:[%s5055 + $0xc] sm:$0xf]
  %v5060 = vld [vmem:[%s5055 + $0x10] sm:$0xf]
  %v5061 = vld [vmem:[%s5055 + $0x14] sm:$0xf]
  %v5062 = vld [vmem:[%s5055 + $0x18] sm:$0xf]
  %v5063 = vld [vmem:[%s5055 + $0x1c] sm:$0xf]
  %v5064 = vld [vmem:[%s5055 + $0x20] sm:$0xf]
  %v5065 = vld [vmem:[%s5055 + $0x24] sm:$0xf]
  %v5066 = vld [vmem:[%s5055 + $0x28] sm:$0xf]
  %v5067 = vld [vmem:[%s5055 + $0x2c] sm:$0xf]
  %v5068 = vld [vmem:[%s5055 + $0x30] sm:$0xf]
  %v5069 = vld [vmem:[%s5055 + $0x34] sm:$0xf]
  %v5070 = vld [vmem:[%s5055 + $0x38] sm:$0xf]
  %v5071 = vld [vmem:[%s5055 + $0x3c] sm:$0xf]
  %v5088 = vunpack.c.l.b16 %v5056
  %v5089 = vunpack.c.l.b16 %v5057
  %v5090 = vunpack.c.l.b16 %v5058
  %v5091 = vunpack.c.l.b16 %v5059
  %v5092 = vunpack.c.l.b16 %v5060
  %v5093 = vunpack.c.l.b16 %v5061
  %v5094 = vunpack.c.l.b16 %v5062
  %v5095 = vunpack.c.l.b16 %v5063
  %v5096 = vunpack.c.l.b16 %v5064
  %v5097 = vunpack.c.l.b16 %v5065
  %v5098 = vunpack.c.l.b16 %v5066
  %v5099 = vunpack.c.l.b16 %v5067
  %v5100 = vunpack.c.l.b16 %v5068
  %v5101 = vunpack.c.l.b16 %v5069
  %v5102 = vunpack.c.l.b16 %v5070
  %v5103 = vunpack.c.l.b16 %v5071
  %v5104 = vpack.c.b16 %v5089, %v5088
  %v5105 = vpack.c.b16 %v5091, %v5090
  %v5106 = vpack.c.b16 %v5093, %v5092
  %v5107 = vpack.c.b16 %v5095, %v5094
  %v5108 = vpack.c.b16 %v5097, %v5096
  %v5109 = vpack.c.b16 %v5099, %v5098
  %v5110 = vpack.c.b16 %v5101, %v5100
  %v5111 = vpack.c.b16 %v5103, %v5102
  %5120 = vmatpush.bf16.msra.mxu0 %v5111
  %5121 = vmatpush.bf16.msra.mxu0 %v5110
  %5122 = vmatpush.bf16.msra.mxu0 %v5109
  %5123 = vmatpush.bf16.msra.mxu0 %v5108
  %5124 = vmatpush.bf16.msra.mxu0 %v5107
  %5125 = vmatpush.bf16.msra.mxu0 %v5106
  %5126 = vmatpush.bf16.msra.mxu0 %v5105
  %5127 = vmatpush.bf16.msra.mxu0 %v5104
  %5128 = vmatmul.bf16.gmra.mxu0 %v4501
  %v5129 = vpop.f32.mrf.mxu0
  %v5130 = vadd.f32 0.0, %v5129
  %v5131 = vpop.f32.mrf.mxu0
  %v5132 = vadd.f32 0.0, %v5131
  %5133 = vmatmul.bf16.gmra.mxu0 %v4502
  %v5134 = vpop.f32.mrf.mxu0
  %v5135 = vadd.f32 0.0, %v5134
  %v5136 = vpop.f32.mrf.mxu0
  %v5137 = vadd.f32 0.0, %v5136
  %5138 = vmatmul.bf16.gmra.mxu0 %v4503
  %v5139 = vpop.f32.mrf.mxu0
  %v5140 = vadd.f32 0.0, %v5139
  %v5141 = vpop.f32.mrf.mxu0
  %v5142 = vadd.f32 0.0, %v5141
  %5143 = vmatmul.bf16.gmra.mxu0 %v4504
  %v5144 = vpop.f32.mrf.mxu0
  %v5145 = vadd.f32 0.0, %v5144
  %v5146 = vpop.f32.mrf.mxu0
  %v5147 = vadd.f32 0.0, %v5146
  %5148 = vdwg.mxu0
  %v5149 = vpack.c.bf16 %v5130, %v5130
  %v5150 = vpack.c.bf16 %v5132, %v5132
  %v5151 = vpack.c.bf16 %v5135, %v5135
  %v5152 = vpack.c.bf16 %v5137, %v5137
  %v5153 = vpack.c.bf16 %v5140, %v5140
  %v5154 = vpack.c.bf16 %v5142, %v5142
  %v5155 = vpack.c.bf16 %v5145, %v5145
  %v5156 = vpack.c.bf16 %v5147, %v5147
  %5157 = vst [vmem:[#allocation2 + $0xa0] sm:$0xf] %v5149
  %5158 = vst [vmem:[#allocation2 + $0xa4] sm:$0xf] %v5150
  %5159 = vst [vmem:[#allocation2 + $0xa8] sm:$0xf] %v5151
  %5160 = vst [vmem:[#allocation2 + $0xac] sm:$0xf] %v5152
  %5161 = vst [vmem:[#allocation2 + $0xb0] sm:$0xf] %v5153
  %5162 = vst [vmem:[#allocation2 + $0xb4] sm:$0xf] %v5154
  %5163 = vst [vmem:[#allocation2 + $0xb8] sm:$0xf] %v5155
  %5164 = vst [vmem:[#allocation2 + $0xbc] sm:$0xf] %v5156
  %s5165 = scalar_lea.vmem %s2, 1920
  %v5166 = vld [vmem:[%s5165] sm:$0xf]
  %v5167 = vld [vmem:[%s5165 + $0x4] sm:$0xf]
  %v5168 = vld [vmem:[%s5165 + $0x8] sm:$0xf]
  %v5169 = vld [vmem:[%s5165 + $0xc] sm:$0xf]
  %v5170 = vld [vmem:[%s5165 + $0x10] sm:$0xf]
  %v5171 = vld [vmem:[%s5165 + $0x14] sm:$0xf]
  %v5172 = vld [vmem:[%s5165 + $0x18] sm:$0xf]
  %v5173 = vld [vmem:[%s5165 + $0x1c] sm:$0xf]
  %v5174 = vld [vmem:[%s5165 + $0x20] sm:$0xf]
  %v5175 = vld [vmem:[%s5165 + $0x24] sm:$0xf]
  %v5176 = vld [vmem:[%s5165 + $0x28] sm:$0xf]
  %v5177 = vld [vmem:[%s5165 + $0x2c] sm:$0xf]
  %v5178 = vld [vmem:[%s5165 + $0x30] sm:$0xf]
  %v5179 = vld [vmem:[%s5165 + $0x34] sm:$0xf]
  %v5180 = vld [vmem:[%s5165 + $0x38] sm:$0xf]
  %v5181 = vld [vmem:[%s5165 + $0x3c] sm:$0xf]
  %v5198 = vunpack.c.l.b16 %v5166
  %v5199 = vunpack.c.l.b16 %v5167
  %v5200 = vunpack.c.l.b16 %v5168
  %v5201 = vunpack.c.l.b16 %v5169
  %v5202 = vunpack.c.l.b16 %v5170
  %v5203 = vunpack.c.l.b16 %v5171
  %v5204 = vunpack.c.l.b16 %v5172
  %v5205 = vunpack.c.l.b16 %v5173
  %v5206 = vunpack.c.l.b16 %v5174
  %v5207 = vunpack.c.l.b16 %v5175
  %v5208 = vunpack.c.l.b16 %v5176
  %v5209 = vunpack.c.l.b16 %v5177
  %v5210 = vunpack.c.l.b16 %v5178
  %v5211 = vunpack.c.l.b16 %v5179
  %v5212 = vunpack.c.l.b16 %v5180
  %v5213 = vunpack.c.l.b16 %v5181
  %v5214 = vpack.c.b16 %v5199, %v5198
  %v5215 = vpack.c.b16 %v5201, %v5200
  %v5216 = vpack.c.b16 %v5203, %v5202
  %v5217 = vpack.c.b16 %v5205, %v5204
  %v5218 = vpack.c.b16 %v5207, %v5206
  %v5219 = vpack.c.b16 %v5209, %v5208
  %v5220 = vpack.c.b16 %v5211, %v5210
  %v5221 = vpack.c.b16 %v5213, %v5212
  %5230 = vmatpush.bf16.msra.mxu0 %v5221
  %5231 = vmatpush.bf16.msra.mxu0 %v5220
  %5232 = vmatpush.bf16.msra.mxu0 %v5219
  %5233 = vmatpush.bf16.msra.mxu0 %v5218
  %5234 = vmatpush.bf16.msra.mxu0 %v5217
  %5235 = vmatpush.bf16.msra.mxu0 %v5216
  %5236 = vmatpush.bf16.msra.mxu0 %v5215
  %5237 = vmatpush.bf16.msra.mxu0 %v5214
  %5238 = vmatmul.bf16.gmra.mxu0 %v4501
  %v5239 = vpop.f32.mrf.mxu0
  %v5240 = vadd.f32 0.0, %v5239
  %v5241 = vpop.f32.mrf.mxu0
  %v5242 = vadd.f32 0.0, %v5241
  %5243 = vmatmul.bf16.gmra.mxu0 %v4502
  %v5244 = vpop.f32.mrf.mxu0
  %v5245 = vadd.f32 0.0, %v5244
  %v5246 = vpop.f32.mrf.mxu0
  %v5247 = vadd.f32 0.0, %v5246
  %5248 = vmatmul.bf16.gmra.mxu0 %v4503
  %v5249 = vpop.f32.mrf.mxu0
  %v5250 = vadd.f32 0.0, %v5249
  %v5251 = vpop.f32.mrf.mxu0
  %v5252 = vadd.f32 0.0, %v5251
  %5253 = vmatmul.bf16.gmra.mxu0 %v4504
  %v5254 = vpop.f32.mrf.mxu0
  %v5255 = vadd.f32 0.0, %v5254
  %v5256 = vpop.f32.mrf.mxu0
  %v5257 = vadd.f32 0.0, %v5256
  %5258 = vdwg.mxu0
  %v5259 = vpack.c.bf16 %v5240, %v5240
  %v5260 = vpack.c.bf16 %v5242, %v5242
  %v5261 = vpack.c.bf16 %v5245, %v5245
  %v5262 = vpack.c.bf16 %v5247, %v5247
  %v5263 = vpack.c.bf16 %v5250, %v5250
  %v5264 = vpack.c.bf16 %v5252, %v5252
  %v5265 = vpack.c.bf16 %v5255, %v5255
  %v5266 = vpack.c.bf16 %v5257, %v5257
  %5267 = vst [vmem:[#allocation2 + $0xc0] sm:$0xf] %v5259
  %5268 = vst [vmem:[#allocation2 + $0xc4] sm:$0xf] %v5260
  %5269 = vst [vmem:[#allocation2 + $0xc8] sm:$0xf] %v5261
  %5270 = vst [vmem:[#allocation2 + $0xcc] sm:$0xf] %v5262
  %5271 = vst [vmem:[#allocation2 + $0xd0] sm:$0xf] %v5263
  %5272 = vst [vmem:[#allocation2 + $0xd4] sm:$0xf] %v5264
  %5273 = vst [vmem:[#allocation2 + $0xd8] sm:$0xf] %v5265
  %5274 = vst [vmem:[#allocation2 + $0xdc] sm:$0xf] %v5266
  %s5275 = scalar_lea.vmem %s2, 1984
  %v5276 = vld [vmem:[%s5275] sm:$0xf]
  %v5277 = vld [vmem:[%s5275 + $0x4] sm:$0xf]
  %v5278 = vld [vmem:[%s5275 + $0x8] sm:$0xf]
  %v5279 = vld [vmem:[%s5275 + $0xc] sm:$0xf]
  %v5280 = vld [vmem:[%s5275 + $0x10] sm:$0xf]
  %v5281 = vld [vmem:[%s5275 + $0x14] sm:$0xf]
  %v5282 = vld [vmem:[%s5275 + $0x18] sm:$0xf]
  %v5283 = vld [vmem:[%s5275 + $0x1c] sm:$0xf]
  %v5284 = vld [vmem:[%s5275 + $0x20] sm:$0xf]
  %v5285 = vld [vmem:[%s5275 + $0x24] sm:$0xf]
  %v5286 = vld [vmem:[%s5275 + $0x28] sm:$0xf]
  %v5287 = vld [vmem:[%s5275 + $0x2c] sm:$0xf]
  %v5288 = vld [vmem:[%s5275 + $0x30] sm:$0xf]
  %v5289 = vld [vmem:[%s5275 + $0x34] sm:$0xf]
  %v5290 = vld [vmem:[%s5275 + $0x38] sm:$0xf]
  %v5291 = vld [vmem:[%s5275 + $0x3c] sm:$0xf]
  %v5308 = vunpack.c.l.b16 %v5276
  %v5309 = vunpack.c.l.b16 %v5277
  %v5310 = vunpack.c.l.b16 %v5278
  %v5311 = vunpack.c.l.b16 %v5279
  %v5312 = vunpack.c.l.b16 %v5280
  %v5313 = vunpack.c.l.b16 %v5281
  %v5314 = vunpack.c.l.b16 %v5282
  %v5315 = vunpack.c.l.b16 %v5283
  %v5316 = vunpack.c.l.b16 %v5284
  %v5317 = vunpack.c.l.b16 %v5285
  %v5318 = vunpack.c.l.b16 %v5286
  %v5319 = vunpack.c.l.b16 %v5287
  %v5320 = vunpack.c.l.b16 %v5288
  %v5321 = vunpack.c.l.b16 %v5289
  %v5322 = vunpack.c.l.b16 %v5290
  %v5323 = vunpack.c.l.b16 %v5291
  %v5324 = vpack.c.b16 %v5309, %v5308
  %v5325 = vpack.c.b16 %v5311, %v5310
  %v5326 = vpack.c.b16 %v5313, %v5312
  %v5327 = vpack.c.b16 %v5315, %v5314
  %v5328 = vpack.c.b16 %v5317, %v5316
  %v5329 = vpack.c.b16 %v5319, %v5318
  %v5330 = vpack.c.b16 %v5321, %v5320
  %v5331 = vpack.c.b16 %v5323, %v5322
  %5340 = vmatpush.bf16.msra.mxu0 %v5331
  %5341 = vmatpush.bf16.msra.mxu0 %v5330
  %5342 = vmatpush.bf16.msra.mxu0 %v5329
  %5343 = vmatpush.bf16.msra.mxu0 %v5328
  %5344 = vmatpush.bf16.msra.mxu0 %v5327
  %5345 = vmatpush.bf16.msra.mxu0 %v5326
  %5346 = vmatpush.bf16.msra.mxu0 %v5325
  %5347 = vmatpush.bf16.msra.mxu0 %v5324
  %5348 = vmatmul.bf16.gmra.mxu0 %v4501
  %v5349 = vpop.f32.mrf.mxu0
  %v5350 = vadd.f32 0.0, %v5349
  %v5351 = vpop.f32.mrf.mxu0
  %v5352 = vadd.f32 0.0, %v5351
  %5353 = vmatmul.bf16.gmra.mxu0 %v4502
  %v5354 = vpop.f32.mrf.mxu0
  %v5355 = vadd.f32 0.0, %v5354
  %v5356 = vpop.f32.mrf.mxu0
  %v5357 = vadd.f32 0.0, %v5356
  %5358 = vmatmul.bf16.gmra.mxu0 %v4503
  %v5359 = vpop.f32.mrf.mxu0
  %v5360 = vadd.f32 0.0, %v5359
  %v5361 = vpop.f32.mrf.mxu0
  %v5362 = vadd.f32 0.0, %v5361
  %5363 = vmatmul.bf16.gmra.mxu0 %v4504
  %v5364 = vpop.f32.mrf.mxu0
  %v5365 = vadd.f32 0.0, %v5364
  %v5366 = vpop.f32.mrf.mxu0
  %v5367 = vadd.f32 0.0, %v5366
  %5368 = vdwg.mxu0
  %v5369 = vpack.c.bf16 %v5350, %v5350
  %v5370 = vpack.c.bf16 %v5352, %v5352
  %v5371 = vpack.c.bf16 %v5355, %v5355
  %v5372 = vpack.c.bf16 %v5357, %v5357
  %v5373 = vpack.c.bf16 %v5360, %v5360
  %v5374 = vpack.c.bf16 %v5362, %v5362
  %v5375 = vpack.c.bf16 %v5365, %v5365
  %v5376 = vpack.c.bf16 %v5367, %v5367
  %5377 = vst [vmem:[#allocation2 + $0xe0] sm:$0xf] %v5369
  %5378 = vst [vmem:[#allocation2 + $0xe4] sm:$0xf] %v5370
  %5379 = vst [vmem:[#allocation2 + $0xe8] sm:$0xf] %v5371
  %5380 = vst [vmem:[#allocation2 + $0xec] sm:$0xf] %v5372
  %5381 = vst [vmem:[#allocation2 + $0xf0] sm:$0xf] %v5373
  %5382 = vst [vmem:[#allocation2 + $0xf4] sm:$0xf] %v5374
  %5383 = vst [vmem:[#allocation2 + $0xf8] sm:$0xf] %v5375
  %5384 = vst [vmem:[#allocation2 + $0xfc] sm:$0xf] %v5376
  %v5385 = vld [vmem:[#allocation2] sm:$0xf]
  %v5386 = vld [vmem:[#allocation2 + $0x4] sm:$0xf]
  %v5387 = vld [vmem:[#allocation2 + $0x8] sm:$0xf]
  %v5388 = vld [vmem:[#allocation2 + $0xc] sm:$0xf]
  %v5389 = vld [vmem:[#allocation2 + $0x10] sm:$0xf]
  %v5390 = vld [vmem:[#allocation2 + $0x14] sm:$0xf]
  %v5391 = vld [vmem:[#allocation2 + $0x18] sm:$0xf]
  %v5392 = vld [vmem:[#allocation2 + $0x1c] sm:$0xf]
  %v5393 = vld [vmem:[#allocation2 + $0x20] sm:$0xf]
  %v5394 = vld [vmem:[#allocation2 + $0x24] sm:$0xf]
  %v5395 = vld [vmem:[#allocation2 + $0x28] sm:$0xf]
  %v5396 = vld [vmem:[#allocation2 + $0x2c] sm:$0xf]
  %v5397 = vld [vmem:[#allocation2 + $0x30] sm:$0xf]
  %v5398 = vld [vmem:[#allocation2 + $0x34] sm:$0xf]
  %v5399 = vld [vmem:[#allocation2 + $0x38] sm:$0xf]
  %v5400 = vld [vmem:[#allocation2 + $0x3c] sm:$0xf]
  %v5401 = vld [vmem:[#allocation2 + $0x40] sm:$0xf]
  %v5402 = vld [vmem:[#allocation2 + $0x44] sm:$0xf]
  %v5403 = vld [vmem:[#allocation2 + $0x48] sm:$0xf]
  %v5404 = vld [vmem:[#allocation2 + $0x4c] sm:$0xf]
  %v5405 = vld [vmem:[#allocation2 + $0x50] sm:$0xf]
  %v5406 = vld [vmem:[#allocation2 + $0x54] sm:$0xf]
  %v5407 = vld [vmem:[#allocation2 + $0x58] sm:$0xf]
  %v5408 = vld [vmem:[#allocation2 + $0x5c] sm:$0xf]
  %v5409 = vld [vmem:[#allocation2 + $0x60] sm:$0xf]
  %v5410 = vld [vmem:[#allocation2 + $0x64] sm:$0xf]
  %v5411 = vld [vmem:[#allocation2 + $0x68] sm:$0xf]
  %v5412 = vld [vmem:[#allocation2 + $0x6c] sm:$0xf]
  %v5413 = vld [vmem:[#allocation2 + $0x70] sm:$0xf]
  %v5414 = vld [vmem:[#allocation2 + $0x74] sm:$0xf]
  %v5415 = vld [vmem:[#allocation2 + $0x78] sm:$0xf]
  %v5416 = vld [vmem:[#allocation2 + $0x7c] sm:$0xf]
  %v5417 = vld [vmem:[#allocation2 + $0x80] sm:$0xf]
  %v5418 = vld [vmem:[#allocation2 + $0x84] sm:$0xf]
  %v5419 = vld [vmem:[#allocation2 + $0x88] sm:$0xf]
  %v5420 = vld [vmem:[#allocation2 + $0x8c] sm:$0xf]
  %v5421 = vld [vmem:[#allocation2 + $0x90] sm:$0xf]
  %v5422 = vld [vmem:[#allocation2 + $0x94] sm:$0xf]
  %v5423 = vld [vmem:[#allocation2 + $0x98] sm:$0xf]
  %v5424 = vld [vmem:[#allocation2 + $0x9c] sm:$0xf]
  %v5425 = vld [vmem:[#allocation2 + $0xa0] sm:$0xf]
  %v5426 = vld [vmem:[#allocation2 + $0xa4] sm:$0xf]
  %v5427 = vld [vmem:[#allocation2 + $0xa8] sm:$0xf]
  %v5428 = vld [vmem:[#allocation2 + $0xac] sm:$0xf]
  %v5429 = vld [vmem:[#allocation2 + $0xb0] sm:$0xf]
  %v5430 = vld [vmem:[#allocation2 + $0xb4] sm:$0xf]
  %v5431 = vld [vmem:[#allocation2 + $0xb8] sm:$0xf]
  %v5432 = vld [vmem:[#allocation2 + $0xbc] sm:$0xf]
  %v5433 = vld [vmem:[#allocation2 + $0xc0] sm:$0xf]
  %v5434 = vld [vmem:[#allocation2 + $0xc4] sm:$0xf]
  %v5435 = vld [vmem:[#allocation2 + $0xc8] sm:$0xf]
  %v5436 = vld [vmem:[#allocation2 + $0xcc] sm:$0xf]
  %v5437 = vld [vmem:[#allocation2 + $0xd0] sm:$0xf]
  %v5438 = vld [vmem:[#allocation2 + $0xd4] sm:$0xf]
  %v5439 = vld [vmem:[#allocation2 + $0xd8] sm:$0xf]
  %v5440 = vld [vmem:[#allocation2 + $0xdc] sm:$0xf]
  %v5441 = vld [vmem:[#allocation2 + $0xe0] sm:$0xf]
  %v5442 = vld [vmem:[#allocation2 + $0xe4] sm:$0xf]
  %v5443 = vld [vmem:[#allocation2 + $0xe8] sm:$0xf]
  %v5444 = vld [vmem:[#allocation2 + $0xec] sm:$0xf]
  %v5445 = vld [vmem:[#allocation2 + $0xf0] sm:$0xf]
  %v5446 = vld [vmem:[#allocation2 + $0xf4] sm:$0xf]
  %v5447 = vld [vmem:[#allocation2 + $0xf8] sm:$0xf]
  %v5448 = vld [vmem:[#allocation2 + $0xfc] sm:$0xf]
  %v5513 = vunpack.c.l.b16 %v5385
  %v5514 = vunpack.c.l.b16 %v5386
  %v5515 = vunpack.c.l.b16 %v5387
  %v5516 = vunpack.c.l.b16 %v5388
  %v5517 = vunpack.c.l.b16 %v5389
  %v5518 = vunpack.c.l.b16 %v5390
  %v5519 = vunpack.c.l.b16 %v5391
  %v5520 = vunpack.c.l.b16 %v5392
  %v5521 = vunpack.c.l.b16 %v5393
  %v5522 = vunpack.c.l.b16 %v5394
  %v5523 = vunpack.c.l.b16 %v5395
  %v5524 = vunpack.c.l.b16 %v5396
  %v5525 = vunpack.c.l.b16 %v5397
  %v5526 = vunpack.c.l.b16 %v5398
  %v5527 = vunpack.c.l.b16 %v5399
  %v5528 = vunpack.c.l.b16 %v5400
  %v5529 = vunpack.c.l.b16 %v5401
  %v5530 = vunpack.c.l.b16 %v5402
  %v5531 = vunpack.c.l.b16 %v5403
  %v5532 = vunpack.c.l.b16 %v5404
  %v5533 = vunpack.c.l.b16 %v5405
  %v5534 = vunpack.c.l.b16 %v5406
  %v5535 = vunpack.c.l.b16 %v5407
  %v5536 = vunpack.c.l.b16 %v5408
  %v5537 = vunpack.c.l.b16 %v5409
  %v5538 = vunpack.c.l.b16 %v5410
  %v5539 = vunpack.c.l.b16 %v5411
  %v5540 = vunpack.c.l.b16 %v5412
  %v5541 = vunpack.c.l.b16 %v5413
  %v5542 = vunpack.c.l.b16 %v5414
  %v5543 = vunpack.c.l.b16 %v5415
  %v5544 = vunpack.c.l.b16 %v5416
  %v5545 = vunpack.c.l.b16 %v5417
  %v5546 = vunpack.c.l.b16 %v5418
  %v5547 = vunpack.c.l.b16 %v5419
  %v5548 = vunpack.c.l.b16 %v5420
  %v5549 = vunpack.c.l.b16 %v5421
  %v5550 = vunpack.c.l.b16 %v5422
  %v5551 = vunpack.c.l.b16 %v5423
  %v5552 = vunpack.c.l.b16 %v5424
  %v5553 = vunpack.c.l.b16 %v5425
  %v5554 = vunpack.c.l.b16 %v5426
  %v5555 = vunpack.c.l.b16 %v5427
  %v5556 = vunpack.c.l.b16 %v5428
  %v5557 = vunpack.c.l.b16 %v5429
  %v5558 = vunpack.c.l.b16 %v5430
  %v5559 = vunpack.c.l.b16 %v5431
  %v5560 = vunpack.c.l.b16 %v5432
  %v5561 = vunpack.c.l.b16 %v5433
  %v5562 = vunpack.c.l.b16 %v5434
  %v5563 = vunpack.c.l.b16 %v5435
  %v5564 = vunpack.c.l.b16 %v5436
  %v5565 = vunpack.c.l.b16 %v5437
  %v5566 = vunpack.c.l.b16 %v5438
  %v5567 = vunpack.c.l.b16 %v5439
  %v5568 = vunpack.c.l.b16 %v5440
  %v5569 = vunpack.c.l.b16 %v5441
  %v5570 = vunpack.c.l.b16 %v5442
  %v5571 = vunpack.c.l.b16 %v5443
  %v5572 = vunpack.c.l.b16 %v5444
  %v5573 = vunpack.c.l.b16 %v5445
  %v5574 = vunpack.c.l.b16 %v5446
  %v5575 = vunpack.c.l.b16 %v5447
  %v5576 = vunpack.c.l.b16 %v5448
  %v5577 = vpack.c.b16 %v5514, %v5513
  %v5578 = vpack.c.b16 %v5516, %v5515
  %v5579 = vpack.c.b16 %v5518, %v5517
  %v5580 = vpack.c.b16 %v5520, %v5519
  %v5581 = vpack.c.b16 %v5522, %v5521
  %v5582 = vpack.c.b16 %v5524, %v5523
  %v5583 = vpack.c.b16 %v5526, %v5525
  %v5584 = vpack.c.b16 %v5528, %v5527
  %v5585 = vpack.c.b16 %v5530, %v5529
  %v5586 = vpack.c.b16 %v5532, %v5531
  %v5587 = vpack.c.b16 %v5534, %v5533
  %v5588 = vpack.c.b16 %v5536, %v5535
  %v5589 = vpack.c.b16 %v5538, %v5537
  %v5590 = vpack.c.b16 %v5540, %v5539
  %v5591 = vpack.c.b16 %v5542, %v5541
  %v5592 = vpack.c.b16 %v5544, %v5543
  %v5593 = vpack.c.b16 %v5546, %v5545
  %v5594 = vpack.c.b16 %v5548, %v5547
  %v5595 = vpack.c.b16 %v5550, %v5549
  %v5596 = vpack.c.b16 %v5552, %v5551
  %v5597 = vpack.c.b16 %v5554, %v5553
  %v5598 = vpack.c.b16 %v5556, %v5555
  %v5599 = vpack.c.b16 %v5558, %v5557
  %v5600 = vpack.c.b16 %v5560, %v5559
  %v5601 = vpack.c.b16 %v5562, %v5561
  %v5602 = vpack.c.b16 %v5564, %v5563
  %v5603 = vpack.c.b16 %v5566, %v5565
  %v5604 = vpack.c.b16 %v5568, %v5567
  %v5605 = vpack.c.b16 %v5570, %v5569
  %v5606 = vpack.c.b16 %v5572, %v5571
  %v5607 = vpack.c.b16 %v5574, %v5573
  %v5608 = vpack.c.b16 %v5576, %v5575
  %5641 = vmatpush.bf16.msra.mxu0 %v5584
  %5642 = vmatpush.bf16.msra.mxu0 %v5583
  %5643 = vmatpush.bf16.msra.mxu0 %v5582
  %5644 = vmatpush.bf16.msra.mxu0 %v5581
  %5645 = vmatpush.bf16.msra.mxu0 %v5580
  %5646 = vmatpush.bf16.msra.mxu0 %v5579
  %5647 = vmatpush.bf16.msra.mxu0 %v5578
  %5648 = vmatpush.bf16.msra.mxu0 %v5577
  %5649 = vmatmul.bf16.gmra.mxu0 %v1064
  %v5650 = vpop.f32.mrf.mxu0
  %v5651 = vadd.f32 0.0, %v5650
  %v5652 = vpop.f32.mrf.mxu0
  %v5653 = vadd.f32 0.0, %v5652
  %5654 = vmatmul.bf16.gmra.mxu0 %v1068
  %v5655 = vpop.f32.mrf.mxu0
  %v5656 = vadd.f32 0.0, %v5655
  %v5657 = vpop.f32.mrf.mxu0
  %v5658 = vadd.f32 0.0, %v5657
  %5659 = vmatmul.bf16.gmra.mxu0 %v1072
  %v5660 = vpop.f32.mrf.mxu0
  %v5661 = vadd.f32 0.0, %v5660
  %v5662 = vpop.f32.mrf.mxu0
  %v5663 = vadd.f32 0.0, %v5662
  %5664 = vmatmul.bf16.gmra.mxu0 %v1076
  %v5665 = vpop.f32.mrf.mxu0
  %v5666 = vadd.f32 0.0, %v5665
  %v5667 = vpop.f32.mrf.mxu0
  %v5668 = vadd.f32 0.0, %v5667
  %5669 = vdwg.mxu0
  %5670 = vmatpush.bf16.msra.mxu0 %v5592
  %5671 = vmatpush.bf16.msra.mxu0 %v5591
  %5672 = vmatpush.bf16.msra.mxu0 %v5590
  %5673 = vmatpush.bf16.msra.mxu0 %v5589
  %5674 = vmatpush.bf16.msra.mxu0 %v5588
  %5675 = vmatpush.bf16.msra.mxu0 %v5587
  %5676 = vmatpush.bf16.msra.mxu0 %v5586
  %5677 = vmatpush.bf16.msra.mxu0 %v5585
  %5678 = vmatmul.bf16.gmra.mxu0 %v1065
  %v5679 = vpop.f32.mrf.mxu0
  %v5680 = vadd.f32 %v5651, %v5679
  %v5681 = vpop.f32.mrf.mxu0
  %v5682 = vadd.f32 %v5653, %v5681
  %5683 = vmatmul.bf16.gmra.mxu0 %v1069
  %v5684 = vpop.f32.mrf.mxu0
  %v5685 = vadd.f32 %v5656, %v5684
  %v5686 = vpop.f32.mrf.mxu0
  %v5687 = vadd.f32 %v5658, %v5686
  %5688 = vmatmul.bf16.gmra.mxu0 %v1073
  %v5689 = vpop.f32.mrf.mxu0
  %v5690 = vadd.f32 %v5661, %v5689
  %v5691 = vpop.f32.mrf.mxu0
  %v5692 = vadd.f32 %v5663, %v5691
  %5693 = vmatmul.bf16.gmra.mxu0 %v1077
  %v5694 = vpop.f32.mrf.mxu0
  %v5695 = vadd.f32 %v5666, %v5694
  %v5696 = vpop.f32.mrf.mxu0
  %v5697 = vadd.f32 %v5668, %v5696
  %5698 = vdwg.mxu0
  %5699 = vmatpush.bf16.msra.mxu0 %v5600
  %5700 = vmatpush.bf16.msra.mxu0 %v5599
  %5701 = vmatpush.bf16.msra.mxu0 %v5598
  %5702 = vmatpush.bf16.msra.mxu0 %v5597
  %5703 = vmatpush.bf16.msra.mxu0 %v5596
  %5704 = vmatpush.bf16.msra.mxu0 %v5595
  %5705 = vmatpush.bf16.msra.mxu0 %v5594
  %5706 = vmatpush.bf16.msra.mxu0 %v5593
  %5707 = vmatmul.bf16.gmra.mxu0 %v1066
  %v5708 = vpop.f32.mrf.mxu0
  %v5709 = vadd.f32 %v5680, %v5708
  %v5710 = vpop.f32.mrf.mxu0
  %v5711 = vadd.f32 %v5682, %v5710
  %5712 = vmatmul.bf16.gmra.mxu0 %v1070
  %v5713 = vpop.f32.mrf.mxu0
  %v5714 = vadd.f32 %v5685, %v5713
  %v5715 = vpop.f32.mrf.mxu0
  %v5716 = vadd.f32 %v5687, %v5715
  %5717 = vmatmul.bf16.gmra.mxu0 %v1074
  %v5718 = vpop.f32.mrf.mxu0
  %v5719 = vadd.f32 %v5690, %v5718
  %v5720 = vpop.f32.mrf.mxu0
  %v5721 = vadd.f32 %v5692, %v5720
  %5722 = vmatmul.bf16.gmra.mxu0 %v1078
  %v5723 = vpop.f32.mrf.mxu0
  %v5724 = vadd.f32 %v5695, %v5723
  %v5725 = vpop.f32.mrf.mxu0
  %v5726 = vadd.f32 %v5697, %v5725
  %5727 = vdwg.mxu0
  %5728 = vmatpush.bf16.msra.mxu0 %v5608
  %5729 = vmatpush.bf16.msra.mxu0 %v5607
  %5730 = vmatpush.bf16.msra.mxu0 %v5606
  %5731 = vmatpush.bf16.msra.mxu0 %v5605
  %5732 = vmatpush.bf16.msra.mxu0 %v5604
  %5733 = vmatpush.bf16.msra.mxu0 %v5603
  %5734 = vmatpush.bf16.msra.mxu0 %v5602
  %5735 = vmatpush.bf16.msra.mxu0 %v5601
  %5736 = vmatmul.bf16.gmra.mxu0 %v1067
  %v5737 = vpop.f32.mrf.mxu0
  %v5738 = vadd.f32 %v5709, %v5737
  %v5739 = vpop.f32.mrf.mxu0
  %v5740 = vadd.f32 %v5711, %v5739
  %5741 = vmatmul.bf16.gmra.mxu0 %v1071
  %v5742 = vpop.f32.mrf.mxu0
  %v5743 = vadd.f32 %v5714, %v5742
  %v5744 = vpop.f32.mrf.mxu0
  %v5745 = vadd.f32 %v5716, %v5744
  %5746 = vmatmul.bf16.gmra.mxu0 %v1075
  %v5747 = vpop.f32.mrf.mxu0
  %v5748 = vadd.f32 %v5719, %v5747
  %v5749 = vpop.f32.mrf.mxu0
  %v5750 = vadd.f32 %v5721, %v5749
  %5751 = vmatmul.bf16.gmra.mxu0 %v1079
  %v5752 = vpop.f32.mrf.mxu0
  %v5753 = vadd.f32 %v5724, %v5752
  %v5754 = vpop.f32.mrf.mxu0
  %v5755 = vadd.f32 %v5726, %v5754
  %5756 = vdwg.mxu0
  %v5757 = vmul.f32 %v5738, %v1407
  %v5758 = vmul.f32 %v5740, %v1412
  %v5759 = vmul.f32 %v5743, %v1417
  %v5760 = vmul.f32 %v5745, %v1422
  %v5761 = vmul.f32 %v5748, %v1427
  %v5762 = vmul.f32 %v5750, %v1432
  %v5763 = vmul.f32 %v5753, %v1437
  %v5764 = vmul.f32 %v5755, %v1442
  %vm5765 = vcmp.gt.f32.partialorder %v5757, 0.0
  %vm5766 = vcmp.gt.f32.partialorder %v5758, 0.0
  %vm5767 = vcmp.gt.f32.partialorder %v5759, 0.0
  %vm5768 = vcmp.gt.f32.partialorder %v5760, 0.0
  %vm5769 = vcmp.gt.f32.partialorder %v5761, 0.0
  %vm5770 = vcmp.gt.f32.partialorder %v5762, 0.0
  %vm5771 = vcmp.gt.f32.partialorder %v5763, 0.0
  %vm5772 = vcmp.gt.f32.partialorder %v5764, 0.0
  %v5773 = vmin.f32 %v5757, 0.0
  %v5774 = vmin.f32 %v5758, 0.0
  %v5775 = vmin.f32 %v5759, 0.0
  %v5776 = vmin.f32 %v5760, 0.0
  %v5777 = vmin.f32 %v5761, 0.0
  %v5778 = vmin.f32 %v5762, 0.0
  %v5779 = vmin.f32 %v5763, 0.0
  %v5780 = vmin.f32 %v5764, 0.0
  %v5781 = vmul.f32 %v5773, 1.442695
  %v5782 = vpow.pop %v5781
  %v5783 = vmul.f32 %v5774, 1.442695
  %v5784 = vpow.pop %v5783
  %v5785 = vmul.f32 %v5775, 1.442695
  %v5786 = vpow.pop %v5785
  %v5787 = vmul.f32 %v5776, 1.442695
  %v5788 = vpow.pop %v5787
  %v5789 = vmul.f32 %v5777, 1.442695
  %v5790 = vpow.pop %v5789
  %v5791 = vmul.f32 %v5778, 1.442695
  %v5792 = vpow.pop %v5791
  %v5793 = vmul.f32 %v5779, 1.442695
  %v5794 = vpow.pop %v5793
  %v5795 = vmul.f32 %v5780, 1.442695
  %v5796 = vpow.pop %v5795
  %v5797 = vsub.f32 %v5782, 1.0
  %v5798 = vsub.f32 %v5784, 1.0
  %v5799 = vsub.f32 %v5786, 1.0
  %v5800 = vsub.f32 %v5788, 1.0
  %v5801 = vsub.f32 %v5790, 1.0
  %v5802 = vsub.f32 %v5792, 1.0
  %v5803 = vsub.f32 %v5794, 1.0
  %v5804 = vsub.f32 %v5796, 1.0
  %v5805 = vsel %vm5765, %v5757, %v5797
  %v5806 = vsel %vm5766, %v5758, %v5798
  %v5807 = vsel %vm5767, %v5759, %v5799
  %v5808 = vsel %vm5768, %v5760, %v5800
  %v5809 = vsel %vm5769, %v5761, %v5801
  %v5810 = vsel %vm5770, %v5762, %v5802
  %v5811 = vsel %vm5771, %v5763, %v5803
  %v5812 = vsel %vm5772, %v5764, %v5804
  %v5813 = vmul.f32 %v5805, %v1503
  %v5814 = vmul.f32 %v5806, %v1508
  %v5815 = vmul.f32 %v5807, %v1513
  %v5816 = vmul.f32 %v5808, %v1518
  %v5817 = vmul.f32 %v5809, %v1523
  %v5818 = vmul.f32 %v5810, %v1528
  %v5819 = vmul.f32 %v5811, %v1533
  %v5820 = vmul.f32 %v5812, %v1538
  %v5821 = vadd.f32 %v5813, %v5814
  %v5822 = vadd.f32 %v5821, %v5815
  %v5823 = vadd.f32 %v5822, %v5816
  %v5824 = vadd.f32 %v5823, %v5817
  %v5825 = vadd.f32 %v5824, %v5818
  %v5826 = vadd.f32 %v5825, %v5819
  %v5827 = vadd.f32 %v5826, %v5820
  %v5828 = vrot.slane %v5827, 4
  %v5829 = vadd.f32 %v5827, %v5828
  %v5830 = vrot.slane %v5829, 2
  %v5831 = vadd.f32 %v5829, %v5830
  %v5832 = vrot.slane %v5831, 1
  %v5833 = vadd.f32 %v5831, %v5832
  %v5834 = vmul.f32 %v5833, 0.015625
  %v5835 = vsub.f32 %v5805, %v5834
  %v5836 = vsub.f32 %v5806, %v5834
  %v5837 = vsub.f32 %v5807, %v5834
  %v5838 = vsub.f32 %v5808, %v5834
  %v5839 = vsub.f32 %v5809, %v5834
  %v5840 = vsub.f32 %v5810, %v5834
  %v5841 = vsub.f32 %v5811, %v5834
  %v5842 = vsub.f32 %v5812, %v5834
  %v5843 = vmul.f32 %v5835, %v1503
  %v5844 = vmul.f32 %v5836, %v1508
  %v5845 = vmul.f32 %v5837, %v1513
  %v5846 = vmul.f32 %v5838, %v1518
  %v5847 = vmul.f32 %v5839, %v1523
  %v5848 = vmul.f32 %v5840, %v1528
  %v5849 = vmul.f32 %v5841, %v1533
  %v5850 = vmul.f32 %v5842, %v1538
  %v5851 = vmul.f32 %v5843, %v5843
  %v5852 = vmul.f32 %v5844, %v5844
  %v5853 = vmul.f32 %v5845, %v5845
  %v5854 = vmul.f32 %v5846, %v5846
  %v5855 = vmul.f32 %v5847, %v5847
  %v5856 = vmul.f32 %v5848, %v5848
  %v5857 = vmul.f32 %v5849, %v5849
  %v5858 = vmul.f32 %v5850, %v5850
  %v5859 = vadd.f32 %v5851, %v5852
  %v5860 = vadd.f32 %v5859, %v5853
  %v5861 = vadd.f32 %v5860, %v5854
  %v5862 = vadd.f32 %v5861, %v5855
  %v5863 = vadd.f32 %v5862, %v5856
  %v5864 = vadd.f32 %v5863, %v5857
  %v5865 = vadd.f32 %v5864, %v5858
  %v5866 = vrot.slane %v5865, 4
  %v5867 = vadd.f32 %v5865, %v5866
  %v5868 = vrot.slane %v5867, 2
  %v5869 = vadd.f32 %v5867, %v5868
  %v5870 = vrot.slane %v5869, 1
  %v5871 = vadd.f32 %v5869, %v5870
  %v5872 = vmul.f32 %v5871, 0.015625
  %v5873 = vadd.f32 %v5872, 1e-05
  %v5874 = vrsqrt.pop %v5873
  %v5875 = vmul.f32 %v5874, %v5873
  %v5876 = vmul.f32 %v5875, %v5874
  %v5877 = vmul.f32 0.5, %v5876
  %v5878 = vsub.f32 1.5, %v5877
  %v5879 = vmul.f32 %v5874, %v5878
  %vm5880 = vweird.f32 %v5873
  %vm5881 = vweird.f32 %v5874
  %vm5882 = vmor %vm5880, %vm5881
  %v5883 = vsel %vm5882, %v5874, %v5879
  %v5884 = vmul.f32 %v5835, %v5883
  %v5885 = vmul.f32 %v5836, %v5883
  %v5886 = vmul.f32 %v5837, %v5883
  %v5887 = vmul.f32 %v5838, %v5883
  %v5888 = vmul.f32 %v5839, %v5883
  %v5889 = vmul.f32 %v5840, %v5883
  %v5890 = vmul.f32 %v5841, %v5883
  %v5891 = vmul.f32 %v5842, %v5883
  %s5892 = scalar_lea.vmem %s3, 3
  %v5893 = vld [vmem:[%s5892] sm:$0x1]
  %v5895 = vperm.slane %v5893, 0
  %v5897 = vmul.f32 %v5884, %v5895
  %v5898 = vmul.f32 %v5885, %v5895
  %v5899 = vmul.f32 %v5886, %v5895
  %v5900 = vmul.f32 %v5887, %v5895
  %v5901 = vmul.f32 %v5888, %v5895
  %v5902 = vmul.f32 %v5889, %v5895
  %v5903 = vmul.f32 %v5890, %v5895
  %v5904 = vmul.f32 %v5891, %v5895
  %s5905 = scalar_lea.vmem %s4, 3
  %v5906 = vld [vmem:[%s5905] sm:$0x1]
  %v5908 = vperm.slane %v5906, 0
  %v5910 = vadd.f32 %v5897, %v5908
  %v5911 = vadd.f32 %v5898, %v5908
  %v5912 = vadd.f32 %v5899, %v5908
  %v5913 = vadd.f32 %v5900, %v5908
  %v5914 = vadd.f32 %v5901, %v5908
  %v5915 = vadd.f32 %v5902, %v5908
  %v5916 = vadd.f32 %v5903, %v5908
  %v5917 = vadd.f32 %v5904, %v5908
  %v5918 = vmul.f32 %v5910, %v1503
  %v5919 = vmul.f32 %v5911, %v1508
  %v5920 = vmul.f32 %v5912, %v1513
  %v5921 = vmul.f32 %v5913, %v1518
  %v5922 = vmul.f32 %v5914, %v1523
  %v5923 = vmul.f32 %v5915, %v1528
  %v5924 = vmul.f32 %v5916, %v1533
  %v5925 = vmul.f32 %v5917, %v1538
  %v5926 = vadd.f32 %v5918, %v3068
  %v5927 = vadd.f32 %v5919, %v3069
  %v5928 = vadd.f32 %v5920, %v3070
  %v5929 = vadd.f32 %v5921, %v3071
  %v5930 = vadd.f32 %v5922, %v3072
  %v5931 = vadd.f32 %v5923, %v3073
  %v5932 = vadd.f32 %v5924, %v3074
  %v5933 = vadd.f32 %v5925, %v3075
  %v5934 = vpack.c.bf16 %v5927, %v5926
  %v5935 = vpack.c.bf16 %v5929, %v5928
  %v5936 = vpack.c.bf16 %v5931, %v5930
  %v5937 = vpack.c.bf16 %v5933, %v5932
  %s5938 = scalar_lea.vmem %s2, 2048
  %v5939 = vld [vmem:[%s5938] sm:$0xf]
  %v5940 = vld [vmem:[%s5938 + $0x4] sm:$0xf]
  %v5941 = vld [vmem:[%s5938 + $0x8] sm:$0xf]
  %v5942 = vld [vmem:[%s5938 + $0xc] sm:$0xf]
  %v5943 = vld [vmem:[%s5938 + $0x10] sm:$0xf]
  %v5944 = vld [vmem:[%s5938 + $0x14] sm:$0xf]
  %v5945 = vld [vmem:[%s5938 + $0x18] sm:$0xf]
  %v5946 = vld [vmem:[%s5938 + $0x1c] sm:$0xf]
  %v5947 = vld [vmem:[%s5938 + $0x20] sm:$0xf]
  %v5948 = vld [vmem:[%s5938 + $0x24] sm:$0xf]
  %v5949 = vld [vmem:[%s5938 + $0x28] sm:$0xf]
  %v5950 = vld [vmem:[%s5938 + $0x2c] sm:$0xf]
  %v5951 = vld [vmem:[%s5938 + $0x30] sm:$0xf]
  %v5952 = vld [vmem:[%s5938 + $0x34] sm:$0xf]
  %v5953 = vld [vmem:[%s5938 + $0x38] sm:$0xf]
  %v5954 = vld [vmem:[%s5938 + $0x3c] sm:$0xf]
  %v5971 = vunpack.c.l.b16 %v5939
  %v5972 = vunpack.c.l.b16 %v5940
  %v5973 = vunpack.c.l.b16 %v5941
  %v5974 = vunpack.c.l.b16 %v5942
  %v5975 = vunpack.c.l.b16 %v5943
  %v5976 = vunpack.c.l.b16 %v5944
  %v5977 = vunpack.c.l.b16 %v5945
  %v5978 = vunpack.c.l.b16 %v5946
  %v5979 = vunpack.c.l.b16 %v5947
  %v5980 = vunpack.c.l.b16 %v5948
  %v5981 = vunpack.c.l.b16 %v5949
  %v5982 = vunpack.c.l.b16 %v5950
  %v5983 = vunpack.c.l.b16 %v5951
  %v5984 = vunpack.c.l.b16 %v5952
  %v5985 = vunpack.c.l.b16 %v5953
  %v5986 = vunpack.c.l.b16 %v5954
  %v5987 = vpack.c.b16 %v5972, %v5971
  %v5988 = vpack.c.b16 %v5974, %v5973
  %v5989 = vpack.c.b16 %v5976, %v5975
  %v5990 = vpack.c.b16 %v5978, %v5977
  %v5991 = vpack.c.b16 %v5980, %v5979
  %v5992 = vpack.c.b16 %v5982, %v5981
  %v5993 = vpack.c.b16 %v5984, %v5983
  %v5994 = vpack.c.b16 %v5986, %v5985
  %6003 = vmatpush.bf16.msra.mxu0 %v5994
  %6004 = vmatpush.bf16.msra.mxu0 %v5993
  %6005 = vmatpush.bf16.msra.mxu0 %v5992
  %6006 = vmatpush.bf16.msra.mxu0 %v5991
  %6007 = vmatpush.bf16.msra.mxu0 %v5990
  %6008 = vmatpush.bf16.msra.mxu0 %v5989
  %6009 = vmatpush.bf16.msra.mxu0 %v5988
  %6010 = vmatpush.bf16.msra.mxu0 %v5987
  %6011 = vmatmul.bf16.gmra.mxu0 %v5934
  %v6012 = vpop.f32.mrf.mxu0
  %v6013 = vadd.f32 0.0, %v6012
  %v6014 = vpop.f32.mrf.mxu0
  %v6015 = vadd.f32 0.0, %v6014
  %6016 = vmatmul.bf16.gmra.mxu0 %v5935
  %v6017 = vpop.f32.mrf.mxu0
  %v6018 = vadd.f32 0.0, %v6017
  %v6019 = vpop.f32.mrf.mxu0
  %v6020 = vadd.f32 0.0, %v6019
  %6021 = vmatmul.bf16.gmra.mxu0 %v5936
  %v6022 = vpop.f32.mrf.mxu0
  %v6023 = vadd.f32 0.0, %v6022
  %v6024 = vpop.f32.mrf.mxu0
  %v6025 = vadd.f32 0.0, %v6024
  %6026 = vmatmul.bf16.gmra.mxu0 %v5937
  %v6027 = vpop.f32.mrf.mxu0
  %v6028 = vadd.f32 0.0, %v6027
  %v6029 = vpop.f32.mrf.mxu0
  %v6030 = vadd.f32 0.0, %v6029
  %6031 = vdwg.mxu0
  %v6032 = vpack.c.bf16 %v6013, %v6013
  %v6033 = vpack.c.bf16 %v6015, %v6015
  %v6034 = vpack.c.bf16 %v6018, %v6018
  %v6035 = vpack.c.bf16 %v6020, %v6020
  %v6036 = vpack.c.bf16 %v6023, %v6023
  %v6037 = vpack.c.bf16 %v6025, %v6025
  %v6038 = vpack.c.bf16 %v6028, %v6028
  %v6039 = vpack.c.bf16 %v6030, %v6030
  %6040 = vst [vmem:[#allocation2] sm:$0xf] %v6032
  %6041 = vst [vmem:[#allocation2 + $0x4] sm:$0xf] %v6033
  %6042 = vst [vmem:[#allocation2 + $0x8] sm:$0xf] %v6034
  %6043 = vst [vmem:[#allocation2 + $0xc] sm:$0xf] %v6035
  %6044 = vst [vmem:[#allocation2 + $0x10] sm:$0xf] %v6036
  %6045 = vst [vmem:[#allocation2 + $0x14] sm:$0xf] %v6037
  %6046 = vst [vmem:[#allocation2 + $0x18] sm:$0xf] %v6038
  %6047 = vst [vmem:[#allocation2 + $0x1c] sm:$0xf] %v6039
  %s6048 = scalar_lea.vmem %s2, 2112
  %v6049 = vld [vmem:[%s6048] sm:$0xf]
  %v6050 = vld [vmem:[%s6048 + $0x4] sm:$0xf]
  %v6051 = vld [vmem:[%s6048 + $0x8] sm:$0xf]
  %v6052 = vld [vmem:[%s6048 + $0xc] sm:$0xf]
  %v6053 = vld [vmem:[%s6048 + $0x10] sm:$0xf]
  %v6054 = vld [vmem:[%s6048 + $0x14] sm:$0xf]
  %v6055 = vld [vmem:[%s6048 + $0x18] sm:$0xf]
  %v6056 = vld [vmem:[%s6048 + $0x1c] sm:$0xf]
  %v6057 = vld [vmem:[%s6048 + $0x20] sm:$0xf]
  %v6058 = vld [vmem:[%s6048 + $0x24] sm:$0xf]
  %v6059 = vld [vmem:[%s6048 + $0x28] sm:$0xf]
  %v6060 = vld [vmem:[%s6048 + $0x2c] sm:$0xf]
  %v6061 = vld [vmem:[%s6048 + $0x30] sm:$0xf]
  %v6062 = vld [vmem:[%s6048 + $0x34] sm:$0xf]
  %v6063 = vld [vmem:[%s6048 + $0x38] sm:$0xf]
  %v6064 = vld [vmem:[%s6048 + $0x3c] sm:$0xf]
  %v6081 = vunpack.c.l.b16 %v6049
  %v6082 = vunpack.c.l.b16 %v6050
  %v6083 = vunpack.c.l.b16 %v6051
  %v6084 = vunpack.c.l.b16 %v6052
  %v6085 = vunpack.c.l.b16 %v6053
  %v6086 = vunpack.c.l.b16 %v6054
  %v6087 = vunpack.c.l.b16 %v6055
  %v6088 = vunpack.c.l.b16 %v6056
  %v6089 = vunpack.c.l.b16 %v6057
  %v6090 = vunpack.c.l.b16 %v6058
  %v6091 = vunpack.c.l.b16 %v6059
  %v6092 = vunpack.c.l.b16 %v6060
  %v6093 = vunpack.c.l.b16 %v6061
  %v6094 = vunpack.c.l.b16 %v6062
  %v6095 = vunpack.c.l.b16 %v6063
  %v6096 = vunpack.c.l.b16 %v6064
  %v6097 = vpack.c.b16 %v6082, %v6081
  %v6098 = vpack.c.b16 %v6084, %v6083
  %v6099 = vpack.c.b16 %v6086, %v6085
  %v6100 = vpack.c.b16 %v6088, %v6087
  %v6101 = vpack.c.b16 %v6090, %v6089
  %v6102 = vpack.c.b16 %v6092, %v6091
  %v6103 = vpack.c.b16 %v6094, %v6093
  %v6104 = vpack.c.b16 %v6096, %v6095
  %6113 = vmatpush.bf16.msra.mxu0 %v6104
  %6114 = vmatpush.bf16.msra.mxu0 %v6103
  %6115 = vmatpush.bf16.msra.mxu0 %v6102
  %6116 = vmatpush.bf16.msra.mxu0 %v6101
  %6117 = vmatpush.bf16.msra.mxu0 %v6100
  %6118 = vmatpush.bf16.msra.mxu0 %v6099
  %6119 = vmatpush.bf16.msra.mxu0 %v6098
  %6120 = vmatpush.bf16.msra.mxu0 %v6097
  %6121 = vmatmul.bf16.gmra.mxu0 %v5934
  %v6122 = vpop.f32.mrf.mxu0
  %v6123 = vadd.f32 0.0, %v6122
  %v6124 = vpop.f32.mrf.mxu0
  %v6125 = vadd.f32 0.0, %v6124
  %6126 = vmatmul.bf16.gmra.mxu0 %v5935
  %v6127 = vpop.f32.mrf.mxu0
  %v6128 = vadd.f32 0.0, %v6127
  %v6129 = vpop.f32.mrf.mxu0
  %v6130 = vadd.f32 0.0, %v6129
  %6131 = vmatmul.bf16.gmra.mxu0 %v5936
  %v6132 = vpop.f32.mrf.mxu0
  %v6133 = vadd.f32 0.0, %v6132
  %v6134 = vpop.f32.mrf.mxu0
  %v6135 = vadd.f32 0.0, %v6134
  %6136 = vmatmul.bf16.gmra.mxu0 %v5937
  %v6137 = vpop.f32.mrf.mxu0
  %v6138 = vadd.f32 0.0, %v6137
  %v6139 = vpop.f32.mrf.mxu0
  %v6140 = vadd.f32 0.0, %v6139
  %6141 = vdwg.mxu0
  %v6142 = vpack.c.bf16 %v6123, %v6123
  %v6143 = vpack.c.bf16 %v6125, %v6125
  %v6144 = vpack.c.bf16 %v6128, %v6128
  %v6145 = vpack.c.bf16 %v6130, %v6130
  %v6146 = vpack.c.bf16 %v6133, %v6133
  %v6147 = vpack.c.bf16 %v6135, %v6135
  %v6148 = vpack.c.bf16 %v6138, %v6138
  %v6149 = vpack.c.bf16 %v6140, %v6140
  %6150 = vst [vmem:[#allocation2 + $0x20] sm:$0xf] %v6142
  %6151 = vst [vmem:[#allocation2 + $0x24] sm:$0xf] %v6143
  %6152 = vst [vmem:[#allocation2 + $0x28] sm:$0xf] %v6144
  %6153 = vst [vmem:[#allocation2 + $0x2c] sm:$0xf] %v6145
  %6154 = vst [vmem:[#allocation2 + $0x30] sm:$0xf] %v6146
  %6155 = vst [vmem:[#allocation2 + $0x34] sm:$0xf] %v6147
  %6156 = vst [vmem:[#allocation2 + $0x38] sm:$0xf] %v6148
  %6157 = vst [vmem:[#allocation2 + $0x3c] sm:$0xf] %v6149
  %s6158 = scalar_lea.vmem %s2, 2176
  %v6159 = vld [vmem:[%s6158] sm:$0xf]
  %v6160 = vld [vmem:[%s6158 + $0x4] sm:$0xf]
  %v6161 = vld [vmem:[%s6158 + $0x8] sm:$0xf]
  %v6162 = vld [vmem:[%s6158 + $0xc] sm:$0xf]
  %v6163 = vld [vmem:[%s6158 + $0x10] sm:$0xf]
  %v6164 = vld [vmem:[%s6158 + $0x14] sm:$0xf]
  %v6165 = vld [vmem:[%s6158 + $0x18] sm:$0xf]
  %v6166 = vld [vmem:[%s6158 + $0x1c] sm:$0xf]
  %v6167 = vld [vmem:[%s6158 + $0x20] sm:$0xf]
  %v6168 = vld [vmem:[%s6158 + $0x24] sm:$0xf]
  %v6169 = vld [vmem:[%s6158 + $0x28] sm:$0xf]
  %v6170 = vld [vmem:[%s6158 + $0x2c] sm:$0xf]
  %v6171 = vld [vmem:[%s6158 + $0x30] sm:$0xf]
  %v6172 = vld [vmem:[%s6158 + $0x34] sm:$0xf]
  %v6173 = vld [vmem:[%s6158 + $0x38] sm:$0xf]
  %v6174 = vld [vmem:[%s6158 + $0x3c] sm:$0xf]
  %v6191 = vunpack.c.l.b16 %v6159
  %v6192 = vunpack.c.l.b16 %v6160
  %v6193 = vunpack.c.l.b16 %v6161
  %v6194 = vunpack.c.l.b16 %v6162
  %v6195 = vunpack.c.l.b16 %v6163
  %v6196 = vunpack.c.l.b16 %v6164
  %v6197 = vunpack.c.l.b16 %v6165
  %v6198 = vunpack.c.l.b16 %v6166
  %v6199 = vunpack.c.l.b16 %v6167
  %v6200 = vunpack.c.l.b16 %v6168
  %v6201 = vunpack.c.l.b16 %v6169
  %v6202 = vunpack.c.l.b16 %v6170
  %v6203 = vunpack.c.l.b16 %v6171
  %v6204 = vunpack.c.l.b16 %v6172
  %v6205 = vunpack.c.l.b16 %v6173
  %v6206 = vunpack.c.l.b16 %v6174
  %v6207 = vpack.c.b16 %v6192, %v6191
  %v6208 = vpack.c.b16 %v6194, %v6193
  %v6209 = vpack.c.b16 %v6196, %v6195
  %v6210 = vpack.c.b16 %v6198, %v6197
  %v6211 = vpack.c.b16 %v6200, %v6199
  %v6212 = vpack.c.b16 %v6202, %v6201
  %v6213 = vpack.c.b16 %v6204, %v6203
  %v6214 = vpack.c.b16 %v6206, %v6205
  %6223 = vmatpush.bf16.msra.mxu0 %v6214
  %6224 = vmatpush.bf16.msra.mxu0 %v6213
  %6225 = vmatpush.bf16.msra.mxu0 %v6212
  %6226 = vmatpush.bf16.msra.mxu0 %v6211
  %6227 = vmatpush.bf16.msra.mxu0 %v6210
  %6228 = vmatpush.bf16.msra.mxu0 %v6209
  %6229 = vmatpush.bf16.msra.mxu0 %v6208
  %6230 = vmatpush.bf16.msra.mxu0 %v6207
  %6231 = vmatmul.bf16.gmra.mxu0 %v5934
  %v6232 = vpop.f32.mrf.mxu0
  %v6233 = vadd.f32 0.0, %v6232
  %v6234 = vpop.f32.mrf.mxu0
  %v6235 = vadd.f32 0.0, %v6234
  %6236 = vmatmul.bf16.gmra.mxu0 %v5935
  %v6237 = vpop.f32.mrf.mxu0
  %v6238 = vadd.f32 0.0, %v6237
  %v6239 = vpop.f32.mrf.mxu0
  %v6240 = vadd.f32 0.0, %v6239
  %6241 = vmatmul.bf16.gmra.mxu0 %v5936
  %v6242 = vpop.f32.mrf.mxu0
  %v6243 = vadd.f32 0.0, %v6242
  %v6244 = vpop.f32.mrf.mxu0
  %v6245 = vadd.f32 0.0, %v6244
  %6246 = vmatmul.bf16.gmra.mxu0 %v5937
  %v6247 = vpop.f32.mrf.mxu0
  %v6248 = vadd.f32 0.0, %v6247
  %v6249 = vpop.f32.mrf.mxu0
  %v6250 = vadd.f32 0.0, %v6249
  %6251 = vdwg.mxu0
  %v6252 = vpack.c.bf16 %v6233, %v6233
  %v6253 = vpack.c.bf16 %v6235, %v6235
  %v6254 = vpack.c.bf16 %v6238, %v6238
  %v6255 = vpack.c.bf16 %v6240, %v6240
  %v6256 = vpack.c.bf16 %v6243, %v6243
  %v6257 = vpack.c.bf16 %v6245, %v6245
  %v6258 = vpack.c.bf16 %v6248, %v6248
  %v6259 = vpack.c.bf16 %v6250, %v6250
  %6260 = vst [vmem:[#allocation2 + $0x40] sm:$0xf] %v6252
  %6261 = vst [vmem:[#allocation2 + $0x44] sm:$0xf] %v6253
  %6262 = vst [vmem:[#allocation2 + $0x48] sm:$0xf] %v6254
  %6263 = vst [vmem:[#allocation2 + $0x4c] sm:$0xf] %v6255
  %6264 = vst [vmem:[#allocation2 + $0x50] sm:$0xf] %v6256
  %6265 = vst [vmem:[#allocation2 + $0x54] sm:$0xf] %v6257
  %6266 = vst [vmem:[#allocation2 + $0x58] sm:$0xf] %v6258
  %6267 = vst [vmem:[#allocation2 + $0x5c] sm:$0xf] %v6259
  %s6268 = scalar_lea.vmem %s2, 2240
  %v6269 = vld [vmem:[%s6268] sm:$0xf]
  %v6270 = vld [vmem:[%s6268 + $0x4] sm:$0xf]
  %v6271 = vld [vmem:[%s6268 + $0x8] sm:$0xf]
  %v6272 = vld [vmem:[%s6268 + $0xc] sm:$0xf]
  %v6273 = vld [vmem:[%s6268 + $0x10] sm:$0xf]
  %v6274 = vld [vmem:[%s6268 + $0x14] sm:$0xf]
  %v6275 = vld [vmem:[%s6268 + $0x18] sm:$0xf]
  %v6276 = vld [vmem:[%s6268 + $0x1c] sm:$0xf]
  %v6277 = vld [vmem:[%s6268 + $0x20] sm:$0xf]
  %v6278 = vld [vmem:[%s6268 + $0x24] sm:$0xf]
  %v6279 = vld [vmem:[%s6268 + $0x28] sm:$0xf]
  %v6280 = vld [vmem:[%s6268 + $0x2c] sm:$0xf]
  %v6281 = vld [vmem:[%s6268 + $0x30] sm:$0xf]
  %v6282 = vld [vmem:[%s6268 + $0x34] sm:$0xf]
  %v6283 = vld [vmem:[%s6268 + $0x38] sm:$0xf]
  %v6284 = vld [vmem:[%s6268 + $0x3c] sm:$0xf]
  %v6301 = vunpack.c.l.b16 %v6269
  %v6302 = vunpack.c.l.b16 %v6270
  %v6303 = vunpack.c.l.b16 %v6271
  %v6304 = vunpack.c.l.b16 %v6272
  %v6305 = vunpack.c.l.b16 %v6273
  %v6306 = vunpack.c.l.b16 %v6274
  %v6307 = vunpack.c.l.b16 %v6275
  %v6308 = vunpack.c.l.b16 %v6276
  %v6309 = vunpack.c.l.b16 %v6277
  %v6310 = vunpack.c.l.b16 %v6278
  %v6311 = vunpack.c.l.b16 %v6279
  %v6312 = vunpack.c.l.b16 %v6280
  %v6313 = vunpack.c.l.b16 %v6281
  %v6314 = vunpack.c.l.b16 %v6282
  %v6315 = vunpack.c.l.b16 %v6283
  %v6316 = vunpack.c.l.b16 %v6284
  %v6317 = vpack.c.b16 %v6302, %v6301
  %v6318 = vpack.c.b16 %v6304, %v6303
  %v6319 = vpack.c.b16 %v6306, %v6305
  %v6320 = vpack.c.b16 %v6308, %v6307
  %v6321 = vpack.c.b16 %v6310, %v6309
  %v6322 = vpack.c.b16 %v6312, %v6311
  %v6323 = vpack.c.b16 %v6314, %v6313
  %v6324 = vpack.c.b16 %v6316, %v6315
  %6333 = vmatpush.bf16.msra.mxu0 %v6324
  %6334 = vmatpush.bf16.msra.mxu0 %v6323
  %6335 = vmatpush.bf16.msra.mxu0 %v6322
  %6336 = vmatpush.bf16.msra.mxu0 %v6321
  %6337 = vmatpush.bf16.msra.mxu0 %v6320
  %6338 = vmatpush.bf16.msra.mxu0 %v6319
  %6339 = vmatpush.bf16.msra.mxu0 %v6318
  %6340 = vmatpush.bf16.msra.mxu0 %v6317
  %6341 = vmatmul.bf16.gmra.mxu0 %v5934
  %v6342 = vpop.f32.mrf.mxu0
  %v6343 = vadd.f32 0.0, %v6342
  %v6344 = vpop.f32.mrf.mxu0
  %v6345 = vadd.f32 0.0, %v6344
  %6346 = vmatmul.bf16.gmra.mxu0 %v5935
  %v6347 = vpop.f32.mrf.mxu0
  %v6348 = vadd.f32 0.0, %v6347
  %v6349 = vpop.f32.mrf.mxu0
  %v6350 = vadd.f32 0.0, %v6349
  %6351 = vmatmul.bf16.gmra.mxu0 %v5936
  %v6352 = vpop.f32.mrf.mxu0
  %v6353 = vadd.f32 0.0, %v6352
  %v6354 = vpop.f32.mrf.mxu0
  %v6355 = vadd.f32 0.0, %v6354
  %6356 = vmatmul.bf16.gmra.mxu0 %v5937
  %v6357 = vpop.f32.mrf.mxu0
  %v6358 = vadd.f32 0.0, %v6357
  %v6359 = vpop.f32.mrf.mxu0
  %v6360 = vadd.f32 0.0, %v6359
  %6361 = vdwg.mxu0
  %v6362 = vpack.c.bf16 %v6343, %v6343
  %v6363 = vpack.c.bf16 %v6345, %v6345
  %v6364 = vpack.c.bf16 %v6348, %v6348
  %v6365 = vpack.c.bf16 %v6350, %v6350
  %v6366 = vpack.c.bf16 %v6353, %v6353
  %v6367 = vpack.c.bf16 %v6355, %v6355
  %v6368 = vpack.c.bf16 %v6358, %v6358
  %v6369 = vpack.c.bf16 %v6360, %v6360
  %6370 = vst [vmem:[#allocation2 + $0x60] sm:$0xf] %v6362
  %6371 = vst [vmem:[#allocation2 + $0x64] sm:$0xf] %v6363
  %6372 = vst [vmem:[#allocation2 + $0x68] sm:$0xf] %v6364
  %6373 = vst [vmem:[#allocation2 + $0x6c] sm:$0xf] %v6365
  %6374 = vst [vmem:[#allocation2 + $0x70] sm:$0xf] %v6366
  %6375 = vst [vmem:[#allocation2 + $0x74] sm:$0xf] %v6367
  %6376 = vst [vmem:[#allocation2 + $0x78] sm:$0xf] %v6368
  %6377 = vst [vmem:[#allocation2 + $0x7c] sm:$0xf] %v6369
  %s6378 = scalar_lea.vmem %s2, 2304
  %v6379 = vld [vmem:[%s6378] sm:$0xf]
  %v6380 = vld [vmem:[%s6378 + $0x4] sm:$0xf]
  %v6381 = vld [vmem:[%s6378 + $0x8] sm:$0xf]
  %v6382 = vld [vmem:[%s6378 + $0xc] sm:$0xf]
  %v6383 = vld [vmem:[%s6378 + $0x10] sm:$0xf]
  %v6384 = vld [vmem:[%s6378 + $0x14] sm:$0xf]
  %v6385 = vld [vmem:[%s6378 + $0x18] sm:$0xf]
  %v6386 = vld [vmem:[%s6378 + $0x1c] sm:$0xf]
  %v6387 = vld [vmem:[%s6378 + $0x20] sm:$0xf]
  %v6388 = vld [vmem:[%s6378 + $0x24] sm:$0xf]
  %v6389 = vld [vmem:[%s6378 + $0x28] sm:$0xf]
  %v6390 = vld [vmem:[%s6378 + $0x2c] sm:$0xf]
  %v6391 = vld [vmem:[%s6378 + $0x30] sm:$0xf]
  %v6392 = vld [vmem:[%s6378 + $0x34] sm:$0xf]
  %v6393 = vld [vmem:[%s6378 + $0x38] sm:$0xf]
  %v6394 = vld [vmem:[%s6378 + $0x3c] sm:$0xf]
  %v6411 = vunpack.c.l.b16 %v6379
  %v6412 = vunpack.c.l.b16 %v6380
  %v6413 = vunpack.c.l.b16 %v6381
  %v6414 = vunpack.c.l.b16 %v6382
  %v6415 = vunpack.c.l.b16 %v6383
  %v6416 = vunpack.c.l.b16 %v6384
  %v6417 = vunpack.c.l.b16 %v6385
  %v6418 = vunpack.c.l.b16 %v6386
  %v6419 = vunpack.c.l.b16 %v6387
  %v6420 = vunpack.c.l.b16 %v6388
  %v6421 = vunpack.c.l.b16 %v6389
  %v6422 = vunpack.c.l.b16 %v6390
  %v6423 = vunpack.c.l.b16 %v6391
  %v6424 = vunpack.c.l.b16 %v6392
  %v6425 = vunpack.c.l.b16 %v6393
  %v6426 = vunpack.c.l.b16 %v6394
  %v6427 = vpack.c.b16 %v6412, %v6411
  %v6428 = vpack.c.b16 %v6414, %v6413
  %v6429 = vpack.c.b16 %v6416, %v6415
  %v6430 = vpack.c.b16 %v6418, %v6417
  %v6431 = vpack.c.b16 %v6420, %v6419
  %v6432 = vpack.c.b16 %v6422, %v6421
  %v6433 = vpack.c.b16 %v6424, %v6423
  %v6434 = vpack.c.b16 %v6426, %v6425
  %6443 = vmatpush.bf16.msra.mxu0 %v6434
  %6444 = vmatpush.bf16.msra.mxu0 %v6433
  %6445 = vmatpush.bf16.msra.mxu0 %v6432
  %6446 = vmatpush.bf16.msra.mxu0 %v6431
  %6447 = vmatpush.bf16.msra.mxu0 %v6430
  %6448 = vmatpush.bf16.msra.mxu0 %v6429
  %6449 = vmatpush.bf16.msra.mxu0 %v6428
  %6450 = vmatpush.bf16.msra.mxu0 %v6427
  %6451 = vmatmul.bf16.gmra.mxu0 %v5934
  %v6452 = vpop.f32.mrf.mxu0
  %v6453 = vadd.f32 0.0, %v6452
  %v6454 = vpop.f32.mrf.mxu0
  %v6455 = vadd.f32 0.0, %v6454
  %6456 = vmatmul.bf16.gmra.mxu0 %v5935
  %v6457 = vpop.f32.mrf.mxu0
  %v6458 = vadd.f32 0.0, %v6457
  %v6459 = vpop.f32.mrf.mxu0
  %v6460 = vadd.f32 0.0, %v6459
  %6461 = vmatmul.bf16.gmra.mxu0 %v5936
  %v6462 = vpop.f32.mrf.mxu0
  %v6463 = vadd.f32 0.0, %v6462
  %v6464 = vpop.f32.mrf.mxu0
  %v6465 = vadd.f32 0.0, %v6464
  %6466 = vmatmul.bf16.gmra.mxu0 %v5937
  %v6467 = vpop.f32.mrf.mxu0
  %v6468 = vadd.f32 0.0, %v6467
  %v6469 = vpop.f32.mrf.mxu0
  %v6470 = vadd.f32 0.0, %v6469
  %6471 = vdwg.mxu0
  %v6472 = vpack.c.bf16 %v6453, %v6453
  %v6473 = vpack.c.bf16 %v6455, %v6455
  %v6474 = vpack.c.bf16 %v6458, %v6458
  %v6475 = vpack.c.bf16 %v6460, %v6460
  %v6476 = vpack.c.bf16 %v6463, %v6463
  %v6477 = vpack.c.bf16 %v6465, %v6465
  %v6478 = vpack.c.bf16 %v6468, %v6468
  %v6479 = vpack.c.bf16 %v6470, %v6470
  %6480 = vst [vmem:[#allocation2 + $0x80] sm:$0xf] %v6472
  %6481 = vst [vmem:[#allocation2 + $0x84] sm:$0xf] %v6473
  %6482 = vst [vmem:[#allocation2 + $0x88] sm:$0xf] %v6474
  %6483 = vst [vmem:[#allocation2 + $0x8c] sm:$0xf] %v6475
  %6484 = vst [vmem:[#allocation2 + $0x90] sm:$0xf] %v6476
  %6485 = vst [vmem:[#allocation2 + $0x94] sm:$0xf] %v6477
  %6486 = vst [vmem:[#allocation2 + $0x98] sm:$0xf] %v6478
  %6487 = vst [vmem:[#allocation2 + $0x9c] sm:$0xf] %v6479
  %s6488 = scalar_lea.vmem %s2, 2368
  %v6489 = vld [vmem:[%s6488] sm:$0xf]
  %v6490 = vld [vmem:[%s6488 + $0x4] sm:$0xf]
  %v6491 = vld [vmem:[%s6488 + $0x8] sm:$0xf]
  %v6492 = vld [vmem:[%s6488 + $0xc] sm:$0xf]
  %v6493 = vld [vmem:[%s6488 + $0x10] sm:$0xf]
  %v6494 = vld [vmem:[%s6488 + $0x14] sm:$0xf]
  %v6495 = vld [vmem:[%s6488 + $0x18] sm:$0xf]
  %v6496 = vld [vmem:[%s6488 + $0x1c] sm:$0xf]
  %v6497 = vld [vmem:[%s6488 + $0x20] sm:$0xf]
  %v6498 = vld [vmem:[%s6488 + $0x24] sm:$0xf]
  %v6499 = vld [vmem:[%s6488 + $0x28] sm:$0xf]
  %v6500 = vld [vmem:[%s6488 + $0x2c] sm:$0xf]
  %v6501 = vld [vmem:[%s6488 + $0x30] sm:$0xf]
  %v6502 = vld [vmem:[%s6488 + $0x34] sm:$0xf]
  %v6503 = vld [vmem:[%s6488 + $0x38] sm:$0xf]
  %v6504 = vld [vmem:[%s6488 + $0x3c] sm:$0xf]
  %v6521 = vunpack.c.l.b16 %v6489
  %v6522 = vunpack.c.l.b16 %v6490
  %v6523 = vunpack.c.l.b16 %v6491
  %v6524 = vunpack.c.l.b16 %v6492
  %v6525 = vunpack.c.l.b16 %v6493
  %v6526 = vunpack.c.l.b16 %v6494
  %v6527 = vunpack.c.l.b16 %v6495
  %v6528 = vunpack.c.l.b16 %v6496
  %v6529 = vunpack.c.l.b16 %v6497
  %v6530 = vunpack.c.l.b16 %v6498
  %v6531 = vunpack.c.l.b16 %v6499
  %v6532 = vunpack.c.l.b16 %v6500
  %v6533 = vunpack.c.l.b16 %v6501
  %v6534 = vunpack.c.l.b16 %v6502
  %v6535 = vunpack.c.l.b16 %v6503
  %v6536 = vunpack.c.l.b16 %v6504
  %v6537 = vpack.c.b16 %v6522, %v6521
  %v6538 = vpack.c.b16 %v6524, %v6523
  %v6539 = vpack.c.b16 %v6526, %v6525
  %v6540 = vpack.c.b16 %v6528, %v6527
  %v6541 = vpack.c.b16 %v6530, %v6529
  %v6542 = vpack.c.b16 %v6532, %v6531
  %v6543 = vpack.c.b16 %v6534, %v6533
  %v6544 = vpack.c.b16 %v6536, %v6535
  %6553 = vmatpush.bf16.msra.mxu0 %v6544
  %6554 = vmatpush.bf16.msra.mxu0 %v6543
  %6555 = vmatpush.bf16.msra.mxu0 %v6542
  %6556 = vmatpush.bf16.msra.mxu0 %v6541
  %6557 = vmatpush.bf16.msra.mxu0 %v6540
  %6558 = vmatpush.bf16.msra.mxu0 %v6539
  %6559 = vmatpush.bf16.msra.mxu0 %v6538
  %6560 = vmatpush.bf16.msra.mxu0 %v6537
  %6561 = vmatmul.bf16.gmra.mxu0 %v5934
  %v6562 = vpop.f32.mrf.mxu0
  %v6563 = vadd.f32 0.0, %v6562
  %v6564 = vpop.f32.mrf.mxu0
  %v6565 = vadd.f32 0.0, %v6564
  %6566 = vmatmul.bf16.gmra.mxu0 %v5935
  %v6567 = vpop.f32.mrf.mxu0
  %v6568 = vadd.f32 0.0, %v6567
  %v6569 = vpop.f32.mrf.mxu0
  %v6570 = vadd.f32 0.0, %v6569
  %6571 = vmatmul.bf16.gmra.mxu0 %v5936
  %v6572 = vpop.f32.mrf.mxu0
  %v6573 = vadd.f32 0.0, %v6572
  %v6574 = vpop.f32.mrf.mxu0
  %v6575 = vadd.f32 0.0, %v6574
  %6576 = vmatmul.bf16.gmra.mxu0 %v5937
  %v6577 = vpop.f32.mrf.mxu0
  %v6578 = vadd.f32 0.0, %v6577
  %v6579 = vpop.f32.mrf.mxu0
  %v6580 = vadd.f32 0.0, %v6579
  %6581 = vdwg.mxu0
  %v6582 = vpack.c.bf16 %v6563, %v6563
  %v6583 = vpack.c.bf16 %v6565, %v6565
  %v6584 = vpack.c.bf16 %v6568, %v6568
  %v6585 = vpack.c.bf16 %v6570, %v6570
  %v6586 = vpack.c.bf16 %v6573, %v6573
  %v6587 = vpack.c.bf16 %v6575, %v6575
  %v6588 = vpack.c.bf16 %v6578, %v6578
  %v6589 = vpack.c.bf16 %v6580, %v6580
  %6590 = vst [vmem:[#allocation2 + $0xa0] sm:$0xf] %v6582
  %6591 = vst [vmem:[#allocation2 + $0xa4] sm:$0xf] %v6583
  %6592 = vst [vmem:[#allocation2 + $0xa8] sm:$0xf] %v6584
  %6593 = vst [vmem:[#allocation2 + $0xac] sm:$0xf] %v6585
  %6594 = vst [vmem:[#allocation2 + $0xb0] sm:$0xf] %v6586
  %6595 = vst [vmem:[#allocation2 + $0xb4] sm:$0xf] %v6587
  %6596 = vst [vmem:[#allocation2 + $0xb8] sm:$0xf] %v6588
  %6597 = vst [vmem:[#allocation2 + $0xbc] sm:$0xf] %v6589
  %s6598 = scalar_lea.vmem %s2, 2432
  %v6599 = vld [vmem:[%s6598] sm:$0xf]
  %v6600 = vld [vmem:[%s6598 + $0x4] sm:$0xf]
  %v6601 = vld [vmem:[%s6598 + $0x8] sm:$0xf]
  %v6602 = vld [vmem:[%s6598 + $0xc] sm:$0xf]
  %v6603 = vld [vmem:[%s6598 + $0x10] sm:$0xf]
  %v6604 = vld [vmem:[%s6598 + $0x14] sm:$0xf]
  %v6605 = vld [vmem:[%s6598 + $0x18] sm:$0xf]
  %v6606 = vld [vmem:[%s6598 + $0x1c] sm:$0xf]
  %v6607 = vld [vmem:[%s6598 + $0x20] sm:$0xf]
  %v6608 = vld [vmem:[%s6598 + $0x24] sm:$0xf]
  %v6609 = vld [vmem:[%s6598 + $0x28] sm:$0xf]
  %v6610 = vld [vmem:[%s6598 + $0x2c] sm:$0xf]
  %v6611 = vld [vmem:[%s6598 + $0x30] sm:$0xf]
  %v6612 = vld [vmem:[%s6598 + $0x34] sm:$0xf]
  %v6613 = vld [vmem:[%s6598 + $0x38] sm:$0xf]
  %v6614 = vld [vmem:[%s6598 + $0x3c] sm:$0xf]
  %v6631 = vunpack.c.l.b16 %v6599
  %v6632 = vunpack.c.l.b16 %v6600
  %v6633 = vunpack.c.l.b16 %v6601
  %v6634 = vunpack.c.l.b16 %v6602
  %v6635 = vunpack.c.l.b16 %v6603
  %v6636 = vunpack.c.l.b16 %v6604
  %v6637 = vunpack.c.l.b16 %v6605
  %v6638 = vunpack.c.l.b16 %v6606
  %v6639 = vunpack.c.l.b16 %v6607
  %v6640 = vunpack.c.l.b16 %v6608
  %v6641 = vunpack.c.l.b16 %v6609
  %v6642 = vunpack.c.l.b16 %v6610
  %v6643 = vunpack.c.l.b16 %v6611
  %v6644 = vunpack.c.l.b16 %v6612
  %v6645 = vunpack.c.l.b16 %v6613
  %v6646 = vunpack.c.l.b16 %v6614
  %v6647 = vpack.c.b16 %v6632, %v6631
  %v6648 = vpack.c.b16 %v6634, %v6633
  %v6649 = vpack.c.b16 %v6636, %v6635
  %v6650 = vpack.c.b16 %v6638, %v6637
  %v6651 = vpack.c.b16 %v6640, %v6639
  %v6652 = vpack.c.b16 %v6642, %v6641
  %v6653 = vpack.c.b16 %v6644, %v6643
  %v6654 = vpack.c.b16 %v6646, %v6645
  %6663 = vmatpush.bf16.msra.mxu0 %v6654
  %6664 = vmatpush.bf16.msra.mxu0 %v6653
  %6665 = vmatpush.bf16.msra.mxu0 %v6652
  %6666 = vmatpush.bf16.msra.mxu0 %v6651
  %6667 = vmatpush.bf16.msra.mxu0 %v6650
  %6668 = vmatpush.bf16.msra.mxu0 %v6649
  %6669 = vmatpush.bf16.msra.mxu0 %v6648
  %6670 = vmatpush.bf16.msra.mxu0 %v6647
  %6671 = vmatmul.bf16.gmra.mxu0 %v5934
  %v6672 = vpop.f32.mrf.mxu0
  %v6673 = vadd.f32 0.0, %v6672
  %v6674 = vpop.f32.mrf.mxu0
  %v6675 = vadd.f32 0.0, %v6674
  %6676 = vmatmul.bf16.gmra.mxu0 %v5935
  %v6677 = vpop.f32.mrf.mxu0
  %v6678 = vadd.f32 0.0, %v6677
  %v6679 = vpop.f32.mrf.mxu0
  %v6680 = vadd.f32 0.0, %v6679
  %6681 = vmatmul.bf16.gmra.mxu0 %v5936
  %v6682 = vpop.f32.mrf.mxu0
  %v6683 = vadd.f32 0.0, %v6682
  %v6684 = vpop.f32.mrf.mxu0
  %v6685 = vadd.f32 0.0, %v6684
  %6686 = vmatmul.bf16.gmra.mxu0 %v5937
  %v6687 = vpop.f32.mrf.mxu0
  %v6688 = vadd.f32 0.0, %v6687
  %v6689 = vpop.f32.mrf.mxu0
  %v6690 = vadd.f32 0.0, %v6689
  %6691 = vdwg.mxu0
  %v6692 = vpack.c.bf16 %v6673, %v6673
  %v6693 = vpack.c.bf16 %v6675, %v6675
  %v6694 = vpack.c.bf16 %v6678, %v6678
  %v6695 = vpack.c.bf16 %v6680, %v6680
  %v6696 = vpack.c.bf16 %v6683, %v6683
  %v6697 = vpack.c.bf16 %v6685, %v6685
  %v6698 = vpack.c.bf16 %v6688, %v6688
  %v6699 = vpack.c.bf16 %v6690, %v6690
  %6700 = vst [vmem:[#allocation2 + $0xc0] sm:$0xf] %v6692
  %6701 = vst [vmem:[#allocation2 + $0xc4] sm:$0xf] %v6693
  %6702 = vst [vmem:[#allocation2 + $0xc8] sm:$0xf] %v6694
  %6703 = vst [vmem:[#allocation2 + $0xcc] sm:$0xf] %v6695
  %6704 = vst [vmem:[#allocation2 + $0xd0] sm:$0xf] %v6696
  %6705 = vst [vmem:[#allocation2 + $0xd4] sm:$0xf] %v6697
  %6706 = vst [vmem:[#allocation2 + $0xd8] sm:$0xf] %v6698
  %6707 = vst [vmem:[#allocation2 + $0xdc] sm:$0xf] %v6699
  %s6708 = scalar_lea.vmem %s2, 2496
  %v6709 = vld [vmem:[%s6708] sm:$0xf]
  %v6710 = vld [vmem:[%s6708 + $0x4] sm:$0xf]
  %v6711 = vld [vmem:[%s6708 + $0x8] sm:$0xf]
  %v6712 = vld [vmem:[%s6708 + $0xc] sm:$0xf]
  %v6713 = vld [vmem:[%s6708 + $0x10] sm:$0xf]
  %v6714 = vld [vmem:[%s6708 + $0x14] sm:$0xf]
  %v6715 = vld [vmem:[%s6708 + $0x18] sm:$0xf]
  %v6716 = vld [vmem:[%s6708 + $0x1c] sm:$0xf]
  %v6717 = vld [vmem:[%s6708 + $0x20] sm:$0xf]
  %v6718 = vld [vmem:[%s6708 + $0x24] sm:$0xf]
  %v6719 = vld [vmem:[%s6708 + $0x28] sm:$0xf]
  %v6720 = vld [vmem:[%s6708 + $0x2c] sm:$0xf]
  %v6721 = vld [vmem:[%s6708 + $0x30] sm:$0xf]
  %v6722 = vld [vmem:[%s6708 + $0x34] sm:$0xf]
  %v6723 = vld [vmem:[%s6708 + $0x38] sm:$0xf]
  %v6724 = vld [vmem:[%s6708 + $0x3c] sm:$0xf]
  %v6741 = vunpack.c.l.b16 %v6709
  %v6742 = vunpack.c.l.b16 %v6710
  %v6743 = vunpack.c.l.b16 %v6711
  %v6744 = vunpack.c.l.b16 %v6712
  %v6745 = vunpack.c.l.b16 %v6713
  %v6746 = vunpack.c.l.b16 %v6714
  %v6747 = vunpack.c.l.b16 %v6715
  %v6748 = vunpack.c.l.b16 %v6716
  %v6749 = vunpack.c.l.b16 %v6717
  %v6750 = vunpack.c.l.b16 %v6718
  %v6751 = vunpack.c.l.b16 %v6719
  %v6752 = vunpack.c.l.b16 %v6720
  %v6753 = vunpack.c.l.b16 %v6721
  %v6754 = vunpack.c.l.b16 %v6722
  %v6755 = vunpack.c.l.b16 %v6723
  %v6756 = vunpack.c.l.b16 %v6724
  %v6757 = vpack.c.b16 %v6742, %v6741
  %v6758 = vpack.c.b16 %v6744, %v6743
  %v6759 = vpack.c.b16 %v6746, %v6745
  %v6760 = vpack.c.b16 %v6748, %v6747
  %v6761 = vpack.c.b16 %v6750, %v6749
  %v6762 = vpack.c.b16 %v6752, %v6751
  %v6763 = vpack.c.b16 %v6754, %v6753
  %v6764 = vpack.c.b16 %v6756, %v6755
  %6773 = vmatpush.bf16.msra.mxu0 %v6764
  %6774 = vmatpush.bf16.msra.mxu0 %v6763
  %6775 = vmatpush.bf16.msra.mxu0 %v6762
  %6776 = vmatpush.bf16.msra.mxu0 %v6761
  %6777 = vmatpush.bf16.msra.mxu0 %v6760
  %6778 = vmatpush.bf16.msra.mxu0 %v6759
  %6779 = vmatpush.bf16.msra.mxu0 %v6758
  %6780 = vmatpush.bf16.msra.mxu0 %v6757
  %6781 = vmatmul.bf16.gmra.mxu0 %v5934
  %v6782 = vpop.f32.mrf.mxu0
  %v6783 = vadd.f32 0.0, %v6782
  %v6784 = vpop.f32.mrf.mxu0
  %v6785 = vadd.f32 0.0, %v6784
  %6786 = vmatmul.bf16.gmra.mxu0 %v5935
  %v6787 = vpop.f32.mrf.mxu0
  %v6788 = vadd.f32 0.0, %v6787
  %v6789 = vpop.f32.mrf.mxu0
  %v6790 = vadd.f32 0.0, %v6789
  %6791 = vmatmul.bf16.gmra.mxu0 %v5936
  %v6792 = vpop.f32.mrf.mxu0
  %v6793 = vadd.f32 0.0, %v6792
  %v6794 = vpop.f32.mrf.mxu0
  %v6795 = vadd.f32 0.0, %v6794
  %6796 = vmatmul.bf16.gmra.mxu0 %v5937
  %v6797 = vpop.f32.mrf.mxu0
  %v6798 = vadd.f32 0.0, %v6797
  %v6799 = vpop.f32.mrf.mxu0
  %v6800 = vadd.f32 0.0, %v6799
  %6801 = vdwg.mxu0
  %v6802 = vpack.c.bf16 %v6783, %v6783
  %v6803 = vpack.c.bf16 %v6785, %v6785
  %v6804 = vpack.c.bf16 %v6788, %v6788
  %v6805 = vpack.c.bf16 %v6790, %v6790
  %v6806 = vpack.c.bf16 %v6793, %v6793
  %v6807 = vpack.c.bf16 %v6795, %v6795
  %v6808 = vpack.c.bf16 %v6798, %v6798
  %v6809 = vpack.c.bf16 %v6800, %v6800
  %6810 = vst [vmem:[#allocation2 + $0xe0] sm:$0xf] %v6802
  %6811 = vst [vmem:[#allocation2 + $0xe4] sm:$0xf] %v6803
  %6812 = vst [vmem:[#allocation2 + $0xe8] sm:$0xf] %v6804
  %6813 = vst [vmem:[#allocation2 + $0xec] sm:$0xf] %v6805
  %6814 = vst [vmem:[#allocation2 + $0xf0] sm:$0xf] %v6806
  %6815 = vst [vmem:[#allocation2 + $0xf4] sm:$0xf] %v6807
  %6816 = vst [vmem:[#allocation2 + $0xf8] sm:$0xf] %v6808
  %6817 = vst [vmem:[#allocation2 + $0xfc] sm:$0xf] %v6809
  %v6818 = vld [vmem:[#allocation2] sm:$0xf]
  %v6819 = vld [vmem:[#allocation2 + $0x4] sm:$0xf]
  %v6820 = vld [vmem:[#allocation2 + $0x8] sm:$0xf]
  %v6821 = vld [vmem:[#allocation2 + $0xc] sm:$0xf]
  %v6822 = vld [vmem:[#allocation2 + $0x10] sm:$0xf]
  %v6823 = vld [vmem:[#allocation2 + $0x14] sm:$0xf]
  %v6824 = vld [vmem:[#allocation2 + $0x18] sm:$0xf]
  %v6825 = vld [vmem:[#allocation2 + $0x1c] sm:$0xf]
  %v6826 = vld [vmem:[#allocation2 + $0x20] sm:$0xf]
  %v6827 = vld [vmem:[#allocation2 + $0x24] sm:$0xf]
  %v6828 = vld [vmem:[#allocation2 + $0x28] sm:$0xf]
  %v6829 = vld [vmem:[#allocation2 + $0x2c] sm:$0xf]
  %v6830 = vld [vmem:[#allocation2 + $0x30] sm:$0xf]
  %v6831 = vld [vmem:[#allocation2 + $0x34] sm:$0xf]
  %v6832 = vld [vmem:[#allocation2 + $0x38] sm:$0xf]
  %v6833 = vld [vmem:[#allocation2 + $0x3c] sm:$0xf]
  %v6834 = vld [vmem:[#allocation2 + $0x40] sm:$0xf]
  %v6835 = vld [vmem:[#allocation2 + $0x44] sm:$0xf]
  %v6836 = vld [vmem:[#allocation2 + $0x48] sm:$0xf]
  %v6837 = vld [vmem:[#allocation2 + $0x4c] sm:$0xf]
  %v6838 = vld [vmem:[#allocation2 + $0x50] sm:$0xf]
  %v6839 = vld [vmem:[#allocation2 + $0x54] sm:$0xf]
  %v6840 = vld [vmem:[#allocation2 + $0x58] sm:$0xf]
  %v6841 = vld [vmem:[#allocation2 + $0x5c] sm:$0xf]
  %v6842 = vld [vmem:[#allocation2 + $0x60] sm:$0xf]
  %v6843 = vld [vmem:[#allocation2 + $0x64] sm:$0xf]
  %v6844 = vld [vmem:[#allocation2 + $0x68] sm:$0xf]
  %v6845 = vld [vmem:[#allocation2 + $0x6c] sm:$0xf]
  %v6846 = vld [vmem:[#allocation2 + $0x70] sm:$0xf]
  %v6847 = vld [vmem:[#allocation2 + $0x74] sm:$0xf]
  %v6848 = vld [vmem:[#allocation2 + $0x78] sm:$0xf]
  %v6849 = vld [vmem:[#allocation2 + $0x7c] sm:$0xf]
  %v6850 = vld [vmem:[#allocation2 + $0x80] sm:$0xf]
  %v6851 = vld [vmem:[#allocation2 + $0x84] sm:$0xf]
  %v6852 = vld [vmem:[#allocation2 + $0x88] sm:$0xf]
  %v6853 = vld [vmem:[#allocation2 + $0x8c] sm:$0xf]
  %v6854 = vld [vmem:[#allocation2 + $0x90] sm:$0xf]
  %v6855 = vld [vmem:[#allocation2 + $0x94] sm:$0xf]
  %v6856 = vld [vmem:[#allocation2 + $0x98] sm:$0xf]
  %v6857 = vld [vmem:[#allocation2 + $0x9c] sm:$0xf]
  %v6858 = vld [vmem:[#allocation2 + $0xa0] sm:$0xf]
  %v6859 = vld [vmem:[#allocation2 + $0xa4] sm:$0xf]
  %v6860 = vld [vmem:[#allocation2 + $0xa8] sm:$0xf]
  %v6861 = vld [vmem:[#allocation2 + $0xac] sm:$0xf]
  %v6862 = vld [vmem:[#allocation2 + $0xb0] sm:$0xf]
  %v6863 = vld [vmem:[#allocation2 + $0xb4] sm:$0xf]
  %v6864 = vld [vmem:[#allocation2 + $0xb8] sm:$0xf]
  %v6865 = vld [vmem:[#allocation2 + $0xbc] sm:$0xf]
  %v6866 = vld [vmem:[#allocation2 + $0xc0] sm:$0xf]
  %v6867 = vld [vmem:[#allocation2 + $0xc4] sm:$0xf]
  %v6868 = vld [vmem:[#allocation2 + $0xc8] sm:$0xf]
  %v6869 = vld [vmem:[#allocation2 + $0xcc] sm:$0xf]
  %v6870 = vld [vmem:[#allocation2 + $0xd0] sm:$0xf]
  %v6871 = vld [vmem:[#allocation2 + $0xd4] sm:$0xf]
  %v6872 = vld [vmem:[#allocation2 + $0xd8] sm:$0xf]
  %v6873 = vld [vmem:[#allocation2 + $0xdc] sm:$0xf]
  %v6874 = vld [vmem:[#allocation2 + $0xe0] sm:$0xf]
  %v6875 = vld [vmem:[#allocation2 + $0xe4] sm:$0xf]
  %v6876 = vld [vmem:[#allocation2 + $0xe8] sm:$0xf]
  %v6877 = vld [vmem:[#allocation2 + $0xec] sm:$0xf]
  %v6878 = vld [vmem:[#allocation2 + $0xf0] sm:$0xf]
  %v6879 = vld [vmem:[#allocation2 + $0xf4] sm:$0xf]
  %v6880 = vld [vmem:[#allocation2 + $0xf8] sm:$0xf]
  %v6881 = vld [vmem:[#allocation2 + $0xfc] sm:$0xf]
  %v6946 = vunpack.c.l.b16 %v6818
  %v6947 = vunpack.c.l.b16 %v6819
  %v6948 = vunpack.c.l.b16 %v6820
  %v6949 = vunpack.c.l.b16 %v6821
  %v6950 = vunpack.c.l.b16 %v6822
  %v6951 = vunpack.c.l.b16 %v6823
  %v6952 = vunpack.c.l.b16 %v6824
  %v6953 = vunpack.c.l.b16 %v6825
  %v6954 = vunpack.c.l.b16 %v6826
  %v6955 = vunpack.c.l.b16 %v6827
  %v6956 = vunpack.c.l.b16 %v6828
  %v6957 = vunpack.c.l.b16 %v6829
  %v6958 = vunpack.c.l.b16 %v6830
  %v6959 = vunpack.c.l.b16 %v6831
  %v6960 = vunpack.c.l.b16 %v6832
  %v6961 = vunpack.c.l.b16 %v6833
  %v6962 = vunpack.c.l.b16 %v6834
  %v6963 = vunpack.c.l.b16 %v6835
  %v6964 = vunpack.c.l.b16 %v6836
  %v6965 = vunpack.c.l.b16 %v6837
  %v6966 = vunpack.c.l.b16 %v6838
  %v6967 = vunpack.c.l.b16 %v6839
  %v6968 = vunpack.c.l.b16 %v6840
  %v6969 = vunpack.c.l.b16 %v6841
  %v6970 = vunpack.c.l.b16 %v6842
  %v6971 = vunpack.c.l.b16 %v6843
  %v6972 = vunpack.c.l.b16 %v6844
  %v6973 = vunpack.c.l.b16 %v6845
  %v6974 = vunpack.c.l.b16 %v6846
  %v6975 = vunpack.c.l.b16 %v6847
  %v6976 = vunpack.c.l.b16 %v6848
  %v6977 = vunpack.c.l.b16 %v6849
  %v6978 = vunpack.c.l.b16 %v6850
  %v6979 = vunpack.c.l.b16 %v6851
  %v6980 = vunpack.c.l.b16 %v6852
  %v6981 = vunpack.c.l.b16 %v6853
  %v6982 = vunpack.c.l.b16 %v6854
  %v6983 = vunpack.c.l.b16 %v6855
  %v6984 = vunpack.c.l.b16 %v6856
  %v6985 = vunpack.c.l.b16 %v6857
  %v6986 = vunpack.c.l.b16 %v6858
  %v6987 = vunpack.c.l.b16 %v6859
  %v6988 = vunpack.c.l.b16 %v6860
  %v6989 = vunpack.c.l.b16 %v6861
  %v6990 = vunpack.c.l.b16 %v6862
  %v6991 = vunpack.c.l.b16 %v6863
  %v6992 = vunpack.c.l.b16 %v6864
  %v6993 = vunpack.c.l.b16 %v6865
  %v6994 = vunpack.c.l.b16 %v6866
  %v6995 = vunpack.c.l.b16 %v6867
  %v6996 = vunpack.c.l.b16 %v6868
  %v6997 = vunpack.c.l.b16 %v6869
  %v6998 = vunpack.c.l.b16 %v6870
  %v6999 = vunpack.c.l.b16 %v6871
  %v7000 = vunpack.c.l.b16 %v6872
  %v7001 = vunpack.c.l.b16 %v6873
  %v7002 = vunpack.c.l.b16 %v6874
  %v7003 = vunpack.c.l.b16 %v6875
  %v7004 = vunpack.c.l.b16 %v6876
  %v7005 = vunpack.c.l.b16 %v6877
  %v7006 = vunpack.c.l.b16 %v6878
  %v7007 = vunpack.c.l.b16 %v6879
  %v7008 = vunpack.c.l.b16 %v6880
  %v7009 = vunpack.c.l.b16 %v6881
  %v7010 = vpack.c.b16 %v6947, %v6946
  %v7011 = vpack.c.b16 %v6949, %v6948
  %v7012 = vpack.c.b16 %v6951, %v6950
  %v7013 = vpack.c.b16 %v6953, %v6952
  %v7014 = vpack.c.b16 %v6955, %v6954
  %v7015 = vpack.c.b16 %v6957, %v6956
  %v7016 = vpack.c.b16 %v6959, %v6958
  %v7017 = vpack.c.b16 %v6961, %v6960
  %v7018 = vpack.c.b16 %v6963, %v6962
  %v7019 = vpack.c.b16 %v6965, %v6964
  %v7020 = vpack.c.b16 %v6967, %v6966
  %v7021 = vpack.c.b16 %v6969, %v6968
  %v7022 = vpack.c.b16 %v6971, %v6970
  %v7023 = vpack.c.b16 %v6973, %v6972
  %v7024 = vpack.c.b16 %v6975, %v6974
  %v7025 = vpack.c.b16 %v6977, %v6976
  %v7026 = vpack.c.b16 %v6979, %v6978
  %v7027 = vpack.c.b16 %v6981, %v6980
  %v7028 = vpack.c.b16 %v6983, %v6982
  %v7029 = vpack.c.b16 %v6985, %v6984
  %v7030 = vpack.c.b16 %v6987, %v6986
  %v7031 = vpack.c.b16 %v6989, %v6988
  %v7032 = vpack.c.b16 %v6991, %v6990
  %v7033 = vpack.c.b16 %v6993, %v6992
  %v7034 = vpack.c.b16 %v6995, %v6994
  %v7035 = vpack.c.b16 %v6997, %v6996
  %v7036 = vpack.c.b16 %v6999, %v6998
  %v7037 = vpack.c.b16 %v7001, %v7000
  %v7038 = vpack.c.b16 %v7003, %v7002
  %v7039 = vpack.c.b16 %v7005, %v7004
  %v7040 = vpack.c.b16 %v7007, %v7006
  %v7041 = vpack.c.b16 %v7009, %v7008
  %7074 = vmatpush.bf16.msra.mxu0 %v7017
  %7075 = vmatpush.bf16.msra.mxu0 %v7016
  %7076 = vmatpush.bf16.msra.mxu0 %v7015
  %7077 = vmatpush.bf16.msra.mxu0 %v7014
  %7078 = vmatpush.bf16.msra.mxu0 %v7013
  %7079 = vmatpush.bf16.msra.mxu0 %v7012
  %7080 = vmatpush.bf16.msra.mxu0 %v7011
  %7081 = vmatpush.bf16.msra.mxu0 %v7010
  %7082 = vmatmul.bf16.gmra.mxu0 %v1064
  %v7083 = vpop.f32.mrf.mxu0
  %v7084 = vadd.f32 0.0, %v7083
  %v7085 = vpop.f32.mrf.mxu0
  %v7086 = vadd.f32 0.0, %v7085
  %7087 = vmatmul.bf16.gmra.mxu0 %v1068
  %v7088 = vpop.f32.mrf.mxu0
  %v7089 = vadd.f32 0.0, %v7088
  %v7090 = vpop.f32.mrf.mxu0
  %v7091 = vadd.f32 0.0, %v7090
  %7092 = vmatmul.bf16.gmra.mxu0 %v1072
  %v7093 = vpop.f32.mrf.mxu0
  %v7094 = vadd.f32 0.0, %v7093
  %v7095 = vpop.f32.mrf.mxu0
  %v7096 = vadd.f32 0.0, %v7095
  %7097 = vmatmul.bf16.gmra.mxu0 %v1076
  %v7098 = vpop.f32.mrf.mxu0
  %v7099 = vadd.f32 0.0, %v7098
  %v7100 = vpop.f32.mrf.mxu0
  %v7101 = vadd.f32 0.0, %v7100
  %7102 = vdwg.mxu0
  %7103 = vmatpush.bf16.msra.mxu0 %v7025
  %7104 = vmatpush.bf16.msra.mxu0 %v7024
  %7105 = vmatpush.bf16.msra.mxu0 %v7023
  %7106 = vmatpush.bf16.msra.mxu0 %v7022
  %7107 = vmatpush.bf16.msra.mxu0 %v7021
  %7108 = vmatpush.bf16.msra.mxu0 %v7020
  %7109 = vmatpush.bf16.msra.mxu0 %v7019
  %7110 = vmatpush.bf16.msra.mxu0 %v7018
  %7111 = vmatmul.bf16.gmra.mxu0 %v1065
  %v7112 = vpop.f32.mrf.mxu0
  %v7113 = vadd.f32 %v7084, %v7112
  %v7114 = vpop.f32.mrf.mxu0
  %v7115 = vadd.f32 %v7086, %v7114
  %7116 = vmatmul.bf16.gmra.mxu0 %v1069
  %v7117 = vpop.f32.mrf.mxu0
  %v7118 = vadd.f32 %v7089, %v7117
  %v7119 = vpop.f32.mrf.mxu0
  %v7120 = vadd.f32 %v7091, %v7119
  %7121 = vmatmul.bf16.gmra.mxu0 %v1073
  %v7122 = vpop.f32.mrf.mxu0
  %v7123 = vadd.f32 %v7094, %v7122
  %v7124 = vpop.f32.mrf.mxu0
  %v7125 = vadd.f32 %v7096, %v7124
  %7126 = vmatmul.bf16.gmra.mxu0 %v1077
  %v7127 = vpop.f32.mrf.mxu0
  %v7128 = vadd.f32 %v7099, %v7127
  %v7129 = vpop.f32.mrf.mxu0
  %v7130 = vadd.f32 %v7101, %v7129
  %7131 = vdwg.mxu0
  %7132 = vmatpush.bf16.msra.mxu0 %v7033
  %7133 = vmatpush.bf16.msra.mxu0 %v7032
  %7134 = vmatpush.bf16.msra.mxu0 %v7031
  %7135 = vmatpush.bf16.msra.mxu0 %v7030
  %7136 = vmatpush.bf16.msra.mxu0 %v7029
  %7137 = vmatpush.bf16.msra.mxu0 %v7028
  %7138 = vmatpush.bf16.msra.mxu0 %v7027
  %7139 = vmatpush.bf16.msra.mxu0 %v7026
  %7140 = vmatmul.bf16.gmra.mxu0 %v1066
  %v7141 = vpop.f32.mrf.mxu0
  %v7142 = vadd.f32 %v7113, %v7141
  %v7143 = vpop.f32.mrf.mxu0
  %v7144 = vadd.f32 %v7115, %v7143
  %7145 = vmatmul.bf16.gmra.mxu0 %v1070
  %v7146 = vpop.f32.mrf.mxu0
  %v7147 = vadd.f32 %v7118, %v7146
  %v7148 = vpop.f32.mrf.mxu0
  %v7149 = vadd.f32 %v7120, %v7148
  %7150 = vmatmul.bf16.gmra.mxu0 %v1074
  %v7151 = vpop.f32.mrf.mxu0
  %v7152 = vadd.f32 %v7123, %v7151
  %v7153 = vpop.f32.mrf.mxu0
  %v7154 = vadd.f32 %v7125, %v7153
  %7155 = vmatmul.bf16.gmra.mxu0 %v1078
  %v7156 = vpop.f32.mrf.mxu0
  %v7157 = vadd.f32 %v7128, %v7156
  %v7158 = vpop.f32.mrf.mxu0
  %v7159 = vadd.f32 %v7130, %v7158
  %7160 = vdwg.mxu0
  %7161 = vmatpush.bf16.msra.mxu0 %v7041
  %7162 = vmatpush.bf16.msra.mxu0 %v7040
  %7163 = vmatpush.bf16.msra.mxu0 %v7039
  %7164 = vmatpush.bf16.msra.mxu0 %v7038
  %7165 = vmatpush.bf16.msra.mxu0 %v7037
  %7166 = vmatpush.bf16.msra.mxu0 %v7036
  %7167 = vmatpush.bf16.msra.mxu0 %v7035
  %7168 = vmatpush.bf16.msra.mxu0 %v7034
  %7169 = vmatmul.bf16.gmra.mxu0 %v1067
  %v7170 = vpop.f32.mrf.mxu0
  %v7171 = vadd.f32 %v7142, %v7170
  %v7172 = vpop.f32.mrf.mxu0
  %v7173 = vadd.f32 %v7144, %v7172
  %7174 = vmatmul.bf16.gmra.mxu0 %v1071
  %v7175 = vpop.f32.mrf.mxu0
  %v7176 = vadd.f32 %v7147, %v7175
  %v7177 = vpop.f32.mrf.mxu0
  %v7178 = vadd.f32 %v7149, %v7177
  %7179 = vmatmul.bf16.gmra.mxu0 %v1075
  %v7180 = vpop.f32.mrf.mxu0
  %v7181 = vadd.f32 %v7152, %v7180
  %v7182 = vpop.f32.mrf.mxu0
  %v7183 = vadd.f32 %v7154, %v7182
  %7184 = vmatmul.bf16.gmra.mxu0 %v1079
  %v7185 = vpop.f32.mrf.mxu0
  %v7186 = vadd.f32 %v7157, %v7185
  %v7187 = vpop.f32.mrf.mxu0
  %v7188 = vadd.f32 %v7159, %v7187
  %7189 = vdwg.mxu0
  %v7190 = vmul.f32 %v7171, %v1407
  %v7191 = vmul.f32 %v7173, %v1412
  %v7192 = vmul.f32 %v7176, %v1417
  %v7193 = vmul.f32 %v7178, %v1422
  %v7194 = vmul.f32 %v7181, %v1427
  %v7195 = vmul.f32 %v7183, %v1432
  %v7196 = vmul.f32 %v7186, %v1437
  %v7197 = vmul.f32 %v7188, %v1442
  %vm7198 = vcmp.gt.f32.partialorder %v7190, 0.0
  %vm7199 = vcmp.gt.f32.partialorder %v7191, 0.0
  %vm7200 = vcmp.gt.f32.partialorder %v7192, 0.0
  %vm7201 = vcmp.gt.f32.partialorder %v7193, 0.0
  %vm7202 = vcmp.gt.f32.partialorder %v7194, 0.0
  %vm7203 = vcmp.gt.f32.partialorder %v7195, 0.0
  %vm7204 = vcmp.gt.f32.partialorder %v7196, 0.0
  %vm7205 = vcmp.gt.f32.partialorder %v7197, 0.0
  %v7206 = vmin.f32 %v7190, 0.0
  %v7207 = vmin.f32 %v7191, 0.0
  %v7208 = vmin.f32 %v7192, 0.0
  %v7209 = vmin.f32 %v7193, 0.0
  %v7210 = vmin.f32 %v7194, 0.0
  %v7211 = vmin.f32 %v7195, 0.0
  %v7212 = vmin.f32 %v7196, 0.0
  %v7213 = vmin.f32 %v7197, 0.0
  %v7214 = vmul.f32 %v7206, 1.442695
  %v7215 = vpow.pop %v7214
  %v7216 = vmul.f32 %v7207, 1.442695
  %v7217 = vpow.pop %v7216
  %v7218 = vmul.f32 %v7208, 1.442695
  %v7219 = vpow.pop %v7218
  %v7220 = vmul.f32 %v7209, 1.442695
  %v7221 = vpow.pop %v7220
  %v7222 = vmul.f32 %v7210, 1.442695
  %v7223 = vpow.pop %v7222
  %v7224 = vmul.f32 %v7211, 1.442695
  %v7225 = vpow.pop %v7224
  %v7226 = vmul.f32 %v7212, 1.442695
  %v7227 = vpow.pop %v7226
  %v7228 = vmul.f32 %v7213, 1.442695
  %v7229 = vpow.pop %v7228
  %v7230 = vsub.f32 %v7215, 1.0
  %v7231 = vsub.f32 %v7217, 1.0
  %v7232 = vsub.f32 %v7219, 1.0
  %v7233 = vsub.f32 %v7221, 1.0
  %v7234 = vsub.f32 %v7223, 1.0
  %v7235 = vsub.f32 %v7225, 1.0
  %v7236 = vsub.f32 %v7227, 1.0
  %v7237 = vsub.f32 %v7229, 1.0
  %v7238 = vsel %vm7198, %v7190, %v7230
  %v7239 = vsel %vm7199, %v7191, %v7231
  %v7240 = vsel %vm7200, %v7192, %v7232
  %v7241 = vsel %vm7201, %v7193, %v7233
  %v7242 = vsel %vm7202, %v7194, %v7234
  %v7243 = vsel %vm7203, %v7195, %v7235
  %v7244 = vsel %vm7204, %v7196, %v7236
  %v7245 = vsel %vm7205, %v7197, %v7237
  %v7246 = vmul.f32 %v7238, %v1503
  %v7247 = vmul.f32 %v7239, %v1508
  %v7248 = vmul.f32 %v7240, %v1513
  %v7249 = vmul.f32 %v7241, %v1518
  %v7250 = vmul.f32 %v7242, %v1523
  %v7251 = vmul.f32 %v7243, %v1528
  %v7252 = vmul.f32 %v7244, %v1533
  %v7253 = vmul.f32 %v7245, %v1538
  %v7254 = vadd.f32 %v7246, %v7247
  %v7255 = vadd.f32 %v7254, %v7248
  %v7256 = vadd.f32 %v7255, %v7249
  %v7257 = vadd.f32 %v7256, %v7250
  %v7258 = vadd.f32 %v7257, %v7251
  %v7259 = vadd.f32 %v7258, %v7252
  %v7260 = vadd.f32 %v7259, %v7253
  %v7261 = vrot.slane %v7260, 4
  %v7262 = vadd.f32 %v7260, %v7261
  %v7263 = vrot.slane %v7262, 2
  %v7264 = vadd.f32 %v7262, %v7263
  %v7265 = vrot.slane %v7264, 1
  %v7266 = vadd.f32 %v7264, %v7265
  %v7267 = vmul.f32 %v7266, 0.015625
  %v7268 = vsub.f32 %v7238, %v7267
  %v7269 = vsub.f32 %v7239, %v7267
  %v7270 = vsub.f32 %v7240, %v7267
  %v7271 = vsub.f32 %v7241, %v7267
  %v7272 = vsub.f32 %v7242, %v7267
  %v7273 = vsub.f32 %v7243, %v7267
  %v7274 = vsub.f32 %v7244, %v7267
  %v7275 = vsub.f32 %v7245, %v7267
  %v7276 = vmul.f32 %v7268, %v1503
  %v7277 = vmul.f32 %v7269, %v1508
  %v7278 = vmul.f32 %v7270, %v1513
  %v7279 = vmul.f32 %v7271, %v1518
  %v7280 = vmul.f32 %v7272, %v1523
  %v7281 = vmul.f32 %v7273, %v1528
  %v7282 = vmul.f32 %v7274, %v1533
  %v7283 = vmul.f32 %v7275, %v1538
  %v7284 = vmul.f32 %v7276, %v7276
  %v7285 = vmul.f32 %v7277, %v7277
  %v7286 = vmul.f32 %v7278, %v7278
  %v7287 = vmul.f32 %v7279, %v7279
  %v7288 = vmul.f32 %v7280, %v7280
  %v7289 = vmul.f32 %v7281, %v7281
  %v7290 = vmul.f32 %v7282, %v7282
  %v7291 = vmul.f32 %v7283, %v7283
  %v7292 = vadd.f32 %v7284, %v7285
  %v7293 = vadd.f32 %v7292, %v7286
  %v7294 = vadd.f32 %v7293, %v7287
  %v7295 = vadd.f32 %v7294, %v7288
  %v7296 = vadd.f32 %v7295, %v7289
  %v7297 = vadd.f32 %v7296, %v7290
  %v7298 = vadd.f32 %v7297, %v7291
  %v7299 = vrot.slane %v7298, 4
  %v7300 = vadd.f32 %v7298, %v7299
  %v7301 = vrot.slane %v7300, 2
  %v7302 = vadd.f32 %v7300, %v7301
  %v7303 = vrot.slane %v7302, 1
  %v7304 = vadd.f32 %v7302, %v7303
  %v7305 = vmul.f32 %v7304, 0.015625
  %v7306 = vadd.f32 %v7305, 1e-05
  %v7307 = vrsqrt.pop %v7306
  %v7308 = vmul.f32 %v7307, %v7306
  %v7309 = vmul.f32 %v7308, %v7307
  %v7310 = vmul.f32 0.5, %v7309
  %v7311 = vsub.f32 1.5, %v7310
  %v7312 = vmul.f32 %v7307, %v7311
  %vm7313 = vweird.f32 %v7306
  %vm7314 = vweird.f32 %v7307
  %vm7315 = vmor %vm7313, %vm7314
  %v7316 = vsel %vm7315, %v7307, %v7312
  %v7317 = vmul.f32 %v7268, %v7316
  %v7318 = vmul.f32 %v7269, %v7316
  %v7319 = vmul.f32 %v7270, %v7316
  %v7320 = vmul.f32 %v7271, %v7316
  %v7321 = vmul.f32 %v7272, %v7316
  %v7322 = vmul.f32 %v7273, %v7316
  %v7323 = vmul.f32 %v7274, %v7316
  %v7324 = vmul.f32 %v7275, %v7316
  %s7325 = scalar_lea.vmem %s3, 4
  %v7326 = vld [vmem:[%s7325] sm:$0x1]
  %v7328 = vperm.slane %v7326, 0
  %v7330 = vmul.f32 %v7317, %v7328
  %v7331 = vmul.f32 %v7318, %v7328
  %v7332 = vmul.f32 %v7319, %v7328
  %v7333 = vmul.f32 %v7320, %v7328
  %v7334 = vmul.f32 %v7321, %v7328
  %v7335 = vmul.f32 %v7322, %v7328
  %v7336 = vmul.f32 %v7323, %v7328
  %v7337 = vmul.f32 %v7324, %v7328
  %s7338 = scalar_lea.vmem %s4, 4
  %v7339 = vld [vmem:[%s7338] sm:$0x1]
  %v7341 = vperm.slane %v7339, 0
  %v7343 = vadd.f32 %v7330, %v7341
  %v7344 = vadd.f32 %v7331, %v7341
  %v7345 = vadd.f32 %v7332, %v7341
  %v7346 = vadd.f32 %v7333, %v7341
  %v7347 = vadd.f32 %v7334, %v7341
  %v7348 = vadd.f32 %v7335, %v7341
  %v7349 = vadd.f32 %v7336, %v7341
  %v7350 = vadd.f32 %v7337, %v7341
  %v7351 = vmul.f32 %v7343, %v1503
  %v7352 = vmul.f32 %v7344, %v1508
  %v7353 = vmul.f32 %v7345, %v1513
  %v7354 = vmul.f32 %v7346, %v1518
  %v7355 = vmul.f32 %v7347, %v1523
  %v7356 = vmul.f32 %v7348, %v1528
  %v7357 = vmul.f32 %v7349, %v1533
  %v7358 = vmul.f32 %v7350, %v1538
  %v7359 = vld [vmem:[%s7] sm:$0xff]
  %v7360 = vld [vmem:[%s7 + $0x8] sm:$0xff]
  %v7361 = vld [vmem:[%s7 + $0x10] sm:$0xff]
  %v7362 = vld [vmem:[%s7 + $0x18] sm:$0xff]
  %v7363 = vld [vmem:[%s7 + $0x20] sm:$0xff]
  %v7364 = vld [vmem:[%s7 + $0x28] sm:$0xff]
  %v7365 = vld [vmem:[%s7 + $0x30] sm:$0xff]
  %v7366 = vld [vmem:[%s7 + $0x38] sm:$0xff]
  %vm7367 = vcmask 523264
  %v7369 = vsel %vm7367, %v7359, 0
  %v7372 = vsel %vm7367, %v7360, 0
  %v7375 = vsel %vm7367, %v7361, 0
  %v7378 = vsel %vm7367, %v7362, 0
  %v7381 = vsel %vm7367, %v7363, 0
  %v7384 = vsel %vm7367, %v7364, 0
  %v7387 = vsel %vm7367, %v7365, 0
  %v7390 = vsel %vm7367, %v7366, 0
  %7392 = vmatpush.msra.mxu0 0.0
  %7393 = vmatpush.msra.mxu0 0.0
  %7394 = vmatpush.msra.mxu0 0.0
  %7395 = vmatpush.msra.mxu0 0.0
  %7396 = vmatpush.msra.mxu0 0.0
  %7397 = vmatpush.msra.mxu0 0.0
  %7398 = vmatpush.msra.mxu0 0.0
  %7399 = vmatpush.msra.mxu0 0.0
  %7400 = vmatpush.msra.mxu0 %v7358
  %7401 = vmatpush.msra.mxu0 %v7357
  %7402 = vmatpush.msra.mxu0 %v7356
  %7403 = vmatpush.msra.mxu0 %v7355
  %7404 = vmatpush.msra.mxu0 %v7354
  %7405 = vmatpush.msra.mxu0 %v7353
  %7406 = vmatpush.msra.mxu0 %v7352
  %7407 = vmatpush.msra.mxu0 %v7351
  %7408 = vmatmul.f32.gmra.mxu0 %v7369
  %v7409 = vpop.f32.mrf.mxu0
  %v7410 = vadd.f32 0.0, %v7409
  %7411 = vmatmul.f32.gmra.mxu0 %v7372
  %v7412 = vpop.f32.mrf.mxu0
  %v7413 = vadd.f32 0.0, %v7412
  %7414 = vmatmul.f32.gmra.mxu0 %v7375
  %v7415 = vpop.f32.mrf.mxu0
  %v7416 = vadd.f32 0.0, %v7415
  %7417 = vmatmul.f32.gmra.mxu0 %v7378
  %v7418 = vpop.f32.mrf.mxu0
  %v7419 = vadd.f32 0.0, %v7418
  %7420 = vmatmul.f32.gmra.mxu0 %v7381
  %v7421 = vpop.f32.mrf.mxu0
  %v7422 = vadd.f32 0.0, %v7421
  %7423 = vmatmul.f32.gmra.mxu0 %v7384
  %v7424 = vpop.f32.mrf.mxu0
  %v7425 = vadd.f32 0.0, %v7424
  %7426 = vmatmul.f32.gmra.mxu0 %v7387
  %v7427 = vpop.f32.mrf.mxu0
  %v7428 = vadd.f32 0.0, %v7427
  %7429 = vmatmul.f32.gmra.mxu0 %v7390
  %v7430 = vpop.f32.mrf.mxu0
  %v7431 = vadd.f32 0.0, %v7430
  %7432 = vdwg.mxu0
  %7433 = vst [vmem:[%s8] sm:$0xff] %v7410
  %7434 = vst [vmem:[%s8 + $0x8] sm:$0xff] %v7413
  %7435 = vst [vmem:[%s8 + $0x10] sm:$0xff] %v7416
  %7436 = vst [vmem:[%s8 + $0x18] sm:$0xff] %v7419
  %7437 = vst [vmem:[%s8 + $0x20] sm:$0xff] %v7422
  %7438 = vst [vmem:[%s8 + $0x28] sm:$0xff] %v7425
  %7439 = vst [vmem:[%s8 + $0x30] sm:$0xff] %v7428
  %7440 = vst [vmem:[%s8 + $0x38] sm:$0xff] %v7431
  // Predicated region
  $region34: #{_device_forward.2} parent=0 // pred_check
    _
  $region35: #{_device_forward.2} parent=0 // pred_check_branch
    %7442 = sbr.rel (0) target = $region37
  $region36: #{_device_forward.2} parent=0 // pred_region
    _
  $region37: #{_device_forward.2} parent=0 // pred_fallthru
    _
  // Predicated region
  $region38: #{_device_forward.2} parent=0 // pred_check
    _
  $region39: #{_device_forward.2} parent=0 // pred_check_branch
    %7444 = sbr.rel (0) target = $region41
  $region40: #{_device_forward.2} parent=0 // pred_region
    _
  $region41: #{_device_forward.2} parent=0 // pred_fallthru
    _

</llo_original>
